<compile_context>
chip_gen: v6e
topology: v6e:2x2x1
jax: 0.10.0
libtpu: 0.0.40
codegen_flags: <defaults>
</compile_context>

<pallas_src>
import numpy as np

import jax
import jax.numpy as jnp
from jax.experimental import pallas as pl
from jax.experimental.pallas import tpu as pltpu


def _round_up(n, m):
    return ((n + m - 1) // m) * m


# ------------------------------- Pallas kernel -------------------------------

def _net_kernel(xp_ref, w1l_ref, b1_ref, w2l_ref, b2_ref,
                fc1w_ref, fc1b_ref, fc2w_ref, fc2b_ref, o_ref):
    """Fully fused LeNet forward for a block of SB samples.

    xp_ref  : [4, 7, SB, 28]  input rows split by (row mod 4); samples on sublanes
    w1l_ref : [5, 28, 512]    lowered conv1 weights; cols = 256*pw + (c*20 + co)
    b1_ref  : [1, 256]        conv1 bias tiled over the 12 pooled-W positions
    w2l_ref : [5, 256, 512]   lowered conv2 weights; cols = 256*qw + (c2*50 + co)
    b2_ref  : [1, 256]        conv2 bias tiled over the 4 pooled-W positions
    fc1w_ref: [4, 256, 512]   fc1 weights split by pooled row r2 (NCHW flatten folded)
    fc1b_ref: [1, 512]        fc1 bias (padded 500 -> 512)
    fc2w_ref: [512, 10]       fc2 weights (rows padded 500 -> 512)
    fc2b_ref: [1, 10]
    o_ref   : [SB, 10]        log-probabilities
    """
    sb = xp_ref.shape[2]
    f32 = jnp.float32
    bf16 = jnp.bfloat16

    w1l = [w1l_ref[kh] for kh in range(5)]          # each [28, 512] bf16
    w2l = [w2l_ref[kh] for kh in range(5)]          # each [256, 512] bf16

    # ---- conv1 + bias + relu + 2x2 max-pool --------------------------------
    # Pooled-row parity q selects the accumulator plane; W-pooling is the max of
    # the two 256-wide halves of each matmul result; H-pooling is the max over ph.
    # Bias/relu commute with max-pool, so they are applied after pooling.
    h1 = []                                         # h1[q]: [6, SB, 256] bf16
    for q in range(2):
        pooled = None
        for ph in range(2):
            acc = None
            for kh in range(5):
                t = 2 * q + ph + kh                 # input row = 4*s + t
                src = xp_ref[t % 4, t // 4:t // 4 + 6, :, :]       # [6, SB, 28]
                src = src.reshape(6 * sb, 28).astype(bf16)
                d = jnp.dot(src, w1l[kh], preferred_element_type=f32)
                acc = d if acc is None else acc + d                # [6*SB, 512]
            cand = jnp.maximum(acc[:, :256], acc[:, 256:])         # max over pw
            pooled = cand if pooled is None else jnp.maximum(pooled, cand)
        h = jnp.maximum(pooled + b1_ref[...], 0.0)                 # [6*SB, 256]
        h1.append(h.astype(bf16).reshape(6, sb, 256))

    # ---- conv2 + bias + relu + 2x2 max-pool --------------------------------
    pooled2 = None
    for qh in range(2):
        acc = None
        for kh in range(5):
            u = qh + kh                             # conv1-pooled row = 2*r2 + u
            src = h1[u % 2][u // 2:u // 2 + 4].reshape(4 * sb, 256)
            d = jnp.dot(src, w2l[kh], preferred_element_type=f32)
            acc = d if acc is None else acc + d                    # [4*SB, 512]
        cand = jnp.maximum(acc[:, :256], acc[:, 256:])             # max over qw
        pooled2 = cand if pooled2 is None else jnp.maximum(pooled2, cand)
    a2 = jnp.maximum(pooled2 + b2_ref[...], 0.0)                   # [4*SB, 256]
    a2 = a2.astype(bf16).reshape(4, sb, 256)                       # rows = (r2, n)

    # ---- fc1 + relu (NCHW flatten folded into per-r2 weight slices) --------
    hfc = None
    for r2 in range(4):
        d = jnp.dot(a2[r2], fc1w_ref[r2], preferred_element_type=f32)
        hfc = d if hfc is None else hfc + d                        # [SB, 512]
    hfc = jnp.maximum(hfc + fc1b_ref[...], 0.0).astype(bf16)

    # ---- fc2 + log_softmax --------------------------------------------------
    y = jnp.dot(hfc, fc2w_ref[...], preferred_element_type=f32) + fc2b_ref[...]
    m = jnp.max(y, axis=-1, keepdims=True)
    s = y - m
    o_ref[...] = s - jnp.log(jnp.sum(jnp.exp(s), axis=-1, keepdims=True))


# ------------------------------ kernel wrapper --------------------------------

def net_forward(x_nchw, prep, sb_max=48):
    """x_nchw: [B, 1, 28, 28] -> log-probs [B, 10]."""
    B = x_nchw.shape[0]
    x = x_nchw[:, 0, :, :].astype(jnp.float32)                     # [B, 28, 28]

    sb = max(8, min(sb_max, _round_up(B, 8)))                      # samples / step
    Bp = _round_up(B, sb)
    if Bp != B:
        x = jnp.pad(x, ((0, Bp - B), (0, 0), (0, 0)))

    # Split rows by (row mod 4) and put the sample dim on the sublanes so every
    # conv tap inside the kernel is a contiguous [6, SB, 28] slice (tiny XLA glue).
    xp = jnp.stack([x[:, r::4, :] for r in range(4)], axis=0)      # [4, Bp, 7, 28]
    xp = xp.transpose(0, 2, 1, 3)                                  # [4, 7, Bp, 28]

    out = pl.pallas_call(
        _net_kernel,
        out_shape=jax.ShapeDtypeStruct((Bp, 10), jnp.float32),
        grid=(Bp // sb,),
        in_specs=[
            pl.BlockSpec((4, 7, sb, 28), lambda i: (0, 0, i, 0)),
            pl.BlockSpec((5, 28, 512), lambda i: (0, 0, 0)),
            pl.BlockSpec((1, 256), lambda i: (0, 0)),
            pl.BlockSpec((5, 256, 512), lambda i: (0, 0, 0)),
            pl.BlockSpec((1, 256), lambda i: (0, 0)),
            pl.BlockSpec((4, 256, 512), lambda i: (0, 0, 0)),
            pl.BlockSpec((1, 512), lambda i: (0, 0)),
            pl.BlockSpec((512, 10), lambda i: (0, 0)),
            pl.BlockSpec((1, 10), lambda i: (0, 0)),
        ],
        out_specs=pl.BlockSpec((sb, 10), lambda i: (i, 0)),
        compiler_params=pltpu.CompilerParams(
            dimension_semantics=("parallel",),
            vmem_limit_bytes=32 * 1024 * 1024),
    )(xp, prep["w1l"], prep["b1t"], prep["w2l"], prep["b2t"],
      prep["fc1w"], prep["fc1b"], prep["fc2w"], prep["fc2b"])
    return out[:B]


# --------------------------- one-time weight prep -----------------------------

def init_params(key):
    """Deterministic PyTorch-layout params; U(-1/sqrt(fan_in), 1/sqrt(fan_in))."""
    ks = jax.random.split(key, 8)

    def u(k, shape, fan_in):
        bound = 1.0 / jnp.sqrt(float(fan_in))
        return jax.random.uniform(k, shape, jnp.float32, -bound, bound)

    return {
        "conv1_w": u(ks[0], (20, 1, 5, 5), 25),
        "conv1_b": u(ks[1], (20,), 25),
        "conv2_w": u(ks[2], (50, 20, 5, 5), 500),
        "conv2_b": u(ks[3], (50,), 500),
        "fc1_w":   u(ks[4], (500, 800), 800),
        "fc1_b":   u(ks[5], (500,), 800),
        "fc2_w":   u(ks[6], (10, 500), 500),
        "fc2_b":   u(ks[7], (10,), 500),
    }


def prepare_params(params):
    """Build kernel-ready (lowered / padded / permuted / bf16) weights once."""
    w1 = np.asarray(params["conv1_w"], np.float32)    # [20, 1, 5, 5]
    b1 = np.asarray(params["conv1_b"], np.float32)    # [20]
    w2 = np.asarray(params["conv2_w"], np.float32)    # [50, 20, 5, 5]
    b2 = np.asarray(params["conv2_b"], np.float32)    # [50]
    f1w = np.asarray(params["fc1_w"], np.float32)     # [500, 800]
    f1b = np.asarray(params["fc1_b"], np.float32)     # [500]
    f2w = np.asarray(params["fc2_w"], np.float32)     # [10, 500]
    f2b = np.asarray(params["fc2_b"], np.float32)     # [10]

    # conv1 lowered (banded) weights, both W-pool parities in the N dimension:
    #   w1l[kh, j, 256*pw + c*20 + co] = w1[co, 0, kh, j - (2*c + pw)]
    w1l = np.zeros((5, 28, 512), np.float32)
    for kh in range(5):
        for pw in range(2):
            for c in range(12):
                for kw in range(5):
                    j = 2 * c + pw + kw
                    base = 256 * pw + c * 20
                    w1l[kh, j, base:base + 20] = w1[:, 0, kh, kw]

    # conv2 lowered weights (input cols c*20+ci match conv1's pooled output layout):
    #   w2l[kh, c*20 + ci, 256*qw + c2*50 + co] = w2[co, ci, kh, kw], c = 2*c2+qw+kw
    w2l = np.zeros((5, 256, 512), np.float32)
    for kh in range(5):
        for qw in range(2):
            for c2 in range(4):
                for kw in range(5):
                    c = 2 * c2 + qw + kw
                    base = 256 * qw + c2 * 50
                    w2l[kh, c * 20:(c + 1) * 20, base:base + 50] = w2[:, :, kh, kw].T

    # fc1 split by pooled row r2, PyTorch NCHW flatten folded into the row order:
    #   fc1ws[r2, c2*50 + co, j] = fc1_w[j, co*16 + r2*4 + c2]
    fc1ws = np.zeros((4, 256, 512), np.float32)
    c2_idx = np.repeat(np.arange(4), 50)
    co_idx = np.tile(np.arange(50), 4)
    for r2 in range(4):
        torch_cols = co_idx * 16 + r2 * 4 + c2_idx
        fc1ws[r2, :200, :500] = f1w[:, torch_cols].T

    fc2wp = np.zeros((512, 10), np.float32)
    fc2wp[:500, :] = f2w.T

    b1t = np.zeros((1, 256), np.float32)
    for c in range(12):
        b1t[0, c * 20:(c + 1) * 20] = b1
    b2t = np.zeros((1, 256), np.float32)
    for c2 in range(4):
        b2t[0, c2 * 50:(c2 + 1) * 50] = b2
    f1bp = np.zeros((1, 512), np.float32)
    f1bp[0, :500] = f1b

    return {
        "w1l": jnp.asarray(w1l, jnp.bfloat16),
        "b1t": jnp.asarray(b1t),
        "w2l": jnp.asarray(w2l, jnp.bfloat16),
        "b2t": jnp.asarray(b2t),
        "fc1w": jnp.asarray(fc1ws, jnp.bfloat16),
        "fc1b": jnp.asarray(f1bp),
        "fc2w": jnp.asarray(fc2wp, jnp.bfloat16),
        "fc2b": jnp.asarray(f2b.reshape(1, 10)),
    }


# ------------------------- pure-JAX reference (check) --------------------------

def reference_forward(x_nchw, params):
    x = x_nchw.astype(jnp.float32)
    y = jax.lax.conv_general_dilated(
        x, params["conv1_w"], (1, 1), "VALID",
        dimension_numbers=("NCHW", "OIHW", "NCHW"),
        precision=jax.lax.Precision.HIGHEST)
    y = jnp.maximum(y + params["conv1_b"][None, :, None, None], 0.0)
    y = jax.lax.reduce_window(y, -jnp.inf, jax.lax.max,
                              (1, 1, 2, 2), (1, 1, 2, 2), "VALID")
    y = jax.lax.conv_general_dilated(
        y, params["conv2_w"], (1, 1), "VALID",
        dimension_numbers=("NCHW", "OIHW", "NCHW"),
        precision=jax.lax.Precision.HIGHEST)
    y = jnp.maximum(y + params["conv2_b"][None, :, None, None], 0.0)
    y = jax.lax.reduce_window(y, -jnp.inf, jax.lax.max,
                              (1, 1, 2, 2), (1, 1, 2, 2), "VALID")
    y = y.reshape(y.shape[0], 800)                                   # NCHW flatten
    y = jnp.maximum(
        jnp.dot(y, params["fc1_w"].T, precision=jax.lax.Precision.HIGHEST)
        + params["fc1_b"], 0.0)
    y = jnp.dot(y, params["fc2_w"].T,
                precision=jax.lax.Precision.HIGHEST) + params["fc2_b"]
    return jax.nn.log_softmax(y, axis=-1)


if __name__ == "__main__":
    key = jax.random.PRNGKey(0)
    k_params, k_x = jax.random.split(key)
    params = init_params(k_params)
    prep = prepare_params(params)
    # The 800 = 50*4*4 flatten implies a 1x28x28 (MNIST-sized) input.
    x = jax.random.normal(k_x, (2, 1, 28, 28), dtype=jnp.float32)

    fwd = jax.jit(net_forward)
    out = jax.block_until_ready(fwd(x, prep))
    assert out.shape == (2, 10)

    # exp of log-softmax rows sums to 1
    assert jnp.allclose(jnp.sum(jnp.exp(out), axis=1), 1.0, atol=1e-3)
    # match the pure-JAX / PyTorch-semantics reference (bf16 matmuls, f32 accumulate)
    ref = reference_forward(x, params)
    assert jnp.allclose(out, ref, atol=2e-2, rtol=2e-2), float(jnp.max(jnp.abs(out - ref)))

    print("KERNEL_OK")
</pallas_src>

<mosaic_0001>
module attributes {stable_mosaic.version = 11 : i64} {
  func.func @_net_kernel(%arg0: i32, %arg1: memref<4x7x8x28xf32, #tpu.memory_space<vmem>>, %arg2: memref<5x28x512xbf16, #tpu.memory_space<vmem>>, %arg3: memref<1x256xf32, #tpu.memory_space<vmem>>, %arg4: memref<5x256x512xbf16, #tpu.memory_space<vmem>>, %arg5: memref<1x256xf32, #tpu.memory_space<vmem>>, %arg6: memref<4x256x512xbf16, #tpu.memory_space<vmem>>, %arg7: memref<1x512xf32, #tpu.memory_space<vmem>>, %arg8: memref<512x10xbf16, #tpu.memory_space<vmem>>, %arg9: memref<1x10xf32, #tpu.memory_space<vmem>>, %arg10: memref<8x10xf32, #tpu.memory_space<vmem>>) attributes {dimension_semantics = [#tpu.dimension_semantics<parallel>], iteration_bounds = array<i64: 1>, scalar_prefetch = 0 : i64, scratch_operands = 0 : i64, tpu.core_type = #tpu.core_type<tc>, window_params = [{transform_indices = @transform_0, window_bounds = array<i64: 4, 7, 8, 28>}, {pipeline_mode = #tpu.pipeline_mode<synchronous>, transform_indices = @transform_1, window_bounds = array<i64: 5, 28, 512>}, {pipeline_mode = #tpu.pipeline_mode<synchronous>, transform_indices = @transform_2, window_bounds = array<i64: 1, 256>}, {pipeline_mode = #tpu.pipeline_mode<synchronous>, transform_indices = @transform_3, window_bounds = array<i64: 5, 256, 512>}, {pipeline_mode = #tpu.pipeline_mode<synchronous>, transform_indices = @transform_4, window_bounds = array<i64: 1, 256>}, {pipeline_mode = #tpu.pipeline_mode<synchronous>, transform_indices = @transform_5, window_bounds = array<i64: 4, 256, 512>}, {pipeline_mode = #tpu.pipeline_mode<synchronous>, transform_indices = @transform_6, window_bounds = array<i64: 1, 512>}, {pipeline_mode = #tpu.pipeline_mode<synchronous>, transform_indices = @transform_7, window_bounds = array<i64: 512, 10>}, {pipeline_mode = #tpu.pipeline_mode<synchronous>, transform_indices = @transform_8, window_bounds = array<i64: 1, 10>}, {transform_indices = @transform_9, window_bounds = array<i64: 8, 10>}]} {
    %c0 = arith.constant 0 : index
    %c0_0 = arith.constant 0 : index
    %c0_1 = arith.constant 0 : index
    %0 = vector.load %arg2[%c0, %c0_0, %c0_1] : memref<5x28x512xbf16, #tpu.memory_space<vmem>>, vector<1x28x512xbf16>
    %1 = vector.shape_cast %0 : vector<1x28x512xbf16> to vector<28x512xbf16>
    %c1 = arith.constant 1 : index
    %c0_2 = arith.constant 0 : index
    %c0_3 = arith.constant 0 : index
    %2 = vector.load %arg2[%c1, %c0_2, %c0_3] : memref<5x28x512xbf16, #tpu.memory_space<vmem>>, vector<1x28x512xbf16>
    %3 = vector.shape_cast %2 : vector<1x28x512xbf16> to vector<28x512xbf16>
    %c2 = arith.constant 2 : index
    %c0_4 = arith.constant 0 : index
    %c0_5 = arith.constant 0 : index
    %4 = vector.load %arg2[%c2, %c0_4, %c0_5] : memref<5x28x512xbf16, #tpu.memory_space<vmem>>, vector<1x28x512xbf16>
    %5 = vector.shape_cast %4 : vector<1x28x512xbf16> to vector<28x512xbf16>
    %c3 = arith.constant 3 : index
    %c0_6 = arith.constant 0 : index
    %c0_7 = arith.constant 0 : index
    %6 = vector.load %arg2[%c3, %c0_6, %c0_7] : memref<5x28x512xbf16, #tpu.memory_space<vmem>>, vector<1x28x512xbf16>
    %7 = vector.shape_cast %6 : vector<1x28x512xbf16> to vector<28x512xbf16>
    %c4 = arith.constant 4 : index
    %c0_8 = arith.constant 0 : index
    %c0_9 = arith.constant 0 : index
    %8 = vector.load %arg2[%c4, %c0_8, %c0_9] : memref<5x28x512xbf16, #tpu.memory_space<vmem>>, vector<1x28x512xbf16>
    %9 = vector.shape_cast %8 : vector<1x28x512xbf16> to vector<28x512xbf16>
    %c0_10 = arith.constant 0 : index
    %c0_11 = arith.constant 0 : index
    %c0_12 = arith.constant 0 : index
    %10 = vector.load %arg4[%c0_10, %c0_11, %c0_12] : memref<5x256x512xbf16, #tpu.memory_space<vmem>>, vector<1x256x512xbf16>
    %11 = vector.shape_cast %10 : vector<1x256x512xbf16> to vector<256x512xbf16>
    %c1_13 = arith.constant 1 : index
    %c0_14 = arith.constant 0 : index
    %c0_15 = arith.constant 0 : index
    %12 = vector.load %arg4[%c1_13, %c0_14, %c0_15] : memref<5x256x512xbf16, #tpu.memory_space<vmem>>, vector<1x256x512xbf16>
    %13 = vector.shape_cast %12 : vector<1x256x512xbf16> to vector<256x512xbf16>
    %c2_16 = arith.constant 2 : index
    %c0_17 = arith.constant 0 : index
    %c0_18 = arith.constant 0 : index
    %14 = vector.load %arg4[%c2_16, %c0_17, %c0_18] : memref<5x256x512xbf16, #tpu.memory_space<vmem>>, vector<1x256x512xbf16>
    %15 = vector.shape_cast %14 : vector<1x256x512xbf16> to vector<256x512xbf16>
    %c3_19 = arith.constant 3 : index
    %c0_20 = arith.constant 0 : index
    %c0_21 = arith.constant 0 : index
    %16 = vector.load %arg4[%c3_19, %c0_20, %c0_21] : memref<5x256x512xbf16, #tpu.memory_space<vmem>>, vector<1x256x512xbf16>
    %17 = vector.shape_cast %16 : vector<1x256x512xbf16> to vector<256x512xbf16>
    %c4_22 = arith.constant 4 : index
    %c0_23 = arith.constant 0 : index
    %c0_24 = arith.constant 0 : index
    %18 = vector.load %arg4[%c4_22, %c0_23, %c0_24] : memref<5x256x512xbf16, #tpu.memory_space<vmem>>, vector<1x256x512xbf16>
    %19 = vector.shape_cast %18 : vector<1x256x512xbf16> to vector<256x512xbf16>
    %c0_25 = arith.constant 0 : index
    %c0_26 = arith.constant 0 : index
    %c0_27 = arith.constant 0 : index
    %c0_28 = arith.constant 0 : index
    %20 = vector.load %arg1[%c0_25, %c0_26, %c0_27, %c0_28] : memref<4x7x8x28xf32, #tpu.memory_space<vmem>>, vector<1x6x8x28xf32>
    %21 = vector.shape_cast %20 : vector<1x6x8x28xf32> to vector<6x8x28xf32>
    %22 = vector.shape_cast %21 : vector<6x8x28xf32> to vector<48x28xf32>
    %23 = arith.truncf %22 : vector<48x28xf32> to vector<48x28xbf16>
    %cst = arith.constant dense<0.000000e+00> : vector<48x512xf32>
    %24 = tpu.matmul %23, %1, %cst {dimension_numbers = #tpu.dot_dimension_numbers<[1], [0], [0], [1], [0, 0, 1, 1], [], []>} : vector<48x28xbf16>, vector<28x512xbf16>, vector<48x512xf32> -> vector<48x512xf32>
    %c1_29 = arith.constant 1 : index
    %c0_30 = arith.constant 0 : index
    %c0_31 = arith.constant 0 : index
    %c0_32 = arith.constant 0 : index
    %25 = vector.load %arg1[%c1_29, %c0_30, %c0_31, %c0_32] : memref<4x7x8x28xf32, #tpu.memory_space<vmem>>, vector<1x6x8x28xf32>
    %26 = vector.shape_cast %25 : vector<1x6x8x28xf32> to vector<6x8x28xf32>
    %27 = vector.shape_cast %26 : vector<6x8x28xf32> to vector<48x28xf32>
    %28 = arith.truncf %27 : vector<48x28xf32> to vector<48x28xbf16>
    %cst_33 = arith.constant dense<0.000000e+00> : vector<48x512xf32>
    %29 = tpu.matmul %28, %3, %cst_33 {dimension_numbers = #tpu.dot_dimension_numbers<[1], [0], [0], [1], [0, 0, 1, 1], [], []>} : vector<48x28xbf16>, vector<28x512xbf16>, vector<48x512xf32> -> vector<48x512xf32>
    %30 = arith.addf %24, %29 : vector<48x512xf32>
    %c2_34 = arith.constant 2 : index
    %c0_35 = arith.constant 0 : index
    %c0_36 = arith.constant 0 : index
    %c0_37 = arith.constant 0 : index
    %31 = vector.load %arg1[%c2_34, %c0_35, %c0_36, %c0_37] : memref<4x7x8x28xf32, #tpu.memory_space<vmem>>, vector<1x6x8x28xf32>
    %32 = vector.shape_cast %31 : vector<1x6x8x28xf32> to vector<6x8x28xf32>
    %33 = vector.shape_cast %32 : vector<6x8x28xf32> to vector<48x28xf32>
    %34 = arith.truncf %33 : vector<48x28xf32> to vector<48x28xbf16>
    %cst_38 = arith.constant dense<0.000000e+00> : vector<48x512xf32>
    %35 = tpu.matmul %34, %5, %cst_38 {dimension_numbers = #tpu.dot_dimension_numbers<[1], [0], [0], [1], [0, 0, 1, 1], [], []>} : vector<48x28xbf16>, vector<28x512xbf16>, vector<48x512xf32> -> vector<48x512xf32>
    %36 = arith.addf %30, %35 : vector<48x512xf32>
    %c3_39 = arith.constant 3 : index
    %c0_40 = arith.constant 0 : index
    %c0_41 = arith.constant 0 : index
    %c0_42 = arith.constant 0 : index
    %37 = vector.load %arg1[%c3_39, %c0_40, %c0_41, %c0_42] : memref<4x7x8x28xf32, #tpu.memory_space<vmem>>, vector<1x6x8x28xf32>
    %38 = vector.shape_cast %37 : vector<1x6x8x28xf32> to vector<6x8x28xf32>
    %39 = vector.shape_cast %38 : vector<6x8x28xf32> to vector<48x28xf32>
    %40 = arith.truncf %39 : vector<48x28xf32> to vector<48x28xbf16>
    %cst_43 = arith.constant dense<0.000000e+00> : vector<48x512xf32>
    %41 = tpu.matmul %40, %7, %cst_43 {dimension_numbers = #tpu.dot_dimension_numbers<[1], [0], [0], [1], [0, 0, 1, 1], [], []>} : vector<48x28xbf16>, vector<28x512xbf16>, vector<48x512xf32> -> vector<48x512xf32>
    %42 = arith.addf %36, %41 : vector<48x512xf32>
    %c0_44 = arith.constant 0 : index
    %c1_45 = arith.constant 1 : index
    %c0_46 = arith.constant 0 : index
    %c0_47 = arith.constant 0 : index
    %43 = vector.load %arg1[%c0_44, %c1_45, %c0_46, %c0_47] : memref<4x7x8x28xf32, #tpu.memory_space<vmem>>, vector<1x6x8x28xf32>
    %44 = vector.shape_cast %43 : vector<1x6x8x28xf32> to vector<6x8x28xf32>
    %45 = vector.shape_cast %44 : vector<6x8x28xf32> to vector<48x28xf32>
    %46 = arith.truncf %45 : vector<48x28xf32> to vector<48x28xbf16>
    %cst_48 = arith.constant dense<0.000000e+00> : vector<48x512xf32>
    %47 = tpu.matmul %46, %9, %cst_48 {dimension_numbers = #tpu.dot_dimension_numbers<[1], [0], [0], [1], [0, 0, 1, 1], [], []>} : vector<48x28xbf16>, vector<28x512xbf16>, vector<48x512xf32> -> vector<48x512xf32>
    %48 = arith.addf %42, %47 : vector<48x512xf32>
    %49 = vector.extract_strided_slice %48 {offsets = [0, 0], sizes = [48, 256], strides = [1, 1]} : vector<48x512xf32> to vector<48x256xf32>
    %50 = vector.extract_strided_slice %48 {offsets = [0, 256], sizes = [48, 256], strides = [1, 1]} : vector<48x512xf32> to vector<48x256xf32>
    %51 = arith.maximumf %49, %50 : vector<48x256xf32>
    %c1_49 = arith.constant 1 : index
    %c0_50 = arith.constant 0 : index
    %c0_51 = arith.constant 0 : index
    %c0_52 = arith.constant 0 : index
    %52 = vector.load %arg1[%c1_49, %c0_50, %c0_51, %c0_52] : memref<4x7x8x28xf32, #tpu.memory_space<vmem>>, vector<1x6x8x28xf32>
    %53 = vector.shape_cast %52 : vector<1x6x8x28xf32> to vector<6x8x28xf32>
    %54 = vector.shape_cast %53 : vector<6x8x28xf32> to vector<48x28xf32>
    %55 = arith.truncf %54 : vector<48x28xf32> to vector<48x28xbf16>
    %cst_53 = arith.constant dense<0.000000e+00> : vector<48x512xf32>
    %56 = tpu.matmul %55, %1, %cst_53 {dimension_numbers = #tpu.dot_dimension_numbers<[1], [0], [0], [1], [0, 0, 1, 1], [], []>} : vector<48x28xbf16>, vector<28x512xbf16>, vector<48x512xf32> -> vector<48x512xf32>
    %c2_54 = arith.constant 2 : index
    %c0_55 = arith.constant 0 : index
    %c0_56 = arith.constant 0 : index
    %c0_57 = arith.constant 0 : index
    %57 = vector.load %arg1[%c2_54, %c0_55, %c0_56, %c0_57] : memref<4x7x8x28xf32, #tpu.memory_space<vmem>>, vector<1x6x8x28xf32>
    %58 = vector.shape_cast %57 : vector<1x6x8x28xf32> to vector<6x8x28xf32>
    %59 = vector.shape_cast %58 : vector<6x8x28xf32> to vector<48x28xf32>
    %60 = arith.truncf %59 : vector<48x28xf32> to vector<48x28xbf16>
    %cst_58 = arith.constant dense<0.000000e+00> : vector<48x512xf32>
    %61 = tpu.matmul %60, %3, %cst_58 {dimension_numbers = #tpu.dot_dimension_numbers<[1], [0], [0], [1], [0, 0, 1, 1], [], []>} : vector<48x28xbf16>, vector<28x512xbf16>, vector<48x512xf32> -> vector<48x512xf32>
    %62 = arith.addf %56, %61 : vector<48x512xf32>
    %c3_59 = arith.constant 3 : index
    %c0_60 = arith.constant 0 : index
    %c0_61 = arith.constant 0 : index
    %c0_62 = arith.constant 0 : index
    %63 = vector.load %arg1[%c3_59, %c0_60, %c0_61, %c0_62] : memref<4x7x8x28xf32, #tpu.memory_space<vmem>>, vector<1x6x8x28xf32>
    %64 = vector.shape_cast %63 : vector<1x6x8x28xf32> to vector<6x8x28xf32>
    %65 = vector.shape_cast %64 : vector<6x8x28xf32> to vector<48x28xf32>
    %66 = arith.truncf %65 : vector<48x28xf32> to vector<48x28xbf16>
    %cst_63 = arith.constant dense<0.000000e+00> : vector<48x512xf32>
    %67 = tpu.matmul %66, %5, %cst_63 {dimension_numbers = #tpu.dot_dimension_numbers<[1], [0], [0], [1], [0, 0, 1, 1], [], []>} : vector<48x28xbf16>, vector<28x512xbf16>, vector<48x512xf32> -> vector<48x512xf32>
    %68 = arith.addf %62, %67 : vector<48x512xf32>
    %c0_64 = arith.constant 0 : index
    %c1_65 = arith.constant 1 : index
    %c0_66 = arith.constant 0 : index
    %c0_67 = arith.constant 0 : index
    %69 = vector.load %arg1[%c0_64, %c1_65, %c0_66, %c0_67] : memref<4x7x8x28xf32, #tpu.memory_space<vmem>>, vector<1x6x8x28xf32>
    %70 = vector.shape_cast %69 : vector<1x6x8x28xf32> to vector<6x8x28xf32>
    %71 = vector.shape_cast %70 : vector<6x8x28xf32> to vector<48x28xf32>
    %72 = arith.truncf %71 : vector<48x28xf32> to vector<48x28xbf16>
    %cst_68 = arith.constant dense<0.000000e+00> : vector<48x512xf32>
    %73 = tpu.matmul %72, %7, %cst_68 {dimension_numbers = #tpu.dot_dimension_numbers<[1], [0], [0], [1], [0, 0, 1, 1], [], []>} : vector<48x28xbf16>, vector<28x512xbf16>, vector<48x512xf32> -> vector<48x512xf32>
    %74 = arith.addf %68, %73 : vector<48x512xf32>
    %c1_69 = arith.constant 1 : index
    %c1_70 = arith.constant 1 : index
    %c0_71 = arith.constant 0 : index
    %c0_72 = arith.constant 0 : index
    %75 = vector.load %arg1[%c1_69, %c1_70, %c0_71, %c0_72] : memref<4x7x8x28xf32, #tpu.memory_space<vmem>>, vector<1x6x8x28xf32>
    %76 = vector.shape_cast %75 : vector<1x6x8x28xf32> to vector<6x8x28xf32>
    %77 = vector.shape_cast %76 : vector<6x8x28xf32> to vector<48x28xf32>
    %78 = arith.truncf %77 : vector<48x28xf32> to vector<48x28xbf16>
    %cst_73 = arith.constant dense<0.000000e+00> : vector<48x512xf32>
    %79 = tpu.matmul %78, %9, %cst_73 {dimension_numbers = #tpu.dot_dimension_numbers<[1], [0], [0], [1], [0, 0, 1, 1], [], []>} : vector<48x28xbf16>, vector<28x512xbf16>, vector<48x512xf32> -> vector<48x512xf32>
    %80 = arith.addf %74, %79 : vector<48x512xf32>
    %81 = vector.extract_strided_slice %80 {offsets = [0, 0], sizes = [48, 256], strides = [1, 1]} : vector<48x512xf32> to vector<48x256xf32>
    %82 = vector.extract_strided_slice %80 {offsets = [0, 256], sizes = [48, 256], strides = [1, 1]} : vector<48x512xf32> to vector<48x256xf32>
    %83 = arith.maximumf %81, %82 : vector<48x256xf32>
    %84 = arith.maximumf %51, %83 : vector<48x256xf32>
    %c0_74 = arith.constant 0 : index
    %c0_75 = arith.constant 0 : index
    %85 = vector.load %arg3[%c0_74, %c0_75] : memref<1x256xf32, #tpu.memory_space<vmem>>, vector<1x256xf32>
    %86 = vector.broadcast %85 : vector<1x256xf32> to vector<48x256xf32>
    %87 = arith.addf %84, %86 : vector<48x256xf32>
    %cst_76 = arith.constant 0.000000e+00 : f32
    %88 = vector.broadcast %cst_76 : f32 to vector<48x256xf32>
    %89 = arith.maximumf %87, %88 : vector<48x256xf32>
    %90 = arith.truncf %89 : vector<48x256xf32> to vector<48x256xbf16>
    %91 = vector.shape_cast %90 : vector<48x256xbf16> to vector<6x8x256xbf16>
    %c2_77 = arith.constant 2 : index
    %c0_78 = arith.constant 0 : index
    %c0_79 = arith.constant 0 : index
    %c0_80 = arith.constant 0 : index
    %92 = vector.load %arg1[%c2_77, %c0_78, %c0_79, %c0_80] : memref<4x7x8x28xf32, #tpu.memory_space<vmem>>, vector<1x6x8x28xf32>
    %93 = vector.shape_cast %92 : vector<1x6x8x28xf32> to vector<6x8x28xf32>
    %94 = vector.shape_cast %93 : vector<6x8x28xf32> to vector<48x28xf32>
    %95 = arith.truncf %94 : vector<48x28xf32> to vector<48x28xbf16>
    %cst_81 = arith.constant dense<0.000000e+00> : vector<48x512xf32>
    %96 = tpu.matmul %95, %1, %cst_81 {dimension_numbers = #tpu.dot_dimension_numbers<[1], [0], [0], [1], [0, 0, 1, 1], [], []>} : vector<48x28xbf16>, vector<28x512xbf16>, vector<48x512xf32> -> vector<48x512xf32>
    %c3_82 = arith.constant 3 : index
    %c0_83 = arith.constant 0 : index
    %c0_84 = arith.constant 0 : index
    %c0_85 = arith.constant 0 : index
    %97 = vector.load %arg1[%c3_82, %c0_83, %c0_84, %c0_85] : memref<4x7x8x28xf32, #tpu.memory_space<vmem>>, vector<1x6x8x28xf32>
    %98 = vector.shape_cast %97 : vector<1x6x8x28xf32> to vector<6x8x28xf32>
    %99 = vector.shape_cast %98 : vector<6x8x28xf32> to vector<48x28xf32>
    %100 = arith.truncf %99 : vector<48x28xf32> to vector<48x28xbf16>
    %cst_86 = arith.constant dense<0.000000e+00> : vector<48x512xf32>
    %101 = tpu.matmul %100, %3, %cst_86 {dimension_numbers = #tpu.dot_dimension_numbers<[1], [0], [0], [1], [0, 0, 1, 1], [], []>} : vector<48x28xbf16>, vector<28x512xbf16>, vector<48x512xf32> -> vector<48x512xf32>
    %102 = arith.addf %96, %101 : vector<48x512xf32>
    %c0_87 = arith.constant 0 : index
    %c1_88 = arith.constant 1 : index
    %c0_89 = arith.constant 0 : index
    %c0_90 = arith.constant 0 : index
    %103 = vector.load %arg1[%c0_87, %c1_88, %c0_89, %c0_90] : memref<4x7x8x28xf32, #tpu.memory_space<vmem>>, vector<1x6x8x28xf32>
    %104 = vector.shape_cast %103 : vector<1x6x8x28xf32> to vector<6x8x28xf32>
    %105 = vector.shape_cast %104 : vector<6x8x28xf32> to vector<48x28xf32>
    %106 = arith.truncf %105 : vector<48x28xf32> to vector<48x28xbf16>
    %cst_91 = arith.constant dense<0.000000e+00> : vector<48x512xf32>
    %107 = tpu.matmul %106, %5, %cst_91 {dimension_numbers = #tpu.dot_dimension_numbers<[1], [0], [0], [1], [0, 0, 1, 1], [], []>} : vector<48x28xbf16>, vector<28x512xbf16>, vector<48x512xf32> -> vector<48x512xf32>
    %108 = arith.addf %102, %107 : vector<48x512xf32>
    %c1_92 = arith.constant 1 : index
    %c1_93 = arith.constant 1 : index
    %c0_94 = arith.constant 0 : index
    %c0_95 = arith.constant 0 : index
    %109 = vector.load %arg1[%c1_92, %c1_93, %c0_94, %c0_95] : memref<4x7x8x28xf32, #tpu.memory_space<vmem>>, vector<1x6x8x28xf32>
    %110 = vector.shape_cast %109 : vector<1x6x8x28xf32> to vector<6x8x28xf32>
    %111 = vector.shape_cast %110 : vector<6x8x28xf32> to vector<48x28xf32>
    %112 = arith.truncf %111 : vector<48x28xf32> to vector<48x28xbf16>
    %cst_96 = arith.constant dense<0.000000e+00> : vector<48x512xf32>
    %113 = tpu.matmul %112, %7, %cst_96 {dimension_numbers = #tpu.dot_dimension_numbers<[1], [0], [0], [1], [0, 0, 1, 1], [], []>} : vector<48x28xbf16>, vector<28x512xbf16>, vector<48x512xf32> -> vector<48x512xf32>
    %114 = arith.addf %108, %113 : vector<48x512xf32>
    %c2_97 = arith.constant 2 : index
    %c1_98 = arith.constant 1 : index
    %c0_99 = arith.constant 0 : index
    %c0_100 = arith.constant 0 : index
    %115 = vector.load %arg1[%c2_97, %c1_98, %c0_99, %c0_100] : memref<4x7x8x28xf32, #tpu.memory_space<vmem>>, vector<1x6x8x28xf32>
    %116 = vector.shape_cast %115 : vector<1x6x8x28xf32> to vector<6x8x28xf32>
    %117 = vector.shape_cast %116 : vector<6x8x28xf32> to vector<48x28xf32>
    %118 = arith.truncf %117 : vector<48x28xf32> to vector<48x28xbf16>
    %cst_101 = arith.constant dense<0.000000e+00> : vector<48x512xf32>
    %119 = tpu.matmul %118, %9, %cst_101 {dimension_numbers = #tpu.dot_dimension_numbers<[1], [0], [0], [1], [0, 0, 1, 1], [], []>} : vector<48x28xbf16>, vector<28x512xbf16>, vector<48x512xf32> -> vector<48x512xf32>
    %120 = arith.addf %114, %119 : vector<48x512xf32>
    %121 = vector.extract_strided_slice %120 {offsets = [0, 0], sizes = [48, 256], strides = [1, 1]} : vector<48x512xf32> to vector<48x256xf32>
    %122 = vector.extract_strided_slice %120 {offsets = [0, 256], sizes = [48, 256], strides = [1, 1]} : vector<48x512xf32> to vector<48x256xf32>
    %123 = arith.maximumf %121, %122 : vector<48x256xf32>
    %c3_102 = arith.constant 3 : index
    %c0_103 = arith.constant 0 : index
    %c0_104 = arith.constant 0 : index
    %c0_105 = arith.constant 0 : index
    %124 = vector.load %arg1[%c3_102, %c0_103, %c0_104, %c0_105] : memref<4x7x8x28xf32, #tpu.memory_space<vmem>>, vector<1x6x8x28xf32>
    %125 = vector.shape_cast %124 : vector<1x6x8x28xf32> to vector<6x8x28xf32>
    %126 = vector.shape_cast %125 : vector<6x8x28xf32> to vector<48x28xf32>
    %127 = arith.truncf %126 : vector<48x28xf32> to vector<48x28xbf16>
    %cst_106 = arith.constant dense<0.000000e+00> : vector<48x512xf32>
    %128 = tpu.matmul %127, %1, %cst_106 {dimension_numbers = #tpu.dot_dimension_numbers<[1], [0], [0], [1], [0, 0, 1, 1], [], []>} : vector<48x28xbf16>, vector<28x512xbf16>, vector<48x512xf32> -> vector<48x512xf32>
    %c0_107 = arith.constant 0 : index
    %c1_108 = arith.constant 1 : index
    %c0_109 = arith.constant 0 : index
    %c0_110 = arith.constant 0 : index
    %129 = vector.load %arg1[%c0_107, %c1_108, %c0_109, %c0_110] : memref<4x7x8x28xf32, #tpu.memory_space<vmem>>, vector<1x6x8x28xf32>
    %130 = vector.shape_cast %129 : vector<1x6x8x28xf32> to vector<6x8x28xf32>
    %131 = vector.shape_cast %130 : vector<6x8x28xf32> to vector<48x28xf32>
    %132 = arith.truncf %131 : vector<48x28xf32> to vector<48x28xbf16>
    %cst_111 = arith.constant dense<0.000000e+00> : vector<48x512xf32>
    %133 = tpu.matmul %132, %3, %cst_111 {dimension_numbers = #tpu.dot_dimension_numbers<[1], [0], [0], [1], [0, 0, 1, 1], [], []>} : vector<48x28xbf16>, vector<28x512xbf16>, vector<48x512xf32> -> vector<48x512xf32>
    %134 = arith.addf %128, %133 : vector<48x512xf32>
    %c1_112 = arith.constant 1 : index
    %c1_113 = arith.constant 1 : index
    %c0_114 = arith.constant 0 : index
    %c0_115 = arith.constant 0 : index
    %135 = vector.load %arg1[%c1_112, %c1_113, %c0_114, %c0_115] : memref<4x7x8x28xf32, #tpu.memory_space<vmem>>, vector<1x6x8x28xf32>
    %136 = vector.shape_cast %135 : vector<1x6x8x28xf32> to vector<6x8x28xf32>
    %137 = vector.shape_cast %136 : vector<6x8x28xf32> to vector<48x28xf32>
    %138 = arith.truncf %137 : vector<48x28xf32> to vector<48x28xbf16>
    %cst_116 = arith.constant dense<0.000000e+00> : vector<48x512xf32>
    %139 = tpu.matmul %138, %5, %cst_116 {dimension_numbers = #tpu.dot_dimension_numbers<[1], [0], [0], [1], [0, 0, 1, 1], [], []>} : vector<48x28xbf16>, vector<28x512xbf16>, vector<48x512xf32> -> vector<48x512xf32>
    %140 = arith.addf %134, %139 : vector<48x512xf32>
    %c2_117 = arith.constant 2 : index
    %c1_118 = arith.constant 1 : index
    %c0_119 = arith.constant 0 : index
    %c0_120 = arith.constant 0 : index
    %141 = vector.load %arg1[%c2_117, %c1_118, %c0_119, %c0_120] : memref<4x7x8x28xf32, #tpu.memory_space<vmem>>, vector<1x6x8x28xf32>
    %142 = vector.shape_cast %141 : vector<1x6x8x28xf32> to vector<6x8x28xf32>
    %143 = vector.shape_cast %142 : vector<6x8x28xf32> to vector<48x28xf32>
    %144 = arith.truncf %143 : vector<48x28xf32> to vector<48x28xbf16>
    %cst_121 = arith.constant dense<0.000000e+00> : vector<48x512xf32>
    %145 = tpu.matmul %144, %7, %cst_121 {dimension_numbers = #tpu.dot_dimension_numbers<[1], [0], [0], [1], [0, 0, 1, 1], [], []>} : vector<48x28xbf16>, vector<28x512xbf16>, vector<48x512xf32> -> vector<48x512xf32>
    %146 = arith.addf %140, %145 : vector<48x512xf32>
    %c3_122 = arith.constant 3 : index
    %c1_123 = arith.constant 1 : index
    %c0_124 = arith.constant 0 : index
    %c0_125 = arith.constant 0 : index
    %147 = vector.load %arg1[%c3_122, %c1_123, %c0_124, %c0_125] : memref<4x7x8x28xf32, #tpu.memory_space<vmem>>, vector<1x6x8x28xf32>
    %148 = vector.shape_cast %147 : vector<1x6x8x28xf32> to vector<6x8x28xf32>
    %149 = vector.shape_cast %148 : vector<6x8x28xf32> to vector<48x28xf32>
    %150 = arith.truncf %149 : vector<48x28xf32> to vector<48x28xbf16>
    %cst_126 = arith.constant dense<0.000000e+00> : vector<48x512xf32>
    %151 = tpu.matmul %150, %9, %cst_126 {dimension_numbers = #tpu.dot_dimension_numbers<[1], [0], [0], [1], [0, 0, 1, 1], [], []>} : vector<48x28xbf16>, vector<28x512xbf16>, vector<48x512xf32> -> vector<48x512xf32>
    %152 = arith.addf %146, %151 : vector<48x512xf32>
    %153 = vector.extract_strided_slice %152 {offsets = [0, 0], sizes = [48, 256], strides = [1, 1]} : vector<48x512xf32> to vector<48x256xf32>
    %154 = vector.extract_strided_slice %152 {offsets = [0, 256], sizes = [48, 256], strides = [1, 1]} : vector<48x512xf32> to vector<48x256xf32>
    %155 = arith.maximumf %153, %154 : vector<48x256xf32>
    %156 = arith.maximumf %123, %155 : vector<48x256xf32>
    %c0_127 = arith.constant 0 : index
    %c0_128 = arith.constant 0 : index
    %157 = vector.load %arg3[%c0_127, %c0_128] : memref<1x256xf32, #tpu.memory_space<vmem>>, vector<1x256xf32>
    %158 = vector.broadcast %157 : vector<1x256xf32> to vector<48x256xf32>
    %159 = arith.addf %156, %158 : vector<48x256xf32>
    %cst_129 = arith.constant 0.000000e+00 : f32
    %160 = vector.broadcast %cst_129 : f32 to vector<48x256xf32>
    %161 = arith.maximumf %159, %160 : vector<48x256xf32>
    %162 = arith.truncf %161 : vector<48x256xf32> to vector<48x256xbf16>
    %163 = vector.shape_cast %162 : vector<48x256xbf16> to vector<6x8x256xbf16>
    %164 = vector.extract_strided_slice %91 {offsets = [0, 0, 0], sizes = [4, 8, 256], strides = [1, 1, 1]} : vector<6x8x256xbf16> to vector<4x8x256xbf16>
    %165 = vector.shape_cast %164 : vector<4x8x256xbf16> to vector<32x256xbf16>
    %cst_130 = arith.constant dense<0.000000e+00> : vector<32x512xf32>
    %166 = tpu.matmul %165, %11, %cst_130 {dimension_numbers = #tpu.dot_dimension_numbers<[1], [0], [0], [1], [0, 0, 1, 1], [], []>} : vector<32x256xbf16>, vector<256x512xbf16>, vector<32x512xf32> -> vector<32x512xf32>
    %167 = vector.extract_strided_slice %163 {offsets = [0, 0, 0], sizes = [4, 8, 256], strides = [1, 1, 1]} : vector<6x8x256xbf16> to vector<4x8x256xbf16>
    %168 = vector.shape_cast %167 : vector<4x8x256xbf16> to vector<32x256xbf16>
    %cst_131 = arith.constant dense<0.000000e+00> : vector<32x512xf32>
    %169 = tpu.matmul %168, %13, %cst_131 {dimension_numbers = #tpu.dot_dimension_numbers<[1], [0], [0], [1], [0, 0, 1, 1], [], []>} : vector<32x256xbf16>, vector<256x512xbf16>, vector<32x512xf32> -> vector<32x512xf32>
    %170 = arith.addf %166, %169 : vector<32x512xf32>
    %171 = vector.extract_strided_slice %91 {offsets = [1, 0, 0], sizes = [4, 8, 256], strides = [1, 1, 1]} : vector<6x8x256xbf16> to vector<4x8x256xbf16>
    %172 = vector.shape_cast %171 : vector<4x8x256xbf16> to vector<32x256xbf16>
    %cst_132 = arith.constant dense<0.000000e+00> : vector<32x512xf32>
    %173 = tpu.matmul %172, %15, %cst_132 {dimension_numbers = #tpu.dot_dimension_numbers<[1], [0], [0], [1], [0, 0, 1, 1], [], []>} : vector<32x256xbf16>, vector<256x512xbf16>, vector<32x512xf32> -> vector<32x512xf32>
    %174 = arith.addf %170, %173 : vector<32x512xf32>
    %175 = vector.extract_strided_slice %163 {offsets = [1, 0, 0], sizes = [4, 8, 256], strides = [1, 1, 1]} : vector<6x8x256xbf16> to vector<4x8x256xbf16>
    %176 = vector.shape_cast %175 : vector<4x8x256xbf16> to vector<32x256xbf16>
    %cst_133 = arith.constant dense<0.000000e+00> : vector<32x512xf32>
    %177 = tpu.matmul %176, %17, %cst_133 {dimension_numbers = #tpu.dot_dimension_numbers<[1], [0], [0], [1], [0, 0, 1, 1], [], []>} : vector<32x256xbf16>, vector<256x512xbf16>, vector<32x512xf32> -> vector<32x512xf32>
    %178 = arith.addf %174, %177 : vector<32x512xf32>
    %179 = vector.extract_strided_slice %91 {offsets = [2, 0, 0], sizes = [4, 8, 256], strides = [1, 1, 1]} : vector<6x8x256xbf16> to vector<4x8x256xbf16>
    %180 = vector.shape_cast %179 : vector<4x8x256xbf16> to vector<32x256xbf16>
    %cst_134 = arith.constant dense<0.000000e+00> : vector<32x512xf32>
    %181 = tpu.matmul %180, %19, %cst_134 {dimension_numbers = #tpu.dot_dimension_numbers<[1], [0], [0], [1], [0, 0, 1, 1], [], []>} : vector<32x256xbf16>, vector<256x512xbf16>, vector<32x512xf32> -> vector<32x512xf32>
    %182 = arith.addf %178, %181 : vector<32x512xf32>
    %183 = vector.extract_strided_slice %182 {offsets = [0, 0], sizes = [32, 256], strides = [1, 1]} : vector<32x512xf32> to vector<32x256xf32>
    %184 = vector.extract_strided_slice %182 {offsets = [0, 256], sizes = [32, 256], strides = [1, 1]} : vector<32x512xf32> to vector<32x256xf32>
    %185 = arith.maximumf %183, %184 : vector<32x256xf32>
    %186 = vector.extract_strided_slice %163 {offsets = [0, 0, 0], sizes = [4, 8, 256], strides = [1, 1, 1]} : vector<6x8x256xbf16> to vector<4x8x256xbf16>
    %187 = vector.shape_cast %186 : vector<4x8x256xbf16> to vector<32x256xbf16>
    %cst_135 = arith.constant dense<0.000000e+00> : vector<32x512xf32>
    %188 = tpu.matmul %187, %11, %cst_135 {dimension_numbers = #tpu.dot_dimension_numbers<[1], [0], [0], [1], [0, 0, 1, 1], [], []>} : vector<32x256xbf16>, vector<256x512xbf16>, vector<32x512xf32> -> vector<32x512xf32>
    %189 = vector.extract_strided_slice %91 {offsets = [1, 0, 0], sizes = [4, 8, 256], strides = [1, 1, 1]} : vector<6x8x256xbf16> to vector<4x8x256xbf16>
    %190 = vector.shape_cast %189 : vector<4x8x256xbf16> to vector<32x256xbf16>
    %cst_136 = arith.constant dense<0.000000e+00> : vector<32x512xf32>
    %191 = tpu.matmul %190, %13, %cst_136 {dimension_numbers = #tpu.dot_dimension_numbers<[1], [0], [0], [1], [0, 0, 1, 1], [], []>} : vector<32x256xbf16>, vector<256x512xbf16>, vector<32x512xf32> -> vector<32x512xf32>
    %192 = arith.addf %188, %191 : vector<32x512xf32>
    %193 = vector.extract_strided_slice %163 {offsets = [1, 0, 0], sizes = [4, 8, 256], strides = [1, 1, 1]} : vector<6x8x256xbf16> to vector<4x8x256xbf16>
    %194 = vector.shape_cast %193 : vector<4x8x256xbf16> to vector<32x256xbf16>
    %cst_137 = arith.constant dense<0.000000e+00> : vector<32x512xf32>
    %195 = tpu.matmul %194, %15, %cst_137 {dimension_numbers = #tpu.dot_dimension_numbers<[1], [0], [0], [1], [0, 0, 1, 1], [], []>} : vector<32x256xbf16>, vector<256x512xbf16>, vector<32x512xf32> -> vector<32x512xf32>
    %196 = arith.addf %192, %195 : vector<32x512xf32>
    %197 = vector.extract_strided_slice %91 {offsets = [2, 0, 0], sizes = [4, 8, 256], strides = [1, 1, 1]} : vector<6x8x256xbf16> to vector<4x8x256xbf16>
    %198 = vector.shape_cast %197 : vector<4x8x256xbf16> to vector<32x256xbf16>
    %cst_138 = arith.constant dense<0.000000e+00> : vector<32x512xf32>
    %199 = tpu.matmul %198, %17, %cst_138 {dimension_numbers = #tpu.dot_dimension_numbers<[1], [0], [0], [1], [0, 0, 1, 1], [], []>} : vector<32x256xbf16>, vector<256x512xbf16>, vector<32x512xf32> -> vector<32x512xf32>
    %200 = arith.addf %196, %199 : vector<32x512xf32>
    %201 = vector.extract_strided_slice %163 {offsets = [2, 0, 0], sizes = [4, 8, 256], strides = [1, 1, 1]} : vector<6x8x256xbf16> to vector<4x8x256xbf16>
    %202 = vector.shape_cast %201 : vector<4x8x256xbf16> to vector<32x256xbf16>
    %cst_139 = arith.constant dense<0.000000e+00> : vector<32x512xf32>
    %203 = tpu.matmul %202, %19, %cst_139 {dimension_numbers = #tpu.dot_dimension_numbers<[1], [0], [0], [1], [0, 0, 1, 1], [], []>} : vector<32x256xbf16>, vector<256x512xbf16>, vector<32x512xf32> -> vector<32x512xf32>
    %204 = arith.addf %200, %203 : vector<32x512xf32>
    %205 = vector.extract_strided_slice %204 {offsets = [0, 0], sizes = [32, 256], strides = [1, 1]} : vector<32x512xf32> to vector<32x256xf32>
    %206 = vector.extract_strided_slice %204 {offsets = [0, 256], sizes = [32, 256], strides = [1, 1]} : vector<32x512xf32> to vector<32x256xf32>
    %207 = arith.maximumf %205, %206 : vector<32x256xf32>
    %208 = arith.maximumf %185, %207 : vector<32x256xf32>
    %c0_140 = arith.constant 0 : index
    %c0_141 = arith.constant 0 : index
    %209 = vector.load %arg5[%c0_140, %c0_141] : memref<1x256xf32, #tpu.memory_space<vmem>>, vector<1x256xf32>
    %210 = vector.broadcast %209 : vector<1x256xf32> to vector<32x256xf32>
    %211 = arith.addf %208, %210 : vector<32x256xf32>
    %cst_142 = arith.constant 0.000000e+00 : f32
    %212 = vector.broadcast %cst_142 : f32 to vector<32x256xf32>
    %213 = arith.maximumf %211, %212 : vector<32x256xf32>
    %214 = arith.truncf %213 : vector<32x256xf32> to vector<32x256xbf16>
    %215 = vector.shape_cast %214 : vector<32x256xbf16> to vector<4x8x256xbf16>
    %216 = vector.extract_strided_slice %215 {offsets = [0, 0, 0], sizes = [1, 8, 256], strides = [1, 1, 1]} : vector<4x8x256xbf16> to vector<1x8x256xbf16>
    %217 = vector.shape_cast %216 : vector<1x8x256xbf16> to vector<8x256xbf16>
    %c0_143 = arith.constant 0 : index
    %c0_144 = arith.constant 0 : index
    %c0_145 = arith.constant 0 : index
    %218 = vector.load %arg6[%c0_143, %c0_144, %c0_145] : memref<4x256x512xbf16, #tpu.memory_space<vmem>>, vector<1x256x512xbf16>
    %219 = vector.shape_cast %218 : vector<1x256x512xbf16> to vector<256x512xbf16>
    %cst_146 = arith.constant dense<0.000000e+00> : vector<8x512xf32>
    %220 = tpu.matmul %217, %219, %cst_146 {dimension_numbers = #tpu.dot_dimension_numbers<[1], [0], [0], [1], [0, 0, 1, 1], [], []>} : vector<8x256xbf16>, vector<256x512xbf16>, vector<8x512xf32> -> vector<8x512xf32>
    %221 = vector.extract_strided_slice %215 {offsets = [1, 0, 0], sizes = [1, 8, 256], strides = [1, 1, 1]} : vector<4x8x256xbf16> to vector<1x8x256xbf16>
    %222 = vector.shape_cast %221 : vector<1x8x256xbf16> to vector<8x256xbf16>
    %c1_147 = arith.constant 1 : index
    %c0_148 = arith.constant 0 : index
    %c0_149 = arith.constant 0 : index
    %223 = vector.load %arg6[%c1_147, %c0_148, %c0_149] : memref<4x256x512xbf16, #tpu.memory_space<vmem>>, vector<1x256x512xbf16>
    %224 = vector.shape_cast %223 : vector<1x256x512xbf16> to vector<256x512xbf16>
    %cst_150 = arith.constant dense<0.000000e+00> : vector<8x512xf32>
    %225 = tpu.matmul %222, %224, %cst_150 {dimension_numbers = #tpu.dot_dimension_numbers<[1], [0], [0], [1], [0, 0, 1, 1], [], []>} : vector<8x256xbf16>, vector<256x512xbf16>, vector<8x512xf32> -> vector<8x512xf32>
    %226 = arith.addf %220, %225 : vector<8x512xf32>
    %227 = vector.extract_strided_slice %215 {offsets = [2, 0, 0], sizes = [1, 8, 256], strides = [1, 1, 1]} : vector<4x8x256xbf16> to vector<1x8x256xbf16>
    %228 = vector.shape_cast %227 : vector<1x8x256xbf16> to vector<8x256xbf16>
    %c2_151 = arith.constant 2 : index
    %c0_152 = arith.constant 0 : index
    %c0_153 = arith.constant 0 : index
    %229 = vector.load %arg6[%c2_151, %c0_152, %c0_153] : memref<4x256x512xbf16, #tpu.memory_space<vmem>>, vector<1x256x512xbf16>
    %230 = vector.shape_cast %229 : vector<1x256x512xbf16> to vector<256x512xbf16>
    %cst_154 = arith.constant dense<0.000000e+00> : vector<8x512xf32>
    %231 = tpu.matmul %228, %230, %cst_154 {dimension_numbers = #tpu.dot_dimension_numbers<[1], [0], [0], [1], [0, 0, 1, 1], [], []>} : vector<8x256xbf16>, vector<256x512xbf16>, vector<8x512xf32> -> vector<8x512xf32>
    %232 = arith.addf %226, %231 : vector<8x512xf32>
    %233 = vector.extract_strided_slice %215 {offsets = [3, 0, 0], sizes = [1, 8, 256], strides = [1, 1, 1]} : vector<4x8x256xbf16> to vector<1x8x256xbf16>
    %234 = vector.shape_cast %233 : vector<1x8x256xbf16> to vector<8x256xbf16>
    %c3_155 = arith.constant 3 : index
    %c0_156 = arith.constant 0 : index
    %c0_157 = arith.constant 0 : index
    %235 = vector.load %arg6[%c3_155, %c0_156, %c0_157] : memref<4x256x512xbf16, #tpu.memory_space<vmem>>, vector<1x256x512xbf16>
    %236 = vector.shape_cast %235 : vector<1x256x512xbf16> to vector<256x512xbf16>
    %cst_158 = arith.constant dense<0.000000e+00> : vector<8x512xf32>
    %237 = tpu.matmul %234, %236, %cst_158 {dimension_numbers = #tpu.dot_dimension_numbers<[1], [0], [0], [1], [0, 0, 1, 1], [], []>} : vector<8x256xbf16>, vector<256x512xbf16>, vector<8x512xf32> -> vector<8x512xf32>
    %238 = arith.addf %232, %237 : vector<8x512xf32>
    %c0_159 = arith.constant 0 : index
    %c0_160 = arith.constant 0 : index
    %239 = vector.load %arg7[%c0_159, %c0_160] : memref<1x512xf32, #tpu.memory_space<vmem>>, vector<1x512xf32>
    %240 = vector.broadcast %239 : vector<1x512xf32> to vector<8x512xf32>
    %241 = arith.addf %238, %240 : vector<8x512xf32>
    %cst_161 = arith.constant 0.000000e+00 : f32
    %242 = vector.broadcast %cst_161 : f32 to vector<8x512xf32>
    %243 = arith.maximumf %241, %242 : vector<8x512xf32>
    %244 = arith.truncf %243 : vector<8x512xf32> to vector<8x512xbf16>
    %c0_162 = arith.constant 0 : index
    %c0_163 = arith.constant 0 : index
    %245 = vector.load %arg8[%c0_162, %c0_163] : memref<512x10xbf16, #tpu.memory_space<vmem>>, vector<512x10xbf16>
    %cst_164 = arith.constant dense<0.000000e+00> : vector<8x10xf32>
    %246 = tpu.matmul %244, %245, %cst_164 {dimension_numbers = #tpu.dot_dimension_numbers<[1], [0], [0], [1], [0, 0, 1, 1], [], []>} : vector<8x512xbf16>, vector<512x10xbf16>, vector<8x10xf32> -> vector<8x10xf32>
    %c0_165 = arith.constant 0 : index
    %c0_166 = arith.constant 0 : index
    %247 = vector.load %arg9[%c0_165, %c0_166] : memref<1x10xf32, #tpu.memory_space<vmem>>, vector<1x10xf32>
    %248 = vector.broadcast %247 : vector<1x10xf32> to vector<8x10xf32>
    %249 = arith.addf %246, %248 : vector<8x10xf32>
    %cst_167 = arith.constant dense<0xFF800000> : vector<8xf32>
    %250 = vector.multi_reduction <maximumf>, %249, %cst_167 [1] : vector<8x10xf32> to vector<8xf32>
    %251 = vector.shape_cast %250 : vector<8xf32> to vector<8x1xf32>
    %252 = vector.broadcast %251 : vector<8x1xf32> to vector<8x10xf32>
    %253 = arith.subf %249, %252 : vector<8x10xf32>
    %254 = math.exp %253 : vector<8x10xf32>
    %cst_168 = arith.constant dense<0.000000e+00> : vector<8xf32>
    %255 = vector.multi_reduction <add>, %254, %cst_168 [1] : vector<8x10xf32> to vector<8xf32>
    %256 = vector.shape_cast %255 : vector<8xf32> to vector<8x1xf32>
    %257 = math.log %256 : vector<8x1xf32>
    %258 = vector.broadcast %257 : vector<8x1xf32> to vector<8x10xf32>
    %259 = arith.subf %253, %258 : vector<8x10xf32>
    %c0_169 = arith.constant 0 : index
    %c0_170 = arith.constant 0 : index
    %260 = vector.load %arg10[%c0_169, %c0_170] : memref<8x10xf32, #tpu.memory_space<vmem>>, vector<8x10xf32>
    tpu.vector_store %arg10[%c0_169, %c0_170], %259 {strides = array<i32>} : memref<8x10xf32, #tpu.memory_space<vmem>>, vector<8x10xf32>,
    return
  }
  func.func @transform_0(%arg0: i32) -> (i32, i32, i32, i32) {
    %c0_i32 = arith.constant 0 : i32
    %c0_i32_0 = arith.constant 0 : i32
    %c0_i32_1 = arith.constant 0 : i32
    %c0_i32_2 = arith.constant 0 : i32
    return %c0_i32, %c0_i32_0, %arg0, %c0_i32_1 : i32, i32, i32, i32
  }
  func.func @transform_1(%arg0: i32) -> (i32, i32, i32) {
    %c0_i32 = arith.constant 0 : i32
    %c0_i32_0 = arith.constant 0 : i32
    %c0_i32_1 = arith.constant 0 : i32
    %c0_i32_2 = arith.constant 0 : i32
    return %c0_i32, %c0_i32_0, %c0_i32_1 : i32, i32, i32
  }
  func.func @transform_2(%arg0: i32) -> (i32, i32) {
    %c0_i32 = arith.constant 0 : i32
    %c0_i32_0 = arith.constant 0 : i32
    %c0_i32_1 = arith.constant 0 : i32
    return %c0_i32, %c0_i32_0 : i32, i32
  }
  func.func @transform_3(%arg0: i32) -> (i32, i32, i32) {
    %c0_i32 = arith.constant 0 : i32
    %c0_i32_0 = arith.constant 0 : i32
    %c0_i32_1 = arith.constant 0 : i32
    %c0_i32_2 = arith.constant 0 : i32
    return %c0_i32, %c0_i32_0, %c0_i32_1 : i32, i32, i32
  }
  func.func @transform_4(%arg0: i32) -> (i32, i32) {
    %c0_i32 = arith.constant 0 : i32
    %c0_i32_0 = arith.constant 0 : i32
    %c0_i32_1 = arith.constant 0 : i32
    return %c0_i32, %c0_i32_0 : i32, i32
  }
  func.func @transform_5(%arg0: i32) -> (i32, i32, i32) {
    %c0_i32 = arith.constant 0 : i32
    %c0_i32_0 = arith.constant 0 : i32
    %c0_i32_1 = arith.constant 0 : i32
    %c0_i32_2 = arith.constant 0 : i32
    return %c0_i32, %c0_i32_0, %c0_i32_1 : i32, i32, i32
  }
  func.func @transform_6(%arg0: i32) -> (i32, i32) {
    %c0_i32 = arith.constant 0 : i32
    %c0_i32_0 = arith.constant 0 : i32
    %c0_i32_1 = arith.constant 0 : i32
    return %c0_i32, %c0_i32_0 : i32, i32
  }
  func.func @transform_7(%arg0: i32) -> (i32, i32) {
    %c0_i32 = arith.constant 0 : i32
    %c0_i32_0 = arith.constant 0 : i32
    %c0_i32_1 = arith.constant 0 : i32
    return %c0_i32, %c0_i32_0 : i32, i32
  }
  func.func @transform_8(%arg0: i32) -> (i32, i32) {
    %c0_i32 = arith.constant 0 : i32
    %c0_i32_0 = arith.constant 0 : i32
    %c0_i32_1 = arith.constant 0 : i32
    return %c0_i32, %c0_i32_0 : i32, i32
  }
  func.func @transform_9(%arg0: i32) -> (i32, i32) {
    %c0_i32 = arith.constant 0 : i32
    %c0_i32_0 = arith.constant 0 : i32
    return %arg0, %c0_i32 : i32, i32
  }
}

</mosaic_0001>

<llo_original>
// kernel: net_forward.1
$region0: #{net_forward.1}
  #allocation0 [shape = 'u32[]', space=smem, size = 0x4, offset = 0x4, fixed_abs, tag = 'smem constant byte address 0x4 - core index']
  #allocation1 [shape = 'u32[144,128]{1,0:T(1,128)}', space=vmem, size = 0x12000, scoped, tag = 'internal scratch']
  %s0 = inlined_call_operand.vmem [shape: f32[4,7,8,28], index: 0, kind: input, shape index: {}]
  %s1 = inlined_call_operand.hbm [shape: bf16[5,28,512], index: 1, kind: input, shape index: {}]
  %s2 = inlined_call_operand.hbm [shape: f32[1,256], index: 2, kind: input, shape index: {}]
  %s3 = inlined_call_operand.hbm [shape: bf16[5,256,512], index: 3, kind: input, shape index: {}]
  %s4 = inlined_call_operand.hbm [shape: f32[1,256], index: 4, kind: input, shape index: {}]
  %s5 = inlined_call_operand.hbm [shape: bf16[4,256,512], index: 5, kind: input, shape index: {}]
  %s6 = inlined_call_operand.hbm [shape: f32[1,512], index: 6, kind: input, shape index: {}]
  %s7 = inlined_call_operand.vmem [shape: bf16[512,10], index: 7, kind: input, shape index: {}]
  %s8 = inlined_call_operand.hbm [shape: f32[1,10], index: 8, kind: input, shape index: {}]
  %s9 = inlined_call_operand.vmem [shape: f32[8,10], index: 9, kind: output, shape index: {}]
  %s10 = sld [smem:[#allocation0]]
  $region74: #{net_forward.1} parent=0
    _
  %s12 = ssub.s32 1, %s10
  %s13 = scalar_select 0, %s12, %s10
  $region1: #{net_forward.1} parent=0
    #allocation2 [shape = 'u8[163840]{0}', space=vmem, size = 0x28000, scoped, tag = 'input window, operand 1, single buffered']
    #allocation3 [shape = 's32[1]{0}', space=sflag, size = 0x4, scoped, tag = 'scoped memory for net_forward.1']
    #allocation4 [shape = 'u8[1024]{0}', space=vmem, size = 0x400, scoped, tag = 'input window, operand 2, single buffered']
    #allocation5 [shape = 's32[1]{0}', space=sflag, size = 0x4, scoped, tag = 'scoped memory for net_forward.1']
    #allocation6 [shape = 'u8[1310720]{0}', space=vmem, size = 0x140000, scoped, tag = 'input window, operand 3, single buffered']
    #allocation7 [shape = 'u8[1024]{0}', space=vmem, size = 0x400, scoped, tag = 'input window, operand 4, single buffered']
    #allocation8 [shape = 's32[1]{0}', space=sflag, size = 0x4, scoped, tag = 'scoped memory for net_forward.1']
    #allocation9 [shape = 'u8[1048576]{0}', space=vmem, size = 0x100000, scoped, tag = 'input window, operand 5, single buffered']
    #allocation10 [shape = 'u8[2048]{0}', space=vmem, size = 0x800, scoped, tag = 'input window, operand 6, single buffered']
    #allocation11 [shape = 's32[1]{0}', space=sflag, size = 0x4, scoped, tag = 'scoped memory for net_forward.1']
    #allocation12 [shape = 'u8[512]{0}', space=vmem, size = 0x400, scoped, tag = 'input window, operand 8, single buffered']
    %14 = vsyncpa [#allocation3], 0
    %15 = vsyncpa [#allocation5], 0
    %16 = vsyncpa [#allocation8], 0
    %17 = vsyncpa [#allocation11], 0
    // Predicated region
    $region2: #{net_forward.1} parent=1 // pred_check
      _
    $region3: #{net_forward.1} parent=1 // pred_check_branch
      %19 = sbr.rel (0) target = $region5
    $region4: #{net_forward.1} parent=1 // pred_region
      _
    $region5: #{net_forward.1} parent=1 // pred_fallthru
      _
    // Predicated region
    $region6: #{net_forward.1} parent=1 // pred_check
      _
    $region7: #{net_forward.1} parent=1 // pred_check_branch
      %21 = sbr.rel (0) target = $region9
    $region8: #{net_forward.1} parent=1 // pred_region
      %s23 = ssub.s32 5120, 5120
      %24 = vsyncadd [#allocation3], %s23
      %s25 = sshll.u32 [#allocation2], 4
      %s26 = int_to_ptr.vmem [resolvable:$true] %s25
      %31 = dma.hbm_to_vmem [thread:$0]  %s1, 5120, %s26, [#allocation3], 256, 256, 16
    $region9: #{net_forward.1} parent=1 // pred_fallthru
      _
    // Predicated region
    $region10: #{net_forward.1} parent=1 // pred_check
      _
    $region11: #{net_forward.1} parent=1 // pred_check_branch
      %33 = sbr.rel (0) target = $region13
    $region12: #{net_forward.1} parent=1 // pred_region
      %s35 = ssub.s32 32, 32
      %36 = vsyncadd [#allocation5], %s35
      %s38 = sshll.u32 [#allocation4], 4
      %s39 = int_to_ptr.vmem [resolvable:$true] %s38
      %41 = dma.hbm_to_vmem [thread:$0]  %s2, 32, %s39, [#allocation5]
    $region13: #{net_forward.1} parent=1 // pred_fallthru
      _
    // Predicated region
    $region14: #{net_forward.1} parent=1 // pred_check
      _
    $region15: #{net_forward.1} parent=1 // pred_check_branch
      %43 = sbr.rel (0) target = $region17
    $region16: #{net_forward.1} parent=1 // pred_region
      %s45 = ssub.s32 40960, 40960
      %46 = vsyncadd [#allocation5], %s45
      %s47 = sshll.u32 [#allocation6], 4
      %s48 = int_to_ptr.vmem [resolvable:$true] %s47
      %53 = dma.hbm_to_vmem [thread:$0]  %s3, 40960, %s48, [#allocation5], 256, 256, 16
    $region17: #{net_forward.1} parent=1 // pred_fallthru
      _
    // Predicated region
    $region18: #{net_forward.1} parent=1 // pred_check
      _
    $region19: #{net_forward.1} parent=1 // pred_check_branch
      %55 = sbr.rel (0) target = $region21
    $region20: #{net_forward.1} parent=1 // pred_region
      %s57 = ssub.s32 32, 32
      %58 = vsyncadd [#allocation8], %s57
      %s60 = sshll.u32 [#allocation7], 4
      %s61 = int_to_ptr.vmem [resolvable:$true] %s60
      %63 = dma.hbm_to_vmem [thread:$0]  %s4, 32, %s61, [#allocation8]
    $region21: #{net_forward.1} parent=1 // pred_fallthru
      _
    // Predicated region
    $region22: #{net_forward.1} parent=1 // pred_check
      _
    $region23: #{net_forward.1} parent=1 // pred_check_branch
      %65 = sbr.rel (0) target = $region25
    $region24: #{net_forward.1} parent=1 // pred_region
      %s67 = ssub.s32 32768, 32768
      %68 = vsyncadd [#allocation8], %s67
      %s69 = sshll.u32 [#allocation9], 4
      %s70 = int_to_ptr.vmem [resolvable:$true] %s69
      %75 = dma.hbm_to_vmem [thread:$0]  %s5, 32768, %s70, [#allocation8], 256, 256, 16
    $region25: #{net_forward.1} parent=1 // pred_fallthru
      _
    // Predicated region
    $region26: #{net_forward.1} parent=1 // pred_check
      _
    $region27: #{net_forward.1} parent=1 // pred_check_branch
      %77 = sbr.rel (0) target = $region29
    $region28: #{net_forward.1} parent=1 // pred_region
      %s79 = ssub.s32 64, 64
      %80 = vsyncadd [#allocation11], %s79
      %s82 = sshll.u32 [#allocation10], 4
      %s83 = int_to_ptr.vmem [resolvable:$true] %s82
      %85 = dma.hbm_to_vmem [thread:$0]  %s6, 64, %s83, [#allocation11]
    $region29: #{net_forward.1} parent=1 // pred_fallthru
      _
    // Predicated region
    $region30: #{net_forward.1} parent=1 // pred_check
      _
    $region31: #{net_forward.1} parent=1 // pred_check_branch
      %87 = sbr.rel (0) target = $region33
    $region32: #{net_forward.1} parent=1 // pred_region
      _
    $region33: #{net_forward.1} parent=1 // pred_fallthru
      _
    // Predicated region
    $region34: #{net_forward.1} parent=1 // pred_check
      _
    $region35: #{net_forward.1} parent=1 // pred_check_branch
      %89 = sbr.rel (0) target = $region37
    $region36: #{net_forward.1} parent=1 // pred_region
      %s91 = ssub.s32 16, 16
      %92 = vsyncadd [#allocation11], %s91
      %s94 = sshll.u32 [#allocation12], 4
      %s95 = int_to_ptr.vmem [resolvable:$true] %s94
      %97 = dma.hbm_to_vmem [thread:$0]  %s8, 16, %s95, [#allocation11]
    $region37: #{net_forward.1} parent=1 // pred_fallthru
      _
    // Predicated region
    $region38: #{net_forward.1} parent=1 // pred_check
      _
    $region39: #{net_forward.1} parent=1 // pred_check_branch
      %99 = sbr.rel (0) target = $region41
    $region40: #{net_forward.1} parent=1 // pred_region
      %100 = dma.done [#allocation3], 5120
    $region41: #{net_forward.1} parent=1 // pred_fallthru
      _
    // Predicated region
    $region42: #{net_forward.1} parent=1 // pred_check
      _
    $region43: #{net_forward.1} parent=1 // pred_check_branch
      %102 = sbr.rel (0) target = $region45
    $region44: #{net_forward.1} parent=1 // pred_region
      %103 = dma.done [#allocation5], 32
    $region45: #{net_forward.1} parent=1 // pred_fallthru
      _
    // Predicated region
    $region46: #{net_forward.1} parent=1 // pred_check
      _
    $region47: #{net_forward.1} parent=1 // pred_check_branch
      %105 = sbr.rel (0) target = $region49
    $region48: #{net_forward.1} parent=1 // pred_region
      %106 = dma.done [#allocation5], 40960
    $region49: #{net_forward.1} parent=1 // pred_fallthru
      _
    // Predicated region
    $region50: #{net_forward.1} parent=1 // pred_check
      _
    $region51: #{net_forward.1} parent=1 // pred_check_branch
      %108 = sbr.rel (0) target = $region53
    $region52: #{net_forward.1} parent=1 // pred_region
      %109 = dma.done [#allocation8], 32
    $region53: #{net_forward.1} parent=1 // pred_fallthru
      _
    // Predicated region
    $region54: #{net_forward.1} parent=1 // pred_check
      _
    $region55: #{net_forward.1} parent=1 // pred_check_branch
      %111 = sbr.rel (0) target = $region57
    $region56: #{net_forward.1} parent=1 // pred_region
      %112 = dma.done [#allocation8], 32768
    $region57: #{net_forward.1} parent=1 // pred_fallthru
      _
    // Predicated region
    $region58: #{net_forward.1} parent=1 // pred_check
      _
    $region59: #{net_forward.1} parent=1 // pred_check_branch
      %114 = sbr.rel (0) target = $region61
    $region60: #{net_forward.1} parent=1 // pred_region
      %115 = dma.done [#allocation11], 64
    $region61: #{net_forward.1} parent=1 // pred_fallthru
      _
    // Predicated region
    $region62: #{net_forward.1} parent=1 // pred_check
      _
    $region63: #{net_forward.1} parent=1 // pred_check_branch
      %117 = sbr.rel (0) target = $region65
    $region64: #{net_forward.1} parent=1 // pred_region
      %118 = dma.done [#allocation11], 16
    $region65: #{net_forward.1} parent=1 // pred_fallthru
      _
    %v120 = vld [vmem:[#allocation2] sm:$0xff]
    %v121 = vld [vmem:[#allocation2 + $0x8] sm:$0xff]
    %v122 = vld [vmem:[#allocation2 + $0x10] sm:$0xff]
    %v123 = vld [vmem:[#allocation2 + $0x18] sm:$0xff]
    %v124 = vld [vmem:[#allocation2 + $0x20] sm:$0xff]
    %v125 = vld [vmem:[#allocation2 + $0x28] sm:$0xff]
    %v126 = vld [vmem:[#allocation2 + $0x30] sm:$0x33]
    %v127 = vld [vmem:[#allocation2 + $0x38] sm:$0x33]
    %s128 = scalar_lea.vmem [#allocation2], 64
    %v129 = vld [vmem:[%s128] sm:$0xff]
    %v130 = vld [vmem:[%s128 + $0x8] sm:$0xff]
    %v131 = vld [vmem:[%s128 + $0x10] sm:$0xff]
    %v132 = vld [vmem:[%s128 + $0x18] sm:$0xff]
    %v133 = vld [vmem:[%s128 + $0x20] sm:$0xff]
    %v134 = vld [vmem:[%s128 + $0x28] sm:$0xff]
    %v135 = vld [vmem:[%s128 + $0x30] sm:$0x33]
    %v136 = vld [vmem:[%s128 + $0x38] sm:$0x33]
    %s137 = scalar_lea.vmem [#allocation2], 128
    %v138 = vld [vmem:[%s137] sm:$0xff]
    %v139 = vld [vmem:[%s137 + $0x8] sm:$0xff]
    %v140 = vld [vmem:[%s137 + $0x10] sm:$0xff]
    %v141 = vld [vmem:[%s137 + $0x18] sm:$0xff]
    %v142 = vld [vmem:[%s137 + $0x20] sm:$0xff]
    %v143 = vld [vmem:[%s137 + $0x28] sm:$0xff]
    %v144 = vld [vmem:[%s137 + $0x30] sm:$0x33]
    %v145 = vld [vmem:[%s137 + $0x38] sm:$0x33]
    %s146 = scalar_lea.vmem [#allocation2], 192
    %v147 = vld [vmem:[%s146] sm:$0xff]
    %v148 = vld [vmem:[%s146 + $0x8] sm:$0xff]
    %v149 = vld [vmem:[%s146 + $0x10] sm:$0xff]
    %v150 = vld [vmem:[%s146 + $0x18] sm:$0xff]
    %v151 = vld [vmem:[%s146 + $0x20] sm:$0xff]
    %v152 = vld [vmem:[%s146 + $0x28] sm:$0xff]
    %v153 = vld [vmem:[%s146 + $0x30] sm:$0x33]
    %v154 = vld [vmem:[%s146 + $0x38] sm:$0x33]
    %s155 = scalar_lea.vmem [#allocation2], 256
    %v156 = vld [vmem:[%s155] sm:$0xff]
    %v157 = vld [vmem:[%s155 + $0x8] sm:$0xff]
    %v158 = vld [vmem:[%s155 + $0x10] sm:$0xff]
    %v159 = vld [vmem:[%s155 + $0x18] sm:$0xff]
    %v160 = vld [vmem:[%s155 + $0x20] sm:$0xff]
    %v161 = vld [vmem:[%s155 + $0x28] sm:$0xff]
    %v162 = vld [vmem:[%s155 + $0x30] sm:$0x33]
    %v163 = vld [vmem:[%s155 + $0x38] sm:$0x33]
    %v164 = vld [vmem:[#allocation6] sm:$0xff]
    %v165 = vld [vmem:[#allocation6 + $0x8] sm:$0xff]
    %v166 = vld [vmem:[#allocation6 + $0x10] sm:$0xff]
    %v167 = vld [vmem:[#allocation6 + $0x18] sm:$0xff]
    %v168 = vld [vmem:[#allocation6 + $0x20] sm:$0xff]
    %v169 = vld [vmem:[#allocation6 + $0x28] sm:$0xff]
    %v170 = vld [vmem:[#allocation6 + $0x30] sm:$0xff]
    %v171 = vld [vmem:[#allocation6 + $0x38] sm:$0xff]
    %v172 = vld [vmem:[#allocation6 + $0x40] sm:$0xff]
    %v173 = vld [vmem:[#allocation6 + $0x48] sm:$0xff]
    %v174 = vld [vmem:[#allocation6 + $0x50] sm:$0xff]
    %v175 = vld [vmem:[#allocation6 + $0x58] sm:$0xff]
    %v176 = vld [vmem:[#allocation6 + $0x60] sm:$0xff]
    %v177 = vld [vmem:[#allocation6 + $0x68] sm:$0xff]
    %v178 = vld [vmem:[#allocation6 + $0x70] sm:$0xff]
    %v179 = vld [vmem:[#allocation6 + $0x78] sm:$0xff]
    %v180 = vld [vmem:[#allocation6 + $0x80] sm:$0xff]
    %v181 = vld [vmem:[#allocation6 + $0x88] sm:$0xff]
    %v182 = vld [vmem:[#allocation6 + $0x90] sm:$0xff]
    %v183 = vld [vmem:[#allocation6 + $0x98] sm:$0xff]
    %v184 = vld [vmem:[#allocation6 + $0xa0] sm:$0xff]
    %v185 = vld [vmem:[#allocation6 + $0xa8] sm:$0xff]
    %v186 = vld [vmem:[#allocation6 + $0xb0] sm:$0xff]
    %v187 = vld [vmem:[#allocation6 + $0xb8] sm:$0xff]
    %v188 = vld [vmem:[#allocation6 + $0xc0] sm:$0xff]
    %v189 = vld [vmem:[#allocation6 + $0xc8] sm:$0xff]
    %v190 = vld [vmem:[#allocation6 + $0xd0] sm:$0xff]
    %v191 = vld [vmem:[#allocation6 + $0xd8] sm:$0xff]
    %v192 = vld [vmem:[#allocation6 + $0xe0] sm:$0xff]
    %v193 = vld [vmem:[#allocation6 + $0xe8] sm:$0xff]
    %v194 = vld [vmem:[#allocation6 + $0xf0] sm:$0xff]
    %v195 = vld [vmem:[#allocation6 + $0xf8] sm:$0xff]
    %v196 = vld [vmem:[#allocation6 + $0x100] sm:$0xff]
    %v197 = vld [vmem:[#allocation6 + $0x108] sm:$0xff]
    %v198 = vld [vmem:[#allocation6 + $0x110] sm:$0xff]
    %v199 = vld [vmem:[#allocation6 + $0x118] sm:$0xff]
    %v200 = vld [vmem:[#allocation6 + $0x120] sm:$0xff]
    %v201 = vld [vmem:[#allocation6 + $0x128] sm:$0xff]
    %v202 = vld [vmem:[#allocation6 + $0x130] sm:$0xff]
    %v203 = vld [vmem:[#allocation6 + $0x138] sm:$0xff]
    %v204 = vld [vmem:[#allocation6 + $0x140] sm:$0xff]
    %v205 = vld [vmem:[#allocation6 + $0x148] sm:$0xff]
    %v206 = vld [vmem:[#allocation6 + $0x150] sm:$0xff]
    %v207 = vld [vmem:[#allocation6 + $0x158] sm:$0xff]
    %v208 = vld [vmem:[#allocation6 + $0x160] sm:$0xff]
    %v209 = vld [vmem:[#allocation6 + $0x168] sm:$0xff]
    %v210 = vld [vmem:[#allocation6 + $0x170] sm:$0xff]
    %v211 = vld [vmem:[#allocation6 + $0x178] sm:$0xff]
    %v212 = vld [vmem:[#allocation6 + $0x180] sm:$0xff]
    %v213 = vld [vmem:[#allocation6 + $0x188] sm:$0xff]
    %v214 = vld [vmem:[#allocation6 + $0x190] sm:$0xff]
    %v215 = vld [vmem:[#allocation6 + $0x198] sm:$0xff]
    %v216 = vld [vmem:[#allocation6 + $0x1a0] sm:$0xff]
    %v217 = vld [vmem:[#allocation6 + $0x1a8] sm:$0xff]
    %v218 = vld [vmem:[#allocation6 + $0x1b0] sm:$0xff]
    %v219 = vld [vmem:[#allocation6 + $0x1b8] sm:$0xff]
    %v220 = vld [vmem:[#allocation6 + $0x1c0] sm:$0xff]
    %v221 = vld [vmem:[#allocation6 + $0x1c8] sm:$0xff]
    %v222 = vld [vmem:[#allocation6 + $0x1d0] sm:$0xff]
    %v223 = vld [vmem:[#allocation6 + $0x1d8] sm:$0xff]
    %v224 = vld [vmem:[#allocation6 + $0x1e0] sm:$0xff]
    %v225 = vld [vmem:[#allocation6 + $0x1e8] sm:$0xff]
    %v226 = vld [vmem:[#allocation6 + $0x1f0] sm:$0xff]
    %v227 = vld [vmem:[#allocation6 + $0x1f8] sm:$0xff]
    %s228 = scalar_lea.vmem [#allocation6], 512
    %v229 = vld [vmem:[%s228] sm:$0xff]
    %v230 = vld [vmem:[%s228 + $0x8] sm:$0xff]
    %v231 = vld [vmem:[%s228 + $0x10] sm:$0xff]
    %v232 = vld [vmem:[%s228 + $0x18] sm:$0xff]
    %v233 = vld [vmem:[%s228 + $0x20] sm:$0xff]
    %v234 = vld [vmem:[%s228 + $0x28] sm:$0xff]
    %v235 = vld [vmem:[%s228 + $0x30] sm:$0xff]
    %v236 = vld [vmem:[%s228 + $0x38] sm:$0xff]
    %v237 = vld [vmem:[%s228 + $0x40] sm:$0xff]
    %v238 = vld [vmem:[%s228 + $0x48] sm:$0xff]
    %v239 = vld [vmem:[%s228 + $0x50] sm:$0xff]
    %v240 = vld [vmem:[%s228 + $0x58] sm:$0xff]
    %v241 = vld [vmem:[%s228 + $0x60] sm:$0xff]
    %v242 = vld [vmem:[%s228 + $0x68] sm:$0xff]
    %v243 = vld [vmem:[%s228 + $0x70] sm:$0xff]
    %v244 = vld [vmem:[%s228 + $0x78] sm:$0xff]
    %v245 = vld [vmem:[%s228 + $0x80] sm:$0xff]
    %v246 = vld [vmem:[%s228 + $0x88] sm:$0xff]
    %v247 = vld [vmem:[%s228 + $0x90] sm:$0xff]
    %v248 = vld [vmem:[%s228 + $0x98] sm:$0xff]
    %v249 = vld [vmem:[%s228 + $0xa0] sm:$0xff]
    %v250 = vld [vmem:[%s228 + $0xa8] sm:$0xff]
    %v251 = vld [vmem:[%s228 + $0xb0] sm:$0xff]
    %v252 = vld [vmem:[%s228 + $0xb8] sm:$0xff]
    %v253 = vld [vmem:[%s228 + $0xc0] sm:$0xff]
    %v254 = vld [vmem:[%s228 + $0xc8] sm:$0xff]
    %v255 = vld [vmem:[%s228 + $0xd0] sm:$0xff]
    %v256 = vld [vmem:[%s228 + $0xd8] sm:$0xff]
    %v257 = vld [vmem:[%s228 + $0xe0] sm:$0xff]
    %v258 = vld [vmem:[%s228 + $0xe8] sm:$0xff]
    %v259 = vld [vmem:[%s228 + $0xf0] sm:$0xff]
    %v260 = vld [vmem:[%s228 + $0xf8] sm:$0xff]
    %v261 = vld [vmem:[%s228 + $0x100] sm:$0xff]
    %v262 = vld [vmem:[%s228 + $0x108] sm:$0xff]
    %v263 = vld [vmem:[%s228 + $0x110] sm:$0xff]
    %v264 = vld [vmem:[%s228 + $0x118] sm:$0xff]
    %v265 = vld [vmem:[%s228 + $0x120] sm:$0xff]
    %v266 = vld [vmem:[%s228 + $0x128] sm:$0xff]
    %v267 = vld [vmem:[%s228 + $0x130] sm:$0xff]
    %v268 = vld [vmem:[%s228 + $0x138] sm:$0xff]
    %v269 = vld [vmem:[%s228 + $0x140] sm:$0xff]
    %v270 = vld [vmem:[%s228 + $0x148] sm:$0xff]
    %v271 = vld [vmem:[%s228 + $0x150] sm:$0xff]
    %v272 = vld [vmem:[%s228 + $0x158] sm:$0xff]
    %v273 = vld [vmem:[%s228 + $0x160] sm:$0xff]
    %v274 = vld [vmem:[%s228 + $0x168] sm:$0xff]
    %v275 = vld [vmem:[%s228 + $0x170] sm:$0xff]
    %v276 = vld [vmem:[%s228 + $0x178] sm:$0xff]
    %v277 = vld [vmem:[%s228 + $0x180] sm:$0xff]
    %v278 = vld [vmem:[%s228 + $0x188] sm:$0xff]
    %v279 = vld [vmem:[%s228 + $0x190] sm:$0xff]
    %v280 = vld [vmem:[%s228 + $0x198] sm:$0xff]
    %v281 = vld [vmem:[%s228 + $0x1a0] sm:$0xff]
    %v282 = vld [vmem:[%s228 + $0x1a8] sm:$0xff]
    %v283 = vld [vmem:[%s228 + $0x1b0] sm:$0xff]
    %v284 = vld [vmem:[%s228 + $0x1b8] sm:$0xff]
    %v285 = vld [vmem:[%s228 + $0x1c0] sm:$0xff]
    %v286 = vld [vmem:[%s228 + $0x1c8] sm:$0xff]
    %v287 = vld [vmem:[%s228 + $0x1d0] sm:$0xff]
    %v288 = vld [vmem:[%s228 + $0x1d8] sm:$0xff]
    %v289 = vld [vmem:[%s228 + $0x1e0] sm:$0xff]
    %v290 = vld [vmem:[%s228 + $0x1e8] sm:$0xff]
    %v291 = vld [vmem:[%s228 + $0x1f0] sm:$0xff]
    %v292 = vld [vmem:[%s228 + $0x1f8] sm:$0xff]
    %s293 = scalar_lea.vmem [#allocation6], 1024
    %v294 = vld [vmem:[%s293] sm:$0xff]
    %v295 = vld [vmem:[%s293 + $0x8] sm:$0xff]
    %v296 = vld [vmem:[%s293 + $0x10] sm:$0xff]
    %v297 = vld [vmem:[%s293 + $0x18] sm:$0xff]
    %v298 = vld [vmem:[%s293 + $0x20] sm:$0xff]
    %v299 = vld [vmem:[%s293 + $0x28] sm:$0xff]
    %v300 = vld [vmem:[%s293 + $0x30] sm:$0xff]
    %v301 = vld [vmem:[%s293 + $0x38] sm:$0xff]
    %v302 = vld [vmem:[%s293 + $0x40] sm:$0xff]
    %v303 = vld [vmem:[%s293 + $0x48] sm:$0xff]
    %v304 = vld [vmem:[%s293 + $0x50] sm:$0xff]
    %v305 = vld [vmem:[%s293 + $0x58] sm:$0xff]
    %v306 = vld [vmem:[%s293 + $0x60] sm:$0xff]
    %v307 = vld [vmem:[%s293 + $0x68] sm:$0xff]
    %v308 = vld [vmem:[%s293 + $0x70] sm:$0xff]
    %v309 = vld [vmem:[%s293 + $0x78] sm:$0xff]
    %v310 = vld [vmem:[%s293 + $0x80] sm:$0xff]
    %v311 = vld [vmem:[%s293 + $0x88] sm:$0xff]
    %v312 = vld [vmem:[%s293 + $0x90] sm:$0xff]
    %v313 = vld [vmem:[%s293 + $0x98] sm:$0xff]
    %v314 = vld [vmem:[%s293 + $0xa0] sm:$0xff]
    %v315 = vld [vmem:[%s293 + $0xa8] sm:$0xff]
    %v316 = vld [vmem:[%s293 + $0xb0] sm:$0xff]
    %v317 = vld [vmem:[%s293 + $0xb8] sm:$0xff]
    %v318 = vld [vmem:[%s293 + $0xc0] sm:$0xff]
    %v319 = vld [vmem:[%s293 + $0xc8] sm:$0xff]
    %v320 = vld [vmem:[%s293 + $0xd0] sm:$0xff]
    %v321 = vld [vmem:[%s293 + $0xd8] sm:$0xff]
    %v322 = vld [vmem:[%s293 + $0xe0] sm:$0xff]
    %v323 = vld [vmem:[%s293 + $0xe8] sm:$0xff]
    %v324 = vld [vmem:[%s293 + $0xf0] sm:$0xff]
    %v325 = vld [vmem:[%s293 + $0xf8] sm:$0xff]
    %v326 = vld [vmem:[%s293 + $0x100] sm:$0xff]
    %v327 = vld [vmem:[%s293 + $0x108] sm:$0xff]
    %v328 = vld [vmem:[%s293 + $0x110] sm:$0xff]
    %v329 = vld [vmem:[%s293 + $0x118] sm:$0xff]
    %v330 = vld [vmem:[%s293 + $0x120] sm:$0xff]
    %v331 = vld [vmem:[%s293 + $0x128] sm:$0xff]
    %v332 = vld [vmem:[%s293 + $0x130] sm:$0xff]
    %v333 = vld [vmem:[%s293 + $0x138] sm:$0xff]
    %v334 = vld [vmem:[%s293 + $0x140] sm:$0xff]
    %v335 = vld [vmem:[%s293 + $0x148] sm:$0xff]
    %v336 = vld [vmem:[%s293 + $0x150] sm:$0xff]
    %v337 = vld [vmem:[%s293 + $0x158] sm:$0xff]
    %v338 = vld [vmem:[%s293 + $0x160] sm:$0xff]
    %v339 = vld [vmem:[%s293 + $0x168] sm:$0xff]
    %v340 = vld [vmem:[%s293 + $0x170] sm:$0xff]
    %v341 = vld [vmem:[%s293 + $0x178] sm:$0xff]
    %v342 = vld [vmem:[%s293 + $0x180] sm:$0xff]
    %v343 = vld [vmem:[%s293 + $0x188] sm:$0xff]
    %v344 = vld [vmem:[%s293 + $0x190] sm:$0xff]
    %v345 = vld [vmem:[%s293 + $0x198] sm:$0xff]
    %v346 = vld [vmem:[%s293 + $0x1a0] sm:$0xff]
    %v347 = vld [vmem:[%s293 + $0x1a8] sm:$0xff]
    %v348 = vld [vmem:[%s293 + $0x1b0] sm:$0xff]
    %v349 = vld [vmem:[%s293 + $0x1b8] sm:$0xff]
    %v350 = vld [vmem:[%s293 + $0x1c0] sm:$0xff]
    %v351 = vld [vmem:[%s293 + $0x1c8] sm:$0xff]
    %v352 = vld [vmem:[%s293 + $0x1d0] sm:$0xff]
    %v353 = vld [vmem:[%s293 + $0x1d8] sm:$0xff]
    %v354 = vld [vmem:[%s293 + $0x1e0] sm:$0xff]
    %v355 = vld [vmem:[%s293 + $0x1e8] sm:$0xff]
    %v356 = vld [vmem:[%s293 + $0x1f0] sm:$0xff]
    %v357 = vld [vmem:[%s293 + $0x1f8] sm:$0xff]
    %s358 = scalar_lea.vmem [#allocation6], 1536
    %v359 = vld [vmem:[%s358] sm:$0xff]
    %v360 = vld [vmem:[%s358 + $0x8] sm:$0xff]
    %v361 = vld [vmem:[%s358 + $0x10] sm:$0xff]
    %v362 = vld [vmem:[%s358 + $0x18] sm:$0xff]
    %v363 = vld [vmem:[%s358 + $0x20] sm:$0xff]
    %v364 = vld [vmem:[%s358 + $0x28] sm:$0xff]
    %v365 = vld [vmem:[%s358 + $0x30] sm:$0xff]
    %v366 = vld [vmem:[%s358 + $0x38] sm:$0xff]
    %v367 = vld [vmem:[%s358 + $0x40] sm:$0xff]
    %v368 = vld [vmem:[%s358 + $0x48] sm:$0xff]
    %v369 = vld [vmem:[%s358 + $0x50] sm:$0xff]
    %v370 = vld [vmem:[%s358 + $0x58] sm:$0xff]
    %v371 = vld [vmem:[%s358 + $0x60] sm:$0xff]
    %v372 = vld [vmem:[%s358 + $0x68] sm:$0xff]
    %v373 = vld [vmem:[%s358 + $0x70] sm:$0xff]
    %v374 = vld [vmem:[%s358 + $0x78] sm:$0xff]
    %v375 = vld [vmem:[%s358 + $0x80] sm:$0xff]
    %v376 = vld [vmem:[%s358 + $0x88] sm:$0xff]
    %v377 = vld [vmem:[%s358 + $0x90] sm:$0xff]
    %v378 = vld [vmem:[%s358 + $0x98] sm:$0xff]
    %v379 = vld [vmem:[%s358 + $0xa0] sm:$0xff]
    %v380 = vld [vmem:[%s358 + $0xa8] sm:$0xff]
    %v381 = vld [vmem:[%s358 + $0xb0] sm:$0xff]
    %v382 = vld [vmem:[%s358 + $0xb8] sm:$0xff]
    %v383 = vld [vmem:[%s358 + $0xc0] sm:$0xff]
    %v384 = vld [vmem:[%s358 + $0xc8] sm:$0xff]
    %v385 = vld [vmem:[%s358 + $0xd0] sm:$0xff]
    %v386 = vld [vmem:[%s358 + $0xd8] sm:$0xff]
    %v387 = vld [vmem:[%s358 + $0xe0] sm:$0xff]
    %v388 = vld [vmem:[%s358 + $0xe8] sm:$0xff]
    %v389 = vld [vmem:[%s358 + $0xf0] sm:$0xff]
    %v390 = vld [vmem:[%s358 + $0xf8] sm:$0xff]
    %v391 = vld [vmem:[%s358 + $0x100] sm:$0xff]
    %v392 = vld [vmem:[%s358 + $0x108] sm:$0xff]
    %v393 = vld [vmem:[%s358 + $0x110] sm:$0xff]
    %v394 = vld [vmem:[%s358 + $0x118] sm:$0xff]
    %v395 = vld [vmem:[%s358 + $0x120] sm:$0xff]
    %v396 = vld [vmem:[%s358 + $0x128] sm:$0xff]
    %v397 = vld [vmem:[%s358 + $0x130] sm:$0xff]
    %v398 = vld [vmem:[%s358 + $0x138] sm:$0xff]
    %v399 = vld [vmem:[%s358 + $0x140] sm:$0xff]
    %v400 = vld [vmem:[%s358 + $0x148] sm:$0xff]
    %v401 = vld [vmem:[%s358 + $0x150] sm:$0xff]
    %v402 = vld [vmem:[%s358 + $0x158] sm:$0xff]
    %v403 = vld [vmem:[%s358 + $0x160] sm:$0xff]
    %v404 = vld [vmem:[%s358 + $0x168] sm:$0xff]
    %v405 = vld [vmem:[%s358 + $0x170] sm:$0xff]
    %v406 = vld [vmem:[%s358 + $0x178] sm:$0xff]
    %v407 = vld [vmem:[%s358 + $0x180] sm:$0xff]
    %v408 = vld [vmem:[%s358 + $0x188] sm:$0xff]
    %v409 = vld [vmem:[%s358 + $0x190] sm:$0xff]
    %v410 = vld [vmem:[%s358 + $0x198] sm:$0xff]
    %v411 = vld [vmem:[%s358 + $0x1a0] sm:$0xff]
    %v412 = vld [vmem:[%s358 + $0x1a8] sm:$0xff]
    %v413 = vld [vmem:[%s358 + $0x1b0] sm:$0xff]
    %v414 = vld [vmem:[%s358 + $0x1b8] sm:$0xff]
    %v415 = vld [vmem:[%s358 + $0x1c0] sm:$0xff]
    %v416 = vld [vmem:[%s358 + $0x1c8] sm:$0xff]
    %v417 = vld [vmem:[%s358 + $0x1d0] sm:$0xff]
    %v418 = vld [vmem:[%s358 + $0x1d8] sm:$0xff]
    %v419 = vld [vmem:[%s358 + $0x1e0] sm:$0xff]
    %v420 = vld [vmem:[%s358 + $0x1e8] sm:$0xff]
    %v421 = vld [vmem:[%s358 + $0x1f0] sm:$0xff]
    %v422 = vld [vmem:[%s358 + $0x1f8] sm:$0xff]
    %s423 = scalar_lea.vmem [#allocation6], 2048
    %v424 = vld [vmem:[%s423] sm:$0xff]
    %v425 = vld [vmem:[%s423 + $0x8] sm:$0xff]
    %v426 = vld [vmem:[%s423 + $0x10] sm:$0xff]
    %v427 = vld [vmem:[%s423 + $0x18] sm:$0xff]
    %v428 = vld [vmem:[%s423 + $0x20] sm:$0xff]
    %v429 = vld [vmem:[%s423 + $0x28] sm:$0xff]
    %v430 = vld [vmem:[%s423 + $0x30] sm:$0xff]
    %v431 = vld [vmem:[%s423 + $0x38] sm:$0xff]
    %v432 = vld [vmem:[%s423 + $0x40] sm:$0xff]
    %v433 = vld [vmem:[%s423 + $0x48] sm:$0xff]
    %v434 = vld [vmem:[%s423 + $0x50] sm:$0xff]
    %v435 = vld [vmem:[%s423 + $0x58] sm:$0xff]
    %v436 = vld [vmem:[%s423 + $0x60] sm:$0xff]
    %v437 = vld [vmem:[%s423 + $0x68] sm:$0xff]
    %v438 = vld [vmem:[%s423 + $0x70] sm:$0xff]
    %v439 = vld [vmem:[%s423 + $0x78] sm:$0xff]
    %v440 = vld [vmem:[%s423 + $0x80] sm:$0xff]
    %v441 = vld [vmem:[%s423 + $0x88] sm:$0xff]
    %v442 = vld [vmem:[%s423 + $0x90] sm:$0xff]
    %v443 = vld [vmem:[%s423 + $0x98] sm:$0xff]
    %v444 = vld [vmem:[%s423 + $0xa0] sm:$0xff]
    %v445 = vld [vmem:[%s423 + $0xa8] sm:$0xff]
    %v446 = vld [vmem:[%s423 + $0xb0] sm:$0xff]
    %v447 = vld [vmem:[%s423 + $0xb8] sm:$0xff]
    %v448 = vld [vmem:[%s423 + $0xc0] sm:$0xff]
    %v449 = vld [vmem:[%s423 + $0xc8] sm:$0xff]
    %v450 = vld [vmem:[%s423 + $0xd0] sm:$0xff]
    %v451 = vld [vmem:[%s423 + $0xd8] sm:$0xff]
    %v452 = vld [vmem:[%s423 + $0xe0] sm:$0xff]
    %v453 = vld [vmem:[%s423 + $0xe8] sm:$0xff]
    %v454 = vld [vmem:[%s423 + $0xf0] sm:$0xff]
    %v455 = vld [vmem:[%s423 + $0xf8] sm:$0xff]
    %v456 = vld [vmem:[%s423 + $0x100] sm:$0xff]
    %v457 = vld [vmem:[%s423 + $0x108] sm:$0xff]
    %v458 = vld [vmem:[%s423 + $0x110] sm:$0xff]
    %v459 = vld [vmem:[%s423 + $0x118] sm:$0xff]
    %v460 = vld [vmem:[%s423 + $0x120] sm:$0xff]
    %v461 = vld [vmem:[%s423 + $0x128] sm:$0xff]
    %v462 = vld [vmem:[%s423 + $0x130] sm:$0xff]
    %v463 = vld [vmem:[%s423 + $0x138] sm:$0xff]
    %v464 = vld [vmem:[%s423 + $0x140] sm:$0xff]
    %v465 = vld [vmem:[%s423 + $0x148] sm:$0xff]
    %v466 = vld [vmem:[%s423 + $0x150] sm:$0xff]
    %v467 = vld [vmem:[%s423 + $0x158] sm:$0xff]
    %v468 = vld [vmem:[%s423 + $0x160] sm:$0xff]
    %v469 = vld [vmem:[%s423 + $0x168] sm:$0xff]
    %v470 = vld [vmem:[%s423 + $0x170] sm:$0xff]
    %v471 = vld [vmem:[%s423 + $0x178] sm:$0xff]
    %v472 = vld [vmem:[%s423 + $0x180] sm:$0xff]
    %v473 = vld [vmem:[%s423 + $0x188] sm:$0xff]
    %v474 = vld [vmem:[%s423 + $0x190] sm:$0xff]
    %v475 = vld [vmem:[%s423 + $0x198] sm:$0xff]
    %v476 = vld [vmem:[%s423 + $0x1a0] sm:$0xff]
    %v477 = vld [vmem:[%s423 + $0x1a8] sm:$0xff]
    %v478 = vld [vmem:[%s423 + $0x1b0] sm:$0xff]
    %v479 = vld [vmem:[%s423 + $0x1b8] sm:$0xff]
    %v480 = vld [vmem:[%s423 + $0x1c0] sm:$0xff]
    %v481 = vld [vmem:[%s423 + $0x1c8] sm:$0xff]
    %v482 = vld [vmem:[%s423 + $0x1d0] sm:$0xff]
    %v483 = vld [vmem:[%s423 + $0x1d8] sm:$0xff]
    %v484 = vld [vmem:[%s423 + $0x1e0] sm:$0xff]
    %v485 = vld [vmem:[%s423 + $0x1e8] sm:$0xff]
    %v486 = vld [vmem:[%s423 + $0x1f0] sm:$0xff]
    %v487 = vld [vmem:[%s423 + $0x1f8] sm:$0xff]
    %v488 = vld [vmem:[%s0] sm:$0xff]
    %v489 = vld [vmem:[%s0 + $0x8] sm:$0xff]
    %v490 = vld [vmem:[%s0 + $0x10] sm:$0xff]
    %v491 = vld [vmem:[%s0 + $0x18] sm:$0xff]
    %v492 = vld [vmem:[%s0 + $0x20] sm:$0xff]
    %v493 = vld [vmem:[%s0 + $0x28] sm:$0xff]
    %v494 = vpack.c.bf16 %v489, %v488
    %v495 = vpack.c.bf16 %v491, %v490
    %v496 = vpack.c.bf16 %v493, %v492
    %s497 = scalar_lea.vmem %s0, 56
    %v498 = vld [vmem:[%s497] sm:$0xff]
    %v499 = vld [vmem:[%s497 + $0x8] sm:$0xff]
    %v500 = vld [vmem:[%s497 + $0x10] sm:$0xff]
    %v501 = vld [vmem:[%s497 + $0x18] sm:$0xff]
    %v502 = vld [vmem:[%s497 + $0x20] sm:$0xff]
    %v503 = vld [vmem:[%s497 + $0x28] sm:$0xff]
    %v504 = vpack.c.bf16 %v499, %v498
    %v505 = vpack.c.bf16 %v501, %v500
    %v506 = vpack.c.bf16 %v503, %v502
    %v515 = vunpack.c.l.b16 %v129
    %v516 = vunpack.c.h.b16 %v129
    %v517 = vunpack.c.l.b16 %v130
    %v518 = vunpack.c.h.b16 %v130
    %v519 = vunpack.c.l.b16 %v131
    %v520 = vunpack.c.h.b16 %v131
    %v521 = vunpack.c.l.b16 %v132
    %v522 = vunpack.c.h.b16 %v132
    %v523 = vunpack.c.l.b16 %v133
    %v524 = vunpack.c.h.b16 %v133
    %v525 = vunpack.c.l.b16 %v134
    %v526 = vunpack.c.h.b16 %v134
    %v527 = vunpack.c.l.b16 %v135
    %v528 = vunpack.c.h.b16 %v135
    %v529 = vunpack.c.l.b16 %v136
    %v530 = vunpack.c.h.b16 %v136
    %v531 = vpack.c.b16 %v519, %v515
    %v532 = vpack.c.b16 %v520, %v516
    %v533 = vpack.c.b16 %v521, %v517
    %v534 = vpack.c.b16 %v522, %v518
    %v535 = vpack.c.b16 %v527, %v523
    %v536 = vpack.c.b16 %v528, %v524
    %v537 = vpack.c.b16 %v529, %v525
    %v538 = vpack.c.b16 %v530, %v526
    %vm543 = vcmask 228352
    %v545 = vsel %vm543, %v504, 0
    %v548 = vsel %vm543, %v505, 0
    %v551 = vsel %vm543, %v506, 0
    %vm553 = vcmask 1045504
    %v555 = vsel %vm553, %v535, 0
    %v558 = vsel %vm553, %v536, 0
    %v561 = vsel %vm553, %v537, 0
    %v564 = vsel %vm553, %v538, 0
    %566 = vmatprep.subr.bf16.mxu0 0
    %567 = vmatpush1.bf16.msra.mxu0 0
    %568 = vmatprep.subr.bf16.mxu0 0
    %569 = vmatpush1.bf16.msra.mxu0 0
    %570 = vmatprep.subr.bf16.mxu0 0
    %571 = vmatpush1.bf16.msra.mxu0 0
    %572 = vmatprep.subr.bf16.mxu0 0
    %573 = vmatpush1.bf16.msra.mxu0 0
    %574 = vmatprep.subr.bf16.mxu0 0
    %575 = vmatpush1.bf16.msra.mxu0 0
    %576 = vmatprep.subr.bf16.mxu0 0
    %577 = vmatpush1.bf16.msra.mxu0 0
    %578 = vmatprep.subr.bf16.mxu0 %v558
    %579 = vmatpush1.bf16.msra.mxu0 %v555
    %580 = vmatprep.subr.bf16.mxu0 %v532
    %581 = vmatpush1.bf16.msra.mxu0 %v531
    %582 = vmatprep.subr.bf16.mxu0 0
    %583 = vmatpush2.bf16.msra.mxu0 0
    %584 = vmatprep.subr.bf16.mxu0 0
    %585 = vmatpush2.bf16.msra.mxu0 0
    %586 = vmatprep.subr.bf16.mxu0 0
    %587 = vmatpush2.bf16.msra.mxu0 0
    %588 = vmatprep.subr.bf16.mxu0 0
    %589 = vmatpush2.bf16.msra.mxu0 0
    %590 = vmatprep.subr.bf16.mxu0 0
    %591 = vmatpush2.bf16.msra.mxu0 0
    %592 = vmatprep.subr.bf16.mxu0 0
    %593 = vmatpush2.bf16.msra.mxu0 0
    %594 = vmatprep.subr.bf16.mxu0 0
    %595 = vmatpush2.bf16.msra.mxu0 0
    %596 = vmatprep.subr.bf16.mxu0 0
    %597 = vmatpush2.bf16.msra.mxu0 0
    %598 = vmatprep.mubr.bf16.mxu0 0
    %599 = vmatmul.mubr.bf16.gmra.mxu0 %v545
    %v600 = vpop.f32.mrf.mxu0
    %v601 = vadd.f32 0.0, %v600
    %v602 = vpop.f32.mrf.mxu0
    %v603 = vadd.f32 0.0, %v602
    %v604 = vpop.f32.mrf.mxu0
    %v605 = vadd.f32 0.0, %v604
    %v606 = vpop.f32.mrf.mxu0
    %v607 = vadd.f32 0.0, %v606
    %608 = vmatprep.mubr.bf16.mxu0 0
    %609 = vmatmul.mubr.bf16.gmra.mxu0 %v548
    %v610 = vpop.f32.mrf.mxu0
    %v611 = vadd.f32 0.0, %v610
    %v612 = vpop.f32.mrf.mxu0
    %v613 = vadd.f32 0.0, %v612
    %v614 = vpop.f32.mrf.mxu0
    %v615 = vadd.f32 0.0, %v614
    %v616 = vpop.f32.mrf.mxu0
    %v617 = vadd.f32 0.0, %v616
    %618 = vmatprep.mubr.bf16.mxu0 0
    %619 = vmatmul.mubr.bf16.gmra.mxu0 %v551
    %v620 = vpop.f32.mrf.mxu0
    %v621 = vadd.f32 0.0, %v620
    %v622 = vpop.f32.mrf.mxu0
    %v623 = vadd.f32 0.0, %v622
    %v624 = vpop.f32.mrf.mxu0
    %v625 = vadd.f32 0.0, %v624
    %v626 = vpop.f32.mrf.mxu0
    %v627 = vadd.f32 0.0, %v626
    %628 = vdwg.mxu0
    %629 = vmatprep.subr.bf16.mxu0 0
    %630 = vmatpush1.bf16.msra.mxu0 0
    %631 = vmatprep.subr.bf16.mxu0 0
    %632 = vmatpush1.bf16.msra.mxu0 0
    %633 = vmatprep.subr.bf16.mxu0 0
    %634 = vmatpush1.bf16.msra.mxu0 0
    %635 = vmatprep.subr.bf16.mxu0 0
    %636 = vmatpush1.bf16.msra.mxu0 0
    %637 = vmatprep.subr.bf16.mxu0 0
    %638 = vmatpush1.bf16.msra.mxu0 0
    %639 = vmatprep.subr.bf16.mxu0 0
    %640 = vmatpush1.bf16.msra.mxu0 0
    %641 = vmatprep.subr.bf16.mxu0 %v564
    %642 = vmatpush1.bf16.msra.mxu0 %v561
    %643 = vmatprep.subr.bf16.mxu0 %v534
    %644 = vmatpush1.bf16.msra.mxu0 %v533
    %645 = vmatprep.subr.bf16.mxu0 0
    %646 = vmatpush2.bf16.msra.mxu0 0
    %647 = vmatprep.subr.bf16.mxu0 0
    %648 = vmatpush2.bf16.msra.mxu0 0
    %649 = vmatprep.subr.bf16.mxu0 0
    %650 = vmatpush2.bf16.msra.mxu0 0
    %651 = vmatprep.subr.bf16.mxu0 0
    %652 = vmatpush2.bf16.msra.mxu0 0
    %653 = vmatprep.subr.bf16.mxu0 0
    %654 = vmatpush2.bf16.msra.mxu0 0
    %655 = vmatprep.subr.bf16.mxu0 0
    %656 = vmatpush2.bf16.msra.mxu0 0
    %657 = vmatprep.subr.bf16.mxu0 0
    %658 = vmatpush2.bf16.msra.mxu0 0
    %659 = vmatprep.subr.bf16.mxu0 0
    %660 = vmatpush2.bf16.msra.mxu0 0
    %661 = vmatprep.mubr.bf16.mxu0 0
    %662 = vmatmul.mubr.bf16.gmra.mxu0 %v545
    %v663 = vpop.f32.mrf.mxu0
    %v664 = vadd.f32 0.0, %v663
    %v665 = vpop.f32.mrf.mxu0
    %v666 = vadd.f32 0.0, %v665
    %v667 = vpop.f32.mrf.mxu0
    %v668 = vadd.f32 0.0, %v667
    %v669 = vpop.f32.mrf.mxu0
    %v670 = vadd.f32 0.0, %v669
    %671 = vmatprep.mubr.bf16.mxu0 0
    %672 = vmatmul.mubr.bf16.gmra.mxu0 %v548
    %v673 = vpop.f32.mrf.mxu0
    %v674 = vadd.f32 0.0, %v673
    %v675 = vpop.f32.mrf.mxu0
    %v676 = vadd.f32 0.0, %v675
    %v677 = vpop.f32.mrf.mxu0
    %v678 = vadd.f32 0.0, %v677
    %v679 = vpop.f32.mrf.mxu0
    %v680 = vadd.f32 0.0, %v679
    %681 = vmatprep.mubr.bf16.mxu0 0
    %682 = vmatmul.mubr.bf16.gmra.mxu0 %v551
    %v683 = vpop.f32.mrf.mxu0
    %v684 = vadd.f32 0.0, %v683
    %v685 = vpop.f32.mrf.mxu0
    %v686 = vadd.f32 0.0, %v685
    %v687 = vpop.f32.mrf.mxu0
    %v688 = vadd.f32 0.0, %v687
    %v689 = vpop.f32.mrf.mxu0
    %v690 = vadd.f32 0.0, %v689
    %691 = vdwg.mxu0
    %v700 = vunpack.c.l.b16 %v120
    %v701 = vunpack.c.h.b16 %v120
    %v702 = vunpack.c.l.b16 %v121
    %v703 = vunpack.c.h.b16 %v121
    %v704 = vunpack.c.l.b16 %v122
    %v705 = vunpack.c.h.b16 %v122
    %v706 = vunpack.c.l.b16 %v123
    %v707 = vunpack.c.h.b16 %v123
    %v708 = vunpack.c.l.b16 %v124
    %v709 = vunpack.c.h.b16 %v124
    %v710 = vunpack.c.l.b16 %v125
    %v711 = vunpack.c.h.b16 %v125
    %v712 = vunpack.c.l.b16 %v126
    %v713 = vunpack.c.h.b16 %v126
    %v714 = vunpack.c.l.b16 %v127
    %v715 = vunpack.c.h.b16 %v127
    %v716 = vpack.c.b16 %v704, %v700
    %v717 = vpack.c.b16 %v705, %v701
    %v718 = vpack.c.b16 %v706, %v702
    %v719 = vpack.c.b16 %v707, %v703
    %v720 = vpack.c.b16 %v712, %v708
    %v721 = vpack.c.b16 %v713, %v709
    %v722 = vpack.c.b16 %v714, %v710
    %v723 = vpack.c.b16 %v715, %v711
    %v729 = vsel %vm543, %v494, 0
    %v732 = vsel %vm543, %v495, 0
    %v735 = vsel %vm543, %v496, 0
    %v738 = vsel %vm553, %v720, 0
    %v741 = vsel %vm553, %v721, 0
    %v744 = vsel %vm553, %v722, 0
    %v747 = vsel %vm553, %v723, 0
    %749 = vmatprep.subr.bf16.mxu0 0
    %750 = vmatpush1.bf16.msra.mxu0 0
    %751 = vmatprep.subr.bf16.mxu0 0
    %752 = vmatpush1.bf16.msra.mxu0 0
    %753 = vmatprep.subr.bf16.mxu0 0
    %754 = vmatpush1.bf16.msra.mxu0 0
    %755 = vmatprep.subr.bf16.mxu0 0
    %756 = vmatpush1.bf16.msra.mxu0 0
    %757 = vmatprep.subr.bf16.mxu0 0
    %758 = vmatpush1.bf16.msra.mxu0 0
    %759 = vmatprep.subr.bf16.mxu0 0
    %760 = vmatpush1.bf16.msra.mxu0 0
    %761 = vmatprep.subr.bf16.mxu0 %v741
    %762 = vmatpush1.bf16.msra.mxu0 %v738
    %763 = vmatprep.subr.bf16.mxu0 %v717
    %764 = vmatpush1.bf16.msra.mxu0 %v716
    %765 = vmatprep.subr.bf16.mxu0 0
    %766 = vmatpush2.bf16.msra.mxu0 0
    %767 = vmatprep.subr.bf16.mxu0 0
    %768 = vmatpush2.bf16.msra.mxu0 0
    %769 = vmatprep.subr.bf16.mxu0 0
    %770 = vmatpush2.bf16.msra.mxu0 0
    %771 = vmatprep.subr.bf16.mxu0 0
    %772 = vmatpush2.bf16.msra.mxu0 0
    %773 = vmatprep.subr.bf16.mxu0 0
    %774 = vmatpush2.bf16.msra.mxu0 0
    %775 = vmatprep.subr.bf16.mxu0 0
    %776 = vmatpush2.bf16.msra.mxu0 0
    %777 = vmatprep.subr.bf16.mxu0 0
    %778 = vmatpush2.bf16.msra.mxu0 0
    %779 = vmatprep.subr.bf16.mxu0 0
    %780 = vmatpush2.bf16.msra.mxu0 0
    %781 = vmatprep.mubr.bf16.mxu0 0
    %782 = vmatmul.mubr.bf16.gmra.mxu0 %v729
    %v783 = vpop.f32.mrf.mxu0
    %v784 = vadd.f32 %v601, %v783
    %v785 = vpop.f32.mrf.mxu0
    %v786 = vadd.f32 %v603, %v785
    %v787 = vpop.f32.mrf.mxu0
    %v788 = vadd.f32 %v605, %v787
    %v789 = vpop.f32.mrf.mxu0
    %v790 = vadd.f32 %v607, %v789
    %791 = vmatprep.mubr.bf16.mxu0 0
    %792 = vmatmul.mubr.bf16.gmra.mxu0 %v732
    %v793 = vpop.f32.mrf.mxu0
    %v794 = vadd.f32 %v611, %v793
    %v795 = vpop.f32.mrf.mxu0
    %v796 = vadd.f32 %v613, %v795
    %v797 = vpop.f32.mrf.mxu0
    %v798 = vadd.f32 %v615, %v797
    %v799 = vpop.f32.mrf.mxu0
    %v800 = vadd.f32 %v617, %v799
    %801 = vmatprep.mubr.bf16.mxu0 0
    %802 = vmatmul.mubr.bf16.gmra.mxu0 %v735
    %v803 = vpop.f32.mrf.mxu0
    %v804 = vadd.f32 %v621, %v803
    %v805 = vpop.f32.mrf.mxu0
    %v806 = vadd.f32 %v623, %v805
    %v807 = vpop.f32.mrf.mxu0
    %v808 = vadd.f32 %v625, %v807
    %v809 = vpop.f32.mrf.mxu0
    %v810 = vadd.f32 %v627, %v809
    %811 = vdwg.mxu0
    %812 = vmatprep.subr.bf16.mxu0 0
    %813 = vmatpush1.bf16.msra.mxu0 0
    %814 = vmatprep.subr.bf16.mxu0 0
    %815 = vmatpush1.bf16.msra.mxu0 0
    %816 = vmatprep.subr.bf16.mxu0 0
    %817 = vmatpush1.bf16.msra.mxu0 0
    %818 = vmatprep.subr.bf16.mxu0 0
    %819 = vmatpush1.bf16.msra.mxu0 0
    %820 = vmatprep.subr.bf16.mxu0 0
    %821 = vmatpush1.bf16.msra.mxu0 0
    %822 = vmatprep.subr.bf16.mxu0 0
    %823 = vmatpush1.bf16.msra.mxu0 0
    %824 = vmatprep.subr.bf16.mxu0 %v747
    %825 = vmatpush1.bf16.msra.mxu0 %v744
    %826 = vmatprep.subr.bf16.mxu0 %v719
    %827 = vmatpush1.bf16.msra.mxu0 %v718
    %828 = vmatprep.subr.bf16.mxu0 0
    %829 = vmatpush2.bf16.msra.mxu0 0
    %830 = vmatprep.subr.bf16.mxu0 0
    %831 = vmatpush2.bf16.msra.mxu0 0
    %832 = vmatprep.subr.bf16.mxu0 0
    %833 = vmatpush2.bf16.msra.mxu0 0
    %834 = vmatprep.subr.bf16.mxu0 0
    %835 = vmatpush2.bf16.msra.mxu0 0
    %836 = vmatprep.subr.bf16.mxu0 0
    %837 = vmatpush2.bf16.msra.mxu0 0
    %838 = vmatprep.subr.bf16.mxu0 0
    %839 = vmatpush2.bf16.msra.mxu0 0
    %840 = vmatprep.subr.bf16.mxu0 0
    %841 = vmatpush2.bf16.msra.mxu0 0
    %842 = vmatprep.subr.bf16.mxu0 0
    %843 = vmatpush2.bf16.msra.mxu0 0
    %844 = vmatprep.mubr.bf16.mxu0 0
    %845 = vmatmul.mubr.bf16.gmra.mxu0 %v729
    %v846 = vpop.f32.mrf.mxu0
    %v847 = vadd.f32 %v664, %v846
    %v848 = vpop.f32.mrf.mxu0
    %v849 = vadd.f32 %v666, %v848
    %v850 = vpop.f32.mrf.mxu0
    %v851 = vadd.f32 %v668, %v850
    %v852 = vpop.f32.mrf.mxu0
    %v853 = vadd.f32 %v670, %v852
    %854 = vmatprep.mubr.bf16.mxu0 0
    %855 = vmatmul.mubr.bf16.gmra.mxu0 %v732
    %v856 = vpop.f32.mrf.mxu0
    %v857 = vadd.f32 %v674, %v856
    %v858 = vpop.f32.mrf.mxu0
    %v859 = vadd.f32 %v676, %v858
    %v860 = vpop.f32.mrf.mxu0
    %v861 = vadd.f32 %v678, %v860
    %v862 = vpop.f32.mrf.mxu0
    %v863 = vadd.f32 %v680, %v862
    %864 = vmatprep.mubr.bf16.mxu0 0
    %865 = vmatmul.mubr.bf16.gmra.mxu0 %v735
    %v866 = vpop.f32.mrf.mxu0
    %v867 = vadd.f32 %v684, %v866
    %v868 = vpop.f32.mrf.mxu0
    %v869 = vadd.f32 %v686, %v868
    %v870 = vpop.f32.mrf.mxu0
    %v871 = vadd.f32 %v688, %v870
    %v872 = vpop.f32.mrf.mxu0
    %v873 = vadd.f32 %v690, %v872
    %874 = vdwg.mxu0
    %s875 = scalar_lea.vmem %s0, 112
    %v876 = vld [vmem:[%s875] sm:$0xff]
    %v877 = vld [vmem:[%s875 + $0x8] sm:$0xff]
    %v878 = vld [vmem:[%s875 + $0x10] sm:$0xff]
    %v879 = vld [vmem:[%s875 + $0x18] sm:$0xff]
    %v880 = vld [vmem:[%s875 + $0x20] sm:$0xff]
    %v881 = vld [vmem:[%s875 + $0x28] sm:$0xff]
    %v882 = vpack.c.bf16 %v877, %v876
    %v883 = vpack.c.bf16 %v879, %v878
    %v884 = vpack.c.bf16 %v881, %v880
    %v893 = vunpack.c.l.b16 %v138
    %v894 = vunpack.c.h.b16 %v138
    %v895 = vunpack.c.l.b16 %v139
    %v896 = vunpack.c.h.b16 %v139
    %v897 = vunpack.c.l.b16 %v140
    %v898 = vunpack.c.h.b16 %v140
    %v899 = vunpack.c.l.b16 %v141
    %v900 = vunpack.c.h.b16 %v141
    %v901 = vunpack.c.l.b16 %v142
    %v902 = vunpack.c.h.b16 %v142
    %v903 = vunpack.c.l.b16 %v143
    %v904 = vunpack.c.h.b16 %v143
    %v905 = vunpack.c.l.b16 %v144
    %v906 = vunpack.c.h.b16 %v144
    %v907 = vunpack.c.l.b16 %v145
    %v908 = vunpack.c.h.b16 %v145
    %v909 = vpack.c.b16 %v897, %v893
    %v910 = vpack.c.b16 %v898, %v894
    %v911 = vpack.c.b16 %v899, %v895
    %v912 = vpack.c.b16 %v900, %v896
    %v913 = vpack.c.b16 %v905, %v901
    %v914 = vpack.c.b16 %v906, %v902
    %v915 = vpack.c.b16 %v907, %v903
    %v916 = vpack.c.b16 %v908, %v904
    %v922 = vsel %vm543, %v882, 0
    %v925 = vsel %vm543, %v883, 0
    %v928 = vsel %vm543, %v884, 0
    %v931 = vsel %vm553, %v913, 0
    %v934 = vsel %vm553, %v914, 0
    %v937 = vsel %vm553, %v915, 0
    %v940 = vsel %vm553, %v916, 0
    %942 = vmatprep.subr.bf16.mxu0 0
    %943 = vmatpush1.bf16.msra.mxu0 0
    %944 = vmatprep.subr.bf16.mxu0 0
    %945 = vmatpush1.bf16.msra.mxu0 0
    %946 = vmatprep.subr.bf16.mxu0 0
    %947 = vmatpush1.bf16.msra.mxu0 0
    %948 = vmatprep.subr.bf16.mxu0 0
    %949 = vmatpush1.bf16.msra.mxu0 0
    %950 = vmatprep.subr.bf16.mxu0 0
    %951 = vmatpush1.bf16.msra.mxu0 0
    %952 = vmatprep.subr.bf16.mxu0 0
    %953 = vmatpush1.bf16.msra.mxu0 0
    %954 = vmatprep.subr.bf16.mxu0 %v934
    %955 = vmatpush1.bf16.msra.mxu0 %v931
    %956 = vmatprep.subr.bf16.mxu0 %v910
    %957 = vmatpush1.bf16.msra.mxu0 %v909
    %958 = vmatprep.subr.bf16.mxu0 0
    %959 = vmatpush2.bf16.msra.mxu0 0
    %960 = vmatprep.subr.bf16.mxu0 0
    %961 = vmatpush2.bf16.msra.mxu0 0
    %962 = vmatprep.subr.bf16.mxu0 0
    %963 = vmatpush2.bf16.msra.mxu0 0
    %964 = vmatprep.subr.bf16.mxu0 0
    %965 = vmatpush2.bf16.msra.mxu0 0
    %966 = vmatprep.subr.bf16.mxu0 0
    %967 = vmatpush2.bf16.msra.mxu0 0
    %968 = vmatprep.subr.bf16.mxu0 0
    %969 = vmatpush2.bf16.msra.mxu0 0
    %970 = vmatprep.subr.bf16.mxu0 0
    %971 = vmatpush2.bf16.msra.mxu0 0
    %972 = vmatprep.subr.bf16.mxu0 0
    %973 = vmatpush2.bf16.msra.mxu0 0
    %974 = vmatprep.mubr.bf16.mxu0 0
    %975 = vmatmul.mubr.bf16.gmra.mxu0 %v922
    %v976 = vpop.f32.mrf.mxu0
    %v977 = vadd.f32 0.0, %v976
    %v978 = vpop.f32.mrf.mxu0
    %v979 = vadd.f32 0.0, %v978
    %v980 = vpop.f32.mrf.mxu0
    %v981 = vadd.f32 0.0, %v980
    %v982 = vpop.f32.mrf.mxu0
    %v983 = vadd.f32 0.0, %v982
    %984 = vmatprep.mubr.bf16.mxu0 0
    %985 = vmatmul.mubr.bf16.gmra.mxu0 %v925
    %v986 = vpop.f32.mrf.mxu0
    %v987 = vadd.f32 0.0, %v986
    %v988 = vpop.f32.mrf.mxu0
    %v989 = vadd.f32 0.0, %v988
    %v990 = vpop.f32.mrf.mxu0
    %v991 = vadd.f32 0.0, %v990
    %v992 = vpop.f32.mrf.mxu0
    %v993 = vadd.f32 0.0, %v992
    %994 = vmatprep.mubr.bf16.mxu0 0
    %995 = vmatmul.mubr.bf16.gmra.mxu0 %v928
    %v996 = vpop.f32.mrf.mxu0
    %v997 = vadd.f32 0.0, %v996
    %v998 = vpop.f32.mrf.mxu0
    %v999 = vadd.f32 0.0, %v998
    %v1000 = vpop.f32.mrf.mxu0
    %v1001 = vadd.f32 0.0, %v1000
    %v1002 = vpop.f32.mrf.mxu0
    %v1003 = vadd.f32 0.0, %v1002
    %1004 = vdwg.mxu0
    %1005 = vmatprep.subr.bf16.mxu0 0
    %1006 = vmatpush1.bf16.msra.mxu0 0
    %1007 = vmatprep.subr.bf16.mxu0 0
    %1008 = vmatpush1.bf16.msra.mxu0 0
    %1009 = vmatprep.subr.bf16.mxu0 0
    %1010 = vmatpush1.bf16.msra.mxu0 0
    %1011 = vmatprep.subr.bf16.mxu0 0
    %1012 = vmatpush1.bf16.msra.mxu0 0
    %1013 = vmatprep.subr.bf16.mxu0 0
    %1014 = vmatpush1.bf16.msra.mxu0 0
    %1015 = vmatprep.subr.bf16.mxu0 0
    %1016 = vmatpush1.bf16.msra.mxu0 0
    %1017 = vmatprep.subr.bf16.mxu0 %v940
    %1018 = vmatpush1.bf16.msra.mxu0 %v937
    %1019 = vmatprep.subr.bf16.mxu0 %v912
    %1020 = vmatpush1.bf16.msra.mxu0 %v911
    %1021 = vmatprep.subr.bf16.mxu0 0
    %1022 = vmatpush2.bf16.msra.mxu0 0
    %1023 = vmatprep.subr.bf16.mxu0 0
    %1024 = vmatpush2.bf16.msra.mxu0 0
    %1025 = vmatprep.subr.bf16.mxu0 0
    %1026 = vmatpush2.bf16.msra.mxu0 0
    %1027 = vmatprep.subr.bf16.mxu0 0
    %1028 = vmatpush2.bf16.msra.mxu0 0
    %1029 = vmatprep.subr.bf16.mxu0 0
    %1030 = vmatpush2.bf16.msra.mxu0 0
    %1031 = vmatprep.subr.bf16.mxu0 0
    %1032 = vmatpush2.bf16.msra.mxu0 0
    %1033 = vmatprep.subr.bf16.mxu0 0
    %1034 = vmatpush2.bf16.msra.mxu0 0
    %1035 = vmatprep.subr.bf16.mxu0 0
    %1036 = vmatpush2.bf16.msra.mxu0 0
    %1037 = vmatprep.mubr.bf16.mxu0 0
    %1038 = vmatmul.mubr.bf16.gmra.mxu0 %v922
    %v1039 = vpop.f32.mrf.mxu0
    %v1040 = vadd.f32 0.0, %v1039
    %v1041 = vpop.f32.mrf.mxu0
    %v1042 = vadd.f32 0.0, %v1041
    %v1043 = vpop.f32.mrf.mxu0
    %v1044 = vadd.f32 0.0, %v1043
    %v1045 = vpop.f32.mrf.mxu0
    %v1046 = vadd.f32 0.0, %v1045
    %1047 = vmatprep.mubr.bf16.mxu0 0
    %1048 = vmatmul.mubr.bf16.gmra.mxu0 %v925
    %v1049 = vpop.f32.mrf.mxu0
    %v1050 = vadd.f32 0.0, %v1049
    %v1051 = vpop.f32.mrf.mxu0
    %v1052 = vadd.f32 0.0, %v1051
    %v1053 = vpop.f32.mrf.mxu0
    %v1054 = vadd.f32 0.0, %v1053
    %v1055 = vpop.f32.mrf.mxu0
    %v1056 = vadd.f32 0.0, %v1055
    %1057 = vmatprep.mubr.bf16.mxu0 0
    %1058 = vmatmul.mubr.bf16.gmra.mxu0 %v928
    %v1059 = vpop.f32.mrf.mxu0
    %v1060 = vadd.f32 0.0, %v1059
    %v1061 = vpop.f32.mrf.mxu0
    %v1062 = vadd.f32 0.0, %v1061
    %v1063 = vpop.f32.mrf.mxu0
    %v1064 = vadd.f32 0.0, %v1063
    %v1065 = vpop.f32.mrf.mxu0
    %v1066 = vadd.f32 0.0, %v1065
    %1067 = vdwg.mxu0
    %v1068 = vadd.f32 %v784, %v977
    %v1069 = vadd.f32 %v786, %v979
    %v1070 = vadd.f32 %v847, %v1040
    %v1071 = vadd.f32 %v849, %v1042
    %v1072 = vadd.f32 %v788, %v981
    %v1073 = vadd.f32 %v790, %v983
    %v1074 = vadd.f32 %v851, %v1044
    %v1075 = vadd.f32 %v853, %v1046
    %v1076 = vadd.f32 %v794, %v987
    %v1077 = vadd.f32 %v796, %v989
    %v1078 = vadd.f32 %v857, %v1050
    %v1079 = vadd.f32 %v859, %v1052
    %v1080 = vadd.f32 %v798, %v991
    %v1081 = vadd.f32 %v800, %v993
    %v1082 = vadd.f32 %v861, %v1054
    %v1083 = vadd.f32 %v863, %v1056
    %v1084 = vadd.f32 %v804, %v997
    %v1085 = vadd.f32 %v806, %v999
    %v1086 = vadd.f32 %v867, %v1060
    %v1087 = vadd.f32 %v869, %v1062
    %v1088 = vadd.f32 %v808, %v1001
    %v1089 = vadd.f32 %v810, %v1003
    %v1090 = vadd.f32 %v871, %v1064
    %v1091 = vadd.f32 %v873, %v1066
    %s1092 = scalar_lea.vmem %s0, 168
    %v1093 = vld [vmem:[%s1092] sm:$0xff]
    %v1094 = vld [vmem:[%s1092 + $0x8] sm:$0xff]
    %v1095 = vld [vmem:[%s1092 + $0x10] sm:$0xff]
    %v1096 = vld [vmem:[%s1092 + $0x18] sm:$0xff]
    %v1097 = vld [vmem:[%s1092 + $0x20] sm:$0xff]
    %v1098 = vld [vmem:[%s1092 + $0x28] sm:$0xff]
    %v1099 = vpack.c.bf16 %v1094, %v1093
    %v1100 = vpack.c.bf16 %v1096, %v1095
    %v1101 = vpack.c.bf16 %v1098, %v1097
    %v1110 = vunpack.c.l.b16 %v147
    %v1111 = vunpack.c.h.b16 %v147
    %v1112 = vunpack.c.l.b16 %v148
    %v1113 = vunpack.c.h.b16 %v148
    %v1114 = vunpack.c.l.b16 %v149
    %v1115 = vunpack.c.h.b16 %v149
    %v1116 = vunpack.c.l.b16 %v150
    %v1117 = vunpack.c.h.b16 %v150
    %v1118 = vunpack.c.l.b16 %v151
    %v1119 = vunpack.c.h.b16 %v151
    %v1120 = vunpack.c.l.b16 %v152
    %v1121 = vunpack.c.h.b16 %v152
    %v1122 = vunpack.c.l.b16 %v153
    %v1123 = vunpack.c.h.b16 %v153
    %v1124 = vunpack.c.l.b16 %v154
    %v1125 = vunpack.c.h.b16 %v154
    %v1126 = vpack.c.b16 %v1114, %v1110
    %v1127 = vpack.c.b16 %v1115, %v1111
    %v1128 = vpack.c.b16 %v1116, %v1112
    %v1129 = vpack.c.b16 %v1117, %v1113
    %v1130 = vpack.c.b16 %v1122, %v1118
    %v1131 = vpack.c.b16 %v1123, %v1119
    %v1132 = vpack.c.b16 %v1124, %v1120
    %v1133 = vpack.c.b16 %v1125, %v1121
    %v1139 = vsel %vm543, %v1099, 0
    %v1142 = vsel %vm543, %v1100, 0
    %v1145 = vsel %vm543, %v1101, 0
    %v1148 = vsel %vm553, %v1130, 0
    %v1151 = vsel %vm553, %v1131, 0
    %v1154 = vsel %vm553, %v1132, 0
    %v1157 = vsel %vm553, %v1133, 0
    %1159 = vmatprep.subr.bf16.mxu0 0
    %1160 = vmatpush1.bf16.msra.mxu0 0
    %1161 = vmatprep.subr.bf16.mxu0 0
    %1162 = vmatpush1.bf16.msra.mxu0 0
    %1163 = vmatprep.subr.bf16.mxu0 0
    %1164 = vmatpush1.bf16.msra.mxu0 0
    %1165 = vmatprep.subr.bf16.mxu0 0
    %1166 = vmatpush1.bf16.msra.mxu0 0
    %1167 = vmatprep.subr.bf16.mxu0 0
    %1168 = vmatpush1.bf16.msra.mxu0 0
    %1169 = vmatprep.subr.bf16.mxu0 0
    %1170 = vmatpush1.bf16.msra.mxu0 0
    %1171 = vmatprep.subr.bf16.mxu0 %v1151
    %1172 = vmatpush1.bf16.msra.mxu0 %v1148
    %1173 = vmatprep.subr.bf16.mxu0 %v1127
    %1174 = vmatpush1.bf16.msra.mxu0 %v1126
    %1175 = vmatprep.subr.bf16.mxu0 0
    %1176 = vmatpush2.bf16.msra.mxu0 0
    %1177 = vmatprep.subr.bf16.mxu0 0
    %1178 = vmatpush2.bf16.msra.mxu0 0
    %1179 = vmatprep.subr.bf16.mxu0 0
    %1180 = vmatpush2.bf16.msra.mxu0 0
    %1181 = vmatprep.subr.bf16.mxu0 0
    %1182 = vmatpush2.bf16.msra.mxu0 0
    %1183 = vmatprep.subr.bf16.mxu0 0
    %1184 = vmatpush2.bf16.msra.mxu0 0
    %1185 = vmatprep.subr.bf16.mxu0 0
    %1186 = vmatpush2.bf16.msra.mxu0 0
    %1187 = vmatprep.subr.bf16.mxu0 0
    %1188 = vmatpush2.bf16.msra.mxu0 0
    %1189 = vmatprep.subr.bf16.mxu0 0
    %1190 = vmatpush2.bf16.msra.mxu0 0
    %1191 = vmatprep.mubr.bf16.mxu0 0
    %1192 = vmatmul.mubr.bf16.gmra.mxu0 %v1139
    %v1193 = vpop.f32.mrf.mxu0
    %v1194 = vadd.f32 0.0, %v1193
    %v1195 = vpop.f32.mrf.mxu0
    %v1196 = vadd.f32 0.0, %v1195
    %v1197 = vpop.f32.mrf.mxu0
    %v1198 = vadd.f32 0.0, %v1197
    %v1199 = vpop.f32.mrf.mxu0
    %v1200 = vadd.f32 0.0, %v1199
    %1201 = vmatprep.mubr.bf16.mxu0 0
    %1202 = vmatmul.mubr.bf16.gmra.mxu0 %v1142
    %v1203 = vpop.f32.mrf.mxu0
    %v1204 = vadd.f32 0.0, %v1203
    %v1205 = vpop.f32.mrf.mxu0
    %v1206 = vadd.f32 0.0, %v1205
    %v1207 = vpop.f32.mrf.mxu0
    %v1208 = vadd.f32 0.0, %v1207
    %v1209 = vpop.f32.mrf.mxu0
    %v1210 = vadd.f32 0.0, %v1209
    %1211 = vmatprep.mubr.bf16.mxu0 0
    %1212 = vmatmul.mubr.bf16.gmra.mxu0 %v1145
    %v1213 = vpop.f32.mrf.mxu0
    %v1214 = vadd.f32 0.0, %v1213
    %v1215 = vpop.f32.mrf.mxu0
    %v1216 = vadd.f32 0.0, %v1215
    %v1217 = vpop.f32.mrf.mxu0
    %v1218 = vadd.f32 0.0, %v1217
    %v1219 = vpop.f32.mrf.mxu0
    %v1220 = vadd.f32 0.0, %v1219
    %1221 = vdwg.mxu0
    %1222 = vmatprep.subr.bf16.mxu0 0
    %1223 = vmatpush1.bf16.msra.mxu0 0
    %1224 = vmatprep.subr.bf16.mxu0 0
    %1225 = vmatpush1.bf16.msra.mxu0 0
    %1226 = vmatprep.subr.bf16.mxu0 0
    %1227 = vmatpush1.bf16.msra.mxu0 0
    %1228 = vmatprep.subr.bf16.mxu0 0
    %1229 = vmatpush1.bf16.msra.mxu0 0
    %1230 = vmatprep.subr.bf16.mxu0 0
    %1231 = vmatpush1.bf16.msra.mxu0 0
    %1232 = vmatprep.subr.bf16.mxu0 0
    %1233 = vmatpush1.bf16.msra.mxu0 0
    %1234 = vmatprep.subr.bf16.mxu0 %v1157
    %1235 = vmatpush1.bf16.msra.mxu0 %v1154
    %1236 = vmatprep.subr.bf16.mxu0 %v1129
    %1237 = vmatpush1.bf16.msra.mxu0 %v1128
    %1238 = vmatprep.subr.bf16.mxu0 0
    %1239 = vmatpush2.bf16.msra.mxu0 0
    %1240 = vmatprep.subr.bf16.mxu0 0
    %1241 = vmatpush2.bf16.msra.mxu0 0
    %1242 = vmatprep.subr.bf16.mxu0 0
    %1243 = vmatpush2.bf16.msra.mxu0 0
    %1244 = vmatprep.subr.bf16.mxu0 0
    %1245 = vmatpush2.bf16.msra.mxu0 0
    %1246 = vmatprep.subr.bf16.mxu0 0
    %1247 = vmatpush2.bf16.msra.mxu0 0
    %1248 = vmatprep.subr.bf16.mxu0 0
    %1249 = vmatpush2.bf16.msra.mxu0 0
    %1250 = vmatprep.subr.bf16.mxu0 0
    %1251 = vmatpush2.bf16.msra.mxu0 0
    %1252 = vmatprep.subr.bf16.mxu0 0
    %1253 = vmatpush2.bf16.msra.mxu0 0
    %1254 = vmatprep.mubr.bf16.mxu0 0
    %1255 = vmatmul.mubr.bf16.gmra.mxu0 %v1139
    %v1256 = vpop.f32.mrf.mxu0
    %v1257 = vadd.f32 0.0, %v1256
    %v1258 = vpop.f32.mrf.mxu0
    %v1259 = vadd.f32 0.0, %v1258
    %v1260 = vpop.f32.mrf.mxu0
    %v1261 = vadd.f32 0.0, %v1260
    %v1262 = vpop.f32.mrf.mxu0
    %v1263 = vadd.f32 0.0, %v1262
    %1264 = vmatprep.mubr.bf16.mxu0 0
    %1265 = vmatmul.mubr.bf16.gmra.mxu0 %v1142
    %v1266 = vpop.f32.mrf.mxu0
    %v1267 = vadd.f32 0.0, %v1266
    %v1268 = vpop.f32.mrf.mxu0
    %v1269 = vadd.f32 0.0, %v1268
    %v1270 = vpop.f32.mrf.mxu0
    %v1271 = vadd.f32 0.0, %v1270
    %v1272 = vpop.f32.mrf.mxu0
    %v1273 = vadd.f32 0.0, %v1272
    %1274 = vmatprep.mubr.bf16.mxu0 0
    %1275 = vmatmul.mubr.bf16.gmra.mxu0 %v1145
    %v1276 = vpop.f32.mrf.mxu0
    %v1277 = vadd.f32 0.0, %v1276
    %v1278 = vpop.f32.mrf.mxu0
    %v1279 = vadd.f32 0.0, %v1278
    %v1280 = vpop.f32.mrf.mxu0
    %v1281 = vadd.f32 0.0, %v1280
    %v1282 = vpop.f32.mrf.mxu0
    %v1283 = vadd.f32 0.0, %v1282
    %1284 = vdwg.mxu0
    %v1285 = vadd.f32 %v1068, %v1194
    %v1286 = vadd.f32 %v1069, %v1196
    %v1287 = vadd.f32 %v1070, %v1257
    %v1288 = vadd.f32 %v1071, %v1259
    %v1289 = vadd.f32 %v1072, %v1198
    %v1290 = vadd.f32 %v1073, %v1200
    %v1291 = vadd.f32 %v1074, %v1261
    %v1292 = vadd.f32 %v1075, %v1263
    %v1293 = vadd.f32 %v1076, %v1204
    %v1294 = vadd.f32 %v1077, %v1206
    %v1295 = vadd.f32 %v1078, %v1267
    %v1296 = vadd.f32 %v1079, %v1269
    %v1297 = vadd.f32 %v1080, %v1208
    %v1298 = vadd.f32 %v1081, %v1210
    %v1299 = vadd.f32 %v1082, %v1271
    %v1300 = vadd.f32 %v1083, %v1273
    %v1301 = vadd.f32 %v1084, %v1214
    %v1302 = vadd.f32 %v1085, %v1216
    %v1303 = vadd.f32 %v1086, %v1277
    %v1304 = vadd.f32 %v1087, %v1279
    %v1305 = vadd.f32 %v1088, %v1218
    %v1306 = vadd.f32 %v1089, %v1220
    %v1307 = vadd.f32 %v1090, %v1281
    %v1308 = vadd.f32 %v1091, %v1283
    %s1309 = scalar_lea.vmem %s0, 8
    %v1310 = vld [vmem:[%s1309] sm:$0xff]
    %v1311 = vld [vmem:[%s1309 + $0x8] sm:$0xff]
    %v1312 = vld [vmem:[%s1309 + $0x10] sm:$0xff]
    %v1313 = vld [vmem:[%s1309 + $0x18] sm:$0xff]
    %v1314 = vld [vmem:[%s1309 + $0x20] sm:$0xff]
    %v1315 = vld [vmem:[%s1309 + $0x28] sm:$0xff]
    %v1316 = vpack.c.bf16 %v1311, %v1310
    %v1317 = vpack.c.bf16 %v1313, %v1312
    %v1318 = vpack.c.bf16 %v1315, %v1314
    %v1327 = vunpack.c.l.b16 %v156
    %v1328 = vunpack.c.h.b16 %v156
    %v1329 = vunpack.c.l.b16 %v157
    %v1330 = vunpack.c.h.b16 %v157
    %v1331 = vunpack.c.l.b16 %v158
    %v1332 = vunpack.c.h.b16 %v158
    %v1333 = vunpack.c.l.b16 %v159
    %v1334 = vunpack.c.h.b16 %v159
    %v1335 = vunpack.c.l.b16 %v160
    %v1336 = vunpack.c.h.b16 %v160
    %v1337 = vunpack.c.l.b16 %v161
    %v1338 = vunpack.c.h.b16 %v161
    %v1339 = vunpack.c.l.b16 %v162
    %v1340 = vunpack.c.h.b16 %v162
    %v1341 = vunpack.c.l.b16 %v163
    %v1342 = vunpack.c.h.b16 %v163
    %v1343 = vpack.c.b16 %v1331, %v1327
    %v1344 = vpack.c.b16 %v1332, %v1328
    %v1345 = vpack.c.b16 %v1333, %v1329
    %v1346 = vpack.c.b16 %v1334, %v1330
    %v1347 = vpack.c.b16 %v1339, %v1335
    %v1348 = vpack.c.b16 %v1340, %v1336
    %v1349 = vpack.c.b16 %v1341, %v1337
    %v1350 = vpack.c.b16 %v1342, %v1338
    %v1356 = vsel %vm543, %v1316, 0
    %v1359 = vsel %vm543, %v1317, 0
    %v1362 = vsel %vm543, %v1318, 0
    %v1365 = vsel %vm553, %v1347, 0
    %v1368 = vsel %vm553, %v1348, 0
    %v1371 = vsel %vm553, %v1349, 0
    %v1374 = vsel %vm553, %v1350, 0
    %1376 = vmatprep.subr.bf16.mxu0 0
    %1377 = vmatpush1.bf16.msra.mxu0 0
    %1378 = vmatprep.subr.bf16.mxu0 0
    %1379 = vmatpush1.bf16.msra.mxu0 0
    %1380 = vmatprep.subr.bf16.mxu0 0
    %1381 = vmatpush1.bf16.msra.mxu0 0
    %1382 = vmatprep.subr.bf16.mxu0 0
    %1383 = vmatpush1.bf16.msra.mxu0 0
    %1384 = vmatprep.subr.bf16.mxu0 0
    %1385 = vmatpush1.bf16.msra.mxu0 0
    %1386 = vmatprep.subr.bf16.mxu0 0
    %1387 = vmatpush1.bf16.msra.mxu0 0
    %1388 = vmatprep.subr.bf16.mxu0 %v1368
    %1389 = vmatpush1.bf16.msra.mxu0 %v1365
    %1390 = vmatprep.subr.bf16.mxu0 %v1344
    %1391 = vmatpush1.bf16.msra.mxu0 %v1343
    %1392 = vmatprep.subr.bf16.mxu0 0
    %1393 = vmatpush2.bf16.msra.mxu0 0
    %1394 = vmatprep.subr.bf16.mxu0 0
    %1395 = vmatpush2.bf16.msra.mxu0 0
    %1396 = vmatprep.subr.bf16.mxu0 0
    %1397 = vmatpush2.bf16.msra.mxu0 0
    %1398 = vmatprep.subr.bf16.mxu0 0
    %1399 = vmatpush2.bf16.msra.mxu0 0
    %1400 = vmatprep.subr.bf16.mxu0 0
    %1401 = vmatpush2.bf16.msra.mxu0 0
    %1402 = vmatprep.subr.bf16.mxu0 0
    %1403 = vmatpush2.bf16.msra.mxu0 0
    %1404 = vmatprep.subr.bf16.mxu0 0
    %1405 = vmatpush2.bf16.msra.mxu0 0
    %1406 = vmatprep.subr.bf16.mxu0 0
    %1407 = vmatpush2.bf16.msra.mxu0 0
    %1408 = vmatprep.mubr.bf16.mxu0 0
    %1409 = vmatmul.mubr.bf16.gmra.mxu0 %v1356
    %v1410 = vpop.f32.mrf.mxu0
    %v1411 = vadd.f32 0.0, %v1410
    %v1412 = vpop.f32.mrf.mxu0
    %v1413 = vadd.f32 0.0, %v1412
    %v1414 = vpop.f32.mrf.mxu0
    %v1415 = vadd.f32 0.0, %v1414
    %v1416 = vpop.f32.mrf.mxu0
    %v1417 = vadd.f32 0.0, %v1416
    %1418 = vmatprep.mubr.bf16.mxu0 0
    %1419 = vmatmul.mubr.bf16.gmra.mxu0 %v1359
    %v1420 = vpop.f32.mrf.mxu0
    %v1421 = vadd.f32 0.0, %v1420
    %v1422 = vpop.f32.mrf.mxu0
    %v1423 = vadd.f32 0.0, %v1422
    %v1424 = vpop.f32.mrf.mxu0
    %v1425 = vadd.f32 0.0, %v1424
    %v1426 = vpop.f32.mrf.mxu0
    %v1427 = vadd.f32 0.0, %v1426
    %1428 = vmatprep.mubr.bf16.mxu0 0
    %1429 = vmatmul.mubr.bf16.gmra.mxu0 %v1362
    %v1430 = vpop.f32.mrf.mxu0
    %v1431 = vadd.f32 0.0, %v1430
    %v1432 = vpop.f32.mrf.mxu0
    %v1433 = vadd.f32 0.0, %v1432
    %v1434 = vpop.f32.mrf.mxu0
    %v1435 = vadd.f32 0.0, %v1434
    %v1436 = vpop.f32.mrf.mxu0
    %v1437 = vadd.f32 0.0, %v1436
    %1438 = vdwg.mxu0
    %1439 = vmatprep.subr.bf16.mxu0 0
    %1440 = vmatpush1.bf16.msra.mxu0 0
    %1441 = vmatprep.subr.bf16.mxu0 0
    %1442 = vmatpush1.bf16.msra.mxu0 0
    %1443 = vmatprep.subr.bf16.mxu0 0
    %1444 = vmatpush1.bf16.msra.mxu0 0
    %1445 = vmatprep.subr.bf16.mxu0 0
    %1446 = vmatpush1.bf16.msra.mxu0 0
    %1447 = vmatprep.subr.bf16.mxu0 0
    %1448 = vmatpush1.bf16.msra.mxu0 0
    %1449 = vmatprep.subr.bf16.mxu0 0
    %1450 = vmatpush1.bf16.msra.mxu0 0
    %1451 = vmatprep.subr.bf16.mxu0 %v1374
    %1452 = vmatpush1.bf16.msra.mxu0 %v1371
    %1453 = vmatprep.subr.bf16.mxu0 %v1346
    %1454 = vmatpush1.bf16.msra.mxu0 %v1345
    %1455 = vmatprep.subr.bf16.mxu0 0
    %1456 = vmatpush2.bf16.msra.mxu0 0
    %1457 = vmatprep.subr.bf16.mxu0 0
    %1458 = vmatpush2.bf16.msra.mxu0 0
    %1459 = vmatprep.subr.bf16.mxu0 0
    %1460 = vmatpush2.bf16.msra.mxu0 0
    %1461 = vmatprep.subr.bf16.mxu0 0
    %1462 = vmatpush2.bf16.msra.mxu0 0
    %1463 = vmatprep.subr.bf16.mxu0 0
    %1464 = vmatpush2.bf16.msra.mxu0 0
    %1465 = vmatprep.subr.bf16.mxu0 0
    %1466 = vmatpush2.bf16.msra.mxu0 0
    %1467 = vmatprep.subr.bf16.mxu0 0
    %1468 = vmatpush2.bf16.msra.mxu0 0
    %1469 = vmatprep.subr.bf16.mxu0 0
    %1470 = vmatpush2.bf16.msra.mxu0 0
    %1471 = vmatprep.mubr.bf16.mxu0 0
    %1472 = vmatmul.mubr.bf16.gmra.mxu0 %v1356
    %v1473 = vpop.f32.mrf.mxu0
    %v1474 = vadd.f32 0.0, %v1473
    %v1475 = vpop.f32.mrf.mxu0
    %v1476 = vadd.f32 0.0, %v1475
    %v1477 = vpop.f32.mrf.mxu0
    %v1478 = vadd.f32 0.0, %v1477
    %v1479 = vpop.f32.mrf.mxu0
    %v1480 = vadd.f32 0.0, %v1479
    %1481 = vmatprep.mubr.bf16.mxu0 0
    %1482 = vmatmul.mubr.bf16.gmra.mxu0 %v1359
    %v1483 = vpop.f32.mrf.mxu0
    %v1484 = vadd.f32 0.0, %v1483
    %v1485 = vpop.f32.mrf.mxu0
    %v1486 = vadd.f32 0.0, %v1485
    %v1487 = vpop.f32.mrf.mxu0
    %v1488 = vadd.f32 0.0, %v1487
    %v1489 = vpop.f32.mrf.mxu0
    %v1490 = vadd.f32 0.0, %v1489
    %1491 = vmatprep.mubr.bf16.mxu0 0
    %1492 = vmatmul.mubr.bf16.gmra.mxu0 %v1362
    %v1493 = vpop.f32.mrf.mxu0
    %v1494 = vadd.f32 0.0, %v1493
    %v1495 = vpop.f32.mrf.mxu0
    %v1496 = vadd.f32 0.0, %v1495
    %v1497 = vpop.f32.mrf.mxu0
    %v1498 = vadd.f32 0.0, %v1497
    %v1499 = vpop.f32.mrf.mxu0
    %v1500 = vadd.f32 0.0, %v1499
    %1501 = vdwg.mxu0
    %v1502 = vadd.f32 %v1285, %v1411
    %v1503 = vadd.f32 %v1286, %v1413
    %v1504 = vadd.f32 %v1287, %v1474
    %v1505 = vadd.f32 %v1288, %v1476
    %v1506 = vadd.f32 %v1289, %v1415
    %v1507 = vadd.f32 %v1290, %v1417
    %v1508 = vadd.f32 %v1291, %v1478
    %v1509 = vadd.f32 %v1292, %v1480
    %v1510 = vadd.f32 %v1293, %v1421
    %v1511 = vadd.f32 %v1294, %v1423
    %v1512 = vadd.f32 %v1295, %v1484
    %v1513 = vadd.f32 %v1296, %v1486
    %v1514 = vadd.f32 %v1297, %v1425
    %v1515 = vadd.f32 %v1298, %v1427
    %v1516 = vadd.f32 %v1299, %v1488
    %v1517 = vadd.f32 %v1300, %v1490
    %v1518 = vadd.f32 %v1301, %v1431
    %v1519 = vadd.f32 %v1302, %v1433
    %v1520 = vadd.f32 %v1303, %v1494
    %v1521 = vadd.f32 %v1304, %v1496
    %v1522 = vadd.f32 %v1305, %v1435
    %v1523 = vadd.f32 %v1306, %v1437
    %v1524 = vadd.f32 %v1307, %v1498
    %v1525 = vadd.f32 %v1308, %v1500
    %v1526 = vmax.f32 %v1502, %v1504
    %v1527 = vmax.f32 %v1503, %v1505
    %v1528 = vmax.f32 %v1506, %v1508
    %v1529 = vmax.f32 %v1507, %v1509
    %v1530 = vmax.f32 %v1510, %v1512
    %v1531 = vmax.f32 %v1511, %v1513
    %v1532 = vmax.f32 %v1514, %v1516
    %v1533 = vmax.f32 %v1515, %v1517
    %v1534 = vmax.f32 %v1518, %v1520
    %v1535 = vmax.f32 %v1519, %v1521
    %v1536 = vmax.f32 %v1522, %v1524
    %v1537 = vmax.f32 %v1523, %v1525
    %1538 = vmatprep.subr.bf16.mxu0 0
    %1539 = vmatpush1.bf16.msra.mxu0 0
    %1540 = vmatprep.subr.bf16.mxu0 0
    %1541 = vmatpush1.bf16.msra.mxu0 0
    %1542 = vmatprep.subr.bf16.mxu0 0
    %1543 = vmatpush1.bf16.msra.mxu0 0
    %1544 = vmatprep.subr.bf16.mxu0 0
    %1545 = vmatpush1.bf16.msra.mxu0 0
    %1546 = vmatprep.subr.bf16.mxu0 0
    %1547 = vmatpush1.bf16.msra.mxu0 0
    %1548 = vmatprep.subr.bf16.mxu0 0
    %1549 = vmatpush1.bf16.msra.mxu0 0
    %1550 = vmatprep.subr.bf16.mxu0 %v558
    %1551 = vmatpush1.bf16.msra.mxu0 %v555
    %1552 = vmatprep.subr.bf16.mxu0 %v532
    %1553 = vmatpush1.bf16.msra.mxu0 %v531
    %1554 = vmatprep.subr.bf16.mxu0 0
    %1555 = vmatpush2.bf16.msra.mxu0 0
    %1556 = vmatprep.subr.bf16.mxu0 0
    %1557 = vmatpush2.bf16.msra.mxu0 0
    %1558 = vmatprep.subr.bf16.mxu0 0
    %1559 = vmatpush2.bf16.msra.mxu0 0
    %1560 = vmatprep.subr.bf16.mxu0 0
    %1561 = vmatpush2.bf16.msra.mxu0 0
    %1562 = vmatprep.subr.bf16.mxu0 0
    %1563 = vmatpush2.bf16.msra.mxu0 0
    %1564 = vmatprep.subr.bf16.mxu0 0
    %1565 = vmatpush2.bf16.msra.mxu0 0
    %1566 = vmatprep.subr.bf16.mxu0 0
    %1567 = vmatpush2.bf16.msra.mxu0 0
    %1568 = vmatprep.subr.bf16.mxu0 0
    %1569 = vmatpush2.bf16.msra.mxu0 0
    %1570 = vmatprep.mubr.bf16.mxu0 0
    %1571 = vmatmul.mubr.bf16.gmra.mxu0 %v922
    %v1572 = vpop.f32.mrf.mxu0
    %v1573 = vadd.f32 0.0, %v1572
    %v1574 = vpop.f32.mrf.mxu0
    %v1575 = vadd.f32 0.0, %v1574
    %v1576 = vpop.f32.mrf.mxu0
    %v1577 = vadd.f32 0.0, %v1576
    %v1578 = vpop.f32.mrf.mxu0
    %v1579 = vadd.f32 0.0, %v1578
    %1580 = vmatprep.mubr.bf16.mxu0 0
    %1581 = vmatmul.mubr.bf16.gmra.mxu0 %v925
    %v1582 = vpop.f32.mrf.mxu0
    %v1583 = vadd.f32 0.0, %v1582
    %v1584 = vpop.f32.mrf.mxu0
    %v1585 = vadd.f32 0.0, %v1584
    %v1586 = vpop.f32.mrf.mxu0
    %v1587 = vadd.f32 0.0, %v1586
    %v1588 = vpop.f32.mrf.mxu0
    %v1589 = vadd.f32 0.0, %v1588
    %1590 = vmatprep.mubr.bf16.mxu0 0
    %1591 = vmatmul.mubr.bf16.gmra.mxu0 %v928
    %v1592 = vpop.f32.mrf.mxu0
    %v1593 = vadd.f32 0.0, %v1592
    %v1594 = vpop.f32.mrf.mxu0
    %v1595 = vadd.f32 0.0, %v1594
    %v1596 = vpop.f32.mrf.mxu0
    %v1597 = vadd.f32 0.0, %v1596
    %v1598 = vpop.f32.mrf.mxu0
    %v1599 = vadd.f32 0.0, %v1598
    %1600 = vdwg.mxu0
    %1601 = vmatprep.subr.bf16.mxu0 0
    %1602 = vmatpush1.bf16.msra.mxu0 0
    %1603 = vmatprep.subr.bf16.mxu0 0
    %1604 = vmatpush1.bf16.msra.mxu0 0
    %1605 = vmatprep.subr.bf16.mxu0 0
    %1606 = vmatpush1.bf16.msra.mxu0 0
    %1607 = vmatprep.subr.bf16.mxu0 0
    %1608 = vmatpush1.bf16.msra.mxu0 0
    %1609 = vmatprep.subr.bf16.mxu0 0
    %1610 = vmatpush1.bf16.msra.mxu0 0
    %1611 = vmatprep.subr.bf16.mxu0 0
    %1612 = vmatpush1.bf16.msra.mxu0 0
    %1613 = vmatprep.subr.bf16.mxu0 %v564
    %1614 = vmatpush1.bf16.msra.mxu0 %v561
    %1615 = vmatprep.subr.bf16.mxu0 %v534
    %1616 = vmatpush1.bf16.msra.mxu0 %v533
    %1617 = vmatprep.subr.bf16.mxu0 0
    %1618 = vmatpush2.bf16.msra.mxu0 0
    %1619 = vmatprep.subr.bf16.mxu0 0
    %1620 = vmatpush2.bf16.msra.mxu0 0
    %1621 = vmatprep.subr.bf16.mxu0 0
    %1622 = vmatpush2.bf16.msra.mxu0 0
    %1623 = vmatprep.subr.bf16.mxu0 0
    %1624 = vmatpush2.bf16.msra.mxu0 0
    %1625 = vmatprep.subr.bf16.mxu0 0
    %1626 = vmatpush2.bf16.msra.mxu0 0
    %1627 = vmatprep.subr.bf16.mxu0 0
    %1628 = vmatpush2.bf16.msra.mxu0 0
    %1629 = vmatprep.subr.bf16.mxu0 0
    %1630 = vmatpush2.bf16.msra.mxu0 0
    %1631 = vmatprep.subr.bf16.mxu0 0
    %1632 = vmatpush2.bf16.msra.mxu0 0
    %1633 = vmatprep.mubr.bf16.mxu0 0
    %1634 = vmatmul.mubr.bf16.gmra.mxu0 %v922
    %v1635 = vpop.f32.mrf.mxu0
    %v1636 = vadd.f32 0.0, %v1635
    %v1637 = vpop.f32.mrf.mxu0
    %v1638 = vadd.f32 0.0, %v1637
    %v1639 = vpop.f32.mrf.mxu0
    %v1640 = vadd.f32 0.0, %v1639
    %v1641 = vpop.f32.mrf.mxu0
    %v1642 = vadd.f32 0.0, %v1641
    %1643 = vmatprep.mubr.bf16.mxu0 0
    %1644 = vmatmul.mubr.bf16.gmra.mxu0 %v925
    %v1645 = vpop.f32.mrf.mxu0
    %v1646 = vadd.f32 0.0, %v1645
    %v1647 = vpop.f32.mrf.mxu0
    %v1648 = vadd.f32 0.0, %v1647
    %v1649 = vpop.f32.mrf.mxu0
    %v1650 = vadd.f32 0.0, %v1649
    %v1651 = vpop.f32.mrf.mxu0
    %v1652 = vadd.f32 0.0, %v1651
    %1653 = vmatprep.mubr.bf16.mxu0 0
    %1654 = vmatmul.mubr.bf16.gmra.mxu0 %v928
    %v1655 = vpop.f32.mrf.mxu0
    %v1656 = vadd.f32 0.0, %v1655
    %v1657 = vpop.f32.mrf.mxu0
    %v1658 = vadd.f32 0.0, %v1657
    %v1659 = vpop.f32.mrf.mxu0
    %v1660 = vadd.f32 0.0, %v1659
    %v1661 = vpop.f32.mrf.mxu0
    %v1662 = vadd.f32 0.0, %v1661
    %1663 = vdwg.mxu0
    %1664 = vmatprep.subr.bf16.mxu0 0
    %1665 = vmatpush1.bf16.msra.mxu0 0
    %1666 = vmatprep.subr.bf16.mxu0 0
    %1667 = vmatpush1.bf16.msra.mxu0 0
    %1668 = vmatprep.subr.bf16.mxu0 0
    %1669 = vmatpush1.bf16.msra.mxu0 0
    %1670 = vmatprep.subr.bf16.mxu0 0
    %1671 = vmatpush1.bf16.msra.mxu0 0
    %1672 = vmatprep.subr.bf16.mxu0 0
    %1673 = vmatpush1.bf16.msra.mxu0 0
    %1674 = vmatprep.subr.bf16.mxu0 0
    %1675 = vmatpush1.bf16.msra.mxu0 0
    %1676 = vmatprep.subr.bf16.mxu0 %v741
    %1677 = vmatpush1.bf16.msra.mxu0 %v738
    %1678 = vmatprep.subr.bf16.mxu0 %v717
    %1679 = vmatpush1.bf16.msra.mxu0 %v716
    %1680 = vmatprep.subr.bf16.mxu0 0
    %1681 = vmatpush2.bf16.msra.mxu0 0
    %1682 = vmatprep.subr.bf16.mxu0 0
    %1683 = vmatpush2.bf16.msra.mxu0 0
    %1684 = vmatprep.subr.bf16.mxu0 0
    %1685 = vmatpush2.bf16.msra.mxu0 0
    %1686 = vmatprep.subr.bf16.mxu0 0
    %1687 = vmatpush2.bf16.msra.mxu0 0
    %1688 = vmatprep.subr.bf16.mxu0 0
    %1689 = vmatpush2.bf16.msra.mxu0 0
    %1690 = vmatprep.subr.bf16.mxu0 0
    %1691 = vmatpush2.bf16.msra.mxu0 0
    %1692 = vmatprep.subr.bf16.mxu0 0
    %1693 = vmatpush2.bf16.msra.mxu0 0
    %1694 = vmatprep.subr.bf16.mxu0 0
    %1695 = vmatpush2.bf16.msra.mxu0 0
    %1696 = vmatprep.mubr.bf16.mxu0 0
    %1697 = vmatmul.mubr.bf16.gmra.mxu0 %v545
    %v1698 = vpop.f32.mrf.mxu0
    %v1699 = vadd.f32 %v1573, %v1698
    %v1700 = vpop.f32.mrf.mxu0
    %v1701 = vadd.f32 %v1575, %v1700
    %v1702 = vpop.f32.mrf.mxu0
    %v1703 = vadd.f32 %v1577, %v1702
    %v1704 = vpop.f32.mrf.mxu0
    %v1705 = vadd.f32 %v1579, %v1704
    %1706 = vmatprep.mubr.bf16.mxu0 0
    %1707 = vmatmul.mubr.bf16.gmra.mxu0 %v548
    %v1708 = vpop.f32.mrf.mxu0
    %v1709 = vadd.f32 %v1583, %v1708
    %v1710 = vpop.f32.mrf.mxu0
    %v1711 = vadd.f32 %v1585, %v1710
    %v1712 = vpop.f32.mrf.mxu0
    %v1713 = vadd.f32 %v1587, %v1712
    %v1714 = vpop.f32.mrf.mxu0
    %v1715 = vadd.f32 %v1589, %v1714
    %1716 = vmatprep.mubr.bf16.mxu0 0
    %1717 = vmatmul.mubr.bf16.gmra.mxu0 %v551
    %v1718 = vpop.f32.mrf.mxu0
    %v1719 = vadd.f32 %v1593, %v1718
    %v1720 = vpop.f32.mrf.mxu0
    %v1721 = vadd.f32 %v1595, %v1720
    %v1722 = vpop.f32.mrf.mxu0
    %v1723 = vadd.f32 %v1597, %v1722
    %v1724 = vpop.f32.mrf.mxu0
    %v1725 = vadd.f32 %v1599, %v1724
    %1726 = vdwg.mxu0
    %1727 = vmatprep.subr.bf16.mxu0 0
    %1728 = vmatpush1.bf16.msra.mxu0 0
    %1729 = vmatprep.subr.bf16.mxu0 0
    %1730 = vmatpush1.bf16.msra.mxu0 0
    %1731 = vmatprep.subr.bf16.mxu0 0
    %1732 = vmatpush1.bf16.msra.mxu0 0
    %1733 = vmatprep.subr.bf16.mxu0 0
    %1734 = vmatpush1.bf16.msra.mxu0 0
    %1735 = vmatprep.subr.bf16.mxu0 0
    %1736 = vmatpush1.bf16.msra.mxu0 0
    %1737 = vmatprep.subr.bf16.mxu0 0
    %1738 = vmatpush1.bf16.msra.mxu0 0
    %1739 = vmatprep.subr.bf16.mxu0 %v747
    %1740 = vmatpush1.bf16.msra.mxu0 %v744
    %1741 = vmatprep.subr.bf16.mxu0 %v719
    %1742 = vmatpush1.bf16.msra.mxu0 %v718
    %1743 = vmatprep.subr.bf16.mxu0 0
    %1744 = vmatpush2.bf16.msra.mxu0 0
    %1745 = vmatprep.subr.bf16.mxu0 0
    %1746 = vmatpush2.bf16.msra.mxu0 0
    %1747 = vmatprep.subr.bf16.mxu0 0
    %1748 = vmatpush2.bf16.msra.mxu0 0
    %1749 = vmatprep.subr.bf16.mxu0 0
    %1750 = vmatpush2.bf16.msra.mxu0 0
    %1751 = vmatprep.subr.bf16.mxu0 0
    %1752 = vmatpush2.bf16.msra.mxu0 0
    %1753 = vmatprep.subr.bf16.mxu0 0
    %1754 = vmatpush2.bf16.msra.mxu0 0
    %1755 = vmatprep.subr.bf16.mxu0 0
    %1756 = vmatpush2.bf16.msra.mxu0 0
    %1757 = vmatprep.subr.bf16.mxu0 0
    %1758 = vmatpush2.bf16.msra.mxu0 0
    %1759 = vmatprep.mubr.bf16.mxu0 0
    %1760 = vmatmul.mubr.bf16.gmra.mxu0 %v545
    %v1761 = vpop.f32.mrf.mxu0
    %v1762 = vadd.f32 %v1636, %v1761
    %v1763 = vpop.f32.mrf.mxu0
    %v1764 = vadd.f32 %v1638, %v1763
    %v1765 = vpop.f32.mrf.mxu0
    %v1766 = vadd.f32 %v1640, %v1765
    %v1767 = vpop.f32.mrf.mxu0
    %v1768 = vadd.f32 %v1642, %v1767
    %1769 = vmatprep.mubr.bf16.mxu0 0
    %1770 = vmatmul.mubr.bf16.gmra.mxu0 %v548
    %v1771 = vpop.f32.mrf.mxu0
    %v1772 = vadd.f32 %v1646, %v1771
    %v1773 = vpop.f32.mrf.mxu0
    %v1774 = vadd.f32 %v1648, %v1773
    %v1775 = vpop.f32.mrf.mxu0
    %v1776 = vadd.f32 %v1650, %v1775
    %v1777 = vpop.f32.mrf.mxu0
    %v1778 = vadd.f32 %v1652, %v1777
    %1779 = vmatprep.mubr.bf16.mxu0 0
    %1780 = vmatmul.mubr.bf16.gmra.mxu0 %v551
    %v1781 = vpop.f32.mrf.mxu0
    %v1782 = vadd.f32 %v1656, %v1781
    %v1783 = vpop.f32.mrf.mxu0
    %v1784 = vadd.f32 %v1658, %v1783
    %v1785 = vpop.f32.mrf.mxu0
    %v1786 = vadd.f32 %v1660, %v1785
    %v1787 = vpop.f32.mrf.mxu0
    %v1788 = vadd.f32 %v1662, %v1787
    %1789 = vdwg.mxu0
    %1790 = vmatprep.subr.bf16.mxu0 0
    %1791 = vmatpush1.bf16.msra.mxu0 0
    %1792 = vmatprep.subr.bf16.mxu0 0
    %1793 = vmatpush1.bf16.msra.mxu0 0
    %1794 = vmatprep.subr.bf16.mxu0 0
    %1795 = vmatpush1.bf16.msra.mxu0 0
    %1796 = vmatprep.subr.bf16.mxu0 0
    %1797 = vmatpush1.bf16.msra.mxu0 0
    %1798 = vmatprep.subr.bf16.mxu0 0
    %1799 = vmatpush1.bf16.msra.mxu0 0
    %1800 = vmatprep.subr.bf16.mxu0 0
    %1801 = vmatpush1.bf16.msra.mxu0 0
    %1802 = vmatprep.subr.bf16.mxu0 %v934
    %1803 = vmatpush1.bf16.msra.mxu0 %v931
    %1804 = vmatprep.subr.bf16.mxu0 %v910
    %1805 = vmatpush1.bf16.msra.mxu0 %v909
    %1806 = vmatprep.subr.bf16.mxu0 0
    %1807 = vmatpush2.bf16.msra.mxu0 0
    %1808 = vmatprep.subr.bf16.mxu0 0
    %1809 = vmatpush2.bf16.msra.mxu0 0
    %1810 = vmatprep.subr.bf16.mxu0 0
    %1811 = vmatpush2.bf16.msra.mxu0 0
    %1812 = vmatprep.subr.bf16.mxu0 0
    %1813 = vmatpush2.bf16.msra.mxu0 0
    %1814 = vmatprep.subr.bf16.mxu0 0
    %1815 = vmatpush2.bf16.msra.mxu0 0
    %1816 = vmatprep.subr.bf16.mxu0 0
    %1817 = vmatpush2.bf16.msra.mxu0 0
    %1818 = vmatprep.subr.bf16.mxu0 0
    %1819 = vmatpush2.bf16.msra.mxu0 0
    %1820 = vmatprep.subr.bf16.mxu0 0
    %1821 = vmatpush2.bf16.msra.mxu0 0
    %1822 = vmatprep.mubr.bf16.mxu0 0
    %1823 = vmatmul.mubr.bf16.gmra.mxu0 %v1139
    %v1824 = vpop.f32.mrf.mxu0
    %v1825 = vadd.f32 0.0, %v1824
    %v1826 = vpop.f32.mrf.mxu0
    %v1827 = vadd.f32 0.0, %v1826
    %v1828 = vpop.f32.mrf.mxu0
    %v1829 = vadd.f32 0.0, %v1828
    %v1830 = vpop.f32.mrf.mxu0
    %v1831 = vadd.f32 0.0, %v1830
    %1832 = vmatprep.mubr.bf16.mxu0 0
    %1833 = vmatmul.mubr.bf16.gmra.mxu0 %v1142
    %v1834 = vpop.f32.mrf.mxu0
    %v1835 = vadd.f32 0.0, %v1834
    %v1836 = vpop.f32.mrf.mxu0
    %v1837 = vadd.f32 0.0, %v1836
    %v1838 = vpop.f32.mrf.mxu0
    %v1839 = vadd.f32 0.0, %v1838
    %v1840 = vpop.f32.mrf.mxu0
    %v1841 = vadd.f32 0.0, %v1840
    %1842 = vmatprep.mubr.bf16.mxu0 0
    %1843 = vmatmul.mubr.bf16.gmra.mxu0 %v1145
    %v1844 = vpop.f32.mrf.mxu0
    %v1845 = vadd.f32 0.0, %v1844
    %v1846 = vpop.f32.mrf.mxu0
    %v1847 = vadd.f32 0.0, %v1846
    %v1848 = vpop.f32.mrf.mxu0
    %v1849 = vadd.f32 0.0, %v1848
    %v1850 = vpop.f32.mrf.mxu0
    %v1851 = vadd.f32 0.0, %v1850
    %1852 = vdwg.mxu0
    %1853 = vmatprep.subr.bf16.mxu0 0
    %1854 = vmatpush1.bf16.msra.mxu0 0
    %1855 = vmatprep.subr.bf16.mxu0 0
    %1856 = vmatpush1.bf16.msra.mxu0 0
    %1857 = vmatprep.subr.bf16.mxu0 0
    %1858 = vmatpush1.bf16.msra.mxu0 0
    %1859 = vmatprep.subr.bf16.mxu0 0
    %1860 = vmatpush1.bf16.msra.mxu0 0
    %1861 = vmatprep.subr.bf16.mxu0 0
    %1862 = vmatpush1.bf16.msra.mxu0 0
    %1863 = vmatprep.subr.bf16.mxu0 0
    %1864 = vmatpush1.bf16.msra.mxu0 0
    %1865 = vmatprep.subr.bf16.mxu0 %v940
    %1866 = vmatpush1.bf16.msra.mxu0 %v937
    %1867 = vmatprep.subr.bf16.mxu0 %v912
    %1868 = vmatpush1.bf16.msra.mxu0 %v911
    %1869 = vmatprep.subr.bf16.mxu0 0
    %1870 = vmatpush2.bf16.msra.mxu0 0
    %1871 = vmatprep.subr.bf16.mxu0 0
    %1872 = vmatpush2.bf16.msra.mxu0 0
    %1873 = vmatprep.subr.bf16.mxu0 0
    %1874 = vmatpush2.bf16.msra.mxu0 0
    %1875 = vmatprep.subr.bf16.mxu0 0
    %1876 = vmatpush2.bf16.msra.mxu0 0
    %1877 = vmatprep.subr.bf16.mxu0 0
    %1878 = vmatpush2.bf16.msra.mxu0 0
    %1879 = vmatprep.subr.bf16.mxu0 0
    %1880 = vmatpush2.bf16.msra.mxu0 0
    %1881 = vmatprep.subr.bf16.mxu0 0
    %1882 = vmatpush2.bf16.msra.mxu0 0
    %1883 = vmatprep.subr.bf16.mxu0 0
    %1884 = vmatpush2.bf16.msra.mxu0 0
    %1885 = vmatprep.mubr.bf16.mxu0 0
    %1886 = vmatmul.mubr.bf16.gmra.mxu0 %v1139
    %v1887 = vpop.f32.mrf.mxu0
    %v1888 = vadd.f32 0.0, %v1887
    %v1889 = vpop.f32.mrf.mxu0
    %v1890 = vadd.f32 0.0, %v1889
    %v1891 = vpop.f32.mrf.mxu0
    %v1892 = vadd.f32 0.0, %v1891
    %v1893 = vpop.f32.mrf.mxu0
    %v1894 = vadd.f32 0.0, %v1893
    %1895 = vmatprep.mubr.bf16.mxu0 0
    %1896 = vmatmul.mubr.bf16.gmra.mxu0 %v1142
    %v1897 = vpop.f32.mrf.mxu0
    %v1898 = vadd.f32 0.0, %v1897
    %v1899 = vpop.f32.mrf.mxu0
    %v1900 = vadd.f32 0.0, %v1899
    %v1901 = vpop.f32.mrf.mxu0
    %v1902 = vadd.f32 0.0, %v1901
    %v1903 = vpop.f32.mrf.mxu0
    %v1904 = vadd.f32 0.0, %v1903
    %1905 = vmatprep.mubr.bf16.mxu0 0
    %1906 = vmatmul.mubr.bf16.gmra.mxu0 %v1145
    %v1907 = vpop.f32.mrf.mxu0
    %v1908 = vadd.f32 0.0, %v1907
    %v1909 = vpop.f32.mrf.mxu0
    %v1910 = vadd.f32 0.0, %v1909
    %v1911 = vpop.f32.mrf.mxu0
    %v1912 = vadd.f32 0.0, %v1911
    %v1913 = vpop.f32.mrf.mxu0
    %v1914 = vadd.f32 0.0, %v1913
    %1915 = vdwg.mxu0
    %v1916 = vadd.f32 %v1699, %v1825
    %v1917 = vadd.f32 %v1701, %v1827
    %v1918 = vadd.f32 %v1762, %v1888
    %v1919 = vadd.f32 %v1764, %v1890
    %v1920 = vadd.f32 %v1703, %v1829
    %v1921 = vadd.f32 %v1705, %v1831
    %v1922 = vadd.f32 %v1766, %v1892
    %v1923 = vadd.f32 %v1768, %v1894
    %v1924 = vadd.f32 %v1709, %v1835
    %v1925 = vadd.f32 %v1711, %v1837
    %v1926 = vadd.f32 %v1772, %v1898
    %v1927 = vadd.f32 %v1774, %v1900
    %v1928 = vadd.f32 %v1713, %v1839
    %v1929 = vadd.f32 %v1715, %v1841
    %v1930 = vadd.f32 %v1776, %v1902
    %v1931 = vadd.f32 %v1778, %v1904
    %v1932 = vadd.f32 %v1719, %v1845
    %v1933 = vadd.f32 %v1721, %v1847
    %v1934 = vadd.f32 %v1782, %v1908
    %v1935 = vadd.f32 %v1784, %v1910
    %v1936 = vadd.f32 %v1723, %v1849
    %v1937 = vadd.f32 %v1725, %v1851
    %v1938 = vadd.f32 %v1786, %v1912
    %v1939 = vadd.f32 %v1788, %v1914
    %1940 = vmatprep.subr.bf16.mxu0 0
    %1941 = vmatpush1.bf16.msra.mxu0 0
    %1942 = vmatprep.subr.bf16.mxu0 0
    %1943 = vmatpush1.bf16.msra.mxu0 0
    %1944 = vmatprep.subr.bf16.mxu0 0
    %1945 = vmatpush1.bf16.msra.mxu0 0
    %1946 = vmatprep.subr.bf16.mxu0 0
    %1947 = vmatpush1.bf16.msra.mxu0 0
    %1948 = vmatprep.subr.bf16.mxu0 0
    %1949 = vmatpush1.bf16.msra.mxu0 0
    %1950 = vmatprep.subr.bf16.mxu0 0
    %1951 = vmatpush1.bf16.msra.mxu0 0
    %1952 = vmatprep.subr.bf16.mxu0 %v1151
    %1953 = vmatpush1.bf16.msra.mxu0 %v1148
    %1954 = vmatprep.subr.bf16.mxu0 %v1127
    %1955 = vmatpush1.bf16.msra.mxu0 %v1126
    %1956 = vmatprep.subr.bf16.mxu0 0
    %1957 = vmatpush2.bf16.msra.mxu0 0
    %1958 = vmatprep.subr.bf16.mxu0 0
    %1959 = vmatpush2.bf16.msra.mxu0 0
    %1960 = vmatprep.subr.bf16.mxu0 0
    %1961 = vmatpush2.bf16.msra.mxu0 0
    %1962 = vmatprep.subr.bf16.mxu0 0
    %1963 = vmatpush2.bf16.msra.mxu0 0
    %1964 = vmatprep.subr.bf16.mxu0 0
    %1965 = vmatpush2.bf16.msra.mxu0 0
    %1966 = vmatprep.subr.bf16.mxu0 0
    %1967 = vmatpush2.bf16.msra.mxu0 0
    %1968 = vmatprep.subr.bf16.mxu0 0
    %1969 = vmatpush2.bf16.msra.mxu0 0
    %1970 = vmatprep.subr.bf16.mxu0 0
    %1971 = vmatpush2.bf16.msra.mxu0 0
    %1972 = vmatprep.mubr.bf16.mxu0 0
    %1973 = vmatmul.mubr.bf16.gmra.mxu0 %v1356
    %v1974 = vpop.f32.mrf.mxu0
    %v1975 = vadd.f32 0.0, %v1974
    %v1976 = vpop.f32.mrf.mxu0
    %v1977 = vadd.f32 0.0, %v1976
    %v1978 = vpop.f32.mrf.mxu0
    %v1979 = vadd.f32 0.0, %v1978
    %v1980 = vpop.f32.mrf.mxu0
    %v1981 = vadd.f32 0.0, %v1980
    %1982 = vmatprep.mubr.bf16.mxu0 0
    %1983 = vmatmul.mubr.bf16.gmra.mxu0 %v1359
    %v1984 = vpop.f32.mrf.mxu0
    %v1985 = vadd.f32 0.0, %v1984
    %v1986 = vpop.f32.mrf.mxu0
    %v1987 = vadd.f32 0.0, %v1986
    %v1988 = vpop.f32.mrf.mxu0
    %v1989 = vadd.f32 0.0, %v1988
    %v1990 = vpop.f32.mrf.mxu0
    %v1991 = vadd.f32 0.0, %v1990
    %1992 = vmatprep.mubr.bf16.mxu0 0
    %1993 = vmatmul.mubr.bf16.gmra.mxu0 %v1362
    %v1994 = vpop.f32.mrf.mxu0
    %v1995 = vadd.f32 0.0, %v1994
    %v1996 = vpop.f32.mrf.mxu0
    %v1997 = vadd.f32 0.0, %v1996
    %v1998 = vpop.f32.mrf.mxu0
    %v1999 = vadd.f32 0.0, %v1998
    %v2000 = vpop.f32.mrf.mxu0
    %v2001 = vadd.f32 0.0, %v2000
    %2002 = vdwg.mxu0
    %2003 = vmatprep.subr.bf16.mxu0 0
    %2004 = vmatpush1.bf16.msra.mxu0 0
    %2005 = vmatprep.subr.bf16.mxu0 0
    %2006 = vmatpush1.bf16.msra.mxu0 0
    %2007 = vmatprep.subr.bf16.mxu0 0
    %2008 = vmatpush1.bf16.msra.mxu0 0
    %2009 = vmatprep.subr.bf16.mxu0 0
    %2010 = vmatpush1.bf16.msra.mxu0 0
    %2011 = vmatprep.subr.bf16.mxu0 0
    %2012 = vmatpush1.bf16.msra.mxu0 0
    %2013 = vmatprep.subr.bf16.mxu0 0
    %2014 = vmatpush1.bf16.msra.mxu0 0
    %2015 = vmatprep.subr.bf16.mxu0 %v1157
    %2016 = vmatpush1.bf16.msra.mxu0 %v1154
    %2017 = vmatprep.subr.bf16.mxu0 %v1129
    %2018 = vmatpush1.bf16.msra.mxu0 %v1128
    %2019 = vmatprep.subr.bf16.mxu0 0
    %2020 = vmatpush2.bf16.msra.mxu0 0
    %2021 = vmatprep.subr.bf16.mxu0 0
    %2022 = vmatpush2.bf16.msra.mxu0 0
    %2023 = vmatprep.subr.bf16.mxu0 0
    %2024 = vmatpush2.bf16.msra.mxu0 0
    %2025 = vmatprep.subr.bf16.mxu0 0
    %2026 = vmatpush2.bf16.msra.mxu0 0
    %2027 = vmatprep.subr.bf16.mxu0 0
    %2028 = vmatpush2.bf16.msra.mxu0 0
    %2029 = vmatprep.subr.bf16.mxu0 0
    %2030 = vmatpush2.bf16.msra.mxu0 0
    %2031 = vmatprep.subr.bf16.mxu0 0
    %2032 = vmatpush2.bf16.msra.mxu0 0
    %2033 = vmatprep.subr.bf16.mxu0 0
    %2034 = vmatpush2.bf16.msra.mxu0 0
    %2035 = vmatprep.mubr.bf16.mxu0 0
    %2036 = vmatmul.mubr.bf16.gmra.mxu0 %v1356
    %v2037 = vpop.f32.mrf.mxu0
    %v2038 = vadd.f32 0.0, %v2037
    %v2039 = vpop.f32.mrf.mxu0
    %v2040 = vadd.f32 0.0, %v2039
    %v2041 = vpop.f32.mrf.mxu0
    %v2042 = vadd.f32 0.0, %v2041
    %v2043 = vpop.f32.mrf.mxu0
    %v2044 = vadd.f32 0.0, %v2043
    %2045 = vmatprep.mubr.bf16.mxu0 0
    %2046 = vmatmul.mubr.bf16.gmra.mxu0 %v1359
    %v2047 = vpop.f32.mrf.mxu0
    %v2048 = vadd.f32 0.0, %v2047
    %v2049 = vpop.f32.mrf.mxu0
    %v2050 = vadd.f32 0.0, %v2049
    %v2051 = vpop.f32.mrf.mxu0
    %v2052 = vadd.f32 0.0, %v2051
    %v2053 = vpop.f32.mrf.mxu0
    %v2054 = vadd.f32 0.0, %v2053
    %2055 = vmatprep.mubr.bf16.mxu0 0
    %2056 = vmatmul.mubr.bf16.gmra.mxu0 %v1362
    %v2057 = vpop.f32.mrf.mxu0
    %v2058 = vadd.f32 0.0, %v2057
    %v2059 = vpop.f32.mrf.mxu0
    %v2060 = vadd.f32 0.0, %v2059
    %v2061 = vpop.f32.mrf.mxu0
    %v2062 = vadd.f32 0.0, %v2061
    %v2063 = vpop.f32.mrf.mxu0
    %v2064 = vadd.f32 0.0, %v2063
    %2065 = vdwg.mxu0
    %v2066 = vadd.f32 %v1916, %v1975
    %v2067 = vadd.f32 %v1917, %v1977
    %v2068 = vadd.f32 %v1918, %v2038
    %v2069 = vadd.f32 %v1919, %v2040
    %v2070 = vadd.f32 %v1920, %v1979
    %v2071 = vadd.f32 %v1921, %v1981
    %v2072 = vadd.f32 %v1922, %v2042
    %v2073 = vadd.f32 %v1923, %v2044
    %v2074 = vadd.f32 %v1924, %v1985
    %v2075 = vadd.f32 %v1925, %v1987
    %v2076 = vadd.f32 %v1926, %v2048
    %v2077 = vadd.f32 %v1927, %v2050
    %v2078 = vadd.f32 %v1928, %v1989
    %v2079 = vadd.f32 %v1929, %v1991
    %v2080 = vadd.f32 %v1930, %v2052
    %v2081 = vadd.f32 %v1931, %v2054
    %v2082 = vadd.f32 %v1932, %v1995
    %v2083 = vadd.f32 %v1933, %v1997
    %v2084 = vadd.f32 %v1934, %v2058
    %v2085 = vadd.f32 %v1935, %v2060
    %v2086 = vadd.f32 %v1936, %v1999
    %v2087 = vadd.f32 %v1937, %v2001
    %v2088 = vadd.f32 %v1938, %v2062
    %v2089 = vadd.f32 %v1939, %v2064
    %s2090 = scalar_lea.vmem %s0, 64
    %v2091 = vld [vmem:[%s2090] sm:$0xff]
    %v2092 = vld [vmem:[%s2090 + $0x8] sm:$0xff]
    %v2093 = vld [vmem:[%s2090 + $0x10] sm:$0xff]
    %v2094 = vld [vmem:[%s2090 + $0x18] sm:$0xff]
    %v2095 = vld [vmem:[%s2090 + $0x20] sm:$0xff]
    %v2096 = vld [vmem:[%s2090 + $0x28] sm:$0xff]
    %v2097 = vpack.c.bf16 %v2092, %v2091
    %v2098 = vpack.c.bf16 %v2094, %v2093
    %v2099 = vpack.c.bf16 %v2096, %v2095
    %v2101 = vsel %vm543, %v2097, 0
    %v2104 = vsel %vm543, %v2098, 0
    %v2107 = vsel %vm543, %v2099, 0
    %2109 = vmatprep.subr.bf16.mxu0 0
    %2110 = vmatpush1.bf16.msra.mxu0 0
    %2111 = vmatprep.subr.bf16.mxu0 0
    %2112 = vmatpush1.bf16.msra.mxu0 0
    %2113 = vmatprep.subr.bf16.mxu0 0
    %2114 = vmatpush1.bf16.msra.mxu0 0
    %2115 = vmatprep.subr.bf16.mxu0 0
    %2116 = vmatpush1.bf16.msra.mxu0 0
    %2117 = vmatprep.subr.bf16.mxu0 0
    %2118 = vmatpush1.bf16.msra.mxu0 0
    %2119 = vmatprep.subr.bf16.mxu0 0
    %2120 = vmatpush1.bf16.msra.mxu0 0
    %2121 = vmatprep.subr.bf16.mxu0 %v1368
    %2122 = vmatpush1.bf16.msra.mxu0 %v1365
    %2123 = vmatprep.subr.bf16.mxu0 %v1344
    %2124 = vmatpush1.bf16.msra.mxu0 %v1343
    %2125 = vmatprep.subr.bf16.mxu0 0
    %2126 = vmatpush2.bf16.msra.mxu0 0
    %2127 = vmatprep.subr.bf16.mxu0 0
    %2128 = vmatpush2.bf16.msra.mxu0 0
    %2129 = vmatprep.subr.bf16.mxu0 0
    %2130 = vmatpush2.bf16.msra.mxu0 0
    %2131 = vmatprep.subr.bf16.mxu0 0
    %2132 = vmatpush2.bf16.msra.mxu0 0
    %2133 = vmatprep.subr.bf16.mxu0 0
    %2134 = vmatpush2.bf16.msra.mxu0 0
    %2135 = vmatprep.subr.bf16.mxu0 0
    %2136 = vmatpush2.bf16.msra.mxu0 0
    %2137 = vmatprep.subr.bf16.mxu0 0
    %2138 = vmatpush2.bf16.msra.mxu0 0
    %2139 = vmatprep.subr.bf16.mxu0 0
    %2140 = vmatpush2.bf16.msra.mxu0 0
    %2141 = vmatprep.mubr.bf16.mxu0 0
    %2142 = vmatmul.mubr.bf16.gmra.mxu0 %v2101
    %v2143 = vpop.f32.mrf.mxu0
    %v2144 = vadd.f32 0.0, %v2143
    %v2145 = vpop.f32.mrf.mxu0
    %v2146 = vadd.f32 0.0, %v2145
    %v2147 = vpop.f32.mrf.mxu0
    %v2148 = vadd.f32 0.0, %v2147
    %v2149 = vpop.f32.mrf.mxu0
    %v2150 = vadd.f32 0.0, %v2149
    %2151 = vmatprep.mubr.bf16.mxu0 0
    %2152 = vmatmul.mubr.bf16.gmra.mxu0 %v2104
    %v2153 = vpop.f32.mrf.mxu0
    %v2154 = vadd.f32 0.0, %v2153
    %v2155 = vpop.f32.mrf.mxu0
    %v2156 = vadd.f32 0.0, %v2155
    %v2157 = vpop.f32.mrf.mxu0
    %v2158 = vadd.f32 0.0, %v2157
    %v2159 = vpop.f32.mrf.mxu0
    %v2160 = vadd.f32 0.0, %v2159
    %2161 = vmatprep.mubr.bf16.mxu0 0
    %2162 = vmatmul.mubr.bf16.gmra.mxu0 %v2107
    %v2163 = vpop.f32.mrf.mxu0
    %v2164 = vadd.f32 0.0, %v2163
    %v2165 = vpop.f32.mrf.mxu0
    %v2166 = vadd.f32 0.0, %v2165
    %v2167 = vpop.f32.mrf.mxu0
    %v2168 = vadd.f32 0.0, %v2167
    %v2169 = vpop.f32.mrf.mxu0
    %v2170 = vadd.f32 0.0, %v2169
    %2171 = vdwg.mxu0
    %2172 = vmatprep.subr.bf16.mxu0 0
    %2173 = vmatpush1.bf16.msra.mxu0 0
    %2174 = vmatprep.subr.bf16.mxu0 0
    %2175 = vmatpush1.bf16.msra.mxu0 0
    %2176 = vmatprep.subr.bf16.mxu0 0
    %2177 = vmatpush1.bf16.msra.mxu0 0
    %2178 = vmatprep.subr.bf16.mxu0 0
    %2179 = vmatpush1.bf16.msra.mxu0 0
    %2180 = vmatprep.subr.bf16.mxu0 0
    %2181 = vmatpush1.bf16.msra.mxu0 0
    %2182 = vmatprep.subr.bf16.mxu0 0
    %2183 = vmatpush1.bf16.msra.mxu0 0
    %2184 = vmatprep.subr.bf16.mxu0 %v1374
    %2185 = vmatpush1.bf16.msra.mxu0 %v1371
    %2186 = vmatprep.subr.bf16.mxu0 %v1346
    %2187 = vmatpush1.bf16.msra.mxu0 %v1345
    %2188 = vmatprep.subr.bf16.mxu0 0
    %2189 = vmatpush2.bf16.msra.mxu0 0
    %2190 = vmatprep.subr.bf16.mxu0 0
    %2191 = vmatpush2.bf16.msra.mxu0 0
    %2192 = vmatprep.subr.bf16.mxu0 0
    %2193 = vmatpush2.bf16.msra.mxu0 0
    %2194 = vmatprep.subr.bf16.mxu0 0
    %2195 = vmatpush2.bf16.msra.mxu0 0
    %2196 = vmatprep.subr.bf16.mxu0 0
    %2197 = vmatpush2.bf16.msra.mxu0 0
    %2198 = vmatprep.subr.bf16.mxu0 0
    %2199 = vmatpush2.bf16.msra.mxu0 0
    %2200 = vmatprep.subr.bf16.mxu0 0
    %2201 = vmatpush2.bf16.msra.mxu0 0
    %2202 = vmatprep.subr.bf16.mxu0 0
    %2203 = vmatpush2.bf16.msra.mxu0 0
    %2204 = vmatprep.mubr.bf16.mxu0 0
    %2205 = vmatmul.mubr.bf16.gmra.mxu0 %v2101
    %v2206 = vpop.f32.mrf.mxu0
    %v2207 = vadd.f32 0.0, %v2206
    %v2208 = vpop.f32.mrf.mxu0
    %v2209 = vadd.f32 0.0, %v2208
    %v2210 = vpop.f32.mrf.mxu0
    %v2211 = vadd.f32 0.0, %v2210
    %v2212 = vpop.f32.mrf.mxu0
    %v2213 = vadd.f32 0.0, %v2212
    %2214 = vmatprep.mubr.bf16.mxu0 0
    %2215 = vmatmul.mubr.bf16.gmra.mxu0 %v2104
    %v2216 = vpop.f32.mrf.mxu0
    %v2217 = vadd.f32 0.0, %v2216
    %v2218 = vpop.f32.mrf.mxu0
    %v2219 = vadd.f32 0.0, %v2218
    %v2220 = vpop.f32.mrf.mxu0
    %v2221 = vadd.f32 0.0, %v2220
    %v2222 = vpop.f32.mrf.mxu0
    %v2223 = vadd.f32 0.0, %v2222
    %2224 = vmatprep.mubr.bf16.mxu0 0
    %2225 = vmatmul.mubr.bf16.gmra.mxu0 %v2107
    %v2226 = vpop.f32.mrf.mxu0
    %v2227 = vadd.f32 0.0, %v2226
    %v2228 = vpop.f32.mrf.mxu0
    %v2229 = vadd.f32 0.0, %v2228
    %v2230 = vpop.f32.mrf.mxu0
    %v2231 = vadd.f32 0.0, %v2230
    %v2232 = vpop.f32.mrf.mxu0
    %v2233 = vadd.f32 0.0, %v2232
    %2234 = vdwg.mxu0
    %v2235 = vadd.f32 %v2066, %v2144
    %v2236 = vadd.f32 %v2067, %v2146
    %v2237 = vadd.f32 %v2068, %v2207
    %v2238 = vadd.f32 %v2069, %v2209
    %v2239 = vadd.f32 %v2070, %v2148
    %v2240 = vadd.f32 %v2071, %v2150
    %v2241 = vadd.f32 %v2072, %v2211
    %v2242 = vadd.f32 %v2073, %v2213
    %v2243 = vadd.f32 %v2074, %v2154
    %v2244 = vadd.f32 %v2075, %v2156
    %v2245 = vadd.f32 %v2076, %v2217
    %v2246 = vadd.f32 %v2077, %v2219
    %v2247 = vadd.f32 %v2078, %v2158
    %v2248 = vadd.f32 %v2079, %v2160
    %v2249 = vadd.f32 %v2080, %v2221
    %v2250 = vadd.f32 %v2081, %v2223
    %v2251 = vadd.f32 %v2082, %v2164
    %v2252 = vadd.f32 %v2083, %v2166
    %v2253 = vadd.f32 %v2084, %v2227
    %v2254 = vadd.f32 %v2085, %v2229
    %v2255 = vadd.f32 %v2086, %v2168
    %v2256 = vadd.f32 %v2087, %v2170
    %v2257 = vadd.f32 %v2088, %v2231
    %v2258 = vadd.f32 %v2089, %v2233
    %v2259 = vmax.f32 %v2235, %v2237
    %v2260 = vmax.f32 %v2236, %v2238
    %v2261 = vmax.f32 %v2239, %v2241
    %v2262 = vmax.f32 %v2240, %v2242
    %v2263 = vmax.f32 %v2243, %v2245
    %v2264 = vmax.f32 %v2244, %v2246
    %v2265 = vmax.f32 %v2247, %v2249
    %v2266 = vmax.f32 %v2248, %v2250
    %v2267 = vmax.f32 %v2251, %v2253
    %v2268 = vmax.f32 %v2252, %v2254
    %v2269 = vmax.f32 %v2255, %v2257
    %v2270 = vmax.f32 %v2256, %v2258
    %v2271 = vmax.f32 %v1526, %v2259
    %v2272 = vmax.f32 %v1527, %v2260
    %v2273 = vmax.f32 %v1528, %v2261
    %v2274 = vmax.f32 %v1529, %v2262
    %v2275 = vmax.f32 %v1530, %v2263
    %v2276 = vmax.f32 %v1531, %v2264
    %v2277 = vmax.f32 %v1532, %v2265
    %v2278 = vmax.f32 %v1533, %v2266
    %v2279 = vmax.f32 %v1534, %v2267
    %v2280 = vmax.f32 %v1535, %v2268
    %v2281 = vmax.f32 %v1536, %v2269
    %v2282 = vmax.f32 %v1537, %v2270
    %v2283 = vld [vmem:[#allocation4] sm:$0x3]
    %v2285 = vlaneseq
    %v2286 = vshrl.u32 %v2285, 7
    %v2287 = vsub.s32 0, %v2286
    %v2288 = vrot.slane %v2283, %v2287
    %v2289 = vlaneseq
    %v2290 = vshrl.u32 %v2289, 7
    %v2291 = vsub.s32 1, %v2290
    %v2292 = vrot.slane %v2283, %v2291
    %v2295 = vadd.f32 %v2271, %v2288
    %v2296 = vadd.f32 %v2272, %v2292
    %v2297 = vadd.f32 %v2273, %v2288
    %v2298 = vadd.f32 %v2274, %v2292
    %v2299 = vadd.f32 %v2275, %v2288
    %v2300 = vadd.f32 %v2276, %v2292
    %v2301 = vadd.f32 %v2277, %v2288
    %v2302 = vadd.f32 %v2278, %v2292
    %v2303 = vadd.f32 %v2279, %v2288
    %v2304 = vadd.f32 %v2280, %v2292
    %v2305 = vadd.f32 %v2281, %v2288
    %v2306 = vadd.f32 %v2282, %v2292
    %v2307 = vmax.f32 %v2295, 0.0
    %v2308 = vmax.f32 %v2296, 0.0
    %v2309 = vmax.f32 %v2297, 0.0
    %v2310 = vmax.f32 %v2298, 0.0
    %v2311 = vmax.f32 %v2299, 0.0
    %v2312 = vmax.f32 %v2300, 0.0
    %v2313 = vmax.f32 %v2301, 0.0
    %v2314 = vmax.f32 %v2302, 0.0
    %v2315 = vmax.f32 %v2303, 0.0
    %v2316 = vmax.f32 %v2304, 0.0
    %v2317 = vmax.f32 %v2305, 0.0
    %v2318 = vmax.f32 %v2306, 0.0
    %v2319 = vpack.c.bf16 %v2309, %v2307
    %v2320 = vpack.c.bf16 %v2310, %v2308
    %v2321 = vpack.c.bf16 %v2313, %v2311
    %v2322 = vpack.c.bf16 %v2314, %v2312
    %v2323 = vpack.c.bf16 %v2317, %v2315
    %v2324 = vpack.c.bf16 %v2318, %v2316
    %v2331 = vunpack.c.l.b16 %v2319
    %v2332 = vunpack.c.l.b16 %v2320
    %v2333 = vunpack.c.h.b16 %v2319
    %v2334 = vunpack.c.h.b16 %v2320
    %v2335 = vunpack.c.l.b16 %v2321
    %v2336 = vunpack.c.l.b16 %v2322
    %v2337 = vunpack.c.h.b16 %v2321
    %v2338 = vunpack.c.h.b16 %v2322
    %v2339 = vunpack.c.l.b16 %v2323
    %v2340 = vunpack.c.l.b16 %v2324
    %v2341 = vunpack.c.h.b16 %v2323
    %v2342 = vunpack.c.h.b16 %v2324
    %2343 = vmatprep.subr.bf16.mxu0 0
    %2344 = vmatpush1.bf16.msra.mxu0 0
    %2345 = vmatprep.subr.bf16.mxu0 0
    %2346 = vmatpush1.bf16.msra.mxu0 0
    %2347 = vmatprep.subr.bf16.mxu0 0
    %2348 = vmatpush1.bf16.msra.mxu0 0
    %2349 = vmatprep.subr.bf16.mxu0 0
    %2350 = vmatpush1.bf16.msra.mxu0 0
    %2351 = vmatprep.subr.bf16.mxu0 0
    %2352 = vmatpush1.bf16.msra.mxu0 0
    %2353 = vmatprep.subr.bf16.mxu0 0
    %2354 = vmatpush1.bf16.msra.mxu0 0
    %2355 = vmatprep.subr.bf16.mxu0 %v558
    %2356 = vmatpush1.bf16.msra.mxu0 %v555
    %2357 = vmatprep.subr.bf16.mxu0 %v532
    %2358 = vmatpush1.bf16.msra.mxu0 %v531
    %2359 = vmatprep.subr.bf16.mxu0 0
    %2360 = vmatpush2.bf16.msra.mxu0 0
    %2361 = vmatprep.subr.bf16.mxu0 0
    %2362 = vmatpush2.bf16.msra.mxu0 0
    %2363 = vmatprep.subr.bf16.mxu0 0
    %2364 = vmatpush2.bf16.msra.mxu0 0
    %2365 = vmatprep.subr.bf16.mxu0 0
    %2366 = vmatpush2.bf16.msra.mxu0 0
    %2367 = vmatprep.subr.bf16.mxu0 0
    %2368 = vmatpush2.bf16.msra.mxu0 0
    %2369 = vmatprep.subr.bf16.mxu0 0
    %2370 = vmatpush2.bf16.msra.mxu0 0
    %2371 = vmatprep.subr.bf16.mxu0 0
    %2372 = vmatpush2.bf16.msra.mxu0 0
    %2373 = vmatprep.subr.bf16.mxu0 0
    %2374 = vmatpush2.bf16.msra.mxu0 0
    %2375 = vmatprep.mubr.bf16.mxu0 0
    %2376 = vmatmul.mubr.bf16.gmra.mxu0 %v1139
    %v2377 = vpop.f32.mrf.mxu0
    %v2378 = vadd.f32 0.0, %v2377
    %v2379 = vpop.f32.mrf.mxu0
    %v2380 = vadd.f32 0.0, %v2379
    %v2381 = vpop.f32.mrf.mxu0
    %v2382 = vadd.f32 0.0, %v2381
    %v2383 = vpop.f32.mrf.mxu0
    %v2384 = vadd.f32 0.0, %v2383
    %2385 = vmatprep.mubr.bf16.mxu0 0
    %2386 = vmatmul.mubr.bf16.gmra.mxu0 %v1142
    %v2387 = vpop.f32.mrf.mxu0
    %v2388 = vadd.f32 0.0, %v2387
    %v2389 = vpop.f32.mrf.mxu0
    %v2390 = vadd.f32 0.0, %v2389
    %v2391 = vpop.f32.mrf.mxu0
    %v2392 = vadd.f32 0.0, %v2391
    %v2393 = vpop.f32.mrf.mxu0
    %v2394 = vadd.f32 0.0, %v2393
    %2395 = vmatprep.mubr.bf16.mxu0 0
    %2396 = vmatmul.mubr.bf16.gmra.mxu0 %v1145
    %v2397 = vpop.f32.mrf.mxu0
    %v2398 = vadd.f32 0.0, %v2397
    %v2399 = vpop.f32.mrf.mxu0
    %v2400 = vadd.f32 0.0, %v2399
    %v2401 = vpop.f32.mrf.mxu0
    %v2402 = vadd.f32 0.0, %v2401
    %v2403 = vpop.f32.mrf.mxu0
    %v2404 = vadd.f32 0.0, %v2403
    %2405 = vdwg.mxu0
    %2406 = vmatprep.subr.bf16.mxu0 0
    %2407 = vmatpush1.bf16.msra.mxu0 0
    %2408 = vmatprep.subr.bf16.mxu0 0
    %2409 = vmatpush1.bf16.msra.mxu0 0
    %2410 = vmatprep.subr.bf16.mxu0 0
    %2411 = vmatpush1.bf16.msra.mxu0 0
    %2412 = vmatprep.subr.bf16.mxu0 0
    %2413 = vmatpush1.bf16.msra.mxu0 0
    %2414 = vmatprep.subr.bf16.mxu0 0
    %2415 = vmatpush1.bf16.msra.mxu0 0
    %2416 = vmatprep.subr.bf16.mxu0 0
    %2417 = vmatpush1.bf16.msra.mxu0 0
    %2418 = vmatprep.subr.bf16.mxu0 %v564
    %2419 = vmatpush1.bf16.msra.mxu0 %v561
    %2420 = vmatprep.subr.bf16.mxu0 %v534
    %2421 = vmatpush1.bf16.msra.mxu0 %v533
    %2422 = vmatprep.subr.bf16.mxu0 0
    %2423 = vmatpush2.bf16.msra.mxu0 0
    %2424 = vmatprep.subr.bf16.mxu0 0
    %2425 = vmatpush2.bf16.msra.mxu0 0
    %2426 = vmatprep.subr.bf16.mxu0 0
    %2427 = vmatpush2.bf16.msra.mxu0 0
    %2428 = vmatprep.subr.bf16.mxu0 0
    %2429 = vmatpush2.bf16.msra.mxu0 0
    %2430 = vmatprep.subr.bf16.mxu0 0
    %2431 = vmatpush2.bf16.msra.mxu0 0
    %2432 = vmatprep.subr.bf16.mxu0 0
    %2433 = vmatpush2.bf16.msra.mxu0 0
    %2434 = vmatprep.subr.bf16.mxu0 0
    %2435 = vmatpush2.bf16.msra.mxu0 0
    %2436 = vmatprep.subr.bf16.mxu0 0
    %2437 = vmatpush2.bf16.msra.mxu0 0
    %2438 = vmatprep.mubr.bf16.mxu0 0
    %2439 = vmatmul.mubr.bf16.gmra.mxu0 %v1139
    %v2440 = vpop.f32.mrf.mxu0
    %v2441 = vadd.f32 0.0, %v2440
    %v2442 = vpop.f32.mrf.mxu0
    %v2443 = vadd.f32 0.0, %v2442
    %v2444 = vpop.f32.mrf.mxu0
    %v2445 = vadd.f32 0.0, %v2444
    %v2446 = vpop.f32.mrf.mxu0
    %v2447 = vadd.f32 0.0, %v2446
    %2448 = vmatprep.mubr.bf16.mxu0 0
    %2449 = vmatmul.mubr.bf16.gmra.mxu0 %v1142
    %v2450 = vpop.f32.mrf.mxu0
    %v2451 = vadd.f32 0.0, %v2450
    %v2452 = vpop.f32.mrf.mxu0
    %v2453 = vadd.f32 0.0, %v2452
    %v2454 = vpop.f32.mrf.mxu0
    %v2455 = vadd.f32 0.0, %v2454
    %v2456 = vpop.f32.mrf.mxu0
    %v2457 = vadd.f32 0.0, %v2456
    %2458 = vmatprep.mubr.bf16.mxu0 0
    %2459 = vmatmul.mubr.bf16.gmra.mxu0 %v1145
    %v2460 = vpop.f32.mrf.mxu0
    %v2461 = vadd.f32 0.0, %v2460
    %v2462 = vpop.f32.mrf.mxu0
    %v2463 = vadd.f32 0.0, %v2462
    %v2464 = vpop.f32.mrf.mxu0
    %v2465 = vadd.f32 0.0, %v2464
    %v2466 = vpop.f32.mrf.mxu0
    %v2467 = vadd.f32 0.0, %v2466
    %2468 = vdwg.mxu0
    %2469 = vmatprep.subr.bf16.mxu0 0
    %2470 = vmatpush1.bf16.msra.mxu0 0
    %2471 = vmatprep.subr.bf16.mxu0 0
    %2472 = vmatpush1.bf16.msra.mxu0 0
    %2473 = vmatprep.subr.bf16.mxu0 0
    %2474 = vmatpush1.bf16.msra.mxu0 0
    %2475 = vmatprep.subr.bf16.mxu0 0
    %2476 = vmatpush1.bf16.msra.mxu0 0
    %2477 = vmatprep.subr.bf16.mxu0 0
    %2478 = vmatpush1.bf16.msra.mxu0 0
    %2479 = vmatprep.subr.bf16.mxu0 0
    %2480 = vmatpush1.bf16.msra.mxu0 0
    %2481 = vmatprep.subr.bf16.mxu0 %v741
    %2482 = vmatpush1.bf16.msra.mxu0 %v738
    %2483 = vmatprep.subr.bf16.mxu0 %v717
    %2484 = vmatpush1.bf16.msra.mxu0 %v716
    %2485 = vmatprep.subr.bf16.mxu0 0
    %2486 = vmatpush2.bf16.msra.mxu0 0
    %2487 = vmatprep.subr.bf16.mxu0 0
    %2488 = vmatpush2.bf16.msra.mxu0 0
    %2489 = vmatprep.subr.bf16.mxu0 0
    %2490 = vmatpush2.bf16.msra.mxu0 0
    %2491 = vmatprep.subr.bf16.mxu0 0
    %2492 = vmatpush2.bf16.msra.mxu0 0
    %2493 = vmatprep.subr.bf16.mxu0 0
    %2494 = vmatpush2.bf16.msra.mxu0 0
    %2495 = vmatprep.subr.bf16.mxu0 0
    %2496 = vmatpush2.bf16.msra.mxu0 0
    %2497 = vmatprep.subr.bf16.mxu0 0
    %2498 = vmatpush2.bf16.msra.mxu0 0
    %2499 = vmatprep.subr.bf16.mxu0 0
    %2500 = vmatpush2.bf16.msra.mxu0 0
    %2501 = vmatprep.mubr.bf16.mxu0 0
    %2502 = vmatmul.mubr.bf16.gmra.mxu0 %v922
    %v2503 = vpop.f32.mrf.mxu0
    %v2504 = vadd.f32 %v2378, %v2503
    %v2505 = vpop.f32.mrf.mxu0
    %v2506 = vadd.f32 %v2380, %v2505
    %v2507 = vpop.f32.mrf.mxu0
    %v2508 = vadd.f32 %v2382, %v2507
    %v2509 = vpop.f32.mrf.mxu0
    %v2510 = vadd.f32 %v2384, %v2509
    %2511 = vmatprep.mubr.bf16.mxu0 0
    %2512 = vmatmul.mubr.bf16.gmra.mxu0 %v925
    %v2513 = vpop.f32.mrf.mxu0
    %v2514 = vadd.f32 %v2388, %v2513
    %v2515 = vpop.f32.mrf.mxu0
    %v2516 = vadd.f32 %v2390, %v2515
    %v2517 = vpop.f32.mrf.mxu0
    %v2518 = vadd.f32 %v2392, %v2517
    %v2519 = vpop.f32.mrf.mxu0
    %v2520 = vadd.f32 %v2394, %v2519
    %2521 = vmatprep.mubr.bf16.mxu0 0
    %2522 = vmatmul.mubr.bf16.gmra.mxu0 %v928
    %v2523 = vpop.f32.mrf.mxu0
    %v2524 = vadd.f32 %v2398, %v2523
    %v2525 = vpop.f32.mrf.mxu0
    %v2526 = vadd.f32 %v2400, %v2525
    %v2527 = vpop.f32.mrf.mxu0
    %v2528 = vadd.f32 %v2402, %v2527
    %v2529 = vpop.f32.mrf.mxu0
    %v2530 = vadd.f32 %v2404, %v2529
    %2531 = vdwg.mxu0
    %2532 = vmatprep.subr.bf16.mxu0 0
    %2533 = vmatpush1.bf16.msra.mxu0 0
    %2534 = vmatprep.subr.bf16.mxu0 0
    %2535 = vmatpush1.bf16.msra.mxu0 0
    %2536 = vmatprep.subr.bf16.mxu0 0
    %2537 = vmatpush1.bf16.msra.mxu0 0
    %2538 = vmatprep.subr.bf16.mxu0 0
    %2539 = vmatpush1.bf16.msra.mxu0 0
    %2540 = vmatprep.subr.bf16.mxu0 0
    %2541 = vmatpush1.bf16.msra.mxu0 0
    %2542 = vmatprep.subr.bf16.mxu0 0
    %2543 = vmatpush1.bf16.msra.mxu0 0
    %2544 = vmatprep.subr.bf16.mxu0 %v747
    %2545 = vmatpush1.bf16.msra.mxu0 %v744
    %2546 = vmatprep.subr.bf16.mxu0 %v719
    %2547 = vmatpush1.bf16.msra.mxu0 %v718
    %2548 = vmatprep.subr.bf16.mxu0 0
    %2549 = vmatpush2.bf16.msra.mxu0 0
    %2550 = vmatprep.subr.bf16.mxu0 0
    %2551 = vmatpush2.bf16.msra.mxu0 0
    %2552 = vmatprep.subr.bf16.mxu0 0
    %2553 = vmatpush2.bf16.msra.mxu0 0
    %2554 = vmatprep.subr.bf16.mxu0 0
    %2555 = vmatpush2.bf16.msra.mxu0 0
    %2556 = vmatprep.subr.bf16.mxu0 0
    %2557 = vmatpush2.bf16.msra.mxu0 0
    %2558 = vmatprep.subr.bf16.mxu0 0
    %2559 = vmatpush2.bf16.msra.mxu0 0
    %2560 = vmatprep.subr.bf16.mxu0 0
    %2561 = vmatpush2.bf16.msra.mxu0 0
    %2562 = vmatprep.subr.bf16.mxu0 0
    %2563 = vmatpush2.bf16.msra.mxu0 0
    %2564 = vmatprep.mubr.bf16.mxu0 0
    %2565 = vmatmul.mubr.bf16.gmra.mxu0 %v922
    %v2566 = vpop.f32.mrf.mxu0
    %v2567 = vadd.f32 %v2441, %v2566
    %v2568 = vpop.f32.mrf.mxu0
    %v2569 = vadd.f32 %v2443, %v2568
    %v2570 = vpop.f32.mrf.mxu0
    %v2571 = vadd.f32 %v2445, %v2570
    %v2572 = vpop.f32.mrf.mxu0
    %v2573 = vadd.f32 %v2447, %v2572
    %2574 = vmatprep.mubr.bf16.mxu0 0
    %2575 = vmatmul.mubr.bf16.gmra.mxu0 %v925
    %v2576 = vpop.f32.mrf.mxu0
    %v2577 = vadd.f32 %v2451, %v2576
    %v2578 = vpop.f32.mrf.mxu0
    %v2579 = vadd.f32 %v2453, %v2578
    %v2580 = vpop.f32.mrf.mxu0
    %v2581 = vadd.f32 %v2455, %v2580
    %v2582 = vpop.f32.mrf.mxu0
    %v2583 = vadd.f32 %v2457, %v2582
    %2584 = vmatprep.mubr.bf16.mxu0 0
    %2585 = vmatmul.mubr.bf16.gmra.mxu0 %v928
    %v2586 = vpop.f32.mrf.mxu0
    %v2587 = vadd.f32 %v2461, %v2586
    %v2588 = vpop.f32.mrf.mxu0
    %v2589 = vadd.f32 %v2463, %v2588
    %v2590 = vpop.f32.mrf.mxu0
    %v2591 = vadd.f32 %v2465, %v2590
    %v2592 = vpop.f32.mrf.mxu0
    %v2593 = vadd.f32 %v2467, %v2592
    %2594 = vdwg.mxu0
    %2595 = vmatprep.subr.bf16.mxu0 0
    %2596 = vmatpush1.bf16.msra.mxu0 0
    %2597 = vmatprep.subr.bf16.mxu0 0
    %2598 = vmatpush1.bf16.msra.mxu0 0
    %2599 = vmatprep.subr.bf16.mxu0 0
    %2600 = vmatpush1.bf16.msra.mxu0 0
    %2601 = vmatprep.subr.bf16.mxu0 0
    %2602 = vmatpush1.bf16.msra.mxu0 0
    %2603 = vmatprep.subr.bf16.mxu0 0
    %2604 = vmatpush1.bf16.msra.mxu0 0
    %2605 = vmatprep.subr.bf16.mxu0 0
    %2606 = vmatpush1.bf16.msra.mxu0 0
    %2607 = vmatprep.subr.bf16.mxu0 %v934
    %2608 = vmatpush1.bf16.msra.mxu0 %v931
    %2609 = vmatprep.subr.bf16.mxu0 %v910
    %2610 = vmatpush1.bf16.msra.mxu0 %v909
    %2611 = vmatprep.subr.bf16.mxu0 0
    %2612 = vmatpush2.bf16.msra.mxu0 0
    %2613 = vmatprep.subr.bf16.mxu0 0
    %2614 = vmatpush2.bf16.msra.mxu0 0
    %2615 = vmatprep.subr.bf16.mxu0 0
    %2616 = vmatpush2.bf16.msra.mxu0 0
    %2617 = vmatprep.subr.bf16.mxu0 0
    %2618 = vmatpush2.bf16.msra.mxu0 0
    %2619 = vmatprep.subr.bf16.mxu0 0
    %2620 = vmatpush2.bf16.msra.mxu0 0
    %2621 = vmatprep.subr.bf16.mxu0 0
    %2622 = vmatpush2.bf16.msra.mxu0 0
    %2623 = vmatprep.subr.bf16.mxu0 0
    %2624 = vmatpush2.bf16.msra.mxu0 0
    %2625 = vmatprep.subr.bf16.mxu0 0
    %2626 = vmatpush2.bf16.msra.mxu0 0
    %2627 = vmatprep.mubr.bf16.mxu0 0
    %2628 = vmatmul.mubr.bf16.gmra.mxu0 %v1356
    %v2629 = vpop.f32.mrf.mxu0
    %v2630 = vadd.f32 0.0, %v2629
    %v2631 = vpop.f32.mrf.mxu0
    %v2632 = vadd.f32 0.0, %v2631
    %v2633 = vpop.f32.mrf.mxu0
    %v2634 = vadd.f32 0.0, %v2633
    %v2635 = vpop.f32.mrf.mxu0
    %v2636 = vadd.f32 0.0, %v2635
    %2637 = vmatprep.mubr.bf16.mxu0 0
    %2638 = vmatmul.mubr.bf16.gmra.mxu0 %v1359
    %v2639 = vpop.f32.mrf.mxu0
    %v2640 = vadd.f32 0.0, %v2639
    %v2641 = vpop.f32.mrf.mxu0
    %v2642 = vadd.f32 0.0, %v2641
    %v2643 = vpop.f32.mrf.mxu0
    %v2644 = vadd.f32 0.0, %v2643
    %v2645 = vpop.f32.mrf.mxu0
    %v2646 = vadd.f32 0.0, %v2645
    %2647 = vmatprep.mubr.bf16.mxu0 0
    %2648 = vmatmul.mubr.bf16.gmra.mxu0 %v1362
    %v2649 = vpop.f32.mrf.mxu0
    %v2650 = vadd.f32 0.0, %v2649
    %v2651 = vpop.f32.mrf.mxu0
    %v2652 = vadd.f32 0.0, %v2651
    %v2653 = vpop.f32.mrf.mxu0
    %v2654 = vadd.f32 0.0, %v2653
    %v2655 = vpop.f32.mrf.mxu0
    %v2656 = vadd.f32 0.0, %v2655
    %2657 = vdwg.mxu0
    %2658 = vmatprep.subr.bf16.mxu0 0
    %2659 = vmatpush1.bf16.msra.mxu0 0
    %2660 = vmatprep.subr.bf16.mxu0 0
    %2661 = vmatpush1.bf16.msra.mxu0 0
    %2662 = vmatprep.subr.bf16.mxu0 0
    %2663 = vmatpush1.bf16.msra.mxu0 0
    %2664 = vmatprep.subr.bf16.mxu0 0
    %2665 = vmatpush1.bf16.msra.mxu0 0
    %2666 = vmatprep.subr.bf16.mxu0 0
    %2667 = vmatpush1.bf16.msra.mxu0 0
    %2668 = vmatprep.subr.bf16.mxu0 0
    %2669 = vmatpush1.bf16.msra.mxu0 0
    %2670 = vmatprep.subr.bf16.mxu0 %v940
    %2671 = vmatpush1.bf16.msra.mxu0 %v937
    %2672 = vmatprep.subr.bf16.mxu0 %v912
    %2673 = vmatpush1.bf16.msra.mxu0 %v911
    %2674 = vmatprep.subr.bf16.mxu0 0
    %2675 = vmatpush2.bf16.msra.mxu0 0
    %2676 = vmatprep.subr.bf16.mxu0 0
    %2677 = vmatpush2.bf16.msra.mxu0 0
    %2678 = vmatprep.subr.bf16.mxu0 0
    %2679 = vmatpush2.bf16.msra.mxu0 0
    %2680 = vmatprep.subr.bf16.mxu0 0
    %2681 = vmatpush2.bf16.msra.mxu0 0
    %2682 = vmatprep.subr.bf16.mxu0 0
    %2683 = vmatpush2.bf16.msra.mxu0 0
    %2684 = vmatprep.subr.bf16.mxu0 0
    %2685 = vmatpush2.bf16.msra.mxu0 0
    %2686 = vmatprep.subr.bf16.mxu0 0
    %2687 = vmatpush2.bf16.msra.mxu0 0
    %2688 = vmatprep.subr.bf16.mxu0 0
    %2689 = vmatpush2.bf16.msra.mxu0 0
    %2690 = vmatprep.mubr.bf16.mxu0 0
    %2691 = vmatmul.mubr.bf16.gmra.mxu0 %v1356
    %v2692 = vpop.f32.mrf.mxu0
    %v2693 = vadd.f32 0.0, %v2692
    %v2694 = vpop.f32.mrf.mxu0
    %v2695 = vadd.f32 0.0, %v2694
    %v2696 = vpop.f32.mrf.mxu0
    %v2697 = vadd.f32 0.0, %v2696
    %v2698 = vpop.f32.mrf.mxu0
    %v2699 = vadd.f32 0.0, %v2698
    %2700 = vmatprep.mubr.bf16.mxu0 0
    %2701 = vmatmul.mubr.bf16.gmra.mxu0 %v1359
    %v2702 = vpop.f32.mrf.mxu0
    %v2703 = vadd.f32 0.0, %v2702
    %v2704 = vpop.f32.mrf.mxu0
    %v2705 = vadd.f32 0.0, %v2704
    %v2706 = vpop.f32.mrf.mxu0
    %v2707 = vadd.f32 0.0, %v2706
    %v2708 = vpop.f32.mrf.mxu0
    %v2709 = vadd.f32 0.0, %v2708
    %2710 = vmatprep.mubr.bf16.mxu0 0
    %2711 = vmatmul.mubr.bf16.gmra.mxu0 %v1362
    %v2712 = vpop.f32.mrf.mxu0
    %v2713 = vadd.f32 0.0, %v2712
    %v2714 = vpop.f32.mrf.mxu0
    %v2715 = vadd.f32 0.0, %v2714
    %v2716 = vpop.f32.mrf.mxu0
    %v2717 = vadd.f32 0.0, %v2716
    %v2718 = vpop.f32.mrf.mxu0
    %v2719 = vadd.f32 0.0, %v2718
    %2720 = vdwg.mxu0
    %v2721 = vadd.f32 %v2504, %v2630
    %v2722 = vadd.f32 %v2506, %v2632
    %v2723 = vadd.f32 %v2567, %v2693
    %v2724 = vadd.f32 %v2569, %v2695
    %v2725 = vadd.f32 %v2508, %v2634
    %v2726 = vadd.f32 %v2510, %v2636
    %v2727 = vadd.f32 %v2571, %v2697
    %v2728 = vadd.f32 %v2573, %v2699
    %v2729 = vadd.f32 %v2514, %v2640
    %v2730 = vadd.f32 %v2516, %v2642
    %v2731 = vadd.f32 %v2577, %v2703
    %v2732 = vadd.f32 %v2579, %v2705
    %v2733 = vadd.f32 %v2518, %v2644
    %v2734 = vadd.f32 %v2520, %v2646
    %v2735 = vadd.f32 %v2581, %v2707
    %v2736 = vadd.f32 %v2583, %v2709
    %v2737 = vadd.f32 %v2524, %v2650
    %v2738 = vadd.f32 %v2526, %v2652
    %v2739 = vadd.f32 %v2587, %v2713
    %v2740 = vadd.f32 %v2589, %v2715
    %v2741 = vadd.f32 %v2528, %v2654
    %v2742 = vadd.f32 %v2530, %v2656
    %v2743 = vadd.f32 %v2591, %v2717
    %v2744 = vadd.f32 %v2593, %v2719
    %2745 = vmatprep.subr.bf16.mxu0 0
    %2746 = vmatpush1.bf16.msra.mxu0 0
    %2747 = vmatprep.subr.bf16.mxu0 0
    %2748 = vmatpush1.bf16.msra.mxu0 0
    %2749 = vmatprep.subr.bf16.mxu0 0
    %2750 = vmatpush1.bf16.msra.mxu0 0
    %2751 = vmatprep.subr.bf16.mxu0 0
    %2752 = vmatpush1.bf16.msra.mxu0 0
    %2753 = vmatprep.subr.bf16.mxu0 0
    %2754 = vmatpush1.bf16.msra.mxu0 0
    %2755 = vmatprep.subr.bf16.mxu0 0
    %2756 = vmatpush1.bf16.msra.mxu0 0
    %2757 = vmatprep.subr.bf16.mxu0 %v1151
    %2758 = vmatpush1.bf16.msra.mxu0 %v1148
    %2759 = vmatprep.subr.bf16.mxu0 %v1127
    %2760 = vmatpush1.bf16.msra.mxu0 %v1126
    %2761 = vmatprep.subr.bf16.mxu0 0
    %2762 = vmatpush2.bf16.msra.mxu0 0
    %2763 = vmatprep.subr.bf16.mxu0 0
    %2764 = vmatpush2.bf16.msra.mxu0 0
    %2765 = vmatprep.subr.bf16.mxu0 0
    %2766 = vmatpush2.bf16.msra.mxu0 0
    %2767 = vmatprep.subr.bf16.mxu0 0
    %2768 = vmatpush2.bf16.msra.mxu0 0
    %2769 = vmatprep.subr.bf16.mxu0 0
    %2770 = vmatpush2.bf16.msra.mxu0 0
    %2771 = vmatprep.subr.bf16.mxu0 0
    %2772 = vmatpush2.bf16.msra.mxu0 0
    %2773 = vmatprep.subr.bf16.mxu0 0
    %2774 = vmatpush2.bf16.msra.mxu0 0
    %2775 = vmatprep.subr.bf16.mxu0 0
    %2776 = vmatpush2.bf16.msra.mxu0 0
    %2777 = vmatprep.mubr.bf16.mxu0 0
    %2778 = vmatmul.mubr.bf16.gmra.mxu0 %v2101
    %v2779 = vpop.f32.mrf.mxu0
    %v2780 = vadd.f32 0.0, %v2779
    %v2781 = vpop.f32.mrf.mxu0
    %v2782 = vadd.f32 0.0, %v2781
    %v2783 = vpop.f32.mrf.mxu0
    %v2784 = vadd.f32 0.0, %v2783
    %v2785 = vpop.f32.mrf.mxu0
    %v2786 = vadd.f32 0.0, %v2785
    %2787 = vmatprep.mubr.bf16.mxu0 0
    %2788 = vmatmul.mubr.bf16.gmra.mxu0 %v2104
    %v2789 = vpop.f32.mrf.mxu0
    %v2790 = vadd.f32 0.0, %v2789
    %v2791 = vpop.f32.mrf.mxu0
    %v2792 = vadd.f32 0.0, %v2791
    %v2793 = vpop.f32.mrf.mxu0
    %v2794 = vadd.f32 0.0, %v2793
    %v2795 = vpop.f32.mrf.mxu0
    %v2796 = vadd.f32 0.0, %v2795
    %2797 = vmatprep.mubr.bf16.mxu0 0
    %2798 = vmatmul.mubr.bf16.gmra.mxu0 %v2107
    %v2799 = vpop.f32.mrf.mxu0
    %v2800 = vadd.f32 0.0, %v2799
    %v2801 = vpop.f32.mrf.mxu0
    %v2802 = vadd.f32 0.0, %v2801
    %v2803 = vpop.f32.mrf.mxu0
    %v2804 = vadd.f32 0.0, %v2803
    %v2805 = vpop.f32.mrf.mxu0
    %v2806 = vadd.f32 0.0, %v2805
    %2807 = vdwg.mxu0
    %2808 = vmatprep.subr.bf16.mxu0 0
    %2809 = vmatpush1.bf16.msra.mxu0 0
    %2810 = vmatprep.subr.bf16.mxu0 0
    %2811 = vmatpush1.bf16.msra.mxu0 0
    %2812 = vmatprep.subr.bf16.mxu0 0
    %2813 = vmatpush1.bf16.msra.mxu0 0
    %2814 = vmatprep.subr.bf16.mxu0 0
    %2815 = vmatpush1.bf16.msra.mxu0 0
    %2816 = vmatprep.subr.bf16.mxu0 0
    %2817 = vmatpush1.bf16.msra.mxu0 0
    %2818 = vmatprep.subr.bf16.mxu0 0
    %2819 = vmatpush1.bf16.msra.mxu0 0
    %2820 = vmatprep.subr.bf16.mxu0 %v1157
    %2821 = vmatpush1.bf16.msra.mxu0 %v1154
    %2822 = vmatprep.subr.bf16.mxu0 %v1129
    %2823 = vmatpush1.bf16.msra.mxu0 %v1128
    %2824 = vmatprep.subr.bf16.mxu0 0
    %2825 = vmatpush2.bf16.msra.mxu0 0
    %2826 = vmatprep.subr.bf16.mxu0 0
    %2827 = vmatpush2.bf16.msra.mxu0 0
    %2828 = vmatprep.subr.bf16.mxu0 0
    %2829 = vmatpush2.bf16.msra.mxu0 0
    %2830 = vmatprep.subr.bf16.mxu0 0
    %2831 = vmatpush2.bf16.msra.mxu0 0
    %2832 = vmatprep.subr.bf16.mxu0 0
    %2833 = vmatpush2.bf16.msra.mxu0 0
    %2834 = vmatprep.subr.bf16.mxu0 0
    %2835 = vmatpush2.bf16.msra.mxu0 0
    %2836 = vmatprep.subr.bf16.mxu0 0
    %2837 = vmatpush2.bf16.msra.mxu0 0
    %2838 = vmatprep.subr.bf16.mxu0 0
    %2839 = vmatpush2.bf16.msra.mxu0 0
    %2840 = vmatprep.mubr.bf16.mxu0 0
    %2841 = vmatmul.mubr.bf16.gmra.mxu0 %v2101
    %v2842 = vpop.f32.mrf.mxu0
    %v2843 = vadd.f32 0.0, %v2842
    %v2844 = vpop.f32.mrf.mxu0
    %v2845 = vadd.f32 0.0, %v2844
    %v2846 = vpop.f32.mrf.mxu0
    %v2847 = vadd.f32 0.0, %v2846
    %v2848 = vpop.f32.mrf.mxu0
    %v2849 = vadd.f32 0.0, %v2848
    %2850 = vmatprep.mubr.bf16.mxu0 0
    %2851 = vmatmul.mubr.bf16.gmra.mxu0 %v2104
    %v2852 = vpop.f32.mrf.mxu0
    %v2853 = vadd.f32 0.0, %v2852
    %v2854 = vpop.f32.mrf.mxu0
    %v2855 = vadd.f32 0.0, %v2854
    %v2856 = vpop.f32.mrf.mxu0
    %v2857 = vadd.f32 0.0, %v2856
    %v2858 = vpop.f32.mrf.mxu0
    %v2859 = vadd.f32 0.0, %v2858
    %2860 = vmatprep.mubr.bf16.mxu0 0
    %2861 = vmatmul.mubr.bf16.gmra.mxu0 %v2107
    %v2862 = vpop.f32.mrf.mxu0
    %v2863 = vadd.f32 0.0, %v2862
    %v2864 = vpop.f32.mrf.mxu0
    %v2865 = vadd.f32 0.0, %v2864
    %v2866 = vpop.f32.mrf.mxu0
    %v2867 = vadd.f32 0.0, %v2866
    %v2868 = vpop.f32.mrf.mxu0
    %v2869 = vadd.f32 0.0, %v2868
    %2870 = vdwg.mxu0
    %v2871 = vadd.f32 %v2721, %v2780
    %v2872 = vadd.f32 %v2722, %v2782
    %v2873 = vadd.f32 %v2723, %v2843
    %v2874 = vadd.f32 %v2724, %v2845
    %v2875 = vadd.f32 %v2725, %v2784
    %v2876 = vadd.f32 %v2726, %v2786
    %v2877 = vadd.f32 %v2727, %v2847
    %v2878 = vadd.f32 %v2728, %v2849
    %v2879 = vadd.f32 %v2729, %v2790
    %v2880 = vadd.f32 %v2730, %v2792
    %v2881 = vadd.f32 %v2731, %v2853
    %v2882 = vadd.f32 %v2732, %v2855
    %v2883 = vadd.f32 %v2733, %v2794
    %v2884 = vadd.f32 %v2734, %v2796
    %v2885 = vadd.f32 %v2735, %v2857
    %v2886 = vadd.f32 %v2736, %v2859
    %v2887 = vadd.f32 %v2737, %v2800
    %v2888 = vadd.f32 %v2738, %v2802
    %v2889 = vadd.f32 %v2739, %v2863
    %v2890 = vadd.f32 %v2740, %v2865
    %v2891 = vadd.f32 %v2741, %v2804
    %v2892 = vadd.f32 %v2742, %v2806
    %v2893 = vadd.f32 %v2743, %v2867
    %v2894 = vadd.f32 %v2744, %v2869
    %s2895 = scalar_lea.vmem %s0, 120
    %v2896 = vld [vmem:[%s2895] sm:$0xff]
    %v2897 = vld [vmem:[%s2895 + $0x8] sm:$0xff]
    %v2898 = vld [vmem:[%s2895 + $0x10] sm:$0xff]
    %v2899 = vld [vmem:[%s2895 + $0x18] sm:$0xff]
    %v2900 = vld [vmem:[%s2895 + $0x20] sm:$0xff]
    %v2901 = vld [vmem:[%s2895 + $0x28] sm:$0xff]
    %v2902 = vpack.c.bf16 %v2897, %v2896
    %v2903 = vpack.c.bf16 %v2899, %v2898
    %v2904 = vpack.c.bf16 %v2901, %v2900
    %v2906 = vsel %vm543, %v2902, 0
    %v2909 = vsel %vm543, %v2903, 0
    %v2912 = vsel %vm543, %v2904, 0
    %2914 = vmatprep.subr.bf16.mxu0 0
    %2915 = vmatpush1.bf16.msra.mxu0 0
    %2916 = vmatprep.subr.bf16.mxu0 0
    %2917 = vmatpush1.bf16.msra.mxu0 0
    %2918 = vmatprep.subr.bf16.mxu0 0
    %2919 = vmatpush1.bf16.msra.mxu0 0
    %2920 = vmatprep.subr.bf16.mxu0 0
    %2921 = vmatpush1.bf16.msra.mxu0 0
    %2922 = vmatprep.subr.bf16.mxu0 0
    %2923 = vmatpush1.bf16.msra.mxu0 0
    %2924 = vmatprep.subr.bf16.mxu0 0
    %2925 = vmatpush1.bf16.msra.mxu0 0
    %2926 = vmatprep.subr.bf16.mxu0 %v1368
    %2927 = vmatpush1.bf16.msra.mxu0 %v1365
    %2928 = vmatprep.subr.bf16.mxu0 %v1344
    %2929 = vmatpush1.bf16.msra.mxu0 %v1343
    %2930 = vmatprep.subr.bf16.mxu0 0
    %2931 = vmatpush2.bf16.msra.mxu0 0
    %2932 = vmatprep.subr.bf16.mxu0 0
    %2933 = vmatpush2.bf16.msra.mxu0 0
    %2934 = vmatprep.subr.bf16.mxu0 0
    %2935 = vmatpush2.bf16.msra.mxu0 0
    %2936 = vmatprep.subr.bf16.mxu0 0
    %2937 = vmatpush2.bf16.msra.mxu0 0
    %2938 = vmatprep.subr.bf16.mxu0 0
    %2939 = vmatpush2.bf16.msra.mxu0 0
    %2940 = vmatprep.subr.bf16.mxu0 0
    %2941 = vmatpush2.bf16.msra.mxu0 0
    %2942 = vmatprep.subr.bf16.mxu0 0
    %2943 = vmatpush2.bf16.msra.mxu0 0
    %2944 = vmatprep.subr.bf16.mxu0 0
    %2945 = vmatpush2.bf16.msra.mxu0 0
    %2946 = vmatprep.mubr.bf16.mxu0 0
    %2947 = vmatmul.mubr.bf16.gmra.mxu0 %v2906
    %v2948 = vpop.f32.mrf.mxu0
    %v2949 = vadd.f32 0.0, %v2948
    %v2950 = vpop.f32.mrf.mxu0
    %v2951 = vadd.f32 0.0, %v2950
    %v2952 = vpop.f32.mrf.mxu0
    %v2953 = vadd.f32 0.0, %v2952
    %v2954 = vpop.f32.mrf.mxu0
    %v2955 = vadd.f32 0.0, %v2954
    %2956 = vmatprep.mubr.bf16.mxu0 0
    %2957 = vmatmul.mubr.bf16.gmra.mxu0 %v2909
    %v2958 = vpop.f32.mrf.mxu0
    %v2959 = vadd.f32 0.0, %v2958
    %v2960 = vpop.f32.mrf.mxu0
    %v2961 = vadd.f32 0.0, %v2960
    %v2962 = vpop.f32.mrf.mxu0
    %v2963 = vadd.f32 0.0, %v2962
    %v2964 = vpop.f32.mrf.mxu0
    %v2965 = vadd.f32 0.0, %v2964
    %2966 = vmatprep.mubr.bf16.mxu0 0
    %2967 = vmatmul.mubr.bf16.gmra.mxu0 %v2912
    %v2968 = vpop.f32.mrf.mxu0
    %v2969 = vadd.f32 0.0, %v2968
    %v2970 = vpop.f32.mrf.mxu0
    %v2971 = vadd.f32 0.0, %v2970
    %v2972 = vpop.f32.mrf.mxu0
    %v2973 = vadd.f32 0.0, %v2972
    %v2974 = vpop.f32.mrf.mxu0
    %v2975 = vadd.f32 0.0, %v2974
    %2976 = vdwg.mxu0
    %2977 = vmatprep.subr.bf16.mxu0 0
    %2978 = vmatpush1.bf16.msra.mxu0 0
    %2979 = vmatprep.subr.bf16.mxu0 0
    %2980 = vmatpush1.bf16.msra.mxu0 0
    %2981 = vmatprep.subr.bf16.mxu0 0
    %2982 = vmatpush1.bf16.msra.mxu0 0
    %2983 = vmatprep.subr.bf16.mxu0 0
    %2984 = vmatpush1.bf16.msra.mxu0 0
    %2985 = vmatprep.subr.bf16.mxu0 0
    %2986 = vmatpush1.bf16.msra.mxu0 0
    %2987 = vmatprep.subr.bf16.mxu0 0
    %2988 = vmatpush1.bf16.msra.mxu0 0
    %2989 = vmatprep.subr.bf16.mxu0 %v1374
    %2990 = vmatpush1.bf16.msra.mxu0 %v1371
    %2991 = vmatprep.subr.bf16.mxu0 %v1346
    %2992 = vmatpush1.bf16.msra.mxu0 %v1345
    %2993 = vmatprep.subr.bf16.mxu0 0
    %2994 = vmatpush2.bf16.msra.mxu0 0
    %2995 = vmatprep.subr.bf16.mxu0 0
    %2996 = vmatpush2.bf16.msra.mxu0 0
    %2997 = vmatprep.subr.bf16.mxu0 0
    %2998 = vmatpush2.bf16.msra.mxu0 0
    %2999 = vmatprep.subr.bf16.mxu0 0
    %3000 = vmatpush2.bf16.msra.mxu0 0
    %3001 = vmatprep.subr.bf16.mxu0 0
    %3002 = vmatpush2.bf16.msra.mxu0 0
    %3003 = vmatprep.subr.bf16.mxu0 0
    %3004 = vmatpush2.bf16.msra.mxu0 0
    %3005 = vmatprep.subr.bf16.mxu0 0
    %3006 = vmatpush2.bf16.msra.mxu0 0
    %3007 = vmatprep.subr.bf16.mxu0 0
    %3008 = vmatpush2.bf16.msra.mxu0 0
    %3009 = vmatprep.mubr.bf16.mxu0 0
    %3010 = vmatmul.mubr.bf16.gmra.mxu0 %v2906
    %v3011 = vpop.f32.mrf.mxu0
    %v3012 = vadd.f32 0.0, %v3011
    %v3013 = vpop.f32.mrf.mxu0
    %v3014 = vadd.f32 0.0, %v3013
    %v3015 = vpop.f32.mrf.mxu0
    %v3016 = vadd.f32 0.0, %v3015
    %v3017 = vpop.f32.mrf.mxu0
    %v3018 = vadd.f32 0.0, %v3017
    %3019 = vmatprep.mubr.bf16.mxu0 0
    %3020 = vmatmul.mubr.bf16.gmra.mxu0 %v2909
    %v3021 = vpop.f32.mrf.mxu0
    %v3022 = vadd.f32 0.0, %v3021
    %v3023 = vpop.f32.mrf.mxu0
    %v3024 = vadd.f32 0.0, %v3023
    %v3025 = vpop.f32.mrf.mxu0
    %v3026 = vadd.f32 0.0, %v3025
    %v3027 = vpop.f32.mrf.mxu0
    %v3028 = vadd.f32 0.0, %v3027
    %3029 = vmatprep.mubr.bf16.mxu0 0
    %3030 = vmatmul.mubr.bf16.gmra.mxu0 %v2912
    %v3031 = vpop.f32.mrf.mxu0
    %v3032 = vadd.f32 0.0, %v3031
    %v3033 = vpop.f32.mrf.mxu0
    %v3034 = vadd.f32 0.0, %v3033
    %v3035 = vpop.f32.mrf.mxu0
    %v3036 = vadd.f32 0.0, %v3035
    %v3037 = vpop.f32.mrf.mxu0
    %v3038 = vadd.f32 0.0, %v3037
    %3039 = vdwg.mxu0
    %v3040 = vadd.f32 %v2871, %v2949
    %v3041 = vadd.f32 %v2872, %v2951
    %v3042 = vadd.f32 %v2873, %v3012
    %v3043 = vadd.f32 %v2874, %v3014
    %v3044 = vadd.f32 %v2875, %v2953
    %v3045 = vadd.f32 %v2876, %v2955
    %v3046 = vadd.f32 %v2877, %v3016
    %v3047 = vadd.f32 %v2878, %v3018
    %v3048 = vadd.f32 %v2879, %v2959
    %v3049 = vadd.f32 %v2880, %v2961
    %v3050 = vadd.f32 %v2881, %v3022
    %v3051 = vadd.f32 %v2882, %v3024
    %v3052 = vadd.f32 %v2883, %v2963
    %v3053 = vadd.f32 %v2884, %v2965
    %v3054 = vadd.f32 %v2885, %v3026
    %v3055 = vadd.f32 %v2886, %v3028
    %v3056 = vadd.f32 %v2887, %v2969
    %v3057 = vadd.f32 %v2888, %v2971
    %v3058 = vadd.f32 %v2889, %v3032
    %v3059 = vadd.f32 %v2890, %v3034
    %v3060 = vadd.f32 %v2891, %v2973
    %v3061 = vadd.f32 %v2892, %v2975
    %v3062 = vadd.f32 %v2893, %v3036
    %v3063 = vadd.f32 %v2894, %v3038
    %v3064 = vmax.f32 %v3040, %v3042
    %v3065 = vmax.f32 %v3041, %v3043
    %v3066 = vmax.f32 %v3044, %v3046
    %v3067 = vmax.f32 %v3045, %v3047
    %v3068 = vmax.f32 %v3048, %v3050
    %v3069 = vmax.f32 %v3049, %v3051
    %v3070 = vmax.f32 %v3052, %v3054
    %v3071 = vmax.f32 %v3053, %v3055
    %v3072 = vmax.f32 %v3056, %v3058
    %v3073 = vmax.f32 %v3057, %v3059
    %v3074 = vmax.f32 %v3060, %v3062
    %v3075 = vmax.f32 %v3061, %v3063
    %3076 = vmatprep.subr.bf16.mxu0 0
    %3077 = vmatpush1.bf16.msra.mxu0 0
    %3078 = vmatprep.subr.bf16.mxu0 0
    %3079 = vmatpush1.bf16.msra.mxu0 0
    %3080 = vmatprep.subr.bf16.mxu0 0
    %3081 = vmatpush1.bf16.msra.mxu0 0
    %3082 = vmatprep.subr.bf16.mxu0 0
    %3083 = vmatpush1.bf16.msra.mxu0 0
    %3084 = vmatprep.subr.bf16.mxu0 0
    %3085 = vmatpush1.bf16.msra.mxu0 0
    %3086 = vmatprep.subr.bf16.mxu0 0
    %3087 = vmatpush1.bf16.msra.mxu0 0
    %3088 = vmatprep.subr.bf16.mxu0 %v558
    %3089 = vmatpush1.bf16.msra.mxu0 %v555
    %3090 = vmatprep.subr.bf16.mxu0 %v532
    %3091 = vmatpush1.bf16.msra.mxu0 %v531
    %3092 = vmatprep.subr.bf16.mxu0 0
    %3093 = vmatpush2.bf16.msra.mxu0 0
    %3094 = vmatprep.subr.bf16.mxu0 0
    %3095 = vmatpush2.bf16.msra.mxu0 0
    %3096 = vmatprep.subr.bf16.mxu0 0
    %3097 = vmatpush2.bf16.msra.mxu0 0
    %3098 = vmatprep.subr.bf16.mxu0 0
    %3099 = vmatpush2.bf16.msra.mxu0 0
    %3100 = vmatprep.subr.bf16.mxu0 0
    %3101 = vmatpush2.bf16.msra.mxu0 0
    %3102 = vmatprep.subr.bf16.mxu0 0
    %3103 = vmatpush2.bf16.msra.mxu0 0
    %3104 = vmatprep.subr.bf16.mxu0 0
    %3105 = vmatpush2.bf16.msra.mxu0 0
    %3106 = vmatprep.subr.bf16.mxu0 0
    %3107 = vmatpush2.bf16.msra.mxu0 0
    %3108 = vmatprep.mubr.bf16.mxu0 0
    %3109 = vmatmul.mubr.bf16.gmra.mxu0 %v1356
    %v3110 = vpop.f32.mrf.mxu0
    %v3111 = vadd.f32 0.0, %v3110
    %v3112 = vpop.f32.mrf.mxu0
    %v3113 = vadd.f32 0.0, %v3112
    %v3114 = vpop.f32.mrf.mxu0
    %v3115 = vadd.f32 0.0, %v3114
    %v3116 = vpop.f32.mrf.mxu0
    %v3117 = vadd.f32 0.0, %v3116
    %3118 = vmatprep.mubr.bf16.mxu0 0
    %3119 = vmatmul.mubr.bf16.gmra.mxu0 %v1359
    %v3120 = vpop.f32.mrf.mxu0
    %v3121 = vadd.f32 0.0, %v3120
    %v3122 = vpop.f32.mrf.mxu0
    %v3123 = vadd.f32 0.0, %v3122
    %v3124 = vpop.f32.mrf.mxu0
    %v3125 = vadd.f32 0.0, %v3124
    %v3126 = vpop.f32.mrf.mxu0
    %v3127 = vadd.f32 0.0, %v3126
    %3128 = vmatprep.mubr.bf16.mxu0 0
    %3129 = vmatmul.mubr.bf16.gmra.mxu0 %v1362
    %v3130 = vpop.f32.mrf.mxu0
    %v3131 = vadd.f32 0.0, %v3130
    %v3132 = vpop.f32.mrf.mxu0
    %v3133 = vadd.f32 0.0, %v3132
    %v3134 = vpop.f32.mrf.mxu0
    %v3135 = vadd.f32 0.0, %v3134
    %v3136 = vpop.f32.mrf.mxu0
    %v3137 = vadd.f32 0.0, %v3136
    %3138 = vdwg.mxu0
    %3139 = vmatprep.subr.bf16.mxu0 0
    %3140 = vmatpush1.bf16.msra.mxu0 0
    %3141 = vmatprep.subr.bf16.mxu0 0
    %3142 = vmatpush1.bf16.msra.mxu0 0
    %3143 = vmatprep.subr.bf16.mxu0 0
    %3144 = vmatpush1.bf16.msra.mxu0 0
    %3145 = vmatprep.subr.bf16.mxu0 0
    %3146 = vmatpush1.bf16.msra.mxu0 0
    %3147 = vmatprep.subr.bf16.mxu0 0
    %3148 = vmatpush1.bf16.msra.mxu0 0
    %3149 = vmatprep.subr.bf16.mxu0 0
    %3150 = vmatpush1.bf16.msra.mxu0 0
    %3151 = vmatprep.subr.bf16.mxu0 %v564
    %3152 = vmatpush1.bf16.msra.mxu0 %v561
    %3153 = vmatprep.subr.bf16.mxu0 %v534
    %3154 = vmatpush1.bf16.msra.mxu0 %v533
    %3155 = vmatprep.subr.bf16.mxu0 0
    %3156 = vmatpush2.bf16.msra.mxu0 0
    %3157 = vmatprep.subr.bf16.mxu0 0
    %3158 = vmatpush2.bf16.msra.mxu0 0
    %3159 = vmatprep.subr.bf16.mxu0 0
    %3160 = vmatpush2.bf16.msra.mxu0 0
    %3161 = vmatprep.subr.bf16.mxu0 0
    %3162 = vmatpush2.bf16.msra.mxu0 0
    %3163 = vmatprep.subr.bf16.mxu0 0
    %3164 = vmatpush2.bf16.msra.mxu0 0
    %3165 = vmatprep.subr.bf16.mxu0 0
    %3166 = vmatpush2.bf16.msra.mxu0 0
    %3167 = vmatprep.subr.bf16.mxu0 0
    %3168 = vmatpush2.bf16.msra.mxu0 0
    %3169 = vmatprep.subr.bf16.mxu0 0
    %3170 = vmatpush2.bf16.msra.mxu0 0
    %3171 = vmatprep.mubr.bf16.mxu0 0
    %3172 = vmatmul.mubr.bf16.gmra.mxu0 %v1356
    %v3173 = vpop.f32.mrf.mxu0
    %v3174 = vadd.f32 0.0, %v3173
    %v3175 = vpop.f32.mrf.mxu0
    %v3176 = vadd.f32 0.0, %v3175
    %v3177 = vpop.f32.mrf.mxu0
    %v3178 = vadd.f32 0.0, %v3177
    %v3179 = vpop.f32.mrf.mxu0
    %v3180 = vadd.f32 0.0, %v3179
    %3181 = vmatprep.mubr.bf16.mxu0 0
    %3182 = vmatmul.mubr.bf16.gmra.mxu0 %v1359
    %v3183 = vpop.f32.mrf.mxu0
    %v3184 = vadd.f32 0.0, %v3183
    %v3185 = vpop.f32.mrf.mxu0
    %v3186 = vadd.f32 0.0, %v3185
    %v3187 = vpop.f32.mrf.mxu0
    %v3188 = vadd.f32 0.0, %v3187
    %v3189 = vpop.f32.mrf.mxu0
    %v3190 = vadd.f32 0.0, %v3189
    %3191 = vmatprep.mubr.bf16.mxu0 0
    %3192 = vmatmul.mubr.bf16.gmra.mxu0 %v1362
    %v3193 = vpop.f32.mrf.mxu0
    %v3194 = vadd.f32 0.0, %v3193
    %v3195 = vpop.f32.mrf.mxu0
    %v3196 = vadd.f32 0.0, %v3195
    %v3197 = vpop.f32.mrf.mxu0
    %v3198 = vadd.f32 0.0, %v3197
    %v3199 = vpop.f32.mrf.mxu0
    %v3200 = vadd.f32 0.0, %v3199
    %3201 = vdwg.mxu0
    %3202 = vmatprep.subr.bf16.mxu0 0
    %3203 = vmatpush1.bf16.msra.mxu0 0
    %3204 = vmatprep.subr.bf16.mxu0 0
    %3205 = vmatpush1.bf16.msra.mxu0 0
    %3206 = vmatprep.subr.bf16.mxu0 0
    %3207 = vmatpush1.bf16.msra.mxu0 0
    %3208 = vmatprep.subr.bf16.mxu0 0
    %3209 = vmatpush1.bf16.msra.mxu0 0
    %3210 = vmatprep.subr.bf16.mxu0 0
    %3211 = vmatpush1.bf16.msra.mxu0 0
    %3212 = vmatprep.subr.bf16.mxu0 0
    %3213 = vmatpush1.bf16.msra.mxu0 0
    %3214 = vmatprep.subr.bf16.mxu0 %v741
    %3215 = vmatpush1.bf16.msra.mxu0 %v738
    %3216 = vmatprep.subr.bf16.mxu0 %v717
    %3217 = vmatpush1.bf16.msra.mxu0 %v716
    %3218 = vmatprep.subr.bf16.mxu0 0
    %3219 = vmatpush2.bf16.msra.mxu0 0
    %3220 = vmatprep.subr.bf16.mxu0 0
    %3221 = vmatpush2.bf16.msra.mxu0 0
    %3222 = vmatprep.subr.bf16.mxu0 0
    %3223 = vmatpush2.bf16.msra.mxu0 0
    %3224 = vmatprep.subr.bf16.mxu0 0
    %3225 = vmatpush2.bf16.msra.mxu0 0
    %3226 = vmatprep.subr.bf16.mxu0 0
    %3227 = vmatpush2.bf16.msra.mxu0 0
    %3228 = vmatprep.subr.bf16.mxu0 0
    %3229 = vmatpush2.bf16.msra.mxu0 0
    %3230 = vmatprep.subr.bf16.mxu0 0
    %3231 = vmatpush2.bf16.msra.mxu0 0
    %3232 = vmatprep.subr.bf16.mxu0 0
    %3233 = vmatpush2.bf16.msra.mxu0 0
    %3234 = vmatprep.mubr.bf16.mxu0 0
    %3235 = vmatmul.mubr.bf16.gmra.mxu0 %v1139
    %v3236 = vpop.f32.mrf.mxu0
    %v3237 = vadd.f32 %v3111, %v3236
    %v3238 = vpop.f32.mrf.mxu0
    %v3239 = vadd.f32 %v3113, %v3238
    %v3240 = vpop.f32.mrf.mxu0
    %v3241 = vadd.f32 %v3115, %v3240
    %v3242 = vpop.f32.mrf.mxu0
    %v3243 = vadd.f32 %v3117, %v3242
    %3244 = vmatprep.mubr.bf16.mxu0 0
    %3245 = vmatmul.mubr.bf16.gmra.mxu0 %v1142
    %v3246 = vpop.f32.mrf.mxu0
    %v3247 = vadd.f32 %v3121, %v3246
    %v3248 = vpop.f32.mrf.mxu0
    %v3249 = vadd.f32 %v3123, %v3248
    %v3250 = vpop.f32.mrf.mxu0
    %v3251 = vadd.f32 %v3125, %v3250
    %v3252 = vpop.f32.mrf.mxu0
    %v3253 = vadd.f32 %v3127, %v3252
    %3254 = vmatprep.mubr.bf16.mxu0 0
    %3255 = vmatmul.mubr.bf16.gmra.mxu0 %v1145
    %v3256 = vpop.f32.mrf.mxu0
    %v3257 = vadd.f32 %v3131, %v3256
    %v3258 = vpop.f32.mrf.mxu0
    %v3259 = vadd.f32 %v3133, %v3258
    %v3260 = vpop.f32.mrf.mxu0
    %v3261 = vadd.f32 %v3135, %v3260
    %v3262 = vpop.f32.mrf.mxu0
    %v3263 = vadd.f32 %v3137, %v3262
    %3264 = vdwg.mxu0
    %3265 = vmatprep.subr.bf16.mxu0 0
    %3266 = vmatpush1.bf16.msra.mxu0 0
    %3267 = vmatprep.subr.bf16.mxu0 0
    %3268 = vmatpush1.bf16.msra.mxu0 0
    %3269 = vmatprep.subr.bf16.mxu0 0
    %3270 = vmatpush1.bf16.msra.mxu0 0
    %3271 = vmatprep.subr.bf16.mxu0 0
    %3272 = vmatpush1.bf16.msra.mxu0 0
    %3273 = vmatprep.subr.bf16.mxu0 0
    %3274 = vmatpush1.bf16.msra.mxu0 0
    %3275 = vmatprep.subr.bf16.mxu0 0
    %3276 = vmatpush1.bf16.msra.mxu0 0
    %3277 = vmatprep.subr.bf16.mxu0 %v747
    %3278 = vmatpush1.bf16.msra.mxu0 %v744
    %3279 = vmatprep.subr.bf16.mxu0 %v719
    %3280 = vmatpush1.bf16.msra.mxu0 %v718
    %3281 = vmatprep.subr.bf16.mxu0 0
    %3282 = vmatpush2.bf16.msra.mxu0 0
    %3283 = vmatprep.subr.bf16.mxu0 0
    %3284 = vmatpush2.bf16.msra.mxu0 0
    %3285 = vmatprep.subr.bf16.mxu0 0
    %3286 = vmatpush2.bf16.msra.mxu0 0
    %3287 = vmatprep.subr.bf16.mxu0 0
    %3288 = vmatpush2.bf16.msra.mxu0 0
    %3289 = vmatprep.subr.bf16.mxu0 0
    %3290 = vmatpush2.bf16.msra.mxu0 0
    %3291 = vmatprep.subr.bf16.mxu0 0
    %3292 = vmatpush2.bf16.msra.mxu0 0
    %3293 = vmatprep.subr.bf16.mxu0 0
    %3294 = vmatpush2.bf16.msra.mxu0 0
    %3295 = vmatprep.subr.bf16.mxu0 0
    %3296 = vmatpush2.bf16.msra.mxu0 0
    %3297 = vmatprep.mubr.bf16.mxu0 0
    %3298 = vmatmul.mubr.bf16.gmra.mxu0 %v1139
    %v3299 = vpop.f32.mrf.mxu0
    %v3300 = vadd.f32 %v3174, %v3299
    %v3301 = vpop.f32.mrf.mxu0
    %v3302 = vadd.f32 %v3176, %v3301
    %v3303 = vpop.f32.mrf.mxu0
    %v3304 = vadd.f32 %v3178, %v3303
    %v3305 = vpop.f32.mrf.mxu0
    %v3306 = vadd.f32 %v3180, %v3305
    %3307 = vmatprep.mubr.bf16.mxu0 0
    %3308 = vmatmul.mubr.bf16.gmra.mxu0 %v1142
    %v3309 = vpop.f32.mrf.mxu0
    %v3310 = vadd.f32 %v3184, %v3309
    %v3311 = vpop.f32.mrf.mxu0
    %v3312 = vadd.f32 %v3186, %v3311
    %v3313 = vpop.f32.mrf.mxu0
    %v3314 = vadd.f32 %v3188, %v3313
    %v3315 = vpop.f32.mrf.mxu0
    %v3316 = vadd.f32 %v3190, %v3315
    %3317 = vmatprep.mubr.bf16.mxu0 0
    %3318 = vmatmul.mubr.bf16.gmra.mxu0 %v1145
    %v3319 = vpop.f32.mrf.mxu0
    %v3320 = vadd.f32 %v3194, %v3319
    %v3321 = vpop.f32.mrf.mxu0
    %v3322 = vadd.f32 %v3196, %v3321
    %v3323 = vpop.f32.mrf.mxu0
    %v3324 = vadd.f32 %v3198, %v3323
    %v3325 = vpop.f32.mrf.mxu0
    %v3326 = vadd.f32 %v3200, %v3325
    %3327 = vdwg.mxu0
    %3328 = vmatprep.subr.bf16.mxu0 0
    %3329 = vmatpush1.bf16.msra.mxu0 0
    %3330 = vmatprep.subr.bf16.mxu0 0
    %3331 = vmatpush1.bf16.msra.mxu0 0
    %3332 = vmatprep.subr.bf16.mxu0 0
    %3333 = vmatpush1.bf16.msra.mxu0 0
    %3334 = vmatprep.subr.bf16.mxu0 0
    %3335 = vmatpush1.bf16.msra.mxu0 0
    %3336 = vmatprep.subr.bf16.mxu0 0
    %3337 = vmatpush1.bf16.msra.mxu0 0
    %3338 = vmatprep.subr.bf16.mxu0 0
    %3339 = vmatpush1.bf16.msra.mxu0 0
    %3340 = vmatprep.subr.bf16.mxu0 %v934
    %3341 = vmatpush1.bf16.msra.mxu0 %v931
    %3342 = vmatprep.subr.bf16.mxu0 %v910
    %3343 = vmatpush1.bf16.msra.mxu0 %v909
    %3344 = vmatprep.subr.bf16.mxu0 0
    %3345 = vmatpush2.bf16.msra.mxu0 0
    %3346 = vmatprep.subr.bf16.mxu0 0
    %3347 = vmatpush2.bf16.msra.mxu0 0
    %3348 = vmatprep.subr.bf16.mxu0 0
    %3349 = vmatpush2.bf16.msra.mxu0 0
    %3350 = vmatprep.subr.bf16.mxu0 0
    %3351 = vmatpush2.bf16.msra.mxu0 0
    %3352 = vmatprep.subr.bf16.mxu0 0
    %3353 = vmatpush2.bf16.msra.mxu0 0
    %3354 = vmatprep.subr.bf16.mxu0 0
    %3355 = vmatpush2.bf16.msra.mxu0 0
    %3356 = vmatprep.subr.bf16.mxu0 0
    %3357 = vmatpush2.bf16.msra.mxu0 0
    %3358 = vmatprep.subr.bf16.mxu0 0
    %3359 = vmatpush2.bf16.msra.mxu0 0
    %3360 = vmatprep.mubr.bf16.mxu0 0
    %3361 = vmatmul.mubr.bf16.gmra.mxu0 %v2101
    %v3362 = vpop.f32.mrf.mxu0
    %v3363 = vadd.f32 0.0, %v3362
    %v3364 = vpop.f32.mrf.mxu0
    %v3365 = vadd.f32 0.0, %v3364
    %v3366 = vpop.f32.mrf.mxu0
    %v3367 = vadd.f32 0.0, %v3366
    %v3368 = vpop.f32.mrf.mxu0
    %v3369 = vadd.f32 0.0, %v3368
    %3370 = vmatprep.mubr.bf16.mxu0 0
    %3371 = vmatmul.mubr.bf16.gmra.mxu0 %v2104
    %v3372 = vpop.f32.mrf.mxu0
    %v3373 = vadd.f32 0.0, %v3372
    %v3374 = vpop.f32.mrf.mxu0
    %v3375 = vadd.f32 0.0, %v3374
    %v3376 = vpop.f32.mrf.mxu0
    %v3377 = vadd.f32 0.0, %v3376
    %v3378 = vpop.f32.mrf.mxu0
    %v3379 = vadd.f32 0.0, %v3378
    %3380 = vmatprep.mubr.bf16.mxu0 0
    %3381 = vmatmul.mubr.bf16.gmra.mxu0 %v2107
    %v3382 = vpop.f32.mrf.mxu0
    %v3383 = vadd.f32 0.0, %v3382
    %v3384 = vpop.f32.mrf.mxu0
    %v3385 = vadd.f32 0.0, %v3384
    %v3386 = vpop.f32.mrf.mxu0
    %v3387 = vadd.f32 0.0, %v3386
    %v3388 = vpop.f32.mrf.mxu0
    %v3389 = vadd.f32 0.0, %v3388
    %3390 = vdwg.mxu0
    %3391 = vmatprep.subr.bf16.mxu0 0
    %3392 = vmatpush1.bf16.msra.mxu0 0
    %3393 = vmatprep.subr.bf16.mxu0 0
    %3394 = vmatpush1.bf16.msra.mxu0 0
    %3395 = vmatprep.subr.bf16.mxu0 0
    %3396 = vmatpush1.bf16.msra.mxu0 0
    %3397 = vmatprep.subr.bf16.mxu0 0
    %3398 = vmatpush1.bf16.msra.mxu0 0
    %3399 = vmatprep.subr.bf16.mxu0 0
    %3400 = vmatpush1.bf16.msra.mxu0 0
    %3401 = vmatprep.subr.bf16.mxu0 0
    %3402 = vmatpush1.bf16.msra.mxu0 0
    %3403 = vmatprep.subr.bf16.mxu0 %v940
    %3404 = vmatpush1.bf16.msra.mxu0 %v937
    %3405 = vmatprep.subr.bf16.mxu0 %v912
    %3406 = vmatpush1.bf16.msra.mxu0 %v911
    %3407 = vmatprep.subr.bf16.mxu0 0
    %3408 = vmatpush2.bf16.msra.mxu0 0
    %3409 = vmatprep.subr.bf16.mxu0 0
    %3410 = vmatpush2.bf16.msra.mxu0 0
    %3411 = vmatprep.subr.bf16.mxu0 0
    %3412 = vmatpush2.bf16.msra.mxu0 0
    %3413 = vmatprep.subr.bf16.mxu0 0
    %3414 = vmatpush2.bf16.msra.mxu0 0
    %3415 = vmatprep.subr.bf16.mxu0 0
    %3416 = vmatpush2.bf16.msra.mxu0 0
    %3417 = vmatprep.subr.bf16.mxu0 0
    %3418 = vmatpush2.bf16.msra.mxu0 0
    %3419 = vmatprep.subr.bf16.mxu0 0
    %3420 = vmatpush2.bf16.msra.mxu0 0
    %3421 = vmatprep.subr.bf16.mxu0 0
    %3422 = vmatpush2.bf16.msra.mxu0 0
    %3423 = vmatprep.mubr.bf16.mxu0 0
    %3424 = vmatmul.mubr.bf16.gmra.mxu0 %v2101
    %v3425 = vpop.f32.mrf.mxu0
    %v3426 = vadd.f32 0.0, %v3425
    %v3427 = vpop.f32.mrf.mxu0
    %v3428 = vadd.f32 0.0, %v3427
    %v3429 = vpop.f32.mrf.mxu0
    %v3430 = vadd.f32 0.0, %v3429
    %v3431 = vpop.f32.mrf.mxu0
    %v3432 = vadd.f32 0.0, %v3431
    %3433 = vmatprep.mubr.bf16.mxu0 0
    %3434 = vmatmul.mubr.bf16.gmra.mxu0 %v2104
    %v3435 = vpop.f32.mrf.mxu0
    %v3436 = vadd.f32 0.0, %v3435
    %v3437 = vpop.f32.mrf.mxu0
    %v3438 = vadd.f32 0.0, %v3437
    %v3439 = vpop.f32.mrf.mxu0
    %v3440 = vadd.f32 0.0, %v3439
    %v3441 = vpop.f32.mrf.mxu0
    %v3442 = vadd.f32 0.0, %v3441
    %3443 = vmatprep.mubr.bf16.mxu0 0
    %3444 = vmatmul.mubr.bf16.gmra.mxu0 %v2107
    %v3445 = vpop.f32.mrf.mxu0
    %v3446 = vadd.f32 0.0, %v3445
    %v3447 = vpop.f32.mrf.mxu0
    %v3448 = vadd.f32 0.0, %v3447
    %v3449 = vpop.f32.mrf.mxu0
    %v3450 = vadd.f32 0.0, %v3449
    %v3451 = vpop.f32.mrf.mxu0
    %v3452 = vadd.f32 0.0, %v3451
    %3453 = vdwg.mxu0
    %v3454 = vadd.f32 %v3237, %v3363
    %v3455 = vadd.f32 %v3239, %v3365
    %v3456 = vadd.f32 %v3300, %v3426
    %v3457 = vadd.f32 %v3302, %v3428
    %v3458 = vadd.f32 %v3241, %v3367
    %v3459 = vadd.f32 %v3243, %v3369
    %v3460 = vadd.f32 %v3304, %v3430
    %v3461 = vadd.f32 %v3306, %v3432
    %v3462 = vadd.f32 %v3247, %v3373
    %v3463 = vadd.f32 %v3249, %v3375
    %v3464 = vadd.f32 %v3310, %v3436
    %v3465 = vadd.f32 %v3312, %v3438
    %v3466 = vadd.f32 %v3251, %v3377
    %v3467 = vadd.f32 %v3253, %v3379
    %v3468 = vadd.f32 %v3314, %v3440
    %v3469 = vadd.f32 %v3316, %v3442
    %v3470 = vadd.f32 %v3257, %v3383
    %v3471 = vadd.f32 %v3259, %v3385
    %v3472 = vadd.f32 %v3320, %v3446
    %v3473 = vadd.f32 %v3322, %v3448
    %v3474 = vadd.f32 %v3261, %v3387
    %v3475 = vadd.f32 %v3263, %v3389
    %v3476 = vadd.f32 %v3324, %v3450
    %v3477 = vadd.f32 %v3326, %v3452
    %3478 = vmatprep.subr.bf16.mxu0 0
    %3479 = vmatpush1.bf16.msra.mxu0 0
    %3480 = vmatprep.subr.bf16.mxu0 0
    %3481 = vmatpush1.bf16.msra.mxu0 0
    %3482 = vmatprep.subr.bf16.mxu0 0
    %3483 = vmatpush1.bf16.msra.mxu0 0
    %3484 = vmatprep.subr.bf16.mxu0 0
    %3485 = vmatpush1.bf16.msra.mxu0 0
    %3486 = vmatprep.subr.bf16.mxu0 0
    %3487 = vmatpush1.bf16.msra.mxu0 0
    %3488 = vmatprep.subr.bf16.mxu0 0
    %3489 = vmatpush1.bf16.msra.mxu0 0
    %3490 = vmatprep.subr.bf16.mxu0 %v1151
    %3491 = vmatpush1.bf16.msra.mxu0 %v1148
    %3492 = vmatprep.subr.bf16.mxu0 %v1127
    %3493 = vmatpush1.bf16.msra.mxu0 %v1126
    %3494 = vmatprep.subr.bf16.mxu0 0
    %3495 = vmatpush2.bf16.msra.mxu0 0
    %3496 = vmatprep.subr.bf16.mxu0 0
    %3497 = vmatpush2.bf16.msra.mxu0 0
    %3498 = vmatprep.subr.bf16.mxu0 0
    %3499 = vmatpush2.bf16.msra.mxu0 0
    %3500 = vmatprep.subr.bf16.mxu0 0
    %3501 = vmatpush2.bf16.msra.mxu0 0
    %3502 = vmatprep.subr.bf16.mxu0 0
    %3503 = vmatpush2.bf16.msra.mxu0 0
    %3504 = vmatprep.subr.bf16.mxu0 0
    %3505 = vmatpush2.bf16.msra.mxu0 0
    %3506 = vmatprep.subr.bf16.mxu0 0
    %3507 = vmatpush2.bf16.msra.mxu0 0
    %3508 = vmatprep.subr.bf16.mxu0 0
    %3509 = vmatpush2.bf16.msra.mxu0 0
    %3510 = vmatprep.mubr.bf16.mxu0 0
    %3511 = vmatmul.mubr.bf16.gmra.mxu0 %v2906
    %v3512 = vpop.f32.mrf.mxu0
    %v3513 = vadd.f32 0.0, %v3512
    %v3514 = vpop.f32.mrf.mxu0
    %v3515 = vadd.f32 0.0, %v3514
    %v3516 = vpop.f32.mrf.mxu0
    %v3517 = vadd.f32 0.0, %v3516
    %v3518 = vpop.f32.mrf.mxu0
    %v3519 = vadd.f32 0.0, %v3518
    %3520 = vmatprep.mubr.bf16.mxu0 0
    %3521 = vmatmul.mubr.bf16.gmra.mxu0 %v2909
    %v3522 = vpop.f32.mrf.mxu0
    %v3523 = vadd.f32 0.0, %v3522
    %v3524 = vpop.f32.mrf.mxu0
    %v3525 = vadd.f32 0.0, %v3524
    %v3526 = vpop.f32.mrf.mxu0
    %v3527 = vadd.f32 0.0, %v3526
    %v3528 = vpop.f32.mrf.mxu0
    %v3529 = vadd.f32 0.0, %v3528
    %3530 = vmatprep.mubr.bf16.mxu0 0
    %3531 = vmatmul.mubr.bf16.gmra.mxu0 %v2912
    %v3532 = vpop.f32.mrf.mxu0
    %v3533 = vadd.f32 0.0, %v3532
    %v3534 = vpop.f32.mrf.mxu0
    %v3535 = vadd.f32 0.0, %v3534
    %v3536 = vpop.f32.mrf.mxu0
    %v3537 = vadd.f32 0.0, %v3536
    %v3538 = vpop.f32.mrf.mxu0
    %v3539 = vadd.f32 0.0, %v3538
    %3540 = vdwg.mxu0
    %3541 = vmatprep.subr.bf16.mxu0 0
    %3542 = vmatpush1.bf16.msra.mxu0 0
    %3543 = vmatprep.subr.bf16.mxu0 0
    %3544 = vmatpush1.bf16.msra.mxu0 0
    %3545 = vmatprep.subr.bf16.mxu0 0
    %3546 = vmatpush1.bf16.msra.mxu0 0
    %3547 = vmatprep.subr.bf16.mxu0 0
    %3548 = vmatpush1.bf16.msra.mxu0 0
    %3549 = vmatprep.subr.bf16.mxu0 0
    %3550 = vmatpush1.bf16.msra.mxu0 0
    %3551 = vmatprep.subr.bf16.mxu0 0
    %3552 = vmatpush1.bf16.msra.mxu0 0
    %3553 = vmatprep.subr.bf16.mxu0 %v1157
    %3554 = vmatpush1.bf16.msra.mxu0 %v1154
    %3555 = vmatprep.subr.bf16.mxu0 %v1129
    %3556 = vmatpush1.bf16.msra.mxu0 %v1128
    %3557 = vmatprep.subr.bf16.mxu0 0
    %3558 = vmatpush2.bf16.msra.mxu0 0
    %3559 = vmatprep.subr.bf16.mxu0 0
    %3560 = vmatpush2.bf16.msra.mxu0 0
    %3561 = vmatprep.subr.bf16.mxu0 0
    %3562 = vmatpush2.bf16.msra.mxu0 0
    %3563 = vmatprep.subr.bf16.mxu0 0
    %3564 = vmatpush2.bf16.msra.mxu0 0
    %3565 = vmatprep.subr.bf16.mxu0 0
    %3566 = vmatpush2.bf16.msra.mxu0 0
    %3567 = vmatprep.subr.bf16.mxu0 0
    %3568 = vmatpush2.bf16.msra.mxu0 0
    %3569 = vmatprep.subr.bf16.mxu0 0
    %3570 = vmatpush2.bf16.msra.mxu0 0
    %3571 = vmatprep.subr.bf16.mxu0 0
    %3572 = vmatpush2.bf16.msra.mxu0 0
    %3573 = vmatprep.mubr.bf16.mxu0 0
    %3574 = vmatmul.mubr.bf16.gmra.mxu0 %v2906
    %v3575 = vpop.f32.mrf.mxu0
    %v3576 = vadd.f32 0.0, %v3575
    %v3577 = vpop.f32.mrf.mxu0
    %v3578 = vadd.f32 0.0, %v3577
    %v3579 = vpop.f32.mrf.mxu0
    %v3580 = vadd.f32 0.0, %v3579
    %v3581 = vpop.f32.mrf.mxu0
    %v3582 = vadd.f32 0.0, %v3581
    %3583 = vmatprep.mubr.bf16.mxu0 0
    %3584 = vmatmul.mubr.bf16.gmra.mxu0 %v2909
    %v3585 = vpop.f32.mrf.mxu0
    %v3586 = vadd.f32 0.0, %v3585
    %v3587 = vpop.f32.mrf.mxu0
    %v3588 = vadd.f32 0.0, %v3587
    %v3589 = vpop.f32.mrf.mxu0
    %v3590 = vadd.f32 0.0, %v3589
    %v3591 = vpop.f32.mrf.mxu0
    %v3592 = vadd.f32 0.0, %v3591
    %3593 = vmatprep.mubr.bf16.mxu0 0
    %3594 = vmatmul.mubr.bf16.gmra.mxu0 %v2912
    %v3595 = vpop.f32.mrf.mxu0
    %v3596 = vadd.f32 0.0, %v3595
    %v3597 = vpop.f32.mrf.mxu0
    %v3598 = vadd.f32 0.0, %v3597
    %v3599 = vpop.f32.mrf.mxu0
    %v3600 = vadd.f32 0.0, %v3599
    %v3601 = vpop.f32.mrf.mxu0
    %v3602 = vadd.f32 0.0, %v3601
    %3603 = vdwg.mxu0
    %v3604 = vadd.f32 %v3454, %v3513
    %v3605 = vadd.f32 %v3455, %v3515
    %v3606 = vadd.f32 %v3456, %v3576
    %v3607 = vadd.f32 %v3457, %v3578
    %v3608 = vadd.f32 %v3458, %v3517
    %v3609 = vadd.f32 %v3459, %v3519
    %v3610 = vadd.f32 %v3460, %v3580
    %v3611 = vadd.f32 %v3461, %v3582
    %v3612 = vadd.f32 %v3462, %v3523
    %v3613 = vadd.f32 %v3463, %v3525
    %v3614 = vadd.f32 %v3464, %v3586
    %v3615 = vadd.f32 %v3465, %v3588
    %v3616 = vadd.f32 %v3466, %v3527
    %v3617 = vadd.f32 %v3467, %v3529
    %v3618 = vadd.f32 %v3468, %v3590
    %v3619 = vadd.f32 %v3469, %v3592
    %v3620 = vadd.f32 %v3470, %v3533
    %v3621 = vadd.f32 %v3471, %v3535
    %v3622 = vadd.f32 %v3472, %v3596
    %v3623 = vadd.f32 %v3473, %v3598
    %v3624 = vadd.f32 %v3474, %v3537
    %v3625 = vadd.f32 %v3475, %v3539
    %v3626 = vadd.f32 %v3476, %v3600
    %v3627 = vadd.f32 %v3477, %v3602
    %s3628 = scalar_lea.vmem %s0, 176
    %v3629 = vld [vmem:[%s3628] sm:$0xff]
    %v3630 = vld [vmem:[%s3628 + $0x8] sm:$0xff]
    %v3631 = vld [vmem:[%s3628 + $0x10] sm:$0xff]
    %v3632 = vld [vmem:[%s3628 + $0x18] sm:$0xff]
    %v3633 = vld [vmem:[%s3628 + $0x20] sm:$0xff]
    %v3634 = vld [vmem:[%s3628 + $0x28] sm:$0xff]
    %v3635 = vpack.c.bf16 %v3630, %v3629
    %v3636 = vpack.c.bf16 %v3632, %v3631
    %v3637 = vpack.c.bf16 %v3634, %v3633
    %v3639 = vsel %vm543, %v3635, 0
    %v3642 = vsel %vm543, %v3636, 0
    %v3645 = vsel %vm543, %v3637, 0
    %3647 = vmatprep.subr.bf16.mxu0 0
    %3648 = vmatpush1.bf16.msra.mxu0 0
    %3649 = vmatprep.subr.bf16.mxu0 0
    %3650 = vmatpush1.bf16.msra.mxu0 0
    %3651 = vmatprep.subr.bf16.mxu0 0
    %3652 = vmatpush1.bf16.msra.mxu0 0
    %3653 = vmatprep.subr.bf16.mxu0 0
    %3654 = vmatpush1.bf16.msra.mxu0 0
    %3655 = vmatprep.subr.bf16.mxu0 0
    %3656 = vmatpush1.bf16.msra.mxu0 0
    %3657 = vmatprep.subr.bf16.mxu0 0
    %3658 = vmatpush1.bf16.msra.mxu0 0
    %3659 = vmatprep.subr.bf16.mxu0 %v1368
    %3660 = vmatpush1.bf16.msra.mxu0 %v1365
    %3661 = vmatprep.subr.bf16.mxu0 %v1344
    %3662 = vmatpush1.bf16.msra.mxu0 %v1343
    %3663 = vmatprep.subr.bf16.mxu0 0
    %3664 = vmatpush2.bf16.msra.mxu0 0
    %3665 = vmatprep.subr.bf16.mxu0 0
    %3666 = vmatpush2.bf16.msra.mxu0 0
    %3667 = vmatprep.subr.bf16.mxu0 0
    %3668 = vmatpush2.bf16.msra.mxu0 0
    %3669 = vmatprep.subr.bf16.mxu0 0
    %3670 = vmatpush2.bf16.msra.mxu0 0
    %3671 = vmatprep.subr.bf16.mxu0 0
    %3672 = vmatpush2.bf16.msra.mxu0 0
    %3673 = vmatprep.subr.bf16.mxu0 0
    %3674 = vmatpush2.bf16.msra.mxu0 0
    %3675 = vmatprep.subr.bf16.mxu0 0
    %3676 = vmatpush2.bf16.msra.mxu0 0
    %3677 = vmatprep.subr.bf16.mxu0 0
    %3678 = vmatpush2.bf16.msra.mxu0 0
    %3679 = vmatprep.mubr.bf16.mxu0 0
    %3680 = vmatmul.mubr.bf16.gmra.mxu0 %v3639
    %v3681 = vpop.f32.mrf.mxu0
    %v3682 = vadd.f32 0.0, %v3681
    %v3683 = vpop.f32.mrf.mxu0
    %v3684 = vadd.f32 0.0, %v3683
    %v3685 = vpop.f32.mrf.mxu0
    %v3686 = vadd.f32 0.0, %v3685
    %v3687 = vpop.f32.mrf.mxu0
    %v3688 = vadd.f32 0.0, %v3687
    %3689 = vmatprep.mubr.bf16.mxu0 0
    %3690 = vmatmul.mubr.bf16.gmra.mxu0 %v3642
    %v3691 = vpop.f32.mrf.mxu0
    %v3692 = vadd.f32 0.0, %v3691
    %v3693 = vpop.f32.mrf.mxu0
    %v3694 = vadd.f32 0.0, %v3693
    %v3695 = vpop.f32.mrf.mxu0
    %v3696 = vadd.f32 0.0, %v3695
    %v3697 = vpop.f32.mrf.mxu0
    %v3698 = vadd.f32 0.0, %v3697
    %3699 = vmatprep.mubr.bf16.mxu0 0
    %3700 = vmatmul.mubr.bf16.gmra.mxu0 %v3645
    %v3701 = vpop.f32.mrf.mxu0
    %v3702 = vadd.f32 0.0, %v3701
    %v3703 = vpop.f32.mrf.mxu0
    %v3704 = vadd.f32 0.0, %v3703
    %v3705 = vpop.f32.mrf.mxu0
    %v3706 = vadd.f32 0.0, %v3705
    %v3707 = vpop.f32.mrf.mxu0
    %v3708 = vadd.f32 0.0, %v3707
    %3709 = vdwg.mxu0
    %3710 = vmatprep.subr.bf16.mxu0 0
    %3711 = vmatpush1.bf16.msra.mxu0 0
    %3712 = vmatprep.subr.bf16.mxu0 0
    %3713 = vmatpush1.bf16.msra.mxu0 0
    %3714 = vmatprep.subr.bf16.mxu0 0
    %3715 = vmatpush1.bf16.msra.mxu0 0
    %3716 = vmatprep.subr.bf16.mxu0 0
    %3717 = vmatpush1.bf16.msra.mxu0 0
    %3718 = vmatprep.subr.bf16.mxu0 0
    %3719 = vmatpush1.bf16.msra.mxu0 0
    %3720 = vmatprep.subr.bf16.mxu0 0
    %3721 = vmatpush1.bf16.msra.mxu0 0
    %3722 = vmatprep.subr.bf16.mxu0 %v1374
    %3723 = vmatpush1.bf16.msra.mxu0 %v1371
    %3724 = vmatprep.subr.bf16.mxu0 %v1346
    %3725 = vmatpush1.bf16.msra.mxu0 %v1345
    %3726 = vmatprep.subr.bf16.mxu0 0
    %3727 = vmatpush2.bf16.msra.mxu0 0
    %3728 = vmatprep.subr.bf16.mxu0 0
    %3729 = vmatpush2.bf16.msra.mxu0 0
    %3730 = vmatprep.subr.bf16.mxu0 0
    %3731 = vmatpush2.bf16.msra.mxu0 0
    %3732 = vmatprep.subr.bf16.mxu0 0
    %3733 = vmatpush2.bf16.msra.mxu0 0
    %3734 = vmatprep.subr.bf16.mxu0 0
    %3735 = vmatpush2.bf16.msra.mxu0 0
    %3736 = vmatprep.subr.bf16.mxu0 0
    %3737 = vmatpush2.bf16.msra.mxu0 0
    %3738 = vmatprep.subr.bf16.mxu0 0
    %3739 = vmatpush2.bf16.msra.mxu0 0
    %3740 = vmatprep.subr.bf16.mxu0 0
    %3741 = vmatpush2.bf16.msra.mxu0 0
    %3742 = vmatprep.mubr.bf16.mxu0 0
    %3743 = vmatmul.mubr.bf16.gmra.mxu0 %v3639
    %v3744 = vpop.f32.mrf.mxu0
    %v3745 = vadd.f32 0.0, %v3744
    %v3746 = vpop.f32.mrf.mxu0
    %v3747 = vadd.f32 0.0, %v3746
    %v3748 = vpop.f32.mrf.mxu0
    %v3749 = vadd.f32 0.0, %v3748
    %v3750 = vpop.f32.mrf.mxu0
    %v3751 = vadd.f32 0.0, %v3750
    %3752 = vmatprep.mubr.bf16.mxu0 0
    %3753 = vmatmul.mubr.bf16.gmra.mxu0 %v3642
    %v3754 = vpop.f32.mrf.mxu0
    %v3755 = vadd.f32 0.0, %v3754
    %v3756 = vpop.f32.mrf.mxu0
    %v3757 = vadd.f32 0.0, %v3756
    %v3758 = vpop.f32.mrf.mxu0
    %v3759 = vadd.f32 0.0, %v3758
    %v3760 = vpop.f32.mrf.mxu0
    %v3761 = vadd.f32 0.0, %v3760
    %3762 = vmatprep.mubr.bf16.mxu0 0
    %3763 = vmatmul.mubr.bf16.gmra.mxu0 %v3645
    %v3764 = vpop.f32.mrf.mxu0
    %v3765 = vadd.f32 0.0, %v3764
    %v3766 = vpop.f32.mrf.mxu0
    %v3767 = vadd.f32 0.0, %v3766
    %v3768 = vpop.f32.mrf.mxu0
    %v3769 = vadd.f32 0.0, %v3768
    %v3770 = vpop.f32.mrf.mxu0
    %v3771 = vadd.f32 0.0, %v3770
    %3772 = vdwg.mxu0
    %v3773 = vadd.f32 %v3604, %v3682
    %v3774 = vadd.f32 %v3605, %v3684
    %v3775 = vadd.f32 %v3606, %v3745
    %v3776 = vadd.f32 %v3607, %v3747
    %v3777 = vadd.f32 %v3608, %v3686
    %v3778 = vadd.f32 %v3609, %v3688
    %v3779 = vadd.f32 %v3610, %v3749
    %v3780 = vadd.f32 %v3611, %v3751
    %v3781 = vadd.f32 %v3612, %v3692
    %v3782 = vadd.f32 %v3613, %v3694
    %v3783 = vadd.f32 %v3614, %v3755
    %v3784 = vadd.f32 %v3615, %v3757
    %v3785 = vadd.f32 %v3616, %v3696
    %v3786 = vadd.f32 %v3617, %v3698
    %v3787 = vadd.f32 %v3618, %v3759
    %v3788 = vadd.f32 %v3619, %v3761
    %v3789 = vadd.f32 %v3620, %v3702
    %v3790 = vadd.f32 %v3621, %v3704
    %v3791 = vadd.f32 %v3622, %v3765
    %v3792 = vadd.f32 %v3623, %v3767
    %v3793 = vadd.f32 %v3624, %v3706
    %v3794 = vadd.f32 %v3625, %v3708
    %v3795 = vadd.f32 %v3626, %v3769
    %v3796 = vadd.f32 %v3627, %v3771
    %v3797 = vmax.f32 %v3773, %v3775
    %v3798 = vmax.f32 %v3774, %v3776
    %v3799 = vmax.f32 %v3777, %v3779
    %v3800 = vmax.f32 %v3778, %v3780
    %v3801 = vmax.f32 %v3781, %v3783
    %v3802 = vmax.f32 %v3782, %v3784
    %v3803 = vmax.f32 %v3785, %v3787
    %v3804 = vmax.f32 %v3786, %v3788
    %v3805 = vmax.f32 %v3789, %v3791
    %v3806 = vmax.f32 %v3790, %v3792
    %v3807 = vmax.f32 %v3793, %v3795
    %v3808 = vmax.f32 %v3794, %v3796
    %v3809 = vmax.f32 %v3064, %v3797
    %v3810 = vmax.f32 %v3065, %v3798
    %v3811 = vmax.f32 %v3066, %v3799
    %v3812 = vmax.f32 %v3067, %v3800
    %v3813 = vmax.f32 %v3068, %v3801
    %v3814 = vmax.f32 %v3069, %v3802
    %v3815 = vmax.f32 %v3070, %v3803
    %v3816 = vmax.f32 %v3071, %v3804
    %v3817 = vmax.f32 %v3072, %v3805
    %v3818 = vmax.f32 %v3073, %v3806
    %v3819 = vmax.f32 %v3074, %v3807
    %v3820 = vmax.f32 %v3075, %v3808
    %v3821 = vadd.f32 %v3809, %v2288
    %v3822 = vadd.f32 %v3810, %v2292
    %v3823 = vadd.f32 %v3811, %v2288
    %v3824 = vadd.f32 %v3812, %v2292
    %v3825 = vadd.f32 %v3813, %v2288
    %v3826 = vadd.f32 %v3814, %v2292
    %v3827 = vadd.f32 %v3815, %v2288
    %v3828 = vadd.f32 %v3816, %v2292
    %v3829 = vadd.f32 %v3817, %v2288
    %v3830 = vadd.f32 %v3818, %v2292
    %v3831 = vadd.f32 %v3819, %v2288
    %v3832 = vadd.f32 %v3820, %v2292
    %v3833 = vmax.f32 %v3821, 0.0
    %v3834 = vmax.f32 %v3822, 0.0
    %v3835 = vmax.f32 %v3823, 0.0
    %v3836 = vmax.f32 %v3824, 0.0
    %v3837 = vmax.f32 %v3825, 0.0
    %v3838 = vmax.f32 %v3826, 0.0
    %v3839 = vmax.f32 %v3827, 0.0
    %v3840 = vmax.f32 %v3828, 0.0
    %v3841 = vmax.f32 %v3829, 0.0
    %v3842 = vmax.f32 %v3830, 0.0
    %v3843 = vmax.f32 %v3831, 0.0
    %v3844 = vmax.f32 %v3832, 0.0
    %v3845 = vpack.c.bf16 %v3835, %v3833
    %v3846 = vpack.c.bf16 %v3836, %v3834
    %v3847 = vpack.c.bf16 %v3839, %v3837
    %v3848 = vpack.c.bf16 %v3840, %v3838
    %v3849 = vpack.c.bf16 %v3843, %v3841
    %v3850 = vpack.c.bf16 %v3844, %v3842
    %v3857 = vunpack.c.l.b16 %v3845
    %v3858 = vunpack.c.l.b16 %v3846
    %v3859 = vunpack.c.h.b16 %v3845
    %v3860 = vunpack.c.h.b16 %v3846
    %v3861 = vunpack.c.l.b16 %v3847
    %v3862 = vunpack.c.l.b16 %v3848
    %v3863 = vunpack.c.h.b16 %v3847
    %v3864 = vunpack.c.h.b16 %v3848
    %v3865 = vunpack.c.l.b16 %v3849
    %v3866 = vunpack.c.l.b16 %v3850
    %v3867 = vunpack.c.h.b16 %v3849
    %v3868 = vunpack.c.h.b16 %v3850
    %v3869 = vpack.c.b16 %v3859, %v3857
    %v3870 = vpack.c.b16 %v3860, %v3858
    %v3871 = vpack.c.b16 %v3863, %v3861
    %v3872 = vpack.c.b16 %v3864, %v3862
    %v3941 = vunpack.c.l.b16 %v229
    %v3942 = vunpack.c.h.b16 %v229
    %v3943 = vunpack.c.l.b16 %v230
    %v3944 = vunpack.c.h.b16 %v230
    %v3945 = vunpack.c.l.b16 %v231
    %v3946 = vunpack.c.h.b16 %v231
    %v3947 = vunpack.c.l.b16 %v232
    %v3948 = vunpack.c.h.b16 %v232
    %v3949 = vunpack.c.l.b16 %v233
    %v3950 = vunpack.c.h.b16 %v233
    %v3951 = vunpack.c.l.b16 %v234
    %v3952 = vunpack.c.h.b16 %v234
    %v3953 = vunpack.c.l.b16 %v235
    %v3954 = vunpack.c.h.b16 %v235
    %v3955 = vunpack.c.l.b16 %v236
    %v3956 = vunpack.c.h.b16 %v236
    %v3957 = vunpack.c.l.b16 %v237
    %v3958 = vunpack.c.h.b16 %v237
    %v3959 = vunpack.c.l.b16 %v238
    %v3960 = vunpack.c.h.b16 %v238
    %v3961 = vunpack.c.l.b16 %v239
    %v3962 = vunpack.c.h.b16 %v239
    %v3963 = vunpack.c.l.b16 %v240
    %v3964 = vunpack.c.h.b16 %v240
    %v3965 = vunpack.c.l.b16 %v241
    %v3966 = vunpack.c.h.b16 %v241
    %v3967 = vunpack.c.l.b16 %v242
    %v3968 = vunpack.c.h.b16 %v242
    %v3969 = vunpack.c.l.b16 %v243
    %v3970 = vunpack.c.h.b16 %v243
    %v3971 = vunpack.c.l.b16 %v244
    %v3972 = vunpack.c.h.b16 %v244
    %v3973 = vunpack.c.l.b16 %v245
    %v3974 = vunpack.c.h.b16 %v245
    %v3975 = vunpack.c.l.b16 %v246
    %v3976 = vunpack.c.h.b16 %v246
    %v3977 = vunpack.c.l.b16 %v247
    %v3978 = vunpack.c.h.b16 %v247
    %v3979 = vunpack.c.l.b16 %v248
    %v3980 = vunpack.c.h.b16 %v248
    %v3981 = vunpack.c.l.b16 %v249
    %v3982 = vunpack.c.h.b16 %v249
    %v3983 = vunpack.c.l.b16 %v250
    %v3984 = vunpack.c.h.b16 %v250
    %v3985 = vunpack.c.l.b16 %v251
    %v3986 = vunpack.c.h.b16 %v251
    %v3987 = vunpack.c.l.b16 %v252
    %v3988 = vunpack.c.h.b16 %v252
    %v3989 = vunpack.c.l.b16 %v253
    %v3990 = vunpack.c.h.b16 %v253
    %v3991 = vunpack.c.l.b16 %v254
    %v3992 = vunpack.c.h.b16 %v254
    %v3993 = vunpack.c.l.b16 %v255
    %v3994 = vunpack.c.h.b16 %v255
    %v3995 = vunpack.c.l.b16 %v256
    %v3996 = vunpack.c.h.b16 %v256
    %v3997 = vunpack.c.l.b16 %v257
    %v3998 = vunpack.c.h.b16 %v257
    %v3999 = vunpack.c.l.b16 %v258
    %v4000 = vunpack.c.h.b16 %v258
    %v4001 = vunpack.c.l.b16 %v259
    %v4002 = vunpack.c.h.b16 %v259
    %v4003 = vunpack.c.l.b16 %v260
    %v4004 = vunpack.c.h.b16 %v260
    %v4005 = vunpack.c.l.b16 %v261
    %v4006 = vunpack.c.h.b16 %v261
    %v4007 = vunpack.c.l.b16 %v262
    %v4008 = vunpack.c.h.b16 %v262
    %v4009 = vunpack.c.l.b16 %v263
    %v4010 = vunpack.c.h.b16 %v263
    %v4011 = vunpack.c.l.b16 %v264
    %v4012 = vunpack.c.h.b16 %v264
    %v4013 = vunpack.c.l.b16 %v265
    %v4014 = vunpack.c.h.b16 %v265
    %v4015 = vunpack.c.l.b16 %v266
    %v4016 = vunpack.c.h.b16 %v266
    %v4017 = vunpack.c.l.b16 %v267
    %v4018 = vunpack.c.h.b16 %v267
    %v4019 = vunpack.c.l.b16 %v268
    %v4020 = vunpack.c.h.b16 %v268
    %v4021 = vunpack.c.l.b16 %v269
    %v4022 = vunpack.c.h.b16 %v269
    %v4023 = vunpack.c.l.b16 %v270
    %v4024 = vunpack.c.h.b16 %v270
    %v4025 = vunpack.c.l.b16 %v271
    %v4026 = vunpack.c.h.b16 %v271
    %v4027 = vunpack.c.l.b16 %v272
    %v4028 = vunpack.c.h.b16 %v272
    %v4029 = vunpack.c.l.b16 %v273
    %v4030 = vunpack.c.h.b16 %v273
    %v4031 = vunpack.c.l.b16 %v274
    %v4032 = vunpack.c.h.b16 %v274
    %v4033 = vunpack.c.l.b16 %v275
    %v4034 = vunpack.c.h.b16 %v275
    %v4035 = vunpack.c.l.b16 %v276
    %v4036 = vunpack.c.h.b16 %v276
    %v4037 = vunpack.c.l.b16 %v277
    %v4038 = vunpack.c.h.b16 %v277
    %v4039 = vunpack.c.l.b16 %v278
    %v4040 = vunpack.c.h.b16 %v278
    %v4041 = vunpack.c.l.b16 %v279
    %v4042 = vunpack.c.h.b16 %v279
    %v4043 = vunpack.c.l.b16 %v280
    %v4044 = vunpack.c.h.b16 %v280
    %v4045 = vunpack.c.l.b16 %v281
    %v4046 = vunpack.c.h.b16 %v281
    %v4047 = vunpack.c.l.b16 %v282
    %v4048 = vunpack.c.h.b16 %v282
    %v4049 = vunpack.c.l.b16 %v283
    %v4050 = vunpack.c.h.b16 %v283
    %v4051 = vunpack.c.l.b16 %v284
    %v4052 = vunpack.c.h.b16 %v284
    %v4053 = vunpack.c.l.b16 %v285
    %v4054 = vunpack.c.h.b16 %v285
    %v4055 = vunpack.c.l.b16 %v286
    %v4056 = vunpack.c.h.b16 %v286
    %v4057 = vunpack.c.l.b16 %v287
    %v4058 = vunpack.c.h.b16 %v287
    %v4059 = vunpack.c.l.b16 %v288
    %v4060 = vunpack.c.h.b16 %v288
    %v4061 = vunpack.c.l.b16 %v289
    %v4062 = vunpack.c.h.b16 %v289
    %v4063 = vunpack.c.l.b16 %v290
    %v4064 = vunpack.c.h.b16 %v290
    %v4065 = vunpack.c.l.b16 %v291
    %v4066 = vunpack.c.h.b16 %v291
    %v4067 = vunpack.c.l.b16 %v292
    %v4068 = vunpack.c.h.b16 %v292
    %v4069 = vpack.c.b16 %v3945, %v3941
    %v4070 = vpack.c.b16 %v3946, %v3942
    %v4071 = vpack.c.b16 %v3947, %v3943
    %v4072 = vpack.c.b16 %v3948, %v3944
    %v4073 = vpack.c.b16 %v3953, %v3949
    %v4074 = vpack.c.b16 %v3954, %v3950
    %v4075 = vpack.c.b16 %v3955, %v3951
    %v4076 = vpack.c.b16 %v3956, %v3952
    %v4077 = vpack.c.b16 %v3961, %v3957
    %v4078 = vpack.c.b16 %v3962, %v3958
    %v4079 = vpack.c.b16 %v3963, %v3959
    %v4080 = vpack.c.b16 %v3964, %v3960
    %v4081 = vpack.c.b16 %v3969, %v3965
    %v4082 = vpack.c.b16 %v3970, %v3966
    %v4083 = vpack.c.b16 %v3971, %v3967
    %v4084 = vpack.c.b16 %v3972, %v3968
    %v4085 = vpack.c.b16 %v3977, %v3973
    %v4086 = vpack.c.b16 %v3978, %v3974
    %v4087 = vpack.c.b16 %v3979, %v3975
    %v4088 = vpack.c.b16 %v3980, %v3976
    %v4089 = vpack.c.b16 %v3985, %v3981
    %v4090 = vpack.c.b16 %v3986, %v3982
    %v4091 = vpack.c.b16 %v3987, %v3983
    %v4092 = vpack.c.b16 %v3988, %v3984
    %v4093 = vpack.c.b16 %v3993, %v3989
    %v4094 = vpack.c.b16 %v3994, %v3990
    %v4095 = vpack.c.b16 %v3995, %v3991
    %v4096 = vpack.c.b16 %v3996, %v3992
    %v4097 = vpack.c.b16 %v4001, %v3997
    %v4098 = vpack.c.b16 %v4002, %v3998
    %v4099 = vpack.c.b16 %v4003, %v3999
    %v4100 = vpack.c.b16 %v4004, %v4000
    %v4101 = vpack.c.b16 %v4009, %v4005
    %v4102 = vpack.c.b16 %v4010, %v4006
    %v4103 = vpack.c.b16 %v4011, %v4007
    %v4104 = vpack.c.b16 %v4012, %v4008
    %v4105 = vpack.c.b16 %v4017, %v4013
    %v4106 = vpack.c.b16 %v4018, %v4014
    %v4107 = vpack.c.b16 %v4019, %v4015
    %v4108 = vpack.c.b16 %v4020, %v4016
    %v4109 = vpack.c.b16 %v4025, %v4021
    %v4110 = vpack.c.b16 %v4026, %v4022
    %v4111 = vpack.c.b16 %v4027, %v4023
    %v4112 = vpack.c.b16 %v4028, %v4024
    %v4113 = vpack.c.b16 %v4033, %v4029
    %v4114 = vpack.c.b16 %v4034, %v4030
    %v4115 = vpack.c.b16 %v4035, %v4031
    %v4116 = vpack.c.b16 %v4036, %v4032
    %v4117 = vpack.c.b16 %v4041, %v4037
    %v4118 = vpack.c.b16 %v4042, %v4038
    %v4119 = vpack.c.b16 %v4043, %v4039
    %v4120 = vpack.c.b16 %v4044, %v4040
    %v4121 = vpack.c.b16 %v4049, %v4045
    %v4122 = vpack.c.b16 %v4050, %v4046
    %v4123 = vpack.c.b16 %v4051, %v4047
    %v4124 = vpack.c.b16 %v4052, %v4048
    %v4125 = vpack.c.b16 %v4057, %v4053
    %v4126 = vpack.c.b16 %v4058, %v4054
    %v4127 = vpack.c.b16 %v4059, %v4055
    %v4128 = vpack.c.b16 %v4060, %v4056
    %v4129 = vpack.c.b16 %v4065, %v4061
    %v4130 = vpack.c.b16 %v4066, %v4062
    %v4131 = vpack.c.b16 %v4067, %v4063
    %v4132 = vpack.c.b16 %v4068, %v4064
    %4197 = vmatprep.subr.bf16.mxu0 %v4098
    %4198 = vmatpush1.bf16.msra.mxu0 %v4097
    %4199 = vmatprep.subr.bf16.mxu0 %v4094
    %4200 = vmatpush1.bf16.msra.mxu0 %v4093
    %4201 = vmatprep.subr.bf16.mxu0 %v4090
    %4202 = vmatpush1.bf16.msra.mxu0 %v4089
    %4203 = vmatprep.subr.bf16.mxu0 %v4086
    %4204 = vmatpush1.bf16.msra.mxu0 %v4085
    %4205 = vmatprep.subr.bf16.mxu0 %v4082
    %4206 = vmatpush1.bf16.msra.mxu0 %v4081
    %4207 = vmatprep.subr.bf16.mxu0 %v4078
    %4208 = vmatpush1.bf16.msra.mxu0 %v4077
    %4209 = vmatprep.subr.bf16.mxu0 %v4074
    %4210 = vmatpush1.bf16.msra.mxu0 %v4073
    %4211 = vmatprep.subr.bf16.mxu0 %v4070
    %4212 = vmatpush1.bf16.msra.mxu0 %v4069
    %4213 = vmatprep.subr.bf16.mxu0 %v4130
    %4214 = vmatpush2.bf16.msra.mxu0 %v4129
    %4215 = vmatprep.subr.bf16.mxu0 %v4126
    %4216 = vmatpush2.bf16.msra.mxu0 %v4125
    %4217 = vmatprep.subr.bf16.mxu0 %v4122
    %4218 = vmatpush2.bf16.msra.mxu0 %v4121
    %4219 = vmatprep.subr.bf16.mxu0 %v4118
    %4220 = vmatpush2.bf16.msra.mxu0 %v4117
    %4221 = vmatprep.subr.bf16.mxu0 %v4114
    %4222 = vmatpush2.bf16.msra.mxu0 %v4113
    %4223 = vmatprep.subr.bf16.mxu0 %v4110
    %4224 = vmatpush2.bf16.msra.mxu0 %v4109
    %4225 = vmatprep.subr.bf16.mxu0 %v4106
    %4226 = vmatpush2.bf16.msra.mxu0 %v4105
    %4227 = vmatprep.subr.bf16.mxu0 %v4102
    %4228 = vmatpush2.bf16.msra.mxu0 %v4101
    %4229 = vmatprep.mubr.bf16.mxu0 %v3870
    %4230 = vmatmul.mubr.bf16.gmra.mxu0 %v3869
    %v4231 = vpop.f32.mrf.mxu0
    %v4232 = vadd.f32 0.0, %v4231
    %v4233 = vpop.f32.mrf.mxu0
    %v4234 = vadd.f32 0.0, %v4233
    %v4235 = vpop.f32.mrf.mxu0
    %v4236 = vadd.f32 0.0, %v4235
    %v4237 = vpop.f32.mrf.mxu0
    %v4238 = vadd.f32 0.0, %v4237
    %4239 = vmatprep.mubr.bf16.mxu0 %v3872
    %4240 = vmatmul.mubr.bf16.gmra.mxu0 %v3871
    %v4241 = vpop.f32.mrf.mxu0
    %v4242 = vadd.f32 0.0, %v4241
    %v4243 = vpop.f32.mrf.mxu0
    %v4244 = vadd.f32 0.0, %v4243
    %v4245 = vpop.f32.mrf.mxu0
    %v4246 = vadd.f32 0.0, %v4245
    %v4247 = vpop.f32.mrf.mxu0
    %v4248 = vadd.f32 0.0, %v4247
    %4249 = vdwg.mxu0
    %4250 = vmatprep.subr.bf16.mxu0 %v4100
    %4251 = vmatpush1.bf16.msra.mxu0 %v4099
    %4252 = vmatprep.subr.bf16.mxu0 %v4096
    %4253 = vmatpush1.bf16.msra.mxu0 %v4095
    %4254 = vmatprep.subr.bf16.mxu0 %v4092
    %4255 = vmatpush1.bf16.msra.mxu0 %v4091
    %4256 = vmatprep.subr.bf16.mxu0 %v4088
    %4257 = vmatpush1.bf16.msra.mxu0 %v4087
    %4258 = vmatprep.subr.bf16.mxu0 %v4084
    %4259 = vmatpush1.bf16.msra.mxu0 %v4083
    %4260 = vmatprep.subr.bf16.mxu0 %v4080
    %4261 = vmatpush1.bf16.msra.mxu0 %v4079
    %4262 = vmatprep.subr.bf16.mxu0 %v4076
    %4263 = vmatpush1.bf16.msra.mxu0 %v4075
    %4264 = vmatprep.subr.bf16.mxu0 %v4072
    %4265 = vmatpush1.bf16.msra.mxu0 %v4071
    %4266 = vmatprep.subr.bf16.mxu0 %v4132
    %4267 = vmatpush2.bf16.msra.mxu0 %v4131
    %4268 = vmatprep.subr.bf16.mxu0 %v4128
    %4269 = vmatpush2.bf16.msra.mxu0 %v4127
    %4270 = vmatprep.subr.bf16.mxu0 %v4124
    %4271 = vmatpush2.bf16.msra.mxu0 %v4123
    %4272 = vmatprep.subr.bf16.mxu0 %v4120
    %4273 = vmatpush2.bf16.msra.mxu0 %v4119
    %4274 = vmatprep.subr.bf16.mxu0 %v4116
    %4275 = vmatpush2.bf16.msra.mxu0 %v4115
    %4276 = vmatprep.subr.bf16.mxu0 %v4112
    %4277 = vmatpush2.bf16.msra.mxu0 %v4111
    %4278 = vmatprep.subr.bf16.mxu0 %v4108
    %4279 = vmatpush2.bf16.msra.mxu0 %v4107
    %4280 = vmatprep.subr.bf16.mxu0 %v4104
    %4281 = vmatpush2.bf16.msra.mxu0 %v4103
    %4282 = vmatprep.mubr.bf16.mxu0 %v3870
    %4283 = vmatmul.mubr.bf16.gmra.mxu0 %v3869
    %v4284 = vpop.f32.mrf.mxu0
    %v4285 = vadd.f32 0.0, %v4284
    %v4286 = vpop.f32.mrf.mxu0
    %v4287 = vadd.f32 0.0, %v4286
    %v4288 = vpop.f32.mrf.mxu0
    %v4289 = vadd.f32 0.0, %v4288
    %v4290 = vpop.f32.mrf.mxu0
    %v4291 = vadd.f32 0.0, %v4290
    %4292 = vmatprep.mubr.bf16.mxu0 %v3872
    %4293 = vmatmul.mubr.bf16.gmra.mxu0 %v3871
    %v4294 = vpop.f32.mrf.mxu0
    %v4295 = vadd.f32 0.0, %v4294
    %v4296 = vpop.f32.mrf.mxu0
    %v4297 = vadd.f32 0.0, %v4296
    %v4298 = vpop.f32.mrf.mxu0
    %v4299 = vadd.f32 0.0, %v4298
    %v4300 = vpop.f32.mrf.mxu0
    %v4301 = vadd.f32 0.0, %v4300
    %4302 = vdwg.mxu0
    %v4303 = vpack.c.b16 %v2333, %v2331
    %v4304 = vpack.c.b16 %v2334, %v2332
    %v4305 = vpack.c.b16 %v2337, %v2335
    %v4306 = vpack.c.b16 %v2338, %v2336
    %v4375 = vunpack.c.l.b16 %v164
    %v4376 = vunpack.c.h.b16 %v164
    %v4377 = vunpack.c.l.b16 %v165
    %v4378 = vunpack.c.h.b16 %v165
    %v4379 = vunpack.c.l.b16 %v166
    %v4380 = vunpack.c.h.b16 %v166
    %v4381 = vunpack.c.l.b16 %v167
    %v4382 = vunpack.c.h.b16 %v167
    %v4383 = vunpack.c.l.b16 %v168
    %v4384 = vunpack.c.h.b16 %v168
    %v4385 = vunpack.c.l.b16 %v169
    %v4386 = vunpack.c.h.b16 %v169
    %v4387 = vunpack.c.l.b16 %v170
    %v4388 = vunpack.c.h.b16 %v170
    %v4389 = vunpack.c.l.b16 %v171
    %v4390 = vunpack.c.h.b16 %v171
    %v4391 = vunpack.c.l.b16 %v172
    %v4392 = vunpack.c.h.b16 %v172
    %v4393 = vunpack.c.l.b16 %v173
    %v4394 = vunpack.c.h.b16 %v173
    %v4395 = vunpack.c.l.b16 %v174
    %v4396 = vunpack.c.h.b16 %v174
    %v4397 = vunpack.c.l.b16 %v175
    %v4398 = vunpack.c.h.b16 %v175
    %v4399 = vunpack.c.l.b16 %v176
    %v4400 = vunpack.c.h.b16 %v176
    %v4401 = vunpack.c.l.b16 %v177
    %v4402 = vunpack.c.h.b16 %v177
    %v4403 = vunpack.c.l.b16 %v178
    %v4404 = vunpack.c.h.b16 %v178
    %v4405 = vunpack.c.l.b16 %v179
    %v4406 = vunpack.c.h.b16 %v179
    %v4407 = vunpack.c.l.b16 %v180
    %v4408 = vunpack.c.h.b16 %v180
    %v4409 = vunpack.c.l.b16 %v181
    %v4410 = vunpack.c.h.b16 %v181
    %v4411 = vunpack.c.l.b16 %v182
    %v4412 = vunpack.c.h.b16 %v182
    %v4413 = vunpack.c.l.b16 %v183
    %v4414 = vunpack.c.h.b16 %v183
    %v4415 = vunpack.c.l.b16 %v184
    %v4416 = vunpack.c.h.b16 %v184
    %v4417 = vunpack.c.l.b16 %v185
    %v4418 = vunpack.c.h.b16 %v185
    %v4419 = vunpack.c.l.b16 %v186
    %v4420 = vunpack.c.h.b16 %v186
    %v4421 = vunpack.c.l.b16 %v187
    %v4422 = vunpack.c.h.b16 %v187
    %v4423 = vunpack.c.l.b16 %v188
    %v4424 = vunpack.c.h.b16 %v188
    %v4425 = vunpack.c.l.b16 %v189
    %v4426 = vunpack.c.h.b16 %v189
    %v4427 = vunpack.c.l.b16 %v190
    %v4428 = vunpack.c.h.b16 %v190
    %v4429 = vunpack.c.l.b16 %v191
    %v4430 = vunpack.c.h.b16 %v191
    %v4431 = vunpack.c.l.b16 %v192
    %v4432 = vunpack.c.h.b16 %v192
    %v4433 = vunpack.c.l.b16 %v193
    %v4434 = vunpack.c.h.b16 %v193
    %v4435 = vunpack.c.l.b16 %v194
    %v4436 = vunpack.c.h.b16 %v194
    %v4437 = vunpack.c.l.b16 %v195
    %v4438 = vunpack.c.h.b16 %v195
    %v4439 = vunpack.c.l.b16 %v196
    %v4440 = vunpack.c.h.b16 %v196
    %v4441 = vunpack.c.l.b16 %v197
    %v4442 = vunpack.c.h.b16 %v197
    %v4443 = vunpack.c.l.b16 %v198
    %v4444 = vunpack.c.h.b16 %v198
    %v4445 = vunpack.c.l.b16 %v199
    %v4446 = vunpack.c.h.b16 %v199
    %v4447 = vunpack.c.l.b16 %v200
    %v4448 = vunpack.c.h.b16 %v200
    %v4449 = vunpack.c.l.b16 %v201
    %v4450 = vunpack.c.h.b16 %v201
    %v4451 = vunpack.c.l.b16 %v202
    %v4452 = vunpack.c.h.b16 %v202
    %v4453 = vunpack.c.l.b16 %v203
    %v4454 = vunpack.c.h.b16 %v203
    %v4455 = vunpack.c.l.b16 %v204
    %v4456 = vunpack.c.h.b16 %v204
    %v4457 = vunpack.c.l.b16 %v205
    %v4458 = vunpack.c.h.b16 %v205
    %v4459 = vunpack.c.l.b16 %v206
    %v4460 = vunpack.c.h.b16 %v206
    %v4461 = vunpack.c.l.b16 %v207
    %v4462 = vunpack.c.h.b16 %v207
    %v4463 = vunpack.c.l.b16 %v208
    %v4464 = vunpack.c.h.b16 %v208
    %v4465 = vunpack.c.l.b16 %v209
    %v4466 = vunpack.c.h.b16 %v209
    %v4467 = vunpack.c.l.b16 %v210
    %v4468 = vunpack.c.h.b16 %v210
    %v4469 = vunpack.c.l.b16 %v211
    %v4470 = vunpack.c.h.b16 %v211
    %v4471 = vunpack.c.l.b16 %v212
    %v4472 = vunpack.c.h.b16 %v212
    %v4473 = vunpack.c.l.b16 %v213
    %v4474 = vunpack.c.h.b16 %v213
    %v4475 = vunpack.c.l.b16 %v214
    %v4476 = vunpack.c.h.b16 %v214
    %v4477 = vunpack.c.l.b16 %v215
    %v4478 = vunpack.c.h.b16 %v215
    %v4479 = vunpack.c.l.b16 %v216
    %v4480 = vunpack.c.h.b16 %v216
    %v4481 = vunpack.c.l.b16 %v217
    %v4482 = vunpack.c.h.b16 %v217
    %v4483 = vunpack.c.l.b16 %v218
    %v4484 = vunpack.c.h.b16 %v218
    %v4485 = vunpack.c.l.b16 %v219
    %v4486 = vunpack.c.h.b16 %v219
    %v4487 = vunpack.c.l.b16 %v220
    %v4488 = vunpack.c.h.b16 %v220
    %v4489 = vunpack.c.l.b16 %v221
    %v4490 = vunpack.c.h.b16 %v221
    %v4491 = vunpack.c.l.b16 %v222
    %v4492 = vunpack.c.h.b16 %v222
    %v4493 = vunpack.c.l.b16 %v223
    %v4494 = vunpack.c.h.b16 %v223
    %v4495 = vunpack.c.l.b16 %v224
    %v4496 = vunpack.c.h.b16 %v224
    %v4497 = vunpack.c.l.b16 %v225
    %v4498 = vunpack.c.h.b16 %v225
    %v4499 = vunpack.c.l.b16 %v226
    %v4500 = vunpack.c.h.b16 %v226
    %v4501 = vunpack.c.l.b16 %v227
    %v4502 = vunpack.c.h.b16 %v227
    %v4503 = vpack.c.b16 %v4379, %v4375
    %v4504 = vpack.c.b16 %v4380, %v4376
    %v4505 = vpack.c.b16 %v4381, %v4377
    %v4506 = vpack.c.b16 %v4382, %v4378
    %v4507 = vpack.c.b16 %v4387, %v4383
    %v4508 = vpack.c.b16 %v4388, %v4384
    %v4509 = vpack.c.b16 %v4389, %v4385
    %v4510 = vpack.c.b16 %v4390, %v4386
    %v4511 = vpack.c.b16 %v4395, %v4391
    %v4512 = vpack.c.b16 %v4396, %v4392
    %v4513 = vpack.c.b16 %v4397, %v4393
    %v4514 = vpack.c.b16 %v4398, %v4394
    %v4515 = vpack.c.b16 %v4403, %v4399
    %v4516 = vpack.c.b16 %v4404, %v4400
    %v4517 = vpack.c.b16 %v4405, %v4401
    %v4518 = vpack.c.b16 %v4406, %v4402
    %v4519 = vpack.c.b16 %v4411, %v4407
    %v4520 = vpack.c.b16 %v4412, %v4408
    %v4521 = vpack.c.b16 %v4413, %v4409
    %v4522 = vpack.c.b16 %v4414, %v4410
    %v4523 = vpack.c.b16 %v4419, %v4415
    %v4524 = vpack.c.b16 %v4420, %v4416
    %v4525 = vpack.c.b16 %v4421, %v4417
    %v4526 = vpack.c.b16 %v4422, %v4418
    %v4527 = vpack.c.b16 %v4427, %v4423
    %v4528 = vpack.c.b16 %v4428, %v4424
    %v4529 = vpack.c.b16 %v4429, %v4425
    %v4530 = vpack.c.b16 %v4430, %v4426
    %v4531 = vpack.c.b16 %v4435, %v4431
    %v4532 = vpack.c.b16 %v4436, %v4432
    %v4533 = vpack.c.b16 %v4437, %v4433
    %v4534 = vpack.c.b16 %v4438, %v4434
    %v4535 = vpack.c.b16 %v4443, %v4439
    %v4536 = vpack.c.b16 %v4444, %v4440
    %v4537 = vpack.c.b16 %v4445, %v4441
    %v4538 = vpack.c.b16 %v4446, %v4442
    %v4539 = vpack.c.b16 %v4451, %v4447
    %v4540 = vpack.c.b16 %v4452, %v4448
    %v4541 = vpack.c.b16 %v4453, %v4449
    %v4542 = vpack.c.b16 %v4454, %v4450
    %v4543 = vpack.c.b16 %v4459, %v4455
    %v4544 = vpack.c.b16 %v4460, %v4456
    %v4545 = vpack.c.b16 %v4461, %v4457
    %v4546 = vpack.c.b16 %v4462, %v4458
    %v4547 = vpack.c.b16 %v4467, %v4463
    %v4548 = vpack.c.b16 %v4468, %v4464
    %v4549 = vpack.c.b16 %v4469, %v4465
    %v4550 = vpack.c.b16 %v4470, %v4466
    %v4551 = vpack.c.b16 %v4475, %v4471
    %v4552 = vpack.c.b16 %v4476, %v4472
    %v4553 = vpack.c.b16 %v4477, %v4473
    %v4554 = vpack.c.b16 %v4478, %v4474
    %v4555 = vpack.c.b16 %v4483, %v4479
    %v4556 = vpack.c.b16 %v4484, %v4480
    %v4557 = vpack.c.b16 %v4485, %v4481
    %v4558 = vpack.c.b16 %v4486, %v4482
    %v4559 = vpack.c.b16 %v4491, %v4487
    %v4560 = vpack.c.b16 %v4492, %v4488
    %v4561 = vpack.c.b16 %v4493, %v4489
    %v4562 = vpack.c.b16 %v4494, %v4490
    %v4563 = vpack.c.b16 %v4499, %v4495
    %v4564 = vpack.c.b16 %v4500, %v4496
    %v4565 = vpack.c.b16 %v4501, %v4497
    %v4566 = vpack.c.b16 %v4502, %v4498
    %4631 = vmatprep.subr.bf16.mxu0 %v4532
    %4632 = vmatpush1.bf16.msra.mxu0 %v4531
    %4633 = vmatprep.subr.bf16.mxu0 %v4528
    %4634 = vmatpush1.bf16.msra.mxu0 %v4527
    %4635 = vmatprep.subr.bf16.mxu0 %v4524
    %4636 = vmatpush1.bf16.msra.mxu0 %v4523
    %4637 = vmatprep.subr.bf16.mxu0 %v4520
    %4638 = vmatpush1.bf16.msra.mxu0 %v4519
    %4639 = vmatprep.subr.bf16.mxu0 %v4516
    %4640 = vmatpush1.bf16.msra.mxu0 %v4515
    %4641 = vmatprep.subr.bf16.mxu0 %v4512
    %4642 = vmatpush1.bf16.msra.mxu0 %v4511
    %4643 = vmatprep.subr.bf16.mxu0 %v4508
    %4644 = vmatpush1.bf16.msra.mxu0 %v4507
    %4645 = vmatprep.subr.bf16.mxu0 %v4504
    %4646 = vmatpush1.bf16.msra.mxu0 %v4503
    %4647 = vmatprep.subr.bf16.mxu0 %v4564
    %4648 = vmatpush2.bf16.msra.mxu0 %v4563
    %4649 = vmatprep.subr.bf16.mxu0 %v4560
    %4650 = vmatpush2.bf16.msra.mxu0 %v4559
    %4651 = vmatprep.subr.bf16.mxu0 %v4556
    %4652 = vmatpush2.bf16.msra.mxu0 %v4555
    %4653 = vmatprep.subr.bf16.mxu0 %v4552
    %4654 = vmatpush2.bf16.msra.mxu0 %v4551
    %4655 = vmatprep.subr.bf16.mxu0 %v4548
    %4656 = vmatpush2.bf16.msra.mxu0 %v4547
    %4657 = vmatprep.subr.bf16.mxu0 %v4544
    %4658 = vmatpush2.bf16.msra.mxu0 %v4543
    %4659 = vmatprep.subr.bf16.mxu0 %v4540
    %4660 = vmatpush2.bf16.msra.mxu0 %v4539
    %4661 = vmatprep.subr.bf16.mxu0 %v4536
    %4662 = vmatpush2.bf16.msra.mxu0 %v4535
    %4663 = vmatprep.mubr.bf16.mxu0 %v4304
    %4664 = vmatmul.mubr.bf16.gmra.mxu0 %v4303
    %v4665 = vpop.f32.mrf.mxu0
    %v4666 = vadd.f32 %v4232, %v4665
    %v4667 = vpop.f32.mrf.mxu0
    %v4668 = vadd.f32 %v4234, %v4667
    %v4669 = vpop.f32.mrf.mxu0
    %v4670 = vadd.f32 %v4236, %v4669
    %v4671 = vpop.f32.mrf.mxu0
    %v4672 = vadd.f32 %v4238, %v4671
    %4673 = vmatprep.mubr.bf16.mxu0 %v4306
    %4674 = vmatmul.mubr.bf16.gmra.mxu0 %v4305
    %v4675 = vpop.f32.mrf.mxu0
    %v4676 = vadd.f32 %v4242, %v4675
    %v4677 = vpop.f32.mrf.mxu0
    %v4678 = vadd.f32 %v4244, %v4677
    %v4679 = vpop.f32.mrf.mxu0
    %v4680 = vadd.f32 %v4246, %v4679
    %v4681 = vpop.f32.mrf.mxu0
    %v4682 = vadd.f32 %v4248, %v4681
    %4683 = vdwg.mxu0
    %4684 = vmatprep.subr.bf16.mxu0 %v4534
    %4685 = vmatpush1.bf16.msra.mxu0 %v4533
    %4686 = vmatprep.subr.bf16.mxu0 %v4530
    %4687 = vmatpush1.bf16.msra.mxu0 %v4529
    %4688 = vmatprep.subr.bf16.mxu0 %v4526
    %4689 = vmatpush1.bf16.msra.mxu0 %v4525
    %4690 = vmatprep.subr.bf16.mxu0 %v4522
    %4691 = vmatpush1.bf16.msra.mxu0 %v4521
    %4692 = vmatprep.subr.bf16.mxu0 %v4518
    %4693 = vmatpush1.bf16.msra.mxu0 %v4517
    %4694 = vmatprep.subr.bf16.mxu0 %v4514
    %4695 = vmatpush1.bf16.msra.mxu0 %v4513
    %4696 = vmatprep.subr.bf16.mxu0 %v4510
    %4697 = vmatpush1.bf16.msra.mxu0 %v4509
    %4698 = vmatprep.subr.bf16.mxu0 %v4506
    %4699 = vmatpush1.bf16.msra.mxu0 %v4505
    %4700 = vmatprep.subr.bf16.mxu0 %v4566
    %4701 = vmatpush2.bf16.msra.mxu0 %v4565
    %4702 = vmatprep.subr.bf16.mxu0 %v4562
    %4703 = vmatpush2.bf16.msra.mxu0 %v4561
    %4704 = vmatprep.subr.bf16.mxu0 %v4558
    %4705 = vmatpush2.bf16.msra.mxu0 %v4557
    %4706 = vmatprep.subr.bf16.mxu0 %v4554
    %4707 = vmatpush2.bf16.msra.mxu0 %v4553
    %4708 = vmatprep.subr.bf16.mxu0 %v4550
    %4709 = vmatpush2.bf16.msra.mxu0 %v4549
    %4710 = vmatprep.subr.bf16.mxu0 %v4546
    %4711 = vmatpush2.bf16.msra.mxu0 %v4545
    %4712 = vmatprep.subr.bf16.mxu0 %v4542
    %4713 = vmatpush2.bf16.msra.mxu0 %v4541
    %4714 = vmatprep.subr.bf16.mxu0 %v4538
    %4715 = vmatpush2.bf16.msra.mxu0 %v4537
    %4716 = vmatprep.mubr.bf16.mxu0 %v4304
    %4717 = vmatmul.mubr.bf16.gmra.mxu0 %v4303
    %v4718 = vpop.f32.mrf.mxu0
    %v4719 = vadd.f32 %v4285, %v4718
    %v4720 = vpop.f32.mrf.mxu0
    %v4721 = vadd.f32 %v4287, %v4720
    %v4722 = vpop.f32.mrf.mxu0
    %v4723 = vadd.f32 %v4289, %v4722
    %v4724 = vpop.f32.mrf.mxu0
    %v4725 = vadd.f32 %v4291, %v4724
    %4726 = vmatprep.mubr.bf16.mxu0 %v4306
    %4727 = vmatmul.mubr.bf16.gmra.mxu0 %v4305
    %v4728 = vpop.f32.mrf.mxu0
    %v4729 = vadd.f32 %v4295, %v4728
    %v4730 = vpop.f32.mrf.mxu0
    %v4731 = vadd.f32 %v4297, %v4730
    %v4732 = vpop.f32.mrf.mxu0
    %v4733 = vadd.f32 %v4299, %v4732
    %v4734 = vpop.f32.mrf.mxu0
    %v4735 = vadd.f32 %v4301, %v4734
    %4736 = vdwg.mxu0
    %v4737 = vpack.c.b16 %v2335, %v2333
    %v4738 = vpack.c.b16 %v2336, %v2334
    %v4739 = vpack.c.b16 %v2339, %v2337
    %v4740 = vpack.c.b16 %v2340, %v2338
    %v4809 = vunpack.c.l.b16 %v294
    %v4810 = vunpack.c.h.b16 %v294
    %v4811 = vunpack.c.l.b16 %v295
    %v4812 = vunpack.c.h.b16 %v295
    %v4813 = vunpack.c.l.b16 %v296
    %v4814 = vunpack.c.h.b16 %v296
    %v4815 = vunpack.c.l.b16 %v297
    %v4816 = vunpack.c.h.b16 %v297
    %v4817 = vunpack.c.l.b16 %v298
    %v4818 = vunpack.c.h.b16 %v298
    %v4819 = vunpack.c.l.b16 %v299
    %v4820 = vunpack.c.h.b16 %v299
    %v4821 = vunpack.c.l.b16 %v300
    %v4822 = vunpack.c.h.b16 %v300
    %v4823 = vunpack.c.l.b16 %v301
    %v4824 = vunpack.c.h.b16 %v301
    %v4825 = vunpack.c.l.b16 %v302
    %v4826 = vunpack.c.h.b16 %v302
    %v4827 = vunpack.c.l.b16 %v303
    %v4828 = vunpack.c.h.b16 %v303
    %v4829 = vunpack.c.l.b16 %v304
    %v4830 = vunpack.c.h.b16 %v304
    %v4831 = vunpack.c.l.b16 %v305
    %v4832 = vunpack.c.h.b16 %v305
    %v4833 = vunpack.c.l.b16 %v306
    %v4834 = vunpack.c.h.b16 %v306
    %v4835 = vunpack.c.l.b16 %v307
    %v4836 = vunpack.c.h.b16 %v307
    %v4837 = vunpack.c.l.b16 %v308
    %v4838 = vunpack.c.h.b16 %v308
    %v4839 = vunpack.c.l.b16 %v309
    %v4840 = vunpack.c.h.b16 %v309
    %v4841 = vunpack.c.l.b16 %v310
    %v4842 = vunpack.c.h.b16 %v310
    %v4843 = vunpack.c.l.b16 %v311
    %v4844 = vunpack.c.h.b16 %v311
    %v4845 = vunpack.c.l.b16 %v312
    %v4846 = vunpack.c.h.b16 %v312
    %v4847 = vunpack.c.l.b16 %v313
    %v4848 = vunpack.c.h.b16 %v313
    %v4849 = vunpack.c.l.b16 %v314
    %v4850 = vunpack.c.h.b16 %v314
    %v4851 = vunpack.c.l.b16 %v315
    %v4852 = vunpack.c.h.b16 %v315
    %v4853 = vunpack.c.l.b16 %v316
    %v4854 = vunpack.c.h.b16 %v316
    %v4855 = vunpack.c.l.b16 %v317
    %v4856 = vunpack.c.h.b16 %v317
    %v4857 = vunpack.c.l.b16 %v318
    %v4858 = vunpack.c.h.b16 %v318
    %v4859 = vunpack.c.l.b16 %v319
    %v4860 = vunpack.c.h.b16 %v319
    %v4861 = vunpack.c.l.b16 %v320
    %v4862 = vunpack.c.h.b16 %v320
    %v4863 = vunpack.c.l.b16 %v321
    %v4864 = vunpack.c.h.b16 %v321
    %v4865 = vunpack.c.l.b16 %v322
    %v4866 = vunpack.c.h.b16 %v322
    %v4867 = vunpack.c.l.b16 %v323
    %v4868 = vunpack.c.h.b16 %v323
    %v4869 = vunpack.c.l.b16 %v324
    %v4870 = vunpack.c.h.b16 %v324
    %v4871 = vunpack.c.l.b16 %v325
    %v4872 = vunpack.c.h.b16 %v325
    %v4873 = vunpack.c.l.b16 %v326
    %v4874 = vunpack.c.h.b16 %v326
    %v4875 = vunpack.c.l.b16 %v327
    %v4876 = vunpack.c.h.b16 %v327
    %v4877 = vunpack.c.l.b16 %v328
    %v4878 = vunpack.c.h.b16 %v328
    %v4879 = vunpack.c.l.b16 %v329
    %v4880 = vunpack.c.h.b16 %v329
    %v4881 = vunpack.c.l.b16 %v330
    %v4882 = vunpack.c.h.b16 %v330
    %v4883 = vunpack.c.l.b16 %v331
    %v4884 = vunpack.c.h.b16 %v331
    %v4885 = vunpack.c.l.b16 %v332
    %v4886 = vunpack.c.h.b16 %v332
    %v4887 = vunpack.c.l.b16 %v333
    %v4888 = vunpack.c.h.b16 %v333
    %v4889 = vunpack.c.l.b16 %v334
    %v4890 = vunpack.c.h.b16 %v334
    %v4891 = vunpack.c.l.b16 %v335
    %v4892 = vunpack.c.h.b16 %v335
    %v4893 = vunpack.c.l.b16 %v336
    %v4894 = vunpack.c.h.b16 %v336
    %v4895 = vunpack.c.l.b16 %v337
    %v4896 = vunpack.c.h.b16 %v337
    %v4897 = vunpack.c.l.b16 %v338
    %v4898 = vunpack.c.h.b16 %v338
    %v4899 = vunpack.c.l.b16 %v339
    %v4900 = vunpack.c.h.b16 %v339
    %v4901 = vunpack.c.l.b16 %v340
    %v4902 = vunpack.c.h.b16 %v340
    %v4903 = vunpack.c.l.b16 %v341
    %v4904 = vunpack.c.h.b16 %v341
    %v4905 = vunpack.c.l.b16 %v342
    %v4906 = vunpack.c.h.b16 %v342
    %v4907 = vunpack.c.l.b16 %v343
    %v4908 = vunpack.c.h.b16 %v343
    %v4909 = vunpack.c.l.b16 %v344
    %v4910 = vunpack.c.h.b16 %v344
    %v4911 = vunpack.c.l.b16 %v345
    %v4912 = vunpack.c.h.b16 %v345
    %v4913 = vunpack.c.l.b16 %v346
    %v4914 = vunpack.c.h.b16 %v346
    %v4915 = vunpack.c.l.b16 %v347
    %v4916 = vunpack.c.h.b16 %v347
    %v4917 = vunpack.c.l.b16 %v348
    %v4918 = vunpack.c.h.b16 %v348
    %v4919 = vunpack.c.l.b16 %v349
    %v4920 = vunpack.c.h.b16 %v349
    %v4921 = vunpack.c.l.b16 %v350
    %v4922 = vunpack.c.h.b16 %v350
    %v4923 = vunpack.c.l.b16 %v351
    %v4924 = vunpack.c.h.b16 %v351
    %v4925 = vunpack.c.l.b16 %v352
    %v4926 = vunpack.c.h.b16 %v352
    %v4927 = vunpack.c.l.b16 %v353
    %v4928 = vunpack.c.h.b16 %v353
    %v4929 = vunpack.c.l.b16 %v354
    %v4930 = vunpack.c.h.b16 %v354
    %v4931 = vunpack.c.l.b16 %v355
    %v4932 = vunpack.c.h.b16 %v355
    %v4933 = vunpack.c.l.b16 %v356
    %v4934 = vunpack.c.h.b16 %v356
    %v4935 = vunpack.c.l.b16 %v357
    %v4936 = vunpack.c.h.b16 %v357
    %v4937 = vpack.c.b16 %v4813, %v4809
    %v4938 = vpack.c.b16 %v4814, %v4810
    %v4939 = vpack.c.b16 %v4815, %v4811
    %v4940 = vpack.c.b16 %v4816, %v4812
    %v4941 = vpack.c.b16 %v4821, %v4817
    %v4942 = vpack.c.b16 %v4822, %v4818
    %v4943 = vpack.c.b16 %v4823, %v4819
    %v4944 = vpack.c.b16 %v4824, %v4820
    %v4945 = vpack.c.b16 %v4829, %v4825
    %v4946 = vpack.c.b16 %v4830, %v4826
    %v4947 = vpack.c.b16 %v4831, %v4827
    %v4948 = vpack.c.b16 %v4832, %v4828
    %v4949 = vpack.c.b16 %v4837, %v4833
    %v4950 = vpack.c.b16 %v4838, %v4834
    %v4951 = vpack.c.b16 %v4839, %v4835
    %v4952 = vpack.c.b16 %v4840, %v4836
    %v4953 = vpack.c.b16 %v4845, %v4841
    %v4954 = vpack.c.b16 %v4846, %v4842
    %v4955 = vpack.c.b16 %v4847, %v4843
    %v4956 = vpack.c.b16 %v4848, %v4844
    %v4957 = vpack.c.b16 %v4853, %v4849
    %v4958 = vpack.c.b16 %v4854, %v4850
    %v4959 = vpack.c.b16 %v4855, %v4851
    %v4960 = vpack.c.b16 %v4856, %v4852
    %v4961 = vpack.c.b16 %v4861, %v4857
    %v4962 = vpack.c.b16 %v4862, %v4858
    %v4963 = vpack.c.b16 %v4863, %v4859
    %v4964 = vpack.c.b16 %v4864, %v4860
    %v4965 = vpack.c.b16 %v4869, %v4865
    %v4966 = vpack.c.b16 %v4870, %v4866
    %v4967 = vpack.c.b16 %v4871, %v4867
    %v4968 = vpack.c.b16 %v4872, %v4868
    %v4969 = vpack.c.b16 %v4877, %v4873
    %v4970 = vpack.c.b16 %v4878, %v4874
    %v4971 = vpack.c.b16 %v4879, %v4875
    %v4972 = vpack.c.b16 %v4880, %v4876
    %v4973 = vpack.c.b16 %v4885, %v4881
    %v4974 = vpack.c.b16 %v4886, %v4882
    %v4975 = vpack.c.b16 %v4887, %v4883
    %v4976 = vpack.c.b16 %v4888, %v4884
    %v4977 = vpack.c.b16 %v4893, %v4889
    %v4978 = vpack.c.b16 %v4894, %v4890
    %v4979 = vpack.c.b16 %v4895, %v4891
    %v4980 = vpack.c.b16 %v4896, %v4892
    %v4981 = vpack.c.b16 %v4901, %v4897
    %v4982 = vpack.c.b16 %v4902, %v4898
    %v4983 = vpack.c.b16 %v4903, %v4899
    %v4984 = vpack.c.b16 %v4904, %v4900
    %v4985 = vpack.c.b16 %v4909, %v4905
    %v4986 = vpack.c.b16 %v4910, %v4906
    %v4987 = vpack.c.b16 %v4911, %v4907
    %v4988 = vpack.c.b16 %v4912, %v4908
    %v4989 = vpack.c.b16 %v4917, %v4913
    %v4990 = vpack.c.b16 %v4918, %v4914
    %v4991 = vpack.c.b16 %v4919, %v4915
    %v4992 = vpack.c.b16 %v4920, %v4916
    %v4993 = vpack.c.b16 %v4925, %v4921
    %v4994 = vpack.c.b16 %v4926, %v4922
    %v4995 = vpack.c.b16 %v4927, %v4923
    %v4996 = vpack.c.b16 %v4928, %v4924
    %v4997 = vpack.c.b16 %v4933, %v4929
    %v4998 = vpack.c.b16 %v4934, %v4930
    %v4999 = vpack.c.b16 %v4935, %v4931
    %v5000 = vpack.c.b16 %v4936, %v4932
    %5065 = vmatprep.subr.bf16.mxu0 %v4966
    %5066 = vmatpush1.bf16.msra.mxu0 %v4965
    %5067 = vmatprep.subr.bf16.mxu0 %v4962
    %5068 = vmatpush1.bf16.msra.mxu0 %v4961
    %5069 = vmatprep.subr.bf16.mxu0 %v4958
    %5070 = vmatpush1.bf16.msra.mxu0 %v4957
    %5071 = vmatprep.subr.bf16.mxu0 %v4954
    %5072 = vmatpush1.bf16.msra.mxu0 %v4953
    %5073 = vmatprep.subr.bf16.mxu0 %v4950
    %5074 = vmatpush1.bf16.msra.mxu0 %v4949
    %5075 = vmatprep.subr.bf16.mxu0 %v4946
    %5076 = vmatpush1.bf16.msra.mxu0 %v4945
    %5077 = vmatprep.subr.bf16.mxu0 %v4942
    %5078 = vmatpush1.bf16.msra.mxu0 %v4941
    %5079 = vmatprep.subr.bf16.mxu0 %v4938
    %5080 = vmatpush1.bf16.msra.mxu0 %v4937
    %5081 = vmatprep.subr.bf16.mxu0 %v4998
    %5082 = vmatpush2.bf16.msra.mxu0 %v4997
    %5083 = vmatprep.subr.bf16.mxu0 %v4994
    %5084 = vmatpush2.bf16.msra.mxu0 %v4993
    %5085 = vmatprep.subr.bf16.mxu0 %v4990
    %5086 = vmatpush2.bf16.msra.mxu0 %v4989
    %5087 = vmatprep.subr.bf16.mxu0 %v4986
    %5088 = vmatpush2.bf16.msra.mxu0 %v4985
    %5089 = vmatprep.subr.bf16.mxu0 %v4982
    %5090 = vmatpush2.bf16.msra.mxu0 %v4981
    %5091 = vmatprep.subr.bf16.mxu0 %v4978
    %5092 = vmatpush2.bf16.msra.mxu0 %v4977
    %5093 = vmatprep.subr.bf16.mxu0 %v4974
    %5094 = vmatpush2.bf16.msra.mxu0 %v4973
    %5095 = vmatprep.subr.bf16.mxu0 %v4970
    %5096 = vmatpush2.bf16.msra.mxu0 %v4969
    %5097 = vmatprep.mubr.bf16.mxu0 %v4738
    %5098 = vmatmul.mubr.bf16.gmra.mxu0 %v4737
    %v5099 = vpop.f32.mrf.mxu0
    %v5100 = vadd.f32 0.0, %v5099
    %v5101 = vpop.f32.mrf.mxu0
    %v5102 = vadd.f32 0.0, %v5101
    %v5103 = vpop.f32.mrf.mxu0
    %v5104 = vadd.f32 0.0, %v5103
    %v5105 = vpop.f32.mrf.mxu0
    %v5106 = vadd.f32 0.0, %v5105
    %5107 = vmatprep.mubr.bf16.mxu0 %v4740
    %5108 = vmatmul.mubr.bf16.gmra.mxu0 %v4739
    %v5109 = vpop.f32.mrf.mxu0
    %v5110 = vadd.f32 0.0, %v5109
    %v5111 = vpop.f32.mrf.mxu0
    %v5112 = vadd.f32 0.0, %v5111
    %v5113 = vpop.f32.mrf.mxu0
    %v5114 = vadd.f32 0.0, %v5113
    %v5115 = vpop.f32.mrf.mxu0
    %v5116 = vadd.f32 0.0, %v5115
    %5117 = vdwg.mxu0
    %5118 = vmatprep.subr.bf16.mxu0 %v4968
    %5119 = vmatpush1.bf16.msra.mxu0 %v4967
    %5120 = vmatprep.subr.bf16.mxu0 %v4964
    %5121 = vmatpush1.bf16.msra.mxu0 %v4963
    %5122 = vmatprep.subr.bf16.mxu0 %v4960
    %5123 = vmatpush1.bf16.msra.mxu0 %v4959
    %5124 = vmatprep.subr.bf16.mxu0 %v4956
    %5125 = vmatpush1.bf16.msra.mxu0 %v4955
    %5126 = vmatprep.subr.bf16.mxu0 %v4952
    %5127 = vmatpush1.bf16.msra.mxu0 %v4951
    %5128 = vmatprep.subr.bf16.mxu0 %v4948
    %5129 = vmatpush1.bf16.msra.mxu0 %v4947
    %5130 = vmatprep.subr.bf16.mxu0 %v4944
    %5131 = vmatpush1.bf16.msra.mxu0 %v4943
    %5132 = vmatprep.subr.bf16.mxu0 %v4940
    %5133 = vmatpush1.bf16.msra.mxu0 %v4939
    %5134 = vmatprep.subr.bf16.mxu0 %v5000
    %5135 = vmatpush2.bf16.msra.mxu0 %v4999
    %5136 = vmatprep.subr.bf16.mxu0 %v4996
    %5137 = vmatpush2.bf16.msra.mxu0 %v4995
    %5138 = vmatprep.subr.bf16.mxu0 %v4992
    %5139 = vmatpush2.bf16.msra.mxu0 %v4991
    %5140 = vmatprep.subr.bf16.mxu0 %v4988
    %5141 = vmatpush2.bf16.msra.mxu0 %v4987
    %5142 = vmatprep.subr.bf16.mxu0 %v4984
    %5143 = vmatpush2.bf16.msra.mxu0 %v4983
    %5144 = vmatprep.subr.bf16.mxu0 %v4980
    %5145 = vmatpush2.bf16.msra.mxu0 %v4979
    %5146 = vmatprep.subr.bf16.mxu0 %v4976
    %5147 = vmatpush2.bf16.msra.mxu0 %v4975
    %5148 = vmatprep.subr.bf16.mxu0 %v4972
    %5149 = vmatpush2.bf16.msra.mxu0 %v4971
    %5150 = vmatprep.mubr.bf16.mxu0 %v4738
    %5151 = vmatmul.mubr.bf16.gmra.mxu0 %v4737
    %v5152 = vpop.f32.mrf.mxu0
    %v5153 = vadd.f32 0.0, %v5152
    %v5154 = vpop.f32.mrf.mxu0
    %v5155 = vadd.f32 0.0, %v5154
    %v5156 = vpop.f32.mrf.mxu0
    %v5157 = vadd.f32 0.0, %v5156
    %v5158 = vpop.f32.mrf.mxu0
    %v5159 = vadd.f32 0.0, %v5158
    %5160 = vmatprep.mubr.bf16.mxu0 %v4740
    %5161 = vmatmul.mubr.bf16.gmra.mxu0 %v4739
    %v5162 = vpop.f32.mrf.mxu0
    %v5163 = vadd.f32 0.0, %v5162
    %v5164 = vpop.f32.mrf.mxu0
    %v5165 = vadd.f32 0.0, %v5164
    %v5166 = vpop.f32.mrf.mxu0
    %v5167 = vadd.f32 0.0, %v5166
    %v5168 = vpop.f32.mrf.mxu0
    %v5169 = vadd.f32 0.0, %v5168
    %5170 = vdwg.mxu0
    %v5171 = vadd.f32 %v4666, %v5100
    %v5172 = vadd.f32 %v4668, %v5102
    %v5173 = vadd.f32 %v4719, %v5153
    %v5174 = vadd.f32 %v4721, %v5155
    %v5175 = vadd.f32 %v4670, %v5104
    %v5176 = vadd.f32 %v4672, %v5106
    %v5177 = vadd.f32 %v4723, %v5157
    %v5178 = vadd.f32 %v4725, %v5159
    %v5179 = vadd.f32 %v4676, %v5110
    %v5180 = vadd.f32 %v4678, %v5112
    %v5181 = vadd.f32 %v4729, %v5163
    %v5182 = vadd.f32 %v4731, %v5165
    %v5183 = vadd.f32 %v4680, %v5114
    %v5184 = vadd.f32 %v4682, %v5116
    %v5185 = vadd.f32 %v4733, %v5167
    %v5186 = vadd.f32 %v4735, %v5169
    %v5187 = vpack.c.b16 %v3861, %v3859
    %v5188 = vpack.c.b16 %v3862, %v3860
    %v5189 = vpack.c.b16 %v3865, %v3863
    %v5190 = vpack.c.b16 %v3866, %v3864
    %v5259 = vunpack.c.l.b16 %v359
    %v5260 = vunpack.c.h.b16 %v359
    %v5261 = vunpack.c.l.b16 %v360
    %v5262 = vunpack.c.h.b16 %v360
    %v5263 = vunpack.c.l.b16 %v361
    %v5264 = vunpack.c.h.b16 %v361
    %v5265 = vunpack.c.l.b16 %v362
    %v5266 = vunpack.c.h.b16 %v362
    %v5267 = vunpack.c.l.b16 %v363
    %v5268 = vunpack.c.h.b16 %v363
    %v5269 = vunpack.c.l.b16 %v364
    %v5270 = vunpack.c.h.b16 %v364
    %v5271 = vunpack.c.l.b16 %v365
    %v5272 = vunpack.c.h.b16 %v365
    %v5273 = vunpack.c.l.b16 %v366
    %v5274 = vunpack.c.h.b16 %v366
    %v5275 = vunpack.c.l.b16 %v367
    %v5276 = vunpack.c.h.b16 %v367
    %v5277 = vunpack.c.l.b16 %v368
    %v5278 = vunpack.c.h.b16 %v368
    %v5279 = vunpack.c.l.b16 %v369
    %v5280 = vunpack.c.h.b16 %v369
    %v5281 = vunpack.c.l.b16 %v370
    %v5282 = vunpack.c.h.b16 %v370
    %v5283 = vunpack.c.l.b16 %v371
    %v5284 = vunpack.c.h.b16 %v371
    %v5285 = vunpack.c.l.b16 %v372
    %v5286 = vunpack.c.h.b16 %v372
    %v5287 = vunpack.c.l.b16 %v373
    %v5288 = vunpack.c.h.b16 %v373
    %v5289 = vunpack.c.l.b16 %v374
    %v5290 = vunpack.c.h.b16 %v374
    %v5291 = vunpack.c.l.b16 %v375
    %v5292 = vunpack.c.h.b16 %v375
    %v5293 = vunpack.c.l.b16 %v376
    %v5294 = vunpack.c.h.b16 %v376
    %v5295 = vunpack.c.l.b16 %v377
    %v5296 = vunpack.c.h.b16 %v377
    %v5297 = vunpack.c.l.b16 %v378
    %v5298 = vunpack.c.h.b16 %v378
    %v5299 = vunpack.c.l.b16 %v379
    %v5300 = vunpack.c.h.b16 %v379
    %v5301 = vunpack.c.l.b16 %v380
    %v5302 = vunpack.c.h.b16 %v380
    %v5303 = vunpack.c.l.b16 %v381
    %v5304 = vunpack.c.h.b16 %v381
    %v5305 = vunpack.c.l.b16 %v382
    %v5306 = vunpack.c.h.b16 %v382
    %v5307 = vunpack.c.l.b16 %v383
    %v5308 = vunpack.c.h.b16 %v383
    %v5309 = vunpack.c.l.b16 %v384
    %v5310 = vunpack.c.h.b16 %v384
    %v5311 = vunpack.c.l.b16 %v385
    %v5312 = vunpack.c.h.b16 %v385
    %v5313 = vunpack.c.l.b16 %v386
    %v5314 = vunpack.c.h.b16 %v386
    %v5315 = vunpack.c.l.b16 %v387
    %v5316 = vunpack.c.h.b16 %v387
    %v5317 = vunpack.c.l.b16 %v388
    %v5318 = vunpack.c.h.b16 %v388
    %v5319 = vunpack.c.l.b16 %v389
    %v5320 = vunpack.c.h.b16 %v389
    %v5321 = vunpack.c.l.b16 %v390
    %v5322 = vunpack.c.h.b16 %v390
    %v5323 = vunpack.c.l.b16 %v391
    %v5324 = vunpack.c.h.b16 %v391
    %v5325 = vunpack.c.l.b16 %v392
    %v5326 = vunpack.c.h.b16 %v392
    %v5327 = vunpack.c.l.b16 %v393
    %v5328 = vunpack.c.h.b16 %v393
    %v5329 = vunpack.c.l.b16 %v394
    %v5330 = vunpack.c.h.b16 %v394
    %v5331 = vunpack.c.l.b16 %v395
    %v5332 = vunpack.c.h.b16 %v395
    %v5333 = vunpack.c.l.b16 %v396
    %v5334 = vunpack.c.h.b16 %v396
    %v5335 = vunpack.c.l.b16 %v397
    %v5336 = vunpack.c.h.b16 %v397
    %v5337 = vunpack.c.l.b16 %v398
    %v5338 = vunpack.c.h.b16 %v398
    %v5339 = vunpack.c.l.b16 %v399
    %v5340 = vunpack.c.h.b16 %v399
    %v5341 = vunpack.c.l.b16 %v400
    %v5342 = vunpack.c.h.b16 %v400
    %v5343 = vunpack.c.l.b16 %v401
    %v5344 = vunpack.c.h.b16 %v401
    %v5345 = vunpack.c.l.b16 %v402
    %v5346 = vunpack.c.h.b16 %v402
    %v5347 = vunpack.c.l.b16 %v403
    %v5348 = vunpack.c.h.b16 %v403
    %v5349 = vunpack.c.l.b16 %v404
    %v5350 = vunpack.c.h.b16 %v404
    %v5351 = vunpack.c.l.b16 %v405
    %v5352 = vunpack.c.h.b16 %v405
    %v5353 = vunpack.c.l.b16 %v406
    %v5354 = vunpack.c.h.b16 %v406
    %v5355 = vunpack.c.l.b16 %v407
    %v5356 = vunpack.c.h.b16 %v407
    %v5357 = vunpack.c.l.b16 %v408
    %v5358 = vunpack.c.h.b16 %v408
    %v5359 = vunpack.c.l.b16 %v409
    %v5360 = vunpack.c.h.b16 %v409
    %v5361 = vunpack.c.l.b16 %v410
    %v5362 = vunpack.c.h.b16 %v410
    %v5363 = vunpack.c.l.b16 %v411
    %v5364 = vunpack.c.h.b16 %v411
    %v5365 = vunpack.c.l.b16 %v412
    %v5366 = vunpack.c.h.b16 %v412
    %v5367 = vunpack.c.l.b16 %v413
    %v5368 = vunpack.c.h.b16 %v413
    %v5369 = vunpack.c.l.b16 %v414
    %v5370 = vunpack.c.h.b16 %v414
    %v5371 = vunpack.c.l.b16 %v415
    %v5372 = vunpack.c.h.b16 %v415
    %v5373 = vunpack.c.l.b16 %v416
    %v5374 = vunpack.c.h.b16 %v416
    %v5375 = vunpack.c.l.b16 %v417
    %v5376 = vunpack.c.h.b16 %v417
    %v5377 = vunpack.c.l.b16 %v418
    %v5378 = vunpack.c.h.b16 %v418
    %v5379 = vunpack.c.l.b16 %v419
    %v5380 = vunpack.c.h.b16 %v419
    %v5381 = vunpack.c.l.b16 %v420
    %v5382 = vunpack.c.h.b16 %v420
    %v5383 = vunpack.c.l.b16 %v421
    %v5384 = vunpack.c.h.b16 %v421
    %v5385 = vunpack.c.l.b16 %v422
    %v5386 = vunpack.c.h.b16 %v422
    %v5387 = vpack.c.b16 %v5263, %v5259
    %v5388 = vpack.c.b16 %v5264, %v5260
    %v5389 = vpack.c.b16 %v5265, %v5261
    %v5390 = vpack.c.b16 %v5266, %v5262
    %v5391 = vpack.c.b16 %v5271, %v5267
    %v5392 = vpack.c.b16 %v5272, %v5268
    %v5393 = vpack.c.b16 %v5273, %v5269
    %v5394 = vpack.c.b16 %v5274, %v5270
    %v5395 = vpack.c.b16 %v5279, %v5275
    %v5396 = vpack.c.b16 %v5280, %v5276
    %v5397 = vpack.c.b16 %v5281, %v5277
    %v5398 = vpack.c.b16 %v5282, %v5278
    %v5399 = vpack.c.b16 %v5287, %v5283
    %v5400 = vpack.c.b16 %v5288, %v5284
    %v5401 = vpack.c.b16 %v5289, %v5285
    %v5402 = vpack.c.b16 %v5290, %v5286
    %v5403 = vpack.c.b16 %v5295, %v5291
    %v5404 = vpack.c.b16 %v5296, %v5292
    %v5405 = vpack.c.b16 %v5297, %v5293
    %v5406 = vpack.c.b16 %v5298, %v5294
    %v5407 = vpack.c.b16 %v5303, %v5299
    %v5408 = vpack.c.b16 %v5304, %v5300
    %v5409 = vpack.c.b16 %v5305, %v5301
    %v5410 = vpack.c.b16 %v5306, %v5302
    %v5411 = vpack.c.b16 %v5311, %v5307
    %v5412 = vpack.c.b16 %v5312, %v5308
    %v5413 = vpack.c.b16 %v5313, %v5309
    %v5414 = vpack.c.b16 %v5314, %v5310
    %v5415 = vpack.c.b16 %v5319, %v5315
    %v5416 = vpack.c.b16 %v5320, %v5316
    %v5417 = vpack.c.b16 %v5321, %v5317
    %v5418 = vpack.c.b16 %v5322, %v5318
    %v5419 = vpack.c.b16 %v5327, %v5323
    %v5420 = vpack.c.b16 %v5328, %v5324
    %v5421 = vpack.c.b16 %v5329, %v5325
    %v5422 = vpack.c.b16 %v5330, %v5326
    %v5423 = vpack.c.b16 %v5335, %v5331
    %v5424 = vpack.c.b16 %v5336, %v5332
    %v5425 = vpack.c.b16 %v5337, %v5333
    %v5426 = vpack.c.b16 %v5338, %v5334
    %v5427 = vpack.c.b16 %v5343, %v5339
    %v5428 = vpack.c.b16 %v5344, %v5340
    %v5429 = vpack.c.b16 %v5345, %v5341
    %v5430 = vpack.c.b16 %v5346, %v5342
    %v5431 = vpack.c.b16 %v5351, %v5347
    %v5432 = vpack.c.b16 %v5352, %v5348
    %v5433 = vpack.c.b16 %v5353, %v5349
    %v5434 = vpack.c.b16 %v5354, %v5350
    %v5435 = vpack.c.b16 %v5359, %v5355
    %v5436 = vpack.c.b16 %v5360, %v5356
    %v5437 = vpack.c.b16 %v5361, %v5357
    %v5438 = vpack.c.b16 %v5362, %v5358
    %v5439 = vpack.c.b16 %v5367, %v5363
    %v5440 = vpack.c.b16 %v5368, %v5364
    %v5441 = vpack.c.b16 %v5369, %v5365
    %v5442 = vpack.c.b16 %v5370, %v5366
    %v5443 = vpack.c.b16 %v5375, %v5371
    %v5444 = vpack.c.b16 %v5376, %v5372
    %v5445 = vpack.c.b16 %v5377, %v5373
    %v5446 = vpack.c.b16 %v5378, %v5374
    %v5447 = vpack.c.b16 %v5383, %v5379
    %v5448 = vpack.c.b16 %v5384, %v5380
    %v5449 = vpack.c.b16 %v5385, %v5381
    %v5450 = vpack.c.b16 %v5386, %v5382
    %5515 = vmatprep.subr.bf16.mxu0 %v5416
    %5516 = vmatpush1.bf16.msra.mxu0 %v5415
    %5517 = vmatprep.subr.bf16.mxu0 %v5412
    %5518 = vmatpush1.bf16.msra.mxu0 %v5411
    %5519 = vmatprep.subr.bf16.mxu0 %v5408
    %5520 = vmatpush1.bf16.msra.mxu0 %v5407
    %5521 = vmatprep.subr.bf16.mxu0 %v5404
    %5522 = vmatpush1.bf16.msra.mxu0 %v5403
    %5523 = vmatprep.subr.bf16.mxu0 %v5400
    %5524 = vmatpush1.bf16.msra.mxu0 %v5399
    %5525 = vmatprep.subr.bf16.mxu0 %v5396
    %5526 = vmatpush1.bf16.msra.mxu0 %v5395
    %5527 = vmatprep.subr.bf16.mxu0 %v5392
    %5528 = vmatpush1.bf16.msra.mxu0 %v5391
    %5529 = vmatprep.subr.bf16.mxu0 %v5388
    %5530 = vmatpush1.bf16.msra.mxu0 %v5387
    %5531 = vmatprep.subr.bf16.mxu0 %v5448
    %5532 = vmatpush2.bf16.msra.mxu0 %v5447
    %5533 = vmatprep.subr.bf16.mxu0 %v5444
    %5534 = vmatpush2.bf16.msra.mxu0 %v5443
    %5535 = vmatprep.subr.bf16.mxu0 %v5440
    %5536 = vmatpush2.bf16.msra.mxu0 %v5439
    %5537 = vmatprep.subr.bf16.mxu0 %v5436
    %5538 = vmatpush2.bf16.msra.mxu0 %v5435
    %5539 = vmatprep.subr.bf16.mxu0 %v5432
    %5540 = vmatpush2.bf16.msra.mxu0 %v5431
    %5541 = vmatprep.subr.bf16.mxu0 %v5428
    %5542 = vmatpush2.bf16.msra.mxu0 %v5427
    %5543 = vmatprep.subr.bf16.mxu0 %v5424
    %5544 = vmatpush2.bf16.msra.mxu0 %v5423
    %5545 = vmatprep.subr.bf16.mxu0 %v5420
    %5546 = vmatpush2.bf16.msra.mxu0 %v5419
    %5547 = vmatprep.mubr.bf16.mxu0 %v5188
    %5548 = vmatmul.mubr.bf16.gmra.mxu0 %v5187
    %v5549 = vpop.f32.mrf.mxu0
    %v5550 = vadd.f32 0.0, %v5549
    %v5551 = vpop.f32.mrf.mxu0
    %v5552 = vadd.f32 0.0, %v5551
    %v5553 = vpop.f32.mrf.mxu0
    %v5554 = vadd.f32 0.0, %v5553
    %v5555 = vpop.f32.mrf.mxu0
    %v5556 = vadd.f32 0.0, %v5555
    %5557 = vmatprep.mubr.bf16.mxu0 %v5190
    %5558 = vmatmul.mubr.bf16.gmra.mxu0 %v5189
    %v5559 = vpop.f32.mrf.mxu0
    %v5560 = vadd.f32 0.0, %v5559
    %v5561 = vpop.f32.mrf.mxu0
    %v5562 = vadd.f32 0.0, %v5561
    %v5563 = vpop.f32.mrf.mxu0
    %v5564 = vadd.f32 0.0, %v5563
    %v5565 = vpop.f32.mrf.mxu0
    %v5566 = vadd.f32 0.0, %v5565
    %5567 = vdwg.mxu0
    %5568 = vmatprep.subr.bf16.mxu0 %v5418
    %5569 = vmatpush1.bf16.msra.mxu0 %v5417
    %5570 = vmatprep.subr.bf16.mxu0 %v5414
    %5571 = vmatpush1.bf16.msra.mxu0 %v5413
    %5572 = vmatprep.subr.bf16.mxu0 %v5410
    %5573 = vmatpush1.bf16.msra.mxu0 %v5409
    %5574 = vmatprep.subr.bf16.mxu0 %v5406
    %5575 = vmatpush1.bf16.msra.mxu0 %v5405
    %5576 = vmatprep.subr.bf16.mxu0 %v5402
    %5577 = vmatpush1.bf16.msra.mxu0 %v5401
    %5578 = vmatprep.subr.bf16.mxu0 %v5398
    %5579 = vmatpush1.bf16.msra.mxu0 %v5397
    %5580 = vmatprep.subr.bf16.mxu0 %v5394
    %5581 = vmatpush1.bf16.msra.mxu0 %v5393
    %5582 = vmatprep.subr.bf16.mxu0 %v5390
    %5583 = vmatpush1.bf16.msra.mxu0 %v5389
    %5584 = vmatprep.subr.bf16.mxu0 %v5450
    %5585 = vmatpush2.bf16.msra.mxu0 %v5449
    %5586 = vmatprep.subr.bf16.mxu0 %v5446
    %5587 = vmatpush2.bf16.msra.mxu0 %v5445
    %5588 = vmatprep.subr.bf16.mxu0 %v5442
    %5589 = vmatpush2.bf16.msra.mxu0 %v5441
    %5590 = vmatprep.subr.bf16.mxu0 %v5438
    %5591 = vmatpush2.bf16.msra.mxu0 %v5437
    %5592 = vmatprep.subr.bf16.mxu0 %v5434
    %5593 = vmatpush2.bf16.msra.mxu0 %v5433
    %5594 = vmatprep.subr.bf16.mxu0 %v5430
    %5595 = vmatpush2.bf16.msra.mxu0 %v5429
    %5596 = vmatprep.subr.bf16.mxu0 %v5426
    %5597 = vmatpush2.bf16.msra.mxu0 %v5425
    %5598 = vmatprep.subr.bf16.mxu0 %v5422
    %5599 = vmatpush2.bf16.msra.mxu0 %v5421
    %5600 = vmatprep.mubr.bf16.mxu0 %v5188
    %5601 = vmatmul.mubr.bf16.gmra.mxu0 %v5187
    %v5602 = vpop.f32.mrf.mxu0
    %v5603 = vadd.f32 0.0, %v5602
    %v5604 = vpop.f32.mrf.mxu0
    %v5605 = vadd.f32 0.0, %v5604
    %v5606 = vpop.f32.mrf.mxu0
    %v5607 = vadd.f32 0.0, %v5606
    %v5608 = vpop.f32.mrf.mxu0
    %v5609 = vadd.f32 0.0, %v5608
    %5610 = vmatprep.mubr.bf16.mxu0 %v5190
    %5611 = vmatmul.mubr.bf16.gmra.mxu0 %v5189
    %v5612 = vpop.f32.mrf.mxu0
    %v5613 = vadd.f32 0.0, %v5612
    %v5614 = vpop.f32.mrf.mxu0
    %v5615 = vadd.f32 0.0, %v5614
    %v5616 = vpop.f32.mrf.mxu0
    %v5617 = vadd.f32 0.0, %v5616
    %v5618 = vpop.f32.mrf.mxu0
    %v5619 = vadd.f32 0.0, %v5618
    %5620 = vdwg.mxu0
    %v5621 = vadd.f32 %v5171, %v5550
    %v5622 = vadd.f32 %v5172, %v5552
    %v5623 = vadd.f32 %v5173, %v5603
    %v5624 = vadd.f32 %v5174, %v5605
    %v5625 = vadd.f32 %v5175, %v5554
    %v5626 = vadd.f32 %v5176, %v5556
    %v5627 = vadd.f32 %v5177, %v5607
    %v5628 = vadd.f32 %v5178, %v5609
    %v5629 = vadd.f32 %v5179, %v5560
    %v5630 = vadd.f32 %v5180, %v5562
    %v5631 = vadd.f32 %v5181, %v5613
    %v5632 = vadd.f32 %v5182, %v5615
    %v5633 = vadd.f32 %v5183, %v5564
    %v5634 = vadd.f32 %v5184, %v5566
    %v5635 = vadd.f32 %v5185, %v5617
    %v5636 = vadd.f32 %v5186, %v5619
    %v5637 = vpack.c.b16 %v2341, %v2339
    %v5638 = vpack.c.b16 %v2342, %v2340
    %v5705 = vunpack.c.l.b16 %v424
    %v5706 = vunpack.c.h.b16 %v424
    %v5707 = vunpack.c.l.b16 %v425
    %v5708 = vunpack.c.h.b16 %v425
    %v5709 = vunpack.c.l.b16 %v426
    %v5710 = vunpack.c.h.b16 %v426
    %v5711 = vunpack.c.l.b16 %v427
    %v5712 = vunpack.c.h.b16 %v427
    %v5713 = vunpack.c.l.b16 %v428
    %v5714 = vunpack.c.h.b16 %v428
    %v5715 = vunpack.c.l.b16 %v429
    %v5716 = vunpack.c.h.b16 %v429
    %v5717 = vunpack.c.l.b16 %v430
    %v5718 = vunpack.c.h.b16 %v430
    %v5719 = vunpack.c.l.b16 %v431
    %v5720 = vunpack.c.h.b16 %v431
    %v5721 = vunpack.c.l.b16 %v432
    %v5722 = vunpack.c.h.b16 %v432
    %v5723 = vunpack.c.l.b16 %v433
    %v5724 = vunpack.c.h.b16 %v433
    %v5725 = vunpack.c.l.b16 %v434
    %v5726 = vunpack.c.h.b16 %v434
    %v5727 = vunpack.c.l.b16 %v435
    %v5728 = vunpack.c.h.b16 %v435
    %v5729 = vunpack.c.l.b16 %v436
    %v5730 = vunpack.c.h.b16 %v436
    %v5731 = vunpack.c.l.b16 %v437
    %v5732 = vunpack.c.h.b16 %v437
    %v5733 = vunpack.c.l.b16 %v438
    %v5734 = vunpack.c.h.b16 %v438
    %v5735 = vunpack.c.l.b16 %v439
    %v5736 = vunpack.c.h.b16 %v439
    %v5737 = vunpack.c.l.b16 %v440
    %v5738 = vunpack.c.h.b16 %v440
    %v5739 = vunpack.c.l.b16 %v441
    %v5740 = vunpack.c.h.b16 %v441
    %v5741 = vunpack.c.l.b16 %v442
    %v5742 = vunpack.c.h.b16 %v442
    %v5743 = vunpack.c.l.b16 %v443
    %v5744 = vunpack.c.h.b16 %v443
    %v5745 = vunpack.c.l.b16 %v444
    %v5746 = vunpack.c.h.b16 %v444
    %v5747 = vunpack.c.l.b16 %v445
    %v5748 = vunpack.c.h.b16 %v445
    %v5749 = vunpack.c.l.b16 %v446
    %v5750 = vunpack.c.h.b16 %v446
    %v5751 = vunpack.c.l.b16 %v447
    %v5752 = vunpack.c.h.b16 %v447
    %v5753 = vunpack.c.l.b16 %v448
    %v5754 = vunpack.c.h.b16 %v448
    %v5755 = vunpack.c.l.b16 %v449
    %v5756 = vunpack.c.h.b16 %v449
    %v5757 = vunpack.c.l.b16 %v450
    %v5758 = vunpack.c.h.b16 %v450
    %v5759 = vunpack.c.l.b16 %v451
    %v5760 = vunpack.c.h.b16 %v451
    %v5761 = vunpack.c.l.b16 %v452
    %v5762 = vunpack.c.h.b16 %v452
    %v5763 = vunpack.c.l.b16 %v453
    %v5764 = vunpack.c.h.b16 %v453
    %v5765 = vunpack.c.l.b16 %v454
    %v5766 = vunpack.c.h.b16 %v454
    %v5767 = vunpack.c.l.b16 %v455
    %v5768 = vunpack.c.h.b16 %v455
    %v5769 = vunpack.c.l.b16 %v456
    %v5770 = vunpack.c.h.b16 %v456
    %v5771 = vunpack.c.l.b16 %v457
    %v5772 = vunpack.c.h.b16 %v457
    %v5773 = vunpack.c.l.b16 %v458
    %v5774 = vunpack.c.h.b16 %v458
    %v5775 = vunpack.c.l.b16 %v459
    %v5776 = vunpack.c.h.b16 %v459
    %v5777 = vunpack.c.l.b16 %v460
    %v5778 = vunpack.c.h.b16 %v460
    %v5779 = vunpack.c.l.b16 %v461
    %v5780 = vunpack.c.h.b16 %v461
    %v5781 = vunpack.c.l.b16 %v462
    %v5782 = vunpack.c.h.b16 %v462
    %v5783 = vunpack.c.l.b16 %v463
    %v5784 = vunpack.c.h.b16 %v463
    %v5785 = vunpack.c.l.b16 %v464
    %v5786 = vunpack.c.h.b16 %v464
    %v5787 = vunpack.c.l.b16 %v465
    %v5788 = vunpack.c.h.b16 %v465
    %v5789 = vunpack.c.l.b16 %v466
    %v5790 = vunpack.c.h.b16 %v466
    %v5791 = vunpack.c.l.b16 %v467
    %v5792 = vunpack.c.h.b16 %v467
    %v5793 = vunpack.c.l.b16 %v468
    %v5794 = vunpack.c.h.b16 %v468
    %v5795 = vunpack.c.l.b16 %v469
    %v5796 = vunpack.c.h.b16 %v469
    %v5797 = vunpack.c.l.b16 %v470
    %v5798 = vunpack.c.h.b16 %v470
    %v5799 = vunpack.c.l.b16 %v471
    %v5800 = vunpack.c.h.b16 %v471
    %v5801 = vunpack.c.l.b16 %v472
    %v5802 = vunpack.c.h.b16 %v472
    %v5803 = vunpack.c.l.b16 %v473
    %v5804 = vunpack.c.h.b16 %v473
    %v5805 = vunpack.c.l.b16 %v474
    %v5806 = vunpack.c.h.b16 %v474
    %v5807 = vunpack.c.l.b16 %v475
    %v5808 = vunpack.c.h.b16 %v475
    %v5809 = vunpack.c.l.b16 %v476
    %v5810 = vunpack.c.h.b16 %v476
    %v5811 = vunpack.c.l.b16 %v477
    %v5812 = vunpack.c.h.b16 %v477
    %v5813 = vunpack.c.l.b16 %v478
    %v5814 = vunpack.c.h.b16 %v478
    %v5815 = vunpack.c.l.b16 %v479
    %v5816 = vunpack.c.h.b16 %v479
    %v5817 = vunpack.c.l.b16 %v480
    %v5818 = vunpack.c.h.b16 %v480
    %v5819 = vunpack.c.l.b16 %v481
    %v5820 = vunpack.c.h.b16 %v481
    %v5821 = vunpack.c.l.b16 %v482
    %v5822 = vunpack.c.h.b16 %v482
    %v5823 = vunpack.c.l.b16 %v483
    %v5824 = vunpack.c.h.b16 %v483
    %v5825 = vunpack.c.l.b16 %v484
    %v5826 = vunpack.c.h.b16 %v484
    %v5827 = vunpack.c.l.b16 %v485
    %v5828 = vunpack.c.h.b16 %v485
    %v5829 = vunpack.c.l.b16 %v486
    %v5830 = vunpack.c.h.b16 %v486
    %v5831 = vunpack.c.l.b16 %v487
    %v5832 = vunpack.c.h.b16 %v487
    %v5833 = vpack.c.b16 %v5709, %v5705
    %v5834 = vpack.c.b16 %v5710, %v5706
    %v5835 = vpack.c.b16 %v5711, %v5707
    %v5836 = vpack.c.b16 %v5712, %v5708
    %v5837 = vpack.c.b16 %v5717, %v5713
    %v5838 = vpack.c.b16 %v5718, %v5714
    %v5839 = vpack.c.b16 %v5719, %v5715
    %v5840 = vpack.c.b16 %v5720, %v5716
    %v5841 = vpack.c.b16 %v5725, %v5721
    %v5842 = vpack.c.b16 %v5726, %v5722
    %v5843 = vpack.c.b16 %v5727, %v5723
    %v5844 = vpack.c.b16 %v5728, %v5724
    %v5845 = vpack.c.b16 %v5733, %v5729
    %v5846 = vpack.c.b16 %v5734, %v5730
    %v5847 = vpack.c.b16 %v5735, %v5731
    %v5848 = vpack.c.b16 %v5736, %v5732
    %v5849 = vpack.c.b16 %v5741, %v5737
    %v5850 = vpack.c.b16 %v5742, %v5738
    %v5851 = vpack.c.b16 %v5743, %v5739
    %v5852 = vpack.c.b16 %v5744, %v5740
    %v5853 = vpack.c.b16 %v5749, %v5745
    %v5854 = vpack.c.b16 %v5750, %v5746
    %v5855 = vpack.c.b16 %v5751, %v5747
    %v5856 = vpack.c.b16 %v5752, %v5748
    %v5857 = vpack.c.b16 %v5757, %v5753
    %v5858 = vpack.c.b16 %v5758, %v5754
    %v5859 = vpack.c.b16 %v5759, %v5755
    %v5860 = vpack.c.b16 %v5760, %v5756
    %v5861 = vpack.c.b16 %v5765, %v5761
    %v5862 = vpack.c.b16 %v5766, %v5762
    %v5863 = vpack.c.b16 %v5767, %v5763
    %v5864 = vpack.c.b16 %v5768, %v5764
    %v5865 = vpack.c.b16 %v5773, %v5769
    %v5866 = vpack.c.b16 %v5774, %v5770
    %v5867 = vpack.c.b16 %v5775, %v5771
    %v5868 = vpack.c.b16 %v5776, %v5772
    %v5869 = vpack.c.b16 %v5781, %v5777
    %v5870 = vpack.c.b16 %v5782, %v5778
    %v5871 = vpack.c.b16 %v5783, %v5779
    %v5872 = vpack.c.b16 %v5784, %v5780
    %v5873 = vpack.c.b16 %v5789, %v5785
    %v5874 = vpack.c.b16 %v5790, %v5786
    %v5875 = vpack.c.b16 %v5791, %v5787
    %v5876 = vpack.c.b16 %v5792, %v5788
    %v5877 = vpack.c.b16 %v5797, %v5793
    %v5878 = vpack.c.b16 %v5798, %v5794
    %v5879 = vpack.c.b16 %v5799, %v5795
    %v5880 = vpack.c.b16 %v5800, %v5796
    %v5881 = vpack.c.b16 %v5805, %v5801
    %v5882 = vpack.c.b16 %v5806, %v5802
    %v5883 = vpack.c.b16 %v5807, %v5803
    %v5884 = vpack.c.b16 %v5808, %v5804
    %v5885 = vpack.c.b16 %v5813, %v5809
    %v5886 = vpack.c.b16 %v5814, %v5810
    %v5887 = vpack.c.b16 %v5815, %v5811
    %v5888 = vpack.c.b16 %v5816, %v5812
    %v5889 = vpack.c.b16 %v5821, %v5817
    %v5890 = vpack.c.b16 %v5822, %v5818
    %v5891 = vpack.c.b16 %v5823, %v5819
    %v5892 = vpack.c.b16 %v5824, %v5820
    %v5893 = vpack.c.b16 %v5829, %v5825
    %v5894 = vpack.c.b16 %v5830, %v5826
    %v5895 = vpack.c.b16 %v5831, %v5827
    %v5896 = vpack.c.b16 %v5832, %v5828
    %5961 = vmatprep.subr.bf16.mxu0 %v5862
    %5962 = vmatpush1.bf16.msra.mxu0 %v5861
    %5963 = vmatprep.subr.bf16.mxu0 %v5858
    %5964 = vmatpush1.bf16.msra.mxu0 %v5857
    %5965 = vmatprep.subr.bf16.mxu0 %v5854
    %5966 = vmatpush1.bf16.msra.mxu0 %v5853
    %5967 = vmatprep.subr.bf16.mxu0 %v5850
    %5968 = vmatpush1.bf16.msra.mxu0 %v5849
    %5969 = vmatprep.subr.bf16.mxu0 %v5846
    %5970 = vmatpush1.bf16.msra.mxu0 %v5845
    %5971 = vmatprep.subr.bf16.mxu0 %v5842
    %5972 = vmatpush1.bf16.msra.mxu0 %v5841
    %5973 = vmatprep.subr.bf16.mxu0 %v5838
    %5974 = vmatpush1.bf16.msra.mxu0 %v5837
    %5975 = vmatprep.subr.bf16.mxu0 %v5834
    %5976 = vmatpush1.bf16.msra.mxu0 %v5833
    %5977 = vmatprep.subr.bf16.mxu0 %v5894
    %5978 = vmatpush2.bf16.msra.mxu0 %v5893
    %5979 = vmatprep.subr.bf16.mxu0 %v5890
    %5980 = vmatpush2.bf16.msra.mxu0 %v5889
    %5981 = vmatprep.subr.bf16.mxu0 %v5886
    %5982 = vmatpush2.bf16.msra.mxu0 %v5885
    %5983 = vmatprep.subr.bf16.mxu0 %v5882
    %5984 = vmatpush2.bf16.msra.mxu0 %v5881
    %5985 = vmatprep.subr.bf16.mxu0 %v5878
    %5986 = vmatpush2.bf16.msra.mxu0 %v5877
    %5987 = vmatprep.subr.bf16.mxu0 %v5874
    %5988 = vmatpush2.bf16.msra.mxu0 %v5873
    %5989 = vmatprep.subr.bf16.mxu0 %v5870
    %5990 = vmatpush2.bf16.msra.mxu0 %v5869
    %5991 = vmatprep.subr.bf16.mxu0 %v5866
    %5992 = vmatpush2.bf16.msra.mxu0 %v5865
    %5993 = vmatprep.mubr.bf16.mxu0 %v4306
    %5994 = vmatmul.mubr.bf16.gmra.mxu0 %v4305
    %v5995 = vpop.f32.mrf.mxu0
    %v5996 = vadd.f32 0.0, %v5995
    %v5997 = vpop.f32.mrf.mxu0
    %v5998 = vadd.f32 0.0, %v5997
    %v5999 = vpop.f32.mrf.mxu0
    %v6000 = vadd.f32 0.0, %v5999
    %v6001 = vpop.f32.mrf.mxu0
    %v6002 = vadd.f32 0.0, %v6001
    %6003 = vmatprep.mubr.bf16.mxu0 %v5638
    %6004 = vmatmul.mubr.bf16.gmra.mxu0 %v5637
    %v6005 = vpop.f32.mrf.mxu0
    %v6006 = vadd.f32 0.0, %v6005
    %v6007 = vpop.f32.mrf.mxu0
    %v6008 = vadd.f32 0.0, %v6007
    %v6009 = vpop.f32.mrf.mxu0
    %v6010 = vadd.f32 0.0, %v6009
    %v6011 = vpop.f32.mrf.mxu0
    %v6012 = vadd.f32 0.0, %v6011
    %6013 = vdwg.mxu0
    %6014 = vmatprep.subr.bf16.mxu0 %v5864
    %6015 = vmatpush1.bf16.msra.mxu0 %v5863
    %6016 = vmatprep.subr.bf16.mxu0 %v5860
    %6017 = vmatpush1.bf16.msra.mxu0 %v5859
    %6018 = vmatprep.subr.bf16.mxu0 %v5856
    %6019 = vmatpush1.bf16.msra.mxu0 %v5855
    %6020 = vmatprep.subr.bf16.mxu0 %v5852
    %6021 = vmatpush1.bf16.msra.mxu0 %v5851
    %6022 = vmatprep.subr.bf16.mxu0 %v5848
    %6023 = vmatpush1.bf16.msra.mxu0 %v5847
    %6024 = vmatprep.subr.bf16.mxu0 %v5844
    %6025 = vmatpush1.bf16.msra.mxu0 %v5843
    %6026 = vmatprep.subr.bf16.mxu0 %v5840
    %6027 = vmatpush1.bf16.msra.mxu0 %v5839
    %6028 = vmatprep.subr.bf16.mxu0 %v5836
    %6029 = vmatpush1.bf16.msra.mxu0 %v5835
    %6030 = vmatprep.subr.bf16.mxu0 %v5896
    %6031 = vmatpush2.bf16.msra.mxu0 %v5895
    %6032 = vmatprep.subr.bf16.mxu0 %v5892
    %6033 = vmatpush2.bf16.msra.mxu0 %v5891
    %6034 = vmatprep.subr.bf16.mxu0 %v5888
    %6035 = vmatpush2.bf16.msra.mxu0 %v5887
    %6036 = vmatprep.subr.bf16.mxu0 %v5884
    %6037 = vmatpush2.bf16.msra.mxu0 %v5883
    %6038 = vmatprep.subr.bf16.mxu0 %v5880
    %6039 = vmatpush2.bf16.msra.mxu0 %v5879
    %6040 = vmatprep.subr.bf16.mxu0 %v5876
    %6041 = vmatpush2.bf16.msra.mxu0 %v5875
    %6042 = vmatprep.subr.bf16.mxu0 %v5872
    %6043 = vmatpush2.bf16.msra.mxu0 %v5871
    %6044 = vmatprep.subr.bf16.mxu0 %v5868
    %6045 = vmatpush2.bf16.msra.mxu0 %v5867
    %6046 = vmatprep.mubr.bf16.mxu0 %v4306
    %6047 = vmatmul.mubr.bf16.gmra.mxu0 %v4305
    %v6048 = vpop.f32.mrf.mxu0
    %v6049 = vadd.f32 0.0, %v6048
    %v6050 = vpop.f32.mrf.mxu0
    %v6051 = vadd.f32 0.0, %v6050
    %v6052 = vpop.f32.mrf.mxu0
    %v6053 = vadd.f32 0.0, %v6052
    %v6054 = vpop.f32.mrf.mxu0
    %v6055 = vadd.f32 0.0, %v6054
    %6056 = vmatprep.mubr.bf16.mxu0 %v5638
    %6057 = vmatmul.mubr.bf16.gmra.mxu0 %v5637
    %v6058 = vpop.f32.mrf.mxu0
    %v6059 = vadd.f32 0.0, %v6058
    %v6060 = vpop.f32.mrf.mxu0
    %v6061 = vadd.f32 0.0, %v6060
    %v6062 = vpop.f32.mrf.mxu0
    %v6063 = vadd.f32 0.0, %v6062
    %v6064 = vpop.f32.mrf.mxu0
    %v6065 = vadd.f32 0.0, %v6064
    %6066 = vdwg.mxu0
    %v6067 = vadd.f32 %v5621, %v5996
    %v6068 = vadd.f32 %v5622, %v5998
    %v6069 = vadd.f32 %v5623, %v6049
    %v6070 = vadd.f32 %v5624, %v6051
    %v6071 = vadd.f32 %v5625, %v6000
    %v6072 = vadd.f32 %v5626, %v6002
    %v6073 = vadd.f32 %v5627, %v6053
    %v6074 = vadd.f32 %v5628, %v6055
    %v6075 = vadd.f32 %v5629, %v6006
    %v6076 = vadd.f32 %v5630, %v6008
    %v6077 = vadd.f32 %v5631, %v6059
    %v6078 = vadd.f32 %v5632, %v6061
    %v6079 = vadd.f32 %v5633, %v6010
    %v6080 = vadd.f32 %v5634, %v6012
    %v6081 = vadd.f32 %v5635, %v6063
    %v6082 = vadd.f32 %v5636, %v6065
    %v6083 = vmax.f32 %v6067, %v6069
    %v6084 = vmax.f32 %v6068, %v6070
    %v6085 = vmax.f32 %v6071, %v6073
    %v6086 = vmax.f32 %v6072, %v6074
    %v6087 = vmax.f32 %v6075, %v6077
    %v6088 = vmax.f32 %v6076, %v6078
    %v6089 = vmax.f32 %v6079, %v6081
    %v6090 = vmax.f32 %v6080, %v6082
    %6091 = vmatprep.subr.bf16.mxu0 %v4098
    %6092 = vmatpush1.bf16.msra.mxu0 %v4097
    %6093 = vmatprep.subr.bf16.mxu0 %v4094
    %6094 = vmatpush1.bf16.msra.mxu0 %v4093
    %6095 = vmatprep.subr.bf16.mxu0 %v4090
    %6096 = vmatpush1.bf16.msra.mxu0 %v4089
    %6097 = vmatprep.subr.bf16.mxu0 %v4086
    %6098 = vmatpush1.bf16.msra.mxu0 %v4085
    %6099 = vmatprep.subr.bf16.mxu0 %v4082
    %6100 = vmatpush1.bf16.msra.mxu0 %v4081
    %6101 = vmatprep.subr.bf16.mxu0 %v4078
    %6102 = vmatpush1.bf16.msra.mxu0 %v4077
    %6103 = vmatprep.subr.bf16.mxu0 %v4074
    %6104 = vmatpush1.bf16.msra.mxu0 %v4073
    %6105 = vmatprep.subr.bf16.mxu0 %v4070
    %6106 = vmatpush1.bf16.msra.mxu0 %v4069
    %6107 = vmatprep.subr.bf16.mxu0 %v4130
    %6108 = vmatpush2.bf16.msra.mxu0 %v4129
    %6109 = vmatprep.subr.bf16.mxu0 %v4126
    %6110 = vmatpush2.bf16.msra.mxu0 %v4125
    %6111 = vmatprep.subr.bf16.mxu0 %v4122
    %6112 = vmatpush2.bf16.msra.mxu0 %v4121
    %6113 = vmatprep.subr.bf16.mxu0 %v4118
    %6114 = vmatpush2.bf16.msra.mxu0 %v4117
    %6115 = vmatprep.subr.bf16.mxu0 %v4114
    %6116 = vmatpush2.bf16.msra.mxu0 %v4113
    %6117 = vmatprep.subr.bf16.mxu0 %v4110
    %6118 = vmatpush2.bf16.msra.mxu0 %v4109
    %6119 = vmatprep.subr.bf16.mxu0 %v4106
    %6120 = vmatpush2.bf16.msra.mxu0 %v4105
    %6121 = vmatprep.subr.bf16.mxu0 %v4102
    %6122 = vmatpush2.bf16.msra.mxu0 %v4101
    %6123 = vmatprep.mubr.bf16.mxu0 %v4738
    %6124 = vmatmul.mubr.bf16.gmra.mxu0 %v4737
    %v6125 = vpop.f32.mrf.mxu0
    %v6126 = vadd.f32 0.0, %v6125
    %v6127 = vpop.f32.mrf.mxu0
    %v6128 = vadd.f32 0.0, %v6127
    %v6129 = vpop.f32.mrf.mxu0
    %v6130 = vadd.f32 0.0, %v6129
    %v6131 = vpop.f32.mrf.mxu0
    %v6132 = vadd.f32 0.0, %v6131
    %6133 = vmatprep.mubr.bf16.mxu0 %v4740
    %6134 = vmatmul.mubr.bf16.gmra.mxu0 %v4739
    %v6135 = vpop.f32.mrf.mxu0
    %v6136 = vadd.f32 0.0, %v6135
    %v6137 = vpop.f32.mrf.mxu0
    %v6138 = vadd.f32 0.0, %v6137
    %v6139 = vpop.f32.mrf.mxu0
    %v6140 = vadd.f32 0.0, %v6139
    %v6141 = vpop.f32.mrf.mxu0
    %v6142 = vadd.f32 0.0, %v6141
    %6143 = vdwg.mxu0
    %6144 = vmatprep.subr.bf16.mxu0 %v4100
    %6145 = vmatpush1.bf16.msra.mxu0 %v4099
    %6146 = vmatprep.subr.bf16.mxu0 %v4096
    %6147 = vmatpush1.bf16.msra.mxu0 %v4095
    %6148 = vmatprep.subr.bf16.mxu0 %v4092
    %6149 = vmatpush1.bf16.msra.mxu0 %v4091
    %6150 = vmatprep.subr.bf16.mxu0 %v4088
    %6151 = vmatpush1.bf16.msra.mxu0 %v4087
    %6152 = vmatprep.subr.bf16.mxu0 %v4084
    %6153 = vmatpush1.bf16.msra.mxu0 %v4083
    %6154 = vmatprep.subr.bf16.mxu0 %v4080
    %6155 = vmatpush1.bf16.msra.mxu0 %v4079
    %6156 = vmatprep.subr.bf16.mxu0 %v4076
    %6157 = vmatpush1.bf16.msra.mxu0 %v4075
    %6158 = vmatprep.subr.bf16.mxu0 %v4072
    %6159 = vmatpush1.bf16.msra.mxu0 %v4071
    %6160 = vmatprep.subr.bf16.mxu0 %v4132
    %6161 = vmatpush2.bf16.msra.mxu0 %v4131
    %6162 = vmatprep.subr.bf16.mxu0 %v4128
    %6163 = vmatpush2.bf16.msra.mxu0 %v4127
    %6164 = vmatprep.subr.bf16.mxu0 %v4124
    %6165 = vmatpush2.bf16.msra.mxu0 %v4123
    %6166 = vmatprep.subr.bf16.mxu0 %v4120
    %6167 = vmatpush2.bf16.msra.mxu0 %v4119
    %6168 = vmatprep.subr.bf16.mxu0 %v4116
    %6169 = vmatpush2.bf16.msra.mxu0 %v4115
    %6170 = vmatprep.subr.bf16.mxu0 %v4112
    %6171 = vmatpush2.bf16.msra.mxu0 %v4111
    %6172 = vmatprep.subr.bf16.mxu0 %v4108
    %6173 = vmatpush2.bf16.msra.mxu0 %v4107
    %6174 = vmatprep.subr.bf16.mxu0 %v4104
    %6175 = vmatpush2.bf16.msra.mxu0 %v4103
    %6176 = vmatprep.mubr.bf16.mxu0 %v4738
    %6177 = vmatmul.mubr.bf16.gmra.mxu0 %v4737
    %v6178 = vpop.f32.mrf.mxu0
    %v6179 = vadd.f32 0.0, %v6178
    %v6180 = vpop.f32.mrf.mxu0
    %v6181 = vadd.f32 0.0, %v6180
    %v6182 = vpop.f32.mrf.mxu0
    %v6183 = vadd.f32 0.0, %v6182
    %v6184 = vpop.f32.mrf.mxu0
    %v6185 = vadd.f32 0.0, %v6184
    %6186 = vmatprep.mubr.bf16.mxu0 %v4740
    %6187 = vmatmul.mubr.bf16.gmra.mxu0 %v4739
    %v6188 = vpop.f32.mrf.mxu0
    %v6189 = vadd.f32 0.0, %v6188
    %v6190 = vpop.f32.mrf.mxu0
    %v6191 = vadd.f32 0.0, %v6190
    %v6192 = vpop.f32.mrf.mxu0
    %v6193 = vadd.f32 0.0, %v6192
    %v6194 = vpop.f32.mrf.mxu0
    %v6195 = vadd.f32 0.0, %v6194
    %6196 = vdwg.mxu0
    %6197 = vmatprep.subr.bf16.mxu0 %v4532
    %6198 = vmatpush1.bf16.msra.mxu0 %v4531
    %6199 = vmatprep.subr.bf16.mxu0 %v4528
    %6200 = vmatpush1.bf16.msra.mxu0 %v4527
    %6201 = vmatprep.subr.bf16.mxu0 %v4524
    %6202 = vmatpush1.bf16.msra.mxu0 %v4523
    %6203 = vmatprep.subr.bf16.mxu0 %v4520
    %6204 = vmatpush1.bf16.msra.mxu0 %v4519
    %6205 = vmatprep.subr.bf16.mxu0 %v4516
    %6206 = vmatpush1.bf16.msra.mxu0 %v4515
    %6207 = vmatprep.subr.bf16.mxu0 %v4512
    %6208 = vmatpush1.bf16.msra.mxu0 %v4511
    %6209 = vmatprep.subr.bf16.mxu0 %v4508
    %6210 = vmatpush1.bf16.msra.mxu0 %v4507
    %6211 = vmatprep.subr.bf16.mxu0 %v4504
    %6212 = vmatpush1.bf16.msra.mxu0 %v4503
    %6213 = vmatprep.subr.bf16.mxu0 %v4564
    %6214 = vmatpush2.bf16.msra.mxu0 %v4563
    %6215 = vmatprep.subr.bf16.mxu0 %v4560
    %6216 = vmatpush2.bf16.msra.mxu0 %v4559
    %6217 = vmatprep.subr.bf16.mxu0 %v4556
    %6218 = vmatpush2.bf16.msra.mxu0 %v4555
    %6219 = vmatprep.subr.bf16.mxu0 %v4552
    %6220 = vmatpush2.bf16.msra.mxu0 %v4551
    %6221 = vmatprep.subr.bf16.mxu0 %v4548
    %6222 = vmatpush2.bf16.msra.mxu0 %v4547
    %6223 = vmatprep.subr.bf16.mxu0 %v4544
    %6224 = vmatpush2.bf16.msra.mxu0 %v4543
    %6225 = vmatprep.subr.bf16.mxu0 %v4540
    %6226 = vmatpush2.bf16.msra.mxu0 %v4539
    %6227 = vmatprep.subr.bf16.mxu0 %v4536
    %6228 = vmatpush2.bf16.msra.mxu0 %v4535
    %6229 = vmatprep.mubr.bf16.mxu0 %v3870
    %6230 = vmatmul.mubr.bf16.gmra.mxu0 %v3869
    %v6231 = vpop.f32.mrf.mxu0
    %v6232 = vadd.f32 %v6126, %v6231
    %v6233 = vpop.f32.mrf.mxu0
    %v6234 = vadd.f32 %v6128, %v6233
    %v6235 = vpop.f32.mrf.mxu0
    %v6236 = vadd.f32 %v6130, %v6235
    %v6237 = vpop.f32.mrf.mxu0
    %v6238 = vadd.f32 %v6132, %v6237
    %6239 = vmatprep.mubr.bf16.mxu0 %v3872
    %6240 = vmatmul.mubr.bf16.gmra.mxu0 %v3871
    %v6241 = vpop.f32.mrf.mxu0
    %v6242 = vadd.f32 %v6136, %v6241
    %v6243 = vpop.f32.mrf.mxu0
    %v6244 = vadd.f32 %v6138, %v6243
    %v6245 = vpop.f32.mrf.mxu0
    %v6246 = vadd.f32 %v6140, %v6245
    %v6247 = vpop.f32.mrf.mxu0
    %v6248 = vadd.f32 %v6142, %v6247
    %6249 = vdwg.mxu0
    %6250 = vmatprep.subr.bf16.mxu0 %v4534
    %6251 = vmatpush1.bf16.msra.mxu0 %v4533
    %6252 = vmatprep.subr.bf16.mxu0 %v4530
    %6253 = vmatpush1.bf16.msra.mxu0 %v4529
    %6254 = vmatprep.subr.bf16.mxu0 %v4526
    %6255 = vmatpush1.bf16.msra.mxu0 %v4525
    %6256 = vmatprep.subr.bf16.mxu0 %v4522
    %6257 = vmatpush1.bf16.msra.mxu0 %v4521
    %6258 = vmatprep.subr.bf16.mxu0 %v4518
    %6259 = vmatpush1.bf16.msra.mxu0 %v4517
    %6260 = vmatprep.subr.bf16.mxu0 %v4514
    %6261 = vmatpush1.bf16.msra.mxu0 %v4513
    %6262 = vmatprep.subr.bf16.mxu0 %v4510
    %6263 = vmatpush1.bf16.msra.mxu0 %v4509
    %6264 = vmatprep.subr.bf16.mxu0 %v4506
    %6265 = vmatpush1.bf16.msra.mxu0 %v4505
    %6266 = vmatprep.subr.bf16.mxu0 %v4566
    %6267 = vmatpush2.bf16.msra.mxu0 %v4565
    %6268 = vmatprep.subr.bf16.mxu0 %v4562
    %6269 = vmatpush2.bf16.msra.mxu0 %v4561
    %6270 = vmatprep.subr.bf16.mxu0 %v4558
    %6271 = vmatpush2.bf16.msra.mxu0 %v4557
    %6272 = vmatprep.subr.bf16.mxu0 %v4554
    %6273 = vmatpush2.bf16.msra.mxu0 %v4553
    %6274 = vmatprep.subr.bf16.mxu0 %v4550
    %6275 = vmatpush2.bf16.msra.mxu0 %v4549
    %6276 = vmatprep.subr.bf16.mxu0 %v4546
    %6277 = vmatpush2.bf16.msra.mxu0 %v4545
    %6278 = vmatprep.subr.bf16.mxu0 %v4542
    %6279 = vmatpush2.bf16.msra.mxu0 %v4541
    %6280 = vmatprep.subr.bf16.mxu0 %v4538
    %6281 = vmatpush2.bf16.msra.mxu0 %v4537
    %6282 = vmatprep.mubr.bf16.mxu0 %v3870
    %6283 = vmatmul.mubr.bf16.gmra.mxu0 %v3869
    %v6284 = vpop.f32.mrf.mxu0
    %v6285 = vadd.f32 %v6179, %v6284
    %v6286 = vpop.f32.mrf.mxu0
    %v6287 = vadd.f32 %v6181, %v6286
    %v6288 = vpop.f32.mrf.mxu0
    %v6289 = vadd.f32 %v6183, %v6288
    %v6290 = vpop.f32.mrf.mxu0
    %v6291 = vadd.f32 %v6185, %v6290
    %6292 = vmatprep.mubr.bf16.mxu0 %v3872
    %6293 = vmatmul.mubr.bf16.gmra.mxu0 %v3871
    %v6294 = vpop.f32.mrf.mxu0
    %v6295 = vadd.f32 %v6189, %v6294
    %v6296 = vpop.f32.mrf.mxu0
    %v6297 = vadd.f32 %v6191, %v6296
    %v6298 = vpop.f32.mrf.mxu0
    %v6299 = vadd.f32 %v6193, %v6298
    %v6300 = vpop.f32.mrf.mxu0
    %v6301 = vadd.f32 %v6195, %v6300
    %6302 = vdwg.mxu0
    %6303 = vmatprep.subr.bf16.mxu0 %v4966
    %6304 = vmatpush1.bf16.msra.mxu0 %v4965
    %6305 = vmatprep.subr.bf16.mxu0 %v4962
    %6306 = vmatpush1.bf16.msra.mxu0 %v4961
    %6307 = vmatprep.subr.bf16.mxu0 %v4958
    %6308 = vmatpush1.bf16.msra.mxu0 %v4957
    %6309 = vmatprep.subr.bf16.mxu0 %v4954
    %6310 = vmatpush1.bf16.msra.mxu0 %v4953
    %6311 = vmatprep.subr.bf16.mxu0 %v4950
    %6312 = vmatpush1.bf16.msra.mxu0 %v4949
    %6313 = vmatprep.subr.bf16.mxu0 %v4946
    %6314 = vmatpush1.bf16.msra.mxu0 %v4945
    %6315 = vmatprep.subr.bf16.mxu0 %v4942
    %6316 = vmatpush1.bf16.msra.mxu0 %v4941
    %6317 = vmatprep.subr.bf16.mxu0 %v4938
    %6318 = vmatpush1.bf16.msra.mxu0 %v4937
    %6319 = vmatprep.subr.bf16.mxu0 %v4998
    %6320 = vmatpush2.bf16.msra.mxu0 %v4997
    %6321 = vmatprep.subr.bf16.mxu0 %v4994
    %6322 = vmatpush2.bf16.msra.mxu0 %v4993
    %6323 = vmatprep.subr.bf16.mxu0 %v4990
    %6324 = vmatpush2.bf16.msra.mxu0 %v4989
    %6325 = vmatprep.subr.bf16.mxu0 %v4986
    %6326 = vmatpush2.bf16.msra.mxu0 %v4985
    %6327 = vmatprep.subr.bf16.mxu0 %v4982
    %6328 = vmatpush2.bf16.msra.mxu0 %v4981
    %6329 = vmatprep.subr.bf16.mxu0 %v4978
    %6330 = vmatpush2.bf16.msra.mxu0 %v4977
    %6331 = vmatprep.subr.bf16.mxu0 %v4974
    %6332 = vmatpush2.bf16.msra.mxu0 %v4973
    %6333 = vmatprep.subr.bf16.mxu0 %v4970
    %6334 = vmatpush2.bf16.msra.mxu0 %v4969
    %6335 = vmatprep.mubr.bf16.mxu0 %v5188
    %6336 = vmatmul.mubr.bf16.gmra.mxu0 %v5187
    %v6337 = vpop.f32.mrf.mxu0
    %v6338 = vadd.f32 0.0, %v6337
    %v6339 = vpop.f32.mrf.mxu0
    %v6340 = vadd.f32 0.0, %v6339
    %v6341 = vpop.f32.mrf.mxu0
    %v6342 = vadd.f32 0.0, %v6341
    %v6343 = vpop.f32.mrf.mxu0
    %v6344 = vadd.f32 0.0, %v6343
    %6345 = vmatprep.mubr.bf16.mxu0 %v5190
    %6346 = vmatmul.mubr.bf16.gmra.mxu0 %v5189
    %v6347 = vpop.f32.mrf.mxu0
    %v6348 = vadd.f32 0.0, %v6347
    %v6349 = vpop.f32.mrf.mxu0
    %v6350 = vadd.f32 0.0, %v6349
    %v6351 = vpop.f32.mrf.mxu0
    %v6352 = vadd.f32 0.0, %v6351
    %v6353 = vpop.f32.mrf.mxu0
    %v6354 = vadd.f32 0.0, %v6353
    %6355 = vdwg.mxu0
    %6356 = vmatprep.subr.bf16.mxu0 %v4968
    %6357 = vmatpush1.bf16.msra.mxu0 %v4967
    %6358 = vmatprep.subr.bf16.mxu0 %v4964
    %6359 = vmatpush1.bf16.msra.mxu0 %v4963
    %6360 = vmatprep.subr.bf16.mxu0 %v4960
    %6361 = vmatpush1.bf16.msra.mxu0 %v4959
    %6362 = vmatprep.subr.bf16.mxu0 %v4956
    %6363 = vmatpush1.bf16.msra.mxu0 %v4955
    %6364 = vmatprep.subr.bf16.mxu0 %v4952
    %6365 = vmatpush1.bf16.msra.mxu0 %v4951
    %6366 = vmatprep.subr.bf16.mxu0 %v4948
    %6367 = vmatpush1.bf16.msra.mxu0 %v4947
    %6368 = vmatprep.subr.bf16.mxu0 %v4944
    %6369 = vmatpush1.bf16.msra.mxu0 %v4943
    %6370 = vmatprep.subr.bf16.mxu0 %v4940
    %6371 = vmatpush1.bf16.msra.mxu0 %v4939
    %6372 = vmatprep.subr.bf16.mxu0 %v5000
    %6373 = vmatpush2.bf16.msra.mxu0 %v4999
    %6374 = vmatprep.subr.bf16.mxu0 %v4996
    %6375 = vmatpush2.bf16.msra.mxu0 %v4995
    %6376 = vmatprep.subr.bf16.mxu0 %v4992
    %6377 = vmatpush2.bf16.msra.mxu0 %v4991
    %6378 = vmatprep.subr.bf16.mxu0 %v4988
    %6379 = vmatpush2.bf16.msra.mxu0 %v4987
    %6380 = vmatprep.subr.bf16.mxu0 %v4984
    %6381 = vmatpush2.bf16.msra.mxu0 %v4983
    %6382 = vmatprep.subr.bf16.mxu0 %v4980
    %6383 = vmatpush2.bf16.msra.mxu0 %v4979
    %6384 = vmatprep.subr.bf16.mxu0 %v4976
    %6385 = vmatpush2.bf16.msra.mxu0 %v4975
    %6386 = vmatprep.subr.bf16.mxu0 %v4972
    %6387 = vmatpush2.bf16.msra.mxu0 %v4971
    %6388 = vmatprep.mubr.bf16.mxu0 %v5188
    %6389 = vmatmul.mubr.bf16.gmra.mxu0 %v5187
    %v6390 = vpop.f32.mrf.mxu0
    %v6391 = vadd.f32 0.0, %v6390
    %v6392 = vpop.f32.mrf.mxu0
    %v6393 = vadd.f32 0.0, %v6392
    %v6394 = vpop.f32.mrf.mxu0
    %v6395 = vadd.f32 0.0, %v6394
    %v6396 = vpop.f32.mrf.mxu0
    %v6397 = vadd.f32 0.0, %v6396
    %6398 = vmatprep.mubr.bf16.mxu0 %v5190
    %6399 = vmatmul.mubr.bf16.gmra.mxu0 %v5189
    %v6400 = vpop.f32.mrf.mxu0
    %v6401 = vadd.f32 0.0, %v6400
    %v6402 = vpop.f32.mrf.mxu0
    %v6403 = vadd.f32 0.0, %v6402
    %v6404 = vpop.f32.mrf.mxu0
    %v6405 = vadd.f32 0.0, %v6404
    %v6406 = vpop.f32.mrf.mxu0
    %v6407 = vadd.f32 0.0, %v6406
    %6408 = vdwg.mxu0
    %v6409 = vadd.f32 %v6232, %v6338
    %v6410 = vadd.f32 %v6234, %v6340
    %v6411 = vadd.f32 %v6285, %v6391
    %v6412 = vadd.f32 %v6287, %v6393
    %v6413 = vadd.f32 %v6236, %v6342
    %v6414 = vadd.f32 %v6238, %v6344
    %v6415 = vadd.f32 %v6289, %v6395
    %v6416 = vadd.f32 %v6291, %v6397
    %v6417 = vadd.f32 %v6242, %v6348
    %v6418 = vadd.f32 %v6244, %v6350
    %v6419 = vadd.f32 %v6295, %v6401
    %v6420 = vadd.f32 %v6297, %v6403
    %v6421 = vadd.f32 %v6246, %v6352
    %v6422 = vadd.f32 %v6248, %v6354
    %v6423 = vadd.f32 %v6299, %v6405
    %v6424 = vadd.f32 %v6301, %v6407
    %6425 = vmatprep.subr.bf16.mxu0 %v5416
    %6426 = vmatpush1.bf16.msra.mxu0 %v5415
    %6427 = vmatprep.subr.bf16.mxu0 %v5412
    %6428 = vmatpush1.bf16.msra.mxu0 %v5411
    %6429 = vmatprep.subr.bf16.mxu0 %v5408
    %6430 = vmatpush1.bf16.msra.mxu0 %v5407
    %6431 = vmatprep.subr.bf16.mxu0 %v5404
    %6432 = vmatpush1.bf16.msra.mxu0 %v5403
    %6433 = vmatprep.subr.bf16.mxu0 %v5400
    %6434 = vmatpush1.bf16.msra.mxu0 %v5399
    %6435 = vmatprep.subr.bf16.mxu0 %v5396
    %6436 = vmatpush1.bf16.msra.mxu0 %v5395
    %6437 = vmatprep.subr.bf16.mxu0 %v5392
    %6438 = vmatpush1.bf16.msra.mxu0 %v5391
    %6439 = vmatprep.subr.bf16.mxu0 %v5388
    %6440 = vmatpush1.bf16.msra.mxu0 %v5387
    %6441 = vmatprep.subr.bf16.mxu0 %v5448
    %6442 = vmatpush2.bf16.msra.mxu0 %v5447
    %6443 = vmatprep.subr.bf16.mxu0 %v5444
    %6444 = vmatpush2.bf16.msra.mxu0 %v5443
    %6445 = vmatprep.subr.bf16.mxu0 %v5440
    %6446 = vmatpush2.bf16.msra.mxu0 %v5439
    %6447 = vmatprep.subr.bf16.mxu0 %v5436
    %6448 = vmatpush2.bf16.msra.mxu0 %v5435
    %6449 = vmatprep.subr.bf16.mxu0 %v5432
    %6450 = vmatpush2.bf16.msra.mxu0 %v5431
    %6451 = vmatprep.subr.bf16.mxu0 %v5428
    %6452 = vmatpush2.bf16.msra.mxu0 %v5427
    %6453 = vmatprep.subr.bf16.mxu0 %v5424
    %6454 = vmatpush2.bf16.msra.mxu0 %v5423
    %6455 = vmatprep.subr.bf16.mxu0 %v5420
    %6456 = vmatpush2.bf16.msra.mxu0 %v5419
    %6457 = vmatprep.mubr.bf16.mxu0 %v4306
    %6458 = vmatmul.mubr.bf16.gmra.mxu0 %v4305
    %v6459 = vpop.f32.mrf.mxu0
    %v6460 = vadd.f32 0.0, %v6459
    %v6461 = vpop.f32.mrf.mxu0
    %v6462 = vadd.f32 0.0, %v6461
    %v6463 = vpop.f32.mrf.mxu0
    %v6464 = vadd.f32 0.0, %v6463
    %v6465 = vpop.f32.mrf.mxu0
    %v6466 = vadd.f32 0.0, %v6465
    %6467 = vmatprep.mubr.bf16.mxu0 %v5638
    %6468 = vmatmul.mubr.bf16.gmra.mxu0 %v5637
    %v6469 = vpop.f32.mrf.mxu0
    %v6470 = vadd.f32 0.0, %v6469
    %v6471 = vpop.f32.mrf.mxu0
    %v6472 = vadd.f32 0.0, %v6471
    %v6473 = vpop.f32.mrf.mxu0
    %v6474 = vadd.f32 0.0, %v6473
    %v6475 = vpop.f32.mrf.mxu0
    %v6476 = vadd.f32 0.0, %v6475
    %6477 = vdwg.mxu0
    %6478 = vmatprep.subr.bf16.mxu0 %v5418
    %6479 = vmatpush1.bf16.msra.mxu0 %v5417
    %6480 = vmatprep.subr.bf16.mxu0 %v5414
    %6481 = vmatpush1.bf16.msra.mxu0 %v5413
    %6482 = vmatprep.subr.bf16.mxu0 %v5410
    %6483 = vmatpush1.bf16.msra.mxu0 %v5409
    %6484 = vmatprep.subr.bf16.mxu0 %v5406
    %6485 = vmatpush1.bf16.msra.mxu0 %v5405
    %6486 = vmatprep.subr.bf16.mxu0 %v5402
    %6487 = vmatpush1.bf16.msra.mxu0 %v5401
    %6488 = vmatprep.subr.bf16.mxu0 %v5398
    %6489 = vmatpush1.bf16.msra.mxu0 %v5397
    %6490 = vmatprep.subr.bf16.mxu0 %v5394
    %6491 = vmatpush1.bf16.msra.mxu0 %v5393
    %6492 = vmatprep.subr.bf16.mxu0 %v5390
    %6493 = vmatpush1.bf16.msra.mxu0 %v5389
    %6494 = vmatprep.subr.bf16.mxu0 %v5450
    %6495 = vmatpush2.bf16.msra.mxu0 %v5449
    %6496 = vmatprep.subr.bf16.mxu0 %v5446
    %6497 = vmatpush2.bf16.msra.mxu0 %v5445
    %6498 = vmatprep.subr.bf16.mxu0 %v5442
    %6499 = vmatpush2.bf16.msra.mxu0 %v5441
    %6500 = vmatprep.subr.bf16.mxu0 %v5438
    %6501 = vmatpush2.bf16.msra.mxu0 %v5437
    %6502 = vmatprep.subr.bf16.mxu0 %v5434
    %6503 = vmatpush2.bf16.msra.mxu0 %v5433
    %6504 = vmatprep.subr.bf16.mxu0 %v5430
    %6505 = vmatpush2.bf16.msra.mxu0 %v5429
    %6506 = vmatprep.subr.bf16.mxu0 %v5426
    %6507 = vmatpush2.bf16.msra.mxu0 %v5425
    %6508 = vmatprep.subr.bf16.mxu0 %v5422
    %6509 = vmatpush2.bf16.msra.mxu0 %v5421
    %6510 = vmatprep.mubr.bf16.mxu0 %v4306
    %6511 = vmatmul.mubr.bf16.gmra.mxu0 %v4305
    %v6512 = vpop.f32.mrf.mxu0
    %v6513 = vadd.f32 0.0, %v6512
    %v6514 = vpop.f32.mrf.mxu0
    %v6515 = vadd.f32 0.0, %v6514
    %v6516 = vpop.f32.mrf.mxu0
    %v6517 = vadd.f32 0.0, %v6516
    %v6518 = vpop.f32.mrf.mxu0
    %v6519 = vadd.f32 0.0, %v6518
    %6520 = vmatprep.mubr.bf16.mxu0 %v5638
    %6521 = vmatmul.mubr.bf16.gmra.mxu0 %v5637
    %v6522 = vpop.f32.mrf.mxu0
    %v6523 = vadd.f32 0.0, %v6522
    %v6524 = vpop.f32.mrf.mxu0
    %v6525 = vadd.f32 0.0, %v6524
    %v6526 = vpop.f32.mrf.mxu0
    %v6527 = vadd.f32 0.0, %v6526
    %v6528 = vpop.f32.mrf.mxu0
    %v6529 = vadd.f32 0.0, %v6528
    %6530 = vdwg.mxu0
    %v6531 = vadd.f32 %v6409, %v6460
    %v6532 = vadd.f32 %v6410, %v6462
    %v6533 = vadd.f32 %v6411, %v6513
    %v6534 = vadd.f32 %v6412, %v6515
    %v6535 = vadd.f32 %v6413, %v6464
    %v6536 = vadd.f32 %v6414, %v6466
    %v6537 = vadd.f32 %v6415, %v6517
    %v6538 = vadd.f32 %v6416, %v6519
    %v6539 = vadd.f32 %v6417, %v6470
    %v6540 = vadd.f32 %v6418, %v6472
    %v6541 = vadd.f32 %v6419, %v6523
    %v6542 = vadd.f32 %v6420, %v6525
    %v6543 = vadd.f32 %v6421, %v6474
    %v6544 = vadd.f32 %v6422, %v6476
    %v6545 = vadd.f32 %v6423, %v6527
    %v6546 = vadd.f32 %v6424, %v6529
    %v6547 = vpack.c.b16 %v3867, %v3865
    %v6548 = vpack.c.b16 %v3868, %v3866
    %6551 = vmatprep.subr.bf16.mxu0 %v5862
    %6552 = vmatpush1.bf16.msra.mxu0 %v5861
    %6553 = vmatprep.subr.bf16.mxu0 %v5858
    %6554 = vmatpush1.bf16.msra.mxu0 %v5857
    %6555 = vmatprep.subr.bf16.mxu0 %v5854
    %6556 = vmatpush1.bf16.msra.mxu0 %v5853
    %6557 = vmatprep.subr.bf16.mxu0 %v5850
    %6558 = vmatpush1.bf16.msra.mxu0 %v5849
    %6559 = vmatprep.subr.bf16.mxu0 %v5846
    %6560 = vmatpush1.bf16.msra.mxu0 %v5845
    %6561 = vmatprep.subr.bf16.mxu0 %v5842
    %6562 = vmatpush1.bf16.msra.mxu0 %v5841
    %6563 = vmatprep.subr.bf16.mxu0 %v5838
    %6564 = vmatpush1.bf16.msra.mxu0 %v5837
    %6565 = vmatprep.subr.bf16.mxu0 %v5834
    %6566 = vmatpush1.bf16.msra.mxu0 %v5833
    %6567 = vmatprep.subr.bf16.mxu0 %v5894
    %6568 = vmatpush2.bf16.msra.mxu0 %v5893
    %6569 = vmatprep.subr.bf16.mxu0 %v5890
    %6570 = vmatpush2.bf16.msra.mxu0 %v5889
    %6571 = vmatprep.subr.bf16.mxu0 %v5886
    %6572 = vmatpush2.bf16.msra.mxu0 %v5885
    %6573 = vmatprep.subr.bf16.mxu0 %v5882
    %6574 = vmatpush2.bf16.msra.mxu0 %v5881
    %6575 = vmatprep.subr.bf16.mxu0 %v5878
    %6576 = vmatpush2.bf16.msra.mxu0 %v5877
    %6577 = vmatprep.subr.bf16.mxu0 %v5874
    %6578 = vmatpush2.bf16.msra.mxu0 %v5873
    %6579 = vmatprep.subr.bf16.mxu0 %v5870
    %6580 = vmatpush2.bf16.msra.mxu0 %v5869
    %6581 = vmatprep.subr.bf16.mxu0 %v5866
    %6582 = vmatpush2.bf16.msra.mxu0 %v5865
    %6583 = vmatprep.mubr.bf16.mxu0 %v3872
    %6584 = vmatmul.mubr.bf16.gmra.mxu0 %v3871
    %v6585 = vpop.f32.mrf.mxu0
    %v6586 = vadd.f32 0.0, %v6585
    %v6587 = vpop.f32.mrf.mxu0
    %v6588 = vadd.f32 0.0, %v6587
    %v6589 = vpop.f32.mrf.mxu0
    %v6590 = vadd.f32 0.0, %v6589
    %v6591 = vpop.f32.mrf.mxu0
    %v6592 = vadd.f32 0.0, %v6591
    %6593 = vmatprep.mubr.bf16.mxu0 %v6548
    %6594 = vmatmul.mubr.bf16.gmra.mxu0 %v6547
    %v6595 = vpop.f32.mrf.mxu0
    %v6596 = vadd.f32 0.0, %v6595
    %v6597 = vpop.f32.mrf.mxu0
    %v6598 = vadd.f32 0.0, %v6597
    %v6599 = vpop.f32.mrf.mxu0
    %v6600 = vadd.f32 0.0, %v6599
    %v6601 = vpop.f32.mrf.mxu0
    %v6602 = vadd.f32 0.0, %v6601
    %6603 = vdwg.mxu0
    %6604 = vmatprep.subr.bf16.mxu0 %v5864
    %6605 = vmatpush1.bf16.msra.mxu0 %v5863
    %6606 = vmatprep.subr.bf16.mxu0 %v5860
    %6607 = vmatpush1.bf16.msra.mxu0 %v5859
    %6608 = vmatprep.subr.bf16.mxu0 %v5856
    %6609 = vmatpush1.bf16.msra.mxu0 %v5855
    %6610 = vmatprep.subr.bf16.mxu0 %v5852
    %6611 = vmatpush1.bf16.msra.mxu0 %v5851
    %6612 = vmatprep.subr.bf16.mxu0 %v5848
    %6613 = vmatpush1.bf16.msra.mxu0 %v5847
    %6614 = vmatprep.subr.bf16.mxu0 %v5844
    %6615 = vmatpush1.bf16.msra.mxu0 %v5843
    %6616 = vmatprep.subr.bf16.mxu0 %v5840
    %6617 = vmatpush1.bf16.msra.mxu0 %v5839
    %6618 = vmatprep.subr.bf16.mxu0 %v5836
    %6619 = vmatpush1.bf16.msra.mxu0 %v5835
    %6620 = vmatprep.subr.bf16.mxu0 %v5896
    %6621 = vmatpush2.bf16.msra.mxu0 %v5895
    %6622 = vmatprep.subr.bf16.mxu0 %v5892
    %6623 = vmatpush2.bf16.msra.mxu0 %v5891
    %6624 = vmatprep.subr.bf16.mxu0 %v5888
    %6625 = vmatpush2.bf16.msra.mxu0 %v5887
    %6626 = vmatprep.subr.bf16.mxu0 %v5884
    %6627 = vmatpush2.bf16.msra.mxu0 %v5883
    %6628 = vmatprep.subr.bf16.mxu0 %v5880
    %6629 = vmatpush2.bf16.msra.mxu0 %v5879
    %6630 = vmatprep.subr.bf16.mxu0 %v5876
    %6631 = vmatpush2.bf16.msra.mxu0 %v5875
    %6632 = vmatprep.subr.bf16.mxu0 %v5872
    %6633 = vmatpush2.bf16.msra.mxu0 %v5871
    %6634 = vmatprep.subr.bf16.mxu0 %v5868
    %6635 = vmatpush2.bf16.msra.mxu0 %v5867
    %6636 = vmatprep.mubr.bf16.mxu0 %v3872
    %6637 = vmatmul.mubr.bf16.gmra.mxu0 %v3871
    %v6638 = vpop.f32.mrf.mxu0
    %v6639 = vadd.f32 0.0, %v6638
    %v6640 = vpop.f32.mrf.mxu0
    %v6641 = vadd.f32 0.0, %v6640
    %v6642 = vpop.f32.mrf.mxu0
    %v6643 = vadd.f32 0.0, %v6642
    %v6644 = vpop.f32.mrf.mxu0
    %v6645 = vadd.f32 0.0, %v6644
    %6646 = vmatprep.mubr.bf16.mxu0 %v6548
    %6647 = vmatmul.mubr.bf16.gmra.mxu0 %v6547
    %v6648 = vpop.f32.mrf.mxu0
    %v6649 = vadd.f32 0.0, %v6648
    %v6650 = vpop.f32.mrf.mxu0
    %v6651 = vadd.f32 0.0, %v6650
    %v6652 = vpop.f32.mrf.mxu0
    %v6653 = vadd.f32 0.0, %v6652
    %v6654 = vpop.f32.mrf.mxu0
    %v6655 = vadd.f32 0.0, %v6654
    %6656 = vdwg.mxu0
    %v6657 = vadd.f32 %v6531, %v6586
    %v6658 = vadd.f32 %v6532, %v6588
    %v6659 = vadd.f32 %v6533, %v6639
    %v6660 = vadd.f32 %v6534, %v6641
    %v6661 = vadd.f32 %v6535, %v6590
    %v6662 = vadd.f32 %v6536, %v6592
    %v6663 = vadd.f32 %v6537, %v6643
    %v6664 = vadd.f32 %v6538, %v6645
    %v6665 = vadd.f32 %v6539, %v6596
    %v6666 = vadd.f32 %v6540, %v6598
    %v6667 = vadd.f32 %v6541, %v6649
    %v6668 = vadd.f32 %v6542, %v6651
    %v6669 = vadd.f32 %v6543, %v6600
    %v6670 = vadd.f32 %v6544, %v6602
    %v6671 = vadd.f32 %v6545, %v6653
    %v6672 = vadd.f32 %v6546, %v6655
    %v6673 = vmax.f32 %v6657, %v6659
    %v6674 = vmax.f32 %v6658, %v6660
    %v6675 = vmax.f32 %v6661, %v6663
    %v6676 = vmax.f32 %v6662, %v6664
    %v6677 = vmax.f32 %v6665, %v6667
    %v6678 = vmax.f32 %v6666, %v6668
    %v6679 = vmax.f32 %v6669, %v6671
    %v6680 = vmax.f32 %v6670, %v6672
    %v6681 = vmax.f32 %v6083, %v6673
    %v6682 = vmax.f32 %v6084, %v6674
    %v6683 = vmax.f32 %v6085, %v6675
    %v6684 = vmax.f32 %v6086, %v6676
    %v6685 = vmax.f32 %v6087, %v6677
    %v6686 = vmax.f32 %v6088, %v6678
    %v6687 = vmax.f32 %v6089, %v6679
    %v6688 = vmax.f32 %v6090, %v6680
    %v6689 = vld [vmem:[#allocation7] sm:$0x3]
    %v6691 = vlaneseq
    %v6692 = vshrl.u32 %v6691, 7
    %v6693 = vsub.s32 0, %v6692
    %v6694 = vrot.slane %v6689, %v6693
    %v6695 = vlaneseq
    %v6696 = vshrl.u32 %v6695, 7
    %v6697 = vsub.s32 1, %v6696
    %v6698 = vrot.slane %v6689, %v6697
    %v6701 = vadd.f32 %v6681, %v6694
    %v6702 = vadd.f32 %v6682, %v6698
    %v6703 = vadd.f32 %v6683, %v6694
    %v6704 = vadd.f32 %v6684, %v6698
    %v6705 = vadd.f32 %v6685, %v6694
    %v6706 = vadd.f32 %v6686, %v6698
    %v6707 = vadd.f32 %v6687, %v6694
    %v6708 = vadd.f32 %v6688, %v6698
    %v6709 = vmax.f32 %v6701, 0.0
    %v6710 = vmax.f32 %v6702, 0.0
    %v6711 = vmax.f32 %v6703, 0.0
    %v6712 = vmax.f32 %v6704, 0.0
    %v6713 = vmax.f32 %v6705, 0.0
    %v6714 = vmax.f32 %v6706, 0.0
    %v6715 = vmax.f32 %v6707, 0.0
    %v6716 = vmax.f32 %v6708, 0.0
    %v6717 = vpack.c.bf16 %v6711, %v6709
    %v6718 = vpack.c.bf16 %v6712, %v6710
    %v6719 = vpack.c.bf16 %v6715, %v6713
    %v6720 = vpack.c.bf16 %v6716, %v6714
    %v6725 = vunpack.c.l.b16 %v6717
    %v6726 = vunpack.c.l.b16 %v6718
    %v6727 = vunpack.c.h.b16 %v6717
    %v6728 = vunpack.c.h.b16 %v6718
    %v6729 = vunpack.c.l.b16 %v6719
    %v6730 = vunpack.c.l.b16 %v6720
    %v6731 = vunpack.c.h.b16 %v6719
    %v6732 = vunpack.c.h.b16 %v6720
    %v6733 = vld [vmem:[#allocation9] sm:$0xff]
    %v6734 = vld [vmem:[#allocation9 + $0x8] sm:$0xff]
    %v6735 = vld [vmem:[#allocation9 + $0x10] sm:$0xff]
    %v6736 = vld [vmem:[#allocation9 + $0x18] sm:$0xff]
    %v6737 = vld [vmem:[#allocation9 + $0x20] sm:$0xff]
    %v6738 = vld [vmem:[#allocation9 + $0x28] sm:$0xff]
    %v6739 = vld [vmem:[#allocation9 + $0x30] sm:$0xff]
    %v6740 = vld [vmem:[#allocation9 + $0x38] sm:$0xff]
    %v6741 = vld [vmem:[#allocation9 + $0x40] sm:$0xff]
    %v6742 = vld [vmem:[#allocation9 + $0x48] sm:$0xff]
    %v6743 = vld [vmem:[#allocation9 + $0x50] sm:$0xff]
    %v6744 = vld [vmem:[#allocation9 + $0x58] sm:$0xff]
    %v6745 = vld [vmem:[#allocation9 + $0x60] sm:$0xff]
    %v6746 = vld [vmem:[#allocation9 + $0x68] sm:$0xff]
    %v6747 = vld [vmem:[#allocation9 + $0x70] sm:$0xff]
    %v6748 = vld [vmem:[#allocation9 + $0x78] sm:$0xff]
    %v6749 = vld [vmem:[#allocation9 + $0x80] sm:$0xff]
    %v6750 = vld [vmem:[#allocation9 + $0x88] sm:$0xff]
    %v6751 = vld [vmem:[#allocation9 + $0x90] sm:$0xff]
    %v6752 = vld [vmem:[#allocation9 + $0x98] sm:$0xff]
    %v6753 = vld [vmem:[#allocation9 + $0xa0] sm:$0xff]
    %v6754 = vld [vmem:[#allocation9 + $0xa8] sm:$0xff]
    %v6755 = vld [vmem:[#allocation9 + $0xb0] sm:$0xff]
    %v6756 = vld [vmem:[#allocation9 + $0xb8] sm:$0xff]
    %v6757 = vld [vmem:[#allocation9 + $0xc0] sm:$0xff]
    %v6758 = vld [vmem:[#allocation9 + $0xc8] sm:$0xff]
    %v6759 = vld [vmem:[#allocation9 + $0xd0] sm:$0xff]
    %v6760 = vld [vmem:[#allocation9 + $0xd8] sm:$0xff]
    %v6761 = vld [vmem:[#allocation9 + $0xe0] sm:$0xff]
    %v6762 = vld [vmem:[#allocation9 + $0xe8] sm:$0xff]
    %v6763 = vld [vmem:[#allocation9 + $0xf0] sm:$0xff]
    %v6764 = vld [vmem:[#allocation9 + $0xf8] sm:$0xff]
    %v6765 = vld [vmem:[#allocation9 + $0x100] sm:$0xff]
    %v6766 = vld [vmem:[#allocation9 + $0x108] sm:$0xff]
    %v6767 = vld [vmem:[#allocation9 + $0x110] sm:$0xff]
    %v6768 = vld [vmem:[#allocation9 + $0x118] sm:$0xff]
    %v6769 = vld [vmem:[#allocation9 + $0x120] sm:$0xff]
    %v6770 = vld [vmem:[#allocation9 + $0x128] sm:$0xff]
    %v6771 = vld [vmem:[#allocation9 + $0x130] sm:$0xff]
    %v6772 = vld [vmem:[#allocation9 + $0x138] sm:$0xff]
    %v6773 = vld [vmem:[#allocation9 + $0x140] sm:$0xff]
    %v6774 = vld [vmem:[#allocation9 + $0x148] sm:$0xff]
    %v6775 = vld [vmem:[#allocation9 + $0x150] sm:$0xff]
    %v6776 = vld [vmem:[#allocation9 + $0x158] sm:$0xff]
    %v6777 = vld [vmem:[#allocation9 + $0x160] sm:$0xff]
    %v6778 = vld [vmem:[#allocation9 + $0x168] sm:$0xff]
    %v6779 = vld [vmem:[#allocation9 + $0x170] sm:$0xff]
    %v6780 = vld [vmem:[#allocation9 + $0x178] sm:$0xff]
    %v6781 = vld [vmem:[#allocation9 + $0x180] sm:$0xff]
    %v6782 = vld [vmem:[#allocation9 + $0x188] sm:$0xff]
    %v6783 = vld [vmem:[#allocation9 + $0x190] sm:$0xff]
    %v6784 = vld [vmem:[#allocation9 + $0x198] sm:$0xff]
    %v6785 = vld [vmem:[#allocation9 + $0x1a0] sm:$0xff]
    %v6786 = vld [vmem:[#allocation9 + $0x1a8] sm:$0xff]
    %v6787 = vld [vmem:[#allocation9 + $0x1b0] sm:$0xff]
    %v6788 = vld [vmem:[#allocation9 + $0x1b8] sm:$0xff]
    %v6789 = vld [vmem:[#allocation9 + $0x1c0] sm:$0xff]
    %v6790 = vld [vmem:[#allocation9 + $0x1c8] sm:$0xff]
    %v6791 = vld [vmem:[#allocation9 + $0x1d0] sm:$0xff]
    %v6792 = vld [vmem:[#allocation9 + $0x1d8] sm:$0xff]
    %v6793 = vld [vmem:[#allocation9 + $0x1e0] sm:$0xff]
    %v6794 = vld [vmem:[#allocation9 + $0x1e8] sm:$0xff]
    %v6795 = vld [vmem:[#allocation9 + $0x1f0] sm:$0xff]
    %v6796 = vld [vmem:[#allocation9 + $0x1f8] sm:$0xff]
    %s6797 = scalar_lea.vmem [#allocation9], 512
    %v6798 = vld [vmem:[%s6797] sm:$0xff]
    %v6799 = vld [vmem:[%s6797 + $0x8] sm:$0xff]
    %v6800 = vld [vmem:[%s6797 + $0x10] sm:$0xff]
    %v6801 = vld [vmem:[%s6797 + $0x18] sm:$0xff]
    %v6802 = vld [vmem:[%s6797 + $0x20] sm:$0xff]
    %v6803 = vld [vmem:[%s6797 + $0x28] sm:$0xff]
    %v6804 = vld [vmem:[%s6797 + $0x30] sm:$0xff]
    %v6805 = vld [vmem:[%s6797 + $0x38] sm:$0xff]
    %v6806 = vld [vmem:[%s6797 + $0x40] sm:$0xff]
    %v6807 = vld [vmem:[%s6797 + $0x48] sm:$0xff]
    %v6808 = vld [vmem:[%s6797 + $0x50] sm:$0xff]
    %v6809 = vld [vmem:[%s6797 + $0x58] sm:$0xff]
    %v6810 = vld [vmem:[%s6797 + $0x60] sm:$0xff]
    %v6811 = vld [vmem:[%s6797 + $0x68] sm:$0xff]
    %v6812 = vld [vmem:[%s6797 + $0x70] sm:$0xff]
    %v6813 = vld [vmem:[%s6797 + $0x78] sm:$0xff]
    %v6814 = vld [vmem:[%s6797 + $0x80] sm:$0xff]
    %v6815 = vld [vmem:[%s6797 + $0x88] sm:$0xff]
    %v6816 = vld [vmem:[%s6797 + $0x90] sm:$0xff]
    %v6817 = vld [vmem:[%s6797 + $0x98] sm:$0xff]
    %v6818 = vld [vmem:[%s6797 + $0xa0] sm:$0xff]
    %v6819 = vld [vmem:[%s6797 + $0xa8] sm:$0xff]
    %v6820 = vld [vmem:[%s6797 + $0xb0] sm:$0xff]
    %v6821 = vld [vmem:[%s6797 + $0xb8] sm:$0xff]
    %v6822 = vld [vmem:[%s6797 + $0xc0] sm:$0xff]
    %v6823 = vld [vmem:[%s6797 + $0xc8] sm:$0xff]
    %v6824 = vld [vmem:[%s6797 + $0xd0] sm:$0xff]
    %v6825 = vld [vmem:[%s6797 + $0xd8] sm:$0xff]
    %v6826 = vld [vmem:[%s6797 + $0xe0] sm:$0xff]
    %v6827 = vld [vmem:[%s6797 + $0xe8] sm:$0xff]
    %v6828 = vld [vmem:[%s6797 + $0xf0] sm:$0xff]
    %v6829 = vld [vmem:[%s6797 + $0xf8] sm:$0xff]
    %v6830 = vld [vmem:[%s6797 + $0x100] sm:$0xff]
    %v6831 = vld [vmem:[%s6797 + $0x108] sm:$0xff]
    %v6832 = vld [vmem:[%s6797 + $0x110] sm:$0xff]
    %v6833 = vld [vmem:[%s6797 + $0x118] sm:$0xff]
    %v6834 = vld [vmem:[%s6797 + $0x120] sm:$0xff]
    %v6835 = vld [vmem:[%s6797 + $0x128] sm:$0xff]
    %v6836 = vld [vmem:[%s6797 + $0x130] sm:$0xff]
    %v6837 = vld [vmem:[%s6797 + $0x138] sm:$0xff]
    %v6838 = vld [vmem:[%s6797 + $0x140] sm:$0xff]
    %v6839 = vld [vmem:[%s6797 + $0x148] sm:$0xff]
    %v6840 = vld [vmem:[%s6797 + $0x150] sm:$0xff]
    %v6841 = vld [vmem:[%s6797 + $0x158] sm:$0xff]
    %v6842 = vld [vmem:[%s6797 + $0x160] sm:$0xff]
    %v6843 = vld [vmem:[%s6797 + $0x168] sm:$0xff]
    %v6844 = vld [vmem:[%s6797 + $0x170] sm:$0xff]
    %v6845 = vld [vmem:[%s6797 + $0x178] sm:$0xff]
    %v6846 = vld [vmem:[%s6797 + $0x180] sm:$0xff]
    %v6847 = vld [vmem:[%s6797 + $0x188] sm:$0xff]
    %v6848 = vld [vmem:[%s6797 + $0x190] sm:$0xff]
    %v6849 = vld [vmem:[%s6797 + $0x198] sm:$0xff]
    %v6850 = vld [vmem:[%s6797 + $0x1a0] sm:$0xff]
    %v6851 = vld [vmem:[%s6797 + $0x1a8] sm:$0xff]
    %v6852 = vld [vmem:[%s6797 + $0x1b0] sm:$0xff]
    %v6853 = vld [vmem:[%s6797 + $0x1b8] sm:$0xff]
    %v6854 = vld [vmem:[%s6797 + $0x1c0] sm:$0xff]
    %v6855 = vld [vmem:[%s6797 + $0x1c8] sm:$0xff]
    %v6856 = vld [vmem:[%s6797 + $0x1d0] sm:$0xff]
    %v6857 = vld [vmem:[%s6797 + $0x1d8] sm:$0xff]
    %v6858 = vld [vmem:[%s6797 + $0x1e0] sm:$0xff]
    %v6859 = vld [vmem:[%s6797 + $0x1e8] sm:$0xff]
    %v6860 = vld [vmem:[%s6797 + $0x1f0] sm:$0xff]
    %v6861 = vld [vmem:[%s6797 + $0x1f8] sm:$0xff]
    %v6862 = vpack.c.b16 %v6727, %v6727
    %v6863 = vpack.c.b16 %v6728, %v6728
    %v6930 = vunpack.c.l.b16 %v6798
    %v6931 = vunpack.c.h.b16 %v6798
    %v6932 = vunpack.c.l.b16 %v6799
    %v6933 = vunpack.c.h.b16 %v6799
    %v6934 = vunpack.c.l.b16 %v6800
    %v6935 = vunpack.c.h.b16 %v6800
    %v6936 = vunpack.c.l.b16 %v6801
    %v6937 = vunpack.c.h.b16 %v6801
    %v6938 = vunpack.c.l.b16 %v6802
    %v6939 = vunpack.c.h.b16 %v6802
    %v6940 = vunpack.c.l.b16 %v6803
    %v6941 = vunpack.c.h.b16 %v6803
    %v6942 = vunpack.c.l.b16 %v6804
    %v6943 = vunpack.c.h.b16 %v6804
    %v6944 = vunpack.c.l.b16 %v6805
    %v6945 = vunpack.c.h.b16 %v6805
    %v6946 = vunpack.c.l.b16 %v6806
    %v6947 = vunpack.c.h.b16 %v6806
    %v6948 = vunpack.c.l.b16 %v6807
    %v6949 = vunpack.c.h.b16 %v6807
    %v6950 = vunpack.c.l.b16 %v6808
    %v6951 = vunpack.c.h.b16 %v6808
    %v6952 = vunpack.c.l.b16 %v6809
    %v6953 = vunpack.c.h.b16 %v6809
    %v6954 = vunpack.c.l.b16 %v6810
    %v6955 = vunpack.c.h.b16 %v6810
    %v6956 = vunpack.c.l.b16 %v6811
    %v6957 = vunpack.c.h.b16 %v6811
    %v6958 = vunpack.c.l.b16 %v6812
    %v6959 = vunpack.c.h.b16 %v6812
    %v6960 = vunpack.c.l.b16 %v6813
    %v6961 = vunpack.c.h.b16 %v6813
    %v6962 = vunpack.c.l.b16 %v6814
    %v6963 = vunpack.c.h.b16 %v6814
    %v6964 = vunpack.c.l.b16 %v6815
    %v6965 = vunpack.c.h.b16 %v6815
    %v6966 = vunpack.c.l.b16 %v6816
    %v6967 = vunpack.c.h.b16 %v6816
    %v6968 = vunpack.c.l.b16 %v6817
    %v6969 = vunpack.c.h.b16 %v6817
    %v6970 = vunpack.c.l.b16 %v6818
    %v6971 = vunpack.c.h.b16 %v6818
    %v6972 = vunpack.c.l.b16 %v6819
    %v6973 = vunpack.c.h.b16 %v6819
    %v6974 = vunpack.c.l.b16 %v6820
    %v6975 = vunpack.c.h.b16 %v6820
    %v6976 = vunpack.c.l.b16 %v6821
    %v6977 = vunpack.c.h.b16 %v6821
    %v6978 = vunpack.c.l.b16 %v6822
    %v6979 = vunpack.c.h.b16 %v6822
    %v6980 = vunpack.c.l.b16 %v6823
    %v6981 = vunpack.c.h.b16 %v6823
    %v6982 = vunpack.c.l.b16 %v6824
    %v6983 = vunpack.c.h.b16 %v6824
    %v6984 = vunpack.c.l.b16 %v6825
    %v6985 = vunpack.c.h.b16 %v6825
    %v6986 = vunpack.c.l.b16 %v6826
    %v6987 = vunpack.c.h.b16 %v6826
    %v6988 = vunpack.c.l.b16 %v6827
    %v6989 = vunpack.c.h.b16 %v6827
    %v6990 = vunpack.c.l.b16 %v6828
    %v6991 = vunpack.c.h.b16 %v6828
    %v6992 = vunpack.c.l.b16 %v6829
    %v6993 = vunpack.c.h.b16 %v6829
    %v6994 = vunpack.c.l.b16 %v6830
    %v6995 = vunpack.c.h.b16 %v6830
    %v6996 = vunpack.c.l.b16 %v6831
    %v6997 = vunpack.c.h.b16 %v6831
    %v6998 = vunpack.c.l.b16 %v6832
    %v6999 = vunpack.c.h.b16 %v6832
    %v7000 = vunpack.c.l.b16 %v6833
    %v7001 = vunpack.c.h.b16 %v6833
    %v7002 = vunpack.c.l.b16 %v6834
    %v7003 = vunpack.c.h.b16 %v6834
    %v7004 = vunpack.c.l.b16 %v6835
    %v7005 = vunpack.c.h.b16 %v6835
    %v7006 = vunpack.c.l.b16 %v6836
    %v7007 = vunpack.c.h.b16 %v6836
    %v7008 = vunpack.c.l.b16 %v6837
    %v7009 = vunpack.c.h.b16 %v6837
    %v7010 = vunpack.c.l.b16 %v6838
    %v7011 = vunpack.c.h.b16 %v6838
    %v7012 = vunpack.c.l.b16 %v6839
    %v7013 = vunpack.c.h.b16 %v6839
    %v7014 = vunpack.c.l.b16 %v6840
    %v7015 = vunpack.c.h.b16 %v6840
    %v7016 = vunpack.c.l.b16 %v6841
    %v7017 = vunpack.c.h.b16 %v6841
    %v7018 = vunpack.c.l.b16 %v6842
    %v7019 = vunpack.c.h.b16 %v6842
    %v7020 = vunpack.c.l.b16 %v6843
    %v7021 = vunpack.c.h.b16 %v6843
    %v7022 = vunpack.c.l.b16 %v6844
    %v7023 = vunpack.c.h.b16 %v6844
    %v7024 = vunpack.c.l.b16 %v6845
    %v7025 = vunpack.c.h.b16 %v6845
    %v7026 = vunpack.c.l.b16 %v6846
    %v7027 = vunpack.c.h.b16 %v6846
    %v7028 = vunpack.c.l.b16 %v6847
    %v7029 = vunpack.c.h.b16 %v6847
    %v7030 = vunpack.c.l.b16 %v6848
    %v7031 = vunpack.c.h.b16 %v6848
    %v7032 = vunpack.c.l.b16 %v6849
    %v7033 = vunpack.c.h.b16 %v6849
    %v7034 = vunpack.c.l.b16 %v6850
    %v7035 = vunpack.c.h.b16 %v6850
    %v7036 = vunpack.c.l.b16 %v6851
    %v7037 = vunpack.c.h.b16 %v6851
    %v7038 = vunpack.c.l.b16 %v6852
    %v7039 = vunpack.c.h.b16 %v6852
    %v7040 = vunpack.c.l.b16 %v6853
    %v7041 = vunpack.c.h.b16 %v6853
    %v7042 = vunpack.c.l.b16 %v6854
    %v7043 = vunpack.c.h.b16 %v6854
    %v7044 = vunpack.c.l.b16 %v6855
    %v7045 = vunpack.c.h.b16 %v6855
    %v7046 = vunpack.c.l.b16 %v6856
    %v7047 = vunpack.c.h.b16 %v6856
    %v7048 = vunpack.c.l.b16 %v6857
    %v7049 = vunpack.c.h.b16 %v6857
    %v7050 = vunpack.c.l.b16 %v6858
    %v7051 = vunpack.c.h.b16 %v6858
    %v7052 = vunpack.c.l.b16 %v6859
    %v7053 = vunpack.c.h.b16 %v6859
    %v7054 = vunpack.c.l.b16 %v6860
    %v7055 = vunpack.c.h.b16 %v6860
    %v7056 = vunpack.c.l.b16 %v6861
    %v7057 = vunpack.c.h.b16 %v6861
    %v7058 = vpack.c.b16 %v6934, %v6930
    %v7059 = vpack.c.b16 %v6935, %v6931
    %v7060 = vpack.c.b16 %v6936, %v6932
    %v7061 = vpack.c.b16 %v6937, %v6933
    %v7062 = vpack.c.b16 %v6942, %v6938
    %v7063 = vpack.c.b16 %v6943, %v6939
    %v7064 = vpack.c.b16 %v6944, %v6940
    %v7065 = vpack.c.b16 %v6945, %v6941
    %v7066 = vpack.c.b16 %v6950, %v6946
    %v7067 = vpack.c.b16 %v6951, %v6947
    %v7068 = vpack.c.b16 %v6952, %v6948
    %v7069 = vpack.c.b16 %v6953, %v6949
    %v7070 = vpack.c.b16 %v6958, %v6954
    %v7071 = vpack.c.b16 %v6959, %v6955
    %v7072 = vpack.c.b16 %v6960, %v6956
    %v7073 = vpack.c.b16 %v6961, %v6957
    %v7074 = vpack.c.b16 %v6966, %v6962
    %v7075 = vpack.c.b16 %v6967, %v6963
    %v7076 = vpack.c.b16 %v6968, %v6964
    %v7077 = vpack.c.b16 %v6969, %v6965
    %v7078 = vpack.c.b16 %v6974, %v6970
    %v7079 = vpack.c.b16 %v6975, %v6971
    %v7080 = vpack.c.b16 %v6976, %v6972
    %v7081 = vpack.c.b16 %v6977, %v6973
    %v7082 = vpack.c.b16 %v6982, %v6978
    %v7083 = vpack.c.b16 %v6983, %v6979
    %v7084 = vpack.c.b16 %v6984, %v6980
    %v7085 = vpack.c.b16 %v6985, %v6981
    %v7086 = vpack.c.b16 %v6990, %v6986
    %v7087 = vpack.c.b16 %v6991, %v6987
    %v7088 = vpack.c.b16 %v6992, %v6988
    %v7089 = vpack.c.b16 %v6993, %v6989
    %v7090 = vpack.c.b16 %v6998, %v6994
    %v7091 = vpack.c.b16 %v6999, %v6995
    %v7092 = vpack.c.b16 %v7000, %v6996
    %v7093 = vpack.c.b16 %v7001, %v6997
    %v7094 = vpack.c.b16 %v7006, %v7002
    %v7095 = vpack.c.b16 %v7007, %v7003
    %v7096 = vpack.c.b16 %v7008, %v7004
    %v7097 = vpack.c.b16 %v7009, %v7005
    %v7098 = vpack.c.b16 %v7014, %v7010
    %v7099 = vpack.c.b16 %v7015, %v7011
    %v7100 = vpack.c.b16 %v7016, %v7012
    %v7101 = vpack.c.b16 %v7017, %v7013
    %v7102 = vpack.c.b16 %v7022, %v7018
    %v7103 = vpack.c.b16 %v7023, %v7019
    %v7104 = vpack.c.b16 %v7024, %v7020
    %v7105 = vpack.c.b16 %v7025, %v7021
    %v7106 = vpack.c.b16 %v7030, %v7026
    %v7107 = vpack.c.b16 %v7031, %v7027
    %v7108 = vpack.c.b16 %v7032, %v7028
    %v7109 = vpack.c.b16 %v7033, %v7029
    %v7110 = vpack.c.b16 %v7038, %v7034
    %v7111 = vpack.c.b16 %v7039, %v7035
    %v7112 = vpack.c.b16 %v7040, %v7036
    %v7113 = vpack.c.b16 %v7041, %v7037
    %v7114 = vpack.c.b16 %v7046, %v7042
    %v7115 = vpack.c.b16 %v7047, %v7043
    %v7116 = vpack.c.b16 %v7048, %v7044
    %v7117 = vpack.c.b16 %v7049, %v7045
    %v7118 = vpack.c.b16 %v7054, %v7050
    %v7119 = vpack.c.b16 %v7055, %v7051
    %v7120 = vpack.c.b16 %v7056, %v7052
    %v7121 = vpack.c.b16 %v7057, %v7053
    %7186 = vmatprep.subr.bf16.mxu0 %v7087
    %7187 = vmatpush1.bf16.msra.mxu0 %v7086
    %7188 = vmatprep.subr.bf16.mxu0 %v7083
    %7189 = vmatpush1.bf16.msra.mxu0 %v7082
    %7190 = vmatprep.subr.bf16.mxu0 %v7079
    %7191 = vmatpush1.bf16.msra.mxu0 %v7078
    %7192 = vmatprep.subr.bf16.mxu0 %v7075
    %7193 = vmatpush1.bf16.msra.mxu0 %v7074
    %7194 = vmatprep.subr.bf16.mxu0 %v7071
    %7195 = vmatpush1.bf16.msra.mxu0 %v7070
    %7196 = vmatprep.subr.bf16.mxu0 %v7067
    %7197 = vmatpush1.bf16.msra.mxu0 %v7066
    %7198 = vmatprep.subr.bf16.mxu0 %v7063
    %7199 = vmatpush1.bf16.msra.mxu0 %v7062
    %7200 = vmatprep.subr.bf16.mxu0 %v7059
    %7201 = vmatpush1.bf16.msra.mxu0 %v7058
    %7202 = vmatprep.subr.bf16.mxu0 %v7119
    %7203 = vmatpush2.bf16.msra.mxu0 %v7118
    %7204 = vmatprep.subr.bf16.mxu0 %v7115
    %7205 = vmatpush2.bf16.msra.mxu0 %v7114
    %7206 = vmatprep.subr.bf16.mxu0 %v7111
    %7207 = vmatpush2.bf16.msra.mxu0 %v7110
    %7208 = vmatprep.subr.bf16.mxu0 %v7107
    %7209 = vmatpush2.bf16.msra.mxu0 %v7106
    %7210 = vmatprep.subr.bf16.mxu0 %v7103
    %7211 = vmatpush2.bf16.msra.mxu0 %v7102
    %7212 = vmatprep.subr.bf16.mxu0 %v7099
    %7213 = vmatpush2.bf16.msra.mxu0 %v7098
    %7214 = vmatprep.subr.bf16.mxu0 %v7095
    %7215 = vmatpush2.bf16.msra.mxu0 %v7094
    %7216 = vmatprep.subr.bf16.mxu0 %v7091
    %7217 = vmatpush2.bf16.msra.mxu0 %v7090
    %7218 = vmatprep.mubr.bf16.mxu0 %v6863
    %7219 = vmatmul.mubr.bf16.gmra.mxu0 %v6862
    %v7220 = vpop.f32.mrf.mxu0
    %v7221 = vadd.f32 0.0, %v7220
    %v7222 = vpop.f32.mrf.mxu0
    %v7223 = vadd.f32 0.0, %v7222
    %v7224 = vpop.f32.mrf.mxu0
    %v7225 = vpop.f32.mrf.mxu0
    %7226 = vdwg.mxu0
    %7227 = vmatprep.subr.bf16.mxu0 %v7089
    %7228 = vmatpush1.bf16.msra.mxu0 %v7088
    %7229 = vmatprep.subr.bf16.mxu0 %v7085
    %7230 = vmatpush1.bf16.msra.mxu0 %v7084
    %7231 = vmatprep.subr.bf16.mxu0 %v7081
    %7232 = vmatpush1.bf16.msra.mxu0 %v7080
    %7233 = vmatprep.subr.bf16.mxu0 %v7077
    %7234 = vmatpush1.bf16.msra.mxu0 %v7076
    %7235 = vmatprep.subr.bf16.mxu0 %v7073
    %7236 = vmatpush1.bf16.msra.mxu0 %v7072
    %7237 = vmatprep.subr.bf16.mxu0 %v7069
    %7238 = vmatpush1.bf16.msra.mxu0 %v7068
    %7239 = vmatprep.subr.bf16.mxu0 %v7065
    %7240 = vmatpush1.bf16.msra.mxu0 %v7064
    %7241 = vmatprep.subr.bf16.mxu0 %v7061
    %7242 = vmatpush1.bf16.msra.mxu0 %v7060
    %7243 = vmatprep.subr.bf16.mxu0 %v7121
    %7244 = vmatpush2.bf16.msra.mxu0 %v7120
    %7245 = vmatprep.subr.bf16.mxu0 %v7117
    %7246 = vmatpush2.bf16.msra.mxu0 %v7116
    %7247 = vmatprep.subr.bf16.mxu0 %v7113
    %7248 = vmatpush2.bf16.msra.mxu0 %v7112
    %7249 = vmatprep.subr.bf16.mxu0 %v7109
    %7250 = vmatpush2.bf16.msra.mxu0 %v7108
    %7251 = vmatprep.subr.bf16.mxu0 %v7105
    %7252 = vmatpush2.bf16.msra.mxu0 %v7104
    %7253 = vmatprep.subr.bf16.mxu0 %v7101
    %7254 = vmatpush2.bf16.msra.mxu0 %v7100
    %7255 = vmatprep.subr.bf16.mxu0 %v7097
    %7256 = vmatpush2.bf16.msra.mxu0 %v7096
    %7257 = vmatprep.subr.bf16.mxu0 %v7093
    %7258 = vmatpush2.bf16.msra.mxu0 %v7092
    %7259 = vmatprep.mubr.bf16.mxu0 %v6863
    %7260 = vmatmul.mubr.bf16.gmra.mxu0 %v6862
    %v7261 = vpop.f32.mrf.mxu0
    %v7262 = vadd.f32 0.0, %v7261
    %v7263 = vpop.f32.mrf.mxu0
    %v7264 = vadd.f32 0.0, %v7263
    %v7265 = vpop.f32.mrf.mxu0
    %v7266 = vpop.f32.mrf.mxu0
    %7267 = vdwg.mxu0
    %v7268 = vpack.c.b16 %v6725, %v6725
    %v7269 = vpack.c.b16 %v6726, %v6726
    %v7336 = vunpack.c.l.b16 %v6733
    %v7337 = vunpack.c.h.b16 %v6733
    %v7338 = vunpack.c.l.b16 %v6734
    %v7339 = vunpack.c.h.b16 %v6734
    %v7340 = vunpack.c.l.b16 %v6735
    %v7341 = vunpack.c.h.b16 %v6735
    %v7342 = vunpack.c.l.b16 %v6736
    %v7343 = vunpack.c.h.b16 %v6736
    %v7344 = vunpack.c.l.b16 %v6737
    %v7345 = vunpack.c.h.b16 %v6737
    %v7346 = vunpack.c.l.b16 %v6738
    %v7347 = vunpack.c.h.b16 %v6738
    %v7348 = vunpack.c.l.b16 %v6739
    %v7349 = vunpack.c.h.b16 %v6739
    %v7350 = vunpack.c.l.b16 %v6740
    %v7351 = vunpack.c.h.b16 %v6740
    %v7352 = vunpack.c.l.b16 %v6741
    %v7353 = vunpack.c.h.b16 %v6741
    %v7354 = vunpack.c.l.b16 %v6742
    %v7355 = vunpack.c.h.b16 %v6742
    %v7356 = vunpack.c.l.b16 %v6743
    %v7357 = vunpack.c.h.b16 %v6743
    %v7358 = vunpack.c.l.b16 %v6744
    %v7359 = vunpack.c.h.b16 %v6744
    %v7360 = vunpack.c.l.b16 %v6745
    %v7361 = vunpack.c.h.b16 %v6745
    %v7362 = vunpack.c.l.b16 %v6746
    %v7363 = vunpack.c.h.b16 %v6746
    %v7364 = vunpack.c.l.b16 %v6747
    %v7365 = vunpack.c.h.b16 %v6747
    %v7366 = vunpack.c.l.b16 %v6748
    %v7367 = vunpack.c.h.b16 %v6748
    %v7368 = vunpack.c.l.b16 %v6749
    %v7369 = vunpack.c.h.b16 %v6749
    %v7370 = vunpack.c.l.b16 %v6750
    %v7371 = vunpack.c.h.b16 %v6750
    %v7372 = vunpack.c.l.b16 %v6751
    %v7373 = vunpack.c.h.b16 %v6751
    %v7374 = vunpack.c.l.b16 %v6752
    %v7375 = vunpack.c.h.b16 %v6752
    %v7376 = vunpack.c.l.b16 %v6753
    %v7377 = vunpack.c.h.b16 %v6753
    %v7378 = vunpack.c.l.b16 %v6754
    %v7379 = vunpack.c.h.b16 %v6754
    %v7380 = vunpack.c.l.b16 %v6755
    %v7381 = vunpack.c.h.b16 %v6755
    %v7382 = vunpack.c.l.b16 %v6756
    %v7383 = vunpack.c.h.b16 %v6756
    %v7384 = vunpack.c.l.b16 %v6757
    %v7385 = vunpack.c.h.b16 %v6757
    %v7386 = vunpack.c.l.b16 %v6758
    %v7387 = vunpack.c.h.b16 %v6758
    %v7388 = vunpack.c.l.b16 %v6759
    %v7389 = vunpack.c.h.b16 %v6759
    %v7390 = vunpack.c.l.b16 %v6760
    %v7391 = vunpack.c.h.b16 %v6760
    %v7392 = vunpack.c.l.b16 %v6761
    %v7393 = vunpack.c.h.b16 %v6761
    %v7394 = vunpack.c.l.b16 %v6762
    %v7395 = vunpack.c.h.b16 %v6762
    %v7396 = vunpack.c.l.b16 %v6763
    %v7397 = vunpack.c.h.b16 %v6763
    %v7398 = vunpack.c.l.b16 %v6764
    %v7399 = vunpack.c.h.b16 %v6764
    %v7400 = vunpack.c.l.b16 %v6765
    %v7401 = vunpack.c.h.b16 %v6765
    %v7402 = vunpack.c.l.b16 %v6766
    %v7403 = vunpack.c.h.b16 %v6766
    %v7404 = vunpack.c.l.b16 %v6767
    %v7405 = vunpack.c.h.b16 %v6767
    %v7406 = vunpack.c.l.b16 %v6768
    %v7407 = vunpack.c.h.b16 %v6768
    %v7408 = vunpack.c.l.b16 %v6769
    %v7409 = vunpack.c.h.b16 %v6769
    %v7410 = vunpack.c.l.b16 %v6770
    %v7411 = vunpack.c.h.b16 %v6770
    %v7412 = vunpack.c.l.b16 %v6771
    %v7413 = vunpack.c.h.b16 %v6771
    %v7414 = vunpack.c.l.b16 %v6772
    %v7415 = vunpack.c.h.b16 %v6772
    %v7416 = vunpack.c.l.b16 %v6773
    %v7417 = vunpack.c.h.b16 %v6773
    %v7418 = vunpack.c.l.b16 %v6774
    %v7419 = vunpack.c.h.b16 %v6774
    %v7420 = vunpack.c.l.b16 %v6775
    %v7421 = vunpack.c.h.b16 %v6775
    %v7422 = vunpack.c.l.b16 %v6776
    %v7423 = vunpack.c.h.b16 %v6776
    %v7424 = vunpack.c.l.b16 %v6777
    %v7425 = vunpack.c.h.b16 %v6777
    %v7426 = vunpack.c.l.b16 %v6778
    %v7427 = vunpack.c.h.b16 %v6778
    %v7428 = vunpack.c.l.b16 %v6779
    %v7429 = vunpack.c.h.b16 %v6779
    %v7430 = vunpack.c.l.b16 %v6780
    %v7431 = vunpack.c.h.b16 %v6780
    %v7432 = vunpack.c.l.b16 %v6781
    %v7433 = vunpack.c.h.b16 %v6781
    %v7434 = vunpack.c.l.b16 %v6782
    %v7435 = vunpack.c.h.b16 %v6782
    %v7436 = vunpack.c.l.b16 %v6783
    %v7437 = vunpack.c.h.b16 %v6783
    %v7438 = vunpack.c.l.b16 %v6784
    %v7439 = vunpack.c.h.b16 %v6784
    %v7440 = vunpack.c.l.b16 %v6785
    %v7441 = vunpack.c.h.b16 %v6785
    %v7442 = vunpack.c.l.b16 %v6786
    %v7443 = vunpack.c.h.b16 %v6786
    %v7444 = vunpack.c.l.b16 %v6787
    %v7445 = vunpack.c.h.b16 %v6787
    %v7446 = vunpack.c.l.b16 %v6788
    %v7447 = vunpack.c.h.b16 %v6788
    %v7448 = vunpack.c.l.b16 %v6789
    %v7449 = vunpack.c.h.b16 %v6789
    %v7450 = vunpack.c.l.b16 %v6790
    %v7451 = vunpack.c.h.b16 %v6790
    %v7452 = vunpack.c.l.b16 %v6791
    %v7453 = vunpack.c.h.b16 %v6791
    %v7454 = vunpack.c.l.b16 %v6792
    %v7455 = vunpack.c.h.b16 %v6792
    %v7456 = vunpack.c.l.b16 %v6793
    %v7457 = vunpack.c.h.b16 %v6793
    %v7458 = vunpack.c.l.b16 %v6794
    %v7459 = vunpack.c.h.b16 %v6794
    %v7460 = vunpack.c.l.b16 %v6795
    %v7461 = vunpack.c.h.b16 %v6795
    %v7462 = vunpack.c.l.b16 %v6796
    %v7463 = vunpack.c.h.b16 %v6796
    %v7464 = vpack.c.b16 %v7340, %v7336
    %v7465 = vpack.c.b16 %v7341, %v7337
    %v7466 = vpack.c.b16 %v7342, %v7338
    %v7467 = vpack.c.b16 %v7343, %v7339
    %v7468 = vpack.c.b16 %v7348, %v7344
    %v7469 = vpack.c.b16 %v7349, %v7345
    %v7470 = vpack.c.b16 %v7350, %v7346
    %v7471 = vpack.c.b16 %v7351, %v7347
    %v7472 = vpack.c.b16 %v7356, %v7352
    %v7473 = vpack.c.b16 %v7357, %v7353
    %v7474 = vpack.c.b16 %v7358, %v7354
    %v7475 = vpack.c.b16 %v7359, %v7355
    %v7476 = vpack.c.b16 %v7364, %v7360
    %v7477 = vpack.c.b16 %v7365, %v7361
    %v7478 = vpack.c.b16 %v7366, %v7362
    %v7479 = vpack.c.b16 %v7367, %v7363
    %v7480 = vpack.c.b16 %v7372, %v7368
    %v7481 = vpack.c.b16 %v7373, %v7369
    %v7482 = vpack.c.b16 %v7374, %v7370
    %v7483 = vpack.c.b16 %v7375, %v7371
    %v7484 = vpack.c.b16 %v7380, %v7376
    %v7485 = vpack.c.b16 %v7381, %v7377
    %v7486 = vpack.c.b16 %v7382, %v7378
    %v7487 = vpack.c.b16 %v7383, %v7379
    %v7488 = vpack.c.b16 %v7388, %v7384
    %v7489 = vpack.c.b16 %v7389, %v7385
    %v7490 = vpack.c.b16 %v7390, %v7386
    %v7491 = vpack.c.b16 %v7391, %v7387
    %v7492 = vpack.c.b16 %v7396, %v7392
    %v7493 = vpack.c.b16 %v7397, %v7393
    %v7494 = vpack.c.b16 %v7398, %v7394
    %v7495 = vpack.c.b16 %v7399, %v7395
    %v7496 = vpack.c.b16 %v7404, %v7400
    %v7497 = vpack.c.b16 %v7405, %v7401
    %v7498 = vpack.c.b16 %v7406, %v7402
    %v7499 = vpack.c.b16 %v7407, %v7403
    %v7500 = vpack.c.b16 %v7412, %v7408
    %v7501 = vpack.c.b16 %v7413, %v7409
    %v7502 = vpack.c.b16 %v7414, %v7410
    %v7503 = vpack.c.b16 %v7415, %v7411
    %v7504 = vpack.c.b16 %v7420, %v7416
    %v7505 = vpack.c.b16 %v7421, %v7417
    %v7506 = vpack.c.b16 %v7422, %v7418
    %v7507 = vpack.c.b16 %v7423, %v7419
    %v7508 = vpack.c.b16 %v7428, %v7424
    %v7509 = vpack.c.b16 %v7429, %v7425
    %v7510 = vpack.c.b16 %v7430, %v7426
    %v7511 = vpack.c.b16 %v7431, %v7427
    %v7512 = vpack.c.b16 %v7436, %v7432
    %v7513 = vpack.c.b16 %v7437, %v7433
    %v7514 = vpack.c.b16 %v7438, %v7434
    %v7515 = vpack.c.b16 %v7439, %v7435
    %v7516 = vpack.c.b16 %v7444, %v7440
    %v7517 = vpack.c.b16 %v7445, %v7441
    %v7518 = vpack.c.b16 %v7446, %v7442
    %v7519 = vpack.c.b16 %v7447, %v7443
    %v7520 = vpack.c.b16 %v7452, %v7448
    %v7521 = vpack.c.b16 %v7453, %v7449
    %v7522 = vpack.c.b16 %v7454, %v7450
    %v7523 = vpack.c.b16 %v7455, %v7451
    %v7524 = vpack.c.b16 %v7460, %v7456
    %v7525 = vpack.c.b16 %v7461, %v7457
    %v7526 = vpack.c.b16 %v7462, %v7458
    %v7527 = vpack.c.b16 %v7463, %v7459
    %7592 = vmatprep.subr.bf16.mxu0 %v7493
    %7593 = vmatpush1.bf16.msra.mxu0 %v7492
    %7594 = vmatprep.subr.bf16.mxu0 %v7489
    %7595 = vmatpush1.bf16.msra.mxu0 %v7488
    %7596 = vmatprep.subr.bf16.mxu0 %v7485
    %7597 = vmatpush1.bf16.msra.mxu0 %v7484
    %7598 = vmatprep.subr.bf16.mxu0 %v7481
    %7599 = vmatpush1.bf16.msra.mxu0 %v7480
    %7600 = vmatprep.subr.bf16.mxu0 %v7477
    %7601 = vmatpush1.bf16.msra.mxu0 %v7476
    %7602 = vmatprep.subr.bf16.mxu0 %v7473
    %7603 = vmatpush1.bf16.msra.mxu0 %v7472
    %7604 = vmatprep.subr.bf16.mxu0 %v7469
    %7605 = vmatpush1.bf16.msra.mxu0 %v7468
    %7606 = vmatprep.subr.bf16.mxu0 %v7465
    %7607 = vmatpush1.bf16.msra.mxu0 %v7464
    %7608 = vmatprep.subr.bf16.mxu0 %v7525
    %7609 = vmatpush2.bf16.msra.mxu0 %v7524
    %7610 = vmatprep.subr.bf16.mxu0 %v7521
    %7611 = vmatpush2.bf16.msra.mxu0 %v7520
    %7612 = vmatprep.subr.bf16.mxu0 %v7517
    %7613 = vmatpush2.bf16.msra.mxu0 %v7516
    %7614 = vmatprep.subr.bf16.mxu0 %v7513
    %7615 = vmatpush2.bf16.msra.mxu0 %v7512
    %7616 = vmatprep.subr.bf16.mxu0 %v7509
    %7617 = vmatpush2.bf16.msra.mxu0 %v7508
    %7618 = vmatprep.subr.bf16.mxu0 %v7505
    %7619 = vmatpush2.bf16.msra.mxu0 %v7504
    %7620 = vmatprep.subr.bf16.mxu0 %v7501
    %7621 = vmatpush2.bf16.msra.mxu0 %v7500
    %7622 = vmatprep.subr.bf16.mxu0 %v7497
    %7623 = vmatpush2.bf16.msra.mxu0 %v7496
    %7624 = vmatprep.mubr.bf16.mxu0 %v7269
    %7625 = vmatmul.mubr.bf16.gmra.mxu0 %v7268
    %v7626 = vpop.f32.mrf.mxu0
    %v7627 = vadd.f32 %v7221, %v7626
    %v7628 = vpop.f32.mrf.mxu0
    %v7629 = vadd.f32 %v7223, %v7628
    %v7630 = vpop.f32.mrf.mxu0
    %v7631 = vpop.f32.mrf.mxu0
    %7632 = vdwg.mxu0
    %7633 = vmatprep.subr.bf16.mxu0 %v7495
    %7634 = vmatpush1.bf16.msra.mxu0 %v7494
    %7635 = vmatprep.subr.bf16.mxu0 %v7491
    %7636 = vmatpush1.bf16.msra.mxu0 %v7490
    %7637 = vmatprep.subr.bf16.mxu0 %v7487
    %7638 = vmatpush1.bf16.msra.mxu0 %v7486
    %7639 = vmatprep.subr.bf16.mxu0 %v7483
    %7640 = vmatpush1.bf16.msra.mxu0 %v7482
    %7641 = vmatprep.subr.bf16.mxu0 %v7479
    %7642 = vmatpush1.bf16.msra.mxu0 %v7478
    %7643 = vmatprep.subr.bf16.mxu0 %v7475
    %7644 = vmatpush1.bf16.msra.mxu0 %v7474
    %7645 = vmatprep.subr.bf16.mxu0 %v7471
    %7646 = vmatpush1.bf16.msra.mxu0 %v7470
    %7647 = vmatprep.subr.bf16.mxu0 %v7467
    %7648 = vmatpush1.bf16.msra.mxu0 %v7466
    %7649 = vmatprep.subr.bf16.mxu0 %v7527
    %7650 = vmatpush2.bf16.msra.mxu0 %v7526
    %7651 = vmatprep.subr.bf16.mxu0 %v7523
    %7652 = vmatpush2.bf16.msra.mxu0 %v7522
    %7653 = vmatprep.subr.bf16.mxu0 %v7519
    %7654 = vmatpush2.bf16.msra.mxu0 %v7518
    %7655 = vmatprep.subr.bf16.mxu0 %v7515
    %7656 = vmatpush2.bf16.msra.mxu0 %v7514
    %7657 = vmatprep.subr.bf16.mxu0 %v7511
    %7658 = vmatpush2.bf16.msra.mxu0 %v7510
    %7659 = vmatprep.subr.bf16.mxu0 %v7507
    %7660 = vmatpush2.bf16.msra.mxu0 %v7506
    %7661 = vmatprep.subr.bf16.mxu0 %v7503
    %7662 = vmatpush2.bf16.msra.mxu0 %v7502
    %7663 = vmatprep.subr.bf16.mxu0 %v7499
    %7664 = vmatpush2.bf16.msra.mxu0 %v7498
    %7665 = vmatprep.mubr.bf16.mxu0 %v7269
    %7666 = vmatmul.mubr.bf16.gmra.mxu0 %v7268
    %v7667 = vpop.f32.mrf.mxu0
    %v7668 = vadd.f32 %v7262, %v7667
    %v7669 = vpop.f32.mrf.mxu0
    %v7670 = vadd.f32 %v7264, %v7669
    %v7671 = vpop.f32.mrf.mxu0
    %v7672 = vpop.f32.mrf.mxu0
    %7673 = vdwg.mxu0
    %s7674 = scalar_lea.vmem [#allocation9], 1024
    %v7675 = vld [vmem:[%s7674] sm:$0xff]
    %v7676 = vld [vmem:[%s7674 + $0x8] sm:$0xff]
    %v7677 = vld [vmem:[%s7674 + $0x10] sm:$0xff]
    %v7678 = vld [vmem:[%s7674 + $0x18] sm:$0xff]
    %v7679 = vld [vmem:[%s7674 + $0x20] sm:$0xff]
    %v7680 = vld [vmem:[%s7674 + $0x28] sm:$0xff]
    %v7681 = vld [vmem:[%s7674 + $0x30] sm:$0xff]
    %v7682 = vld [vmem:[%s7674 + $0x38] sm:$0xff]
    %v7683 = vld [vmem:[%s7674 + $0x40] sm:$0xff]
    %v7684 = vld [vmem:[%s7674 + $0x48] sm:$0xff]
    %v7685 = vld [vmem:[%s7674 + $0x50] sm:$0xff]
    %v7686 = vld [vmem:[%s7674 + $0x58] sm:$0xff]
    %v7687 = vld [vmem:[%s7674 + $0x60] sm:$0xff]
    %v7688 = vld [vmem:[%s7674 + $0x68] sm:$0xff]
    %v7689 = vld [vmem:[%s7674 + $0x70] sm:$0xff]
    %v7690 = vld [vmem:[%s7674 + $0x78] sm:$0xff]
    %v7691 = vld [vmem:[%s7674 + $0x80] sm:$0xff]
    %v7692 = vld [vmem:[%s7674 + $0x88] sm:$0xff]
    %v7693 = vld [vmem:[%s7674 + $0x90] sm:$0xff]
    %v7694 = vld [vmem:[%s7674 + $0x98] sm:$0xff]
    %v7695 = vld [vmem:[%s7674 + $0xa0] sm:$0xff]
    %v7696 = vld [vmem:[%s7674 + $0xa8] sm:$0xff]
    %v7697 = vld [vmem:[%s7674 + $0xb0] sm:$0xff]
    %v7698 = vld [vmem:[%s7674 + $0xb8] sm:$0xff]
    %v7699 = vld [vmem:[%s7674 + $0xc0] sm:$0xff]
    %v7700 = vld [vmem:[%s7674 + $0xc8] sm:$0xff]
    %v7701 = vld [vmem:[%s7674 + $0xd0] sm:$0xff]
    %v7702 = vld [vmem:[%s7674 + $0xd8] sm:$0xff]
    %v7703 = vld [vmem:[%s7674 + $0xe0] sm:$0xff]
    %v7704 = vld [vmem:[%s7674 + $0xe8] sm:$0xff]
    %v7705 = vld [vmem:[%s7674 + $0xf0] sm:$0xff]
    %v7706 = vld [vmem:[%s7674 + $0xf8] sm:$0xff]
    %v7707 = vld [vmem:[%s7674 + $0x100] sm:$0xff]
    %v7708 = vld [vmem:[%s7674 + $0x108] sm:$0xff]
    %v7709 = vld [vmem:[%s7674 + $0x110] sm:$0xff]
    %v7710 = vld [vmem:[%s7674 + $0x118] sm:$0xff]
    %v7711 = vld [vmem:[%s7674 + $0x120] sm:$0xff]
    %v7712 = vld [vmem:[%s7674 + $0x128] sm:$0xff]
    %v7713 = vld [vmem:[%s7674 + $0x130] sm:$0xff]
    %v7714 = vld [vmem:[%s7674 + $0x138] sm:$0xff]
    %v7715 = vld [vmem:[%s7674 + $0x140] sm:$0xff]
    %v7716 = vld [vmem:[%s7674 + $0x148] sm:$0xff]
    %v7717 = vld [vmem:[%s7674 + $0x150] sm:$0xff]
    %v7718 = vld [vmem:[%s7674 + $0x158] sm:$0xff]
    %v7719 = vld [vmem:[%s7674 + $0x160] sm:$0xff]
    %v7720 = vld [vmem:[%s7674 + $0x168] sm:$0xff]
    %v7721 = vld [vmem:[%s7674 + $0x170] sm:$0xff]
    %v7722 = vld [vmem:[%s7674 + $0x178] sm:$0xff]
    %v7723 = vld [vmem:[%s7674 + $0x180] sm:$0xff]
    %v7724 = vld [vmem:[%s7674 + $0x188] sm:$0xff]
    %v7725 = vld [vmem:[%s7674 + $0x190] sm:$0xff]
    %v7726 = vld [vmem:[%s7674 + $0x198] sm:$0xff]
    %v7727 = vld [vmem:[%s7674 + $0x1a0] sm:$0xff]
    %v7728 = vld [vmem:[%s7674 + $0x1a8] sm:$0xff]
    %v7729 = vld [vmem:[%s7674 + $0x1b0] sm:$0xff]
    %v7730 = vld [vmem:[%s7674 + $0x1b8] sm:$0xff]
    %v7731 = vld [vmem:[%s7674 + $0x1c0] sm:$0xff]
    %v7732 = vld [vmem:[%s7674 + $0x1c8] sm:$0xff]
    %v7733 = vld [vmem:[%s7674 + $0x1d0] sm:$0xff]
    %v7734 = vld [vmem:[%s7674 + $0x1d8] sm:$0xff]
    %v7735 = vld [vmem:[%s7674 + $0x1e0] sm:$0xff]
    %v7736 = vld [vmem:[%s7674 + $0x1e8] sm:$0xff]
    %v7737 = vld [vmem:[%s7674 + $0x1f0] sm:$0xff]
    %v7738 = vld [vmem:[%s7674 + $0x1f8] sm:$0xff]
    %v7739 = vpack.c.b16 %v6729, %v6729
    %v7740 = vpack.c.b16 %v6730, %v6730
    %v7807 = vunpack.c.l.b16 %v7675
    %v7808 = vunpack.c.h.b16 %v7675
    %v7809 = vunpack.c.l.b16 %v7676
    %v7810 = vunpack.c.h.b16 %v7676
    %v7811 = vunpack.c.l.b16 %v7677
    %v7812 = vunpack.c.h.b16 %v7677
    %v7813 = vunpack.c.l.b16 %v7678
    %v7814 = vunpack.c.h.b16 %v7678
    %v7815 = vunpack.c.l.b16 %v7679
    %v7816 = vunpack.c.h.b16 %v7679
    %v7817 = vunpack.c.l.b16 %v7680
    %v7818 = vunpack.c.h.b16 %v7680
    %v7819 = vunpack.c.l.b16 %v7681
    %v7820 = vunpack.c.h.b16 %v7681
    %v7821 = vunpack.c.l.b16 %v7682
    %v7822 = vunpack.c.h.b16 %v7682
    %v7823 = vunpack.c.l.b16 %v7683
    %v7824 = vunpack.c.h.b16 %v7683
    %v7825 = vunpack.c.l.b16 %v7684
    %v7826 = vunpack.c.h.b16 %v7684
    %v7827 = vunpack.c.l.b16 %v7685
    %v7828 = vunpack.c.h.b16 %v7685
    %v7829 = vunpack.c.l.b16 %v7686
    %v7830 = vunpack.c.h.b16 %v7686
    %v7831 = vunpack.c.l.b16 %v7687
    %v7832 = vunpack.c.h.b16 %v7687
    %v7833 = vunpack.c.l.b16 %v7688
    %v7834 = vunpack.c.h.b16 %v7688
    %v7835 = vunpack.c.l.b16 %v7689
    %v7836 = vunpack.c.h.b16 %v7689
    %v7837 = vunpack.c.l.b16 %v7690
    %v7838 = vunpack.c.h.b16 %v7690
    %v7839 = vunpack.c.l.b16 %v7691
    %v7840 = vunpack.c.h.b16 %v7691
    %v7841 = vunpack.c.l.b16 %v7692
    %v7842 = vunpack.c.h.b16 %v7692
    %v7843 = vunpack.c.l.b16 %v7693
    %v7844 = vunpack.c.h.b16 %v7693
    %v7845 = vunpack.c.l.b16 %v7694
    %v7846 = vunpack.c.h.b16 %v7694
    %v7847 = vunpack.c.l.b16 %v7695
    %v7848 = vunpack.c.h.b16 %v7695
    %v7849 = vunpack.c.l.b16 %v7696
    %v7850 = vunpack.c.h.b16 %v7696
    %v7851 = vunpack.c.l.b16 %v7697
    %v7852 = vunpack.c.h.b16 %v7697
    %v7853 = vunpack.c.l.b16 %v7698
    %v7854 = vunpack.c.h.b16 %v7698
    %v7855 = vunpack.c.l.b16 %v7699
    %v7856 = vunpack.c.h.b16 %v7699
    %v7857 = vunpack.c.l.b16 %v7700
    %v7858 = vunpack.c.h.b16 %v7700
    %v7859 = vunpack.c.l.b16 %v7701
    %v7860 = vunpack.c.h.b16 %v7701
    %v7861 = vunpack.c.l.b16 %v7702
    %v7862 = vunpack.c.h.b16 %v7702
    %v7863 = vunpack.c.l.b16 %v7703
    %v7864 = vunpack.c.h.b16 %v7703
    %v7865 = vunpack.c.l.b16 %v7704
    %v7866 = vunpack.c.h.b16 %v7704
    %v7867 = vunpack.c.l.b16 %v7705
    %v7868 = vunpack.c.h.b16 %v7705
    %v7869 = vunpack.c.l.b16 %v7706
    %v7870 = vunpack.c.h.b16 %v7706
    %v7871 = vunpack.c.l.b16 %v7707
    %v7872 = vunpack.c.h.b16 %v7707
    %v7873 = vunpack.c.l.b16 %v7708
    %v7874 = vunpack.c.h.b16 %v7708
    %v7875 = vunpack.c.l.b16 %v7709
    %v7876 = vunpack.c.h.b16 %v7709
    %v7877 = vunpack.c.l.b16 %v7710
    %v7878 = vunpack.c.h.b16 %v7710
    %v7879 = vunpack.c.l.b16 %v7711
    %v7880 = vunpack.c.h.b16 %v7711
    %v7881 = vunpack.c.l.b16 %v7712
    %v7882 = vunpack.c.h.b16 %v7712
    %v7883 = vunpack.c.l.b16 %v7713
    %v7884 = vunpack.c.h.b16 %v7713
    %v7885 = vunpack.c.l.b16 %v7714
    %v7886 = vunpack.c.h.b16 %v7714
    %v7887 = vunpack.c.l.b16 %v7715
    %v7888 = vunpack.c.h.b16 %v7715
    %v7889 = vunpack.c.l.b16 %v7716
    %v7890 = vunpack.c.h.b16 %v7716
    %v7891 = vunpack.c.l.b16 %v7717
    %v7892 = vunpack.c.h.b16 %v7717
    %v7893 = vunpack.c.l.b16 %v7718
    %v7894 = vunpack.c.h.b16 %v7718
    %v7895 = vunpack.c.l.b16 %v7719
    %v7896 = vunpack.c.h.b16 %v7719
    %v7897 = vunpack.c.l.b16 %v7720
    %v7898 = vunpack.c.h.b16 %v7720
    %v7899 = vunpack.c.l.b16 %v7721
    %v7900 = vunpack.c.h.b16 %v7721
    %v7901 = vunpack.c.l.b16 %v7722
    %v7902 = vunpack.c.h.b16 %v7722
    %v7903 = vunpack.c.l.b16 %v7723
    %v7904 = vunpack.c.h.b16 %v7723
    %v7905 = vunpack.c.l.b16 %v7724
    %v7906 = vunpack.c.h.b16 %v7724
    %v7907 = vunpack.c.l.b16 %v7725
    %v7908 = vunpack.c.h.b16 %v7725
    %v7909 = vunpack.c.l.b16 %v7726
    %v7910 = vunpack.c.h.b16 %v7726
    %v7911 = vunpack.c.l.b16 %v7727
    %v7912 = vunpack.c.h.b16 %v7727
    %v7913 = vunpack.c.l.b16 %v7728
    %v7914 = vunpack.c.h.b16 %v7728
    %v7915 = vunpack.c.l.b16 %v7729
    %v7916 = vunpack.c.h.b16 %v7729
    %v7917 = vunpack.c.l.b16 %v7730
    %v7918 = vunpack.c.h.b16 %v7730
    %v7919 = vunpack.c.l.b16 %v7731
    %v7920 = vunpack.c.h.b16 %v7731
    %v7921 = vunpack.c.l.b16 %v7732
    %v7922 = vunpack.c.h.b16 %v7732
    %v7923 = vunpack.c.l.b16 %v7733
    %v7924 = vunpack.c.h.b16 %v7733
    %v7925 = vunpack.c.l.b16 %v7734
    %v7926 = vunpack.c.h.b16 %v7734
    %v7927 = vunpack.c.l.b16 %v7735
    %v7928 = vunpack.c.h.b16 %v7735
    %v7929 = vunpack.c.l.b16 %v7736
    %v7930 = vunpack.c.h.b16 %v7736
    %v7931 = vunpack.c.l.b16 %v7737
    %v7932 = vunpack.c.h.b16 %v7737
    %v7933 = vunpack.c.l.b16 %v7738
    %v7934 = vunpack.c.h.b16 %v7738
    %v7935 = vpack.c.b16 %v7811, %v7807
    %v7936 = vpack.c.b16 %v7812, %v7808
    %v7937 = vpack.c.b16 %v7813, %v7809
    %v7938 = vpack.c.b16 %v7814, %v7810
    %v7939 = vpack.c.b16 %v7819, %v7815
    %v7940 = vpack.c.b16 %v7820, %v7816
    %v7941 = vpack.c.b16 %v7821, %v7817
    %v7942 = vpack.c.b16 %v7822, %v7818
    %v7943 = vpack.c.b16 %v7827, %v7823
    %v7944 = vpack.c.b16 %v7828, %v7824
    %v7945 = vpack.c.b16 %v7829, %v7825
    %v7946 = vpack.c.b16 %v7830, %v7826
    %v7947 = vpack.c.b16 %v7835, %v7831
    %v7948 = vpack.c.b16 %v7836, %v7832
    %v7949 = vpack.c.b16 %v7837, %v7833
    %v7950 = vpack.c.b16 %v7838, %v7834
    %v7951 = vpack.c.b16 %v7843, %v7839
    %v7952 = vpack.c.b16 %v7844, %v7840
    %v7953 = vpack.c.b16 %v7845, %v7841
    %v7954 = vpack.c.b16 %v7846, %v7842
    %v7955 = vpack.c.b16 %v7851, %v7847
    %v7956 = vpack.c.b16 %v7852, %v7848
    %v7957 = vpack.c.b16 %v7853, %v7849
    %v7958 = vpack.c.b16 %v7854, %v7850
    %v7959 = vpack.c.b16 %v7859, %v7855
    %v7960 = vpack.c.b16 %v7860, %v7856
    %v7961 = vpack.c.b16 %v7861, %v7857
    %v7962 = vpack.c.b16 %v7862, %v7858
    %v7963 = vpack.c.b16 %v7867, %v7863
    %v7964 = vpack.c.b16 %v7868, %v7864
    %v7965 = vpack.c.b16 %v7869, %v7865
    %v7966 = vpack.c.b16 %v7870, %v7866
    %v7967 = vpack.c.b16 %v7875, %v7871
    %v7968 = vpack.c.b16 %v7876, %v7872
    %v7969 = vpack.c.b16 %v7877, %v7873
    %v7970 = vpack.c.b16 %v7878, %v7874
    %v7971 = vpack.c.b16 %v7883, %v7879
    %v7972 = vpack.c.b16 %v7884, %v7880
    %v7973 = vpack.c.b16 %v7885, %v7881
    %v7974 = vpack.c.b16 %v7886, %v7882
    %v7975 = vpack.c.b16 %v7891, %v7887
    %v7976 = vpack.c.b16 %v7892, %v7888
    %v7977 = vpack.c.b16 %v7893, %v7889
    %v7978 = vpack.c.b16 %v7894, %v7890
    %v7979 = vpack.c.b16 %v7899, %v7895
    %v7980 = vpack.c.b16 %v7900, %v7896
    %v7981 = vpack.c.b16 %v7901, %v7897
    %v7982 = vpack.c.b16 %v7902, %v7898
    %v7983 = vpack.c.b16 %v7907, %v7903
    %v7984 = vpack.c.b16 %v7908, %v7904
    %v7985 = vpack.c.b16 %v7909, %v7905
    %v7986 = vpack.c.b16 %v7910, %v7906
    %v7987 = vpack.c.b16 %v7915, %v7911
    %v7988 = vpack.c.b16 %v7916, %v7912
    %v7989 = vpack.c.b16 %v7917, %v7913
    %v7990 = vpack.c.b16 %v7918, %v7914
    %v7991 = vpack.c.b16 %v7923, %v7919
    %v7992 = vpack.c.b16 %v7924, %v7920
    %v7993 = vpack.c.b16 %v7925, %v7921
    %v7994 = vpack.c.b16 %v7926, %v7922
    %v7995 = vpack.c.b16 %v7931, %v7927
    %v7996 = vpack.c.b16 %v7932, %v7928
    %v7997 = vpack.c.b16 %v7933, %v7929
    %v7998 = vpack.c.b16 %v7934, %v7930
    %8063 = vmatprep.subr.bf16.mxu0 %v7964
    %8064 = vmatpush1.bf16.msra.mxu0 %v7963
    %8065 = vmatprep.subr.bf16.mxu0 %v7960
    %8066 = vmatpush1.bf16.msra.mxu0 %v7959
    %8067 = vmatprep.subr.bf16.mxu0 %v7956
    %8068 = vmatpush1.bf16.msra.mxu0 %v7955
    %8069 = vmatprep.subr.bf16.mxu0 %v7952
    %8070 = vmatpush1.bf16.msra.mxu0 %v7951
    %8071 = vmatprep.subr.bf16.mxu0 %v7948
    %8072 = vmatpush1.bf16.msra.mxu0 %v7947
    %8073 = vmatprep.subr.bf16.mxu0 %v7944
    %8074 = vmatpush1.bf16.msra.mxu0 %v7943
    %8075 = vmatprep.subr.bf16.mxu0 %v7940
    %8076 = vmatpush1.bf16.msra.mxu0 %v7939
    %8077 = vmatprep.subr.bf16.mxu0 %v7936
    %8078 = vmatpush1.bf16.msra.mxu0 %v7935
    %8079 = vmatprep.subr.bf16.mxu0 %v7996
    %8080 = vmatpush2.bf16.msra.mxu0 %v7995
    %8081 = vmatprep.subr.bf16.mxu0 %v7992
    %8082 = vmatpush2.bf16.msra.mxu0 %v7991
    %8083 = vmatprep.subr.bf16.mxu0 %v7988
    %8084 = vmatpush2.bf16.msra.mxu0 %v7987
    %8085 = vmatprep.subr.bf16.mxu0 %v7984
    %8086 = vmatpush2.bf16.msra.mxu0 %v7983
    %8087 = vmatprep.subr.bf16.mxu0 %v7980
    %8088 = vmatpush2.bf16.msra.mxu0 %v7979
    %8089 = vmatprep.subr.bf16.mxu0 %v7976
    %8090 = vmatpush2.bf16.msra.mxu0 %v7975
    %8091 = vmatprep.subr.bf16.mxu0 %v7972
    %8092 = vmatpush2.bf16.msra.mxu0 %v7971
    %8093 = vmatprep.subr.bf16.mxu0 %v7968
    %8094 = vmatpush2.bf16.msra.mxu0 %v7967
    %8095 = vmatprep.mubr.bf16.mxu0 %v7740
    %8096 = vmatmul.mubr.bf16.gmra.mxu0 %v7739
    %v8097 = vpop.f32.mrf.mxu0
    %v8098 = vadd.f32 0.0, %v8097
    %v8099 = vpop.f32.mrf.mxu0
    %v8100 = vadd.f32 0.0, %v8099
    %v8101 = vpop.f32.mrf.mxu0
    %v8102 = vpop.f32.mrf.mxu0
    %8103 = vdwg.mxu0
    %8104 = vmatprep.subr.bf16.mxu0 %v7966
    %8105 = vmatpush1.bf16.msra.mxu0 %v7965
    %8106 = vmatprep.subr.bf16.mxu0 %v7962
    %8107 = vmatpush1.bf16.msra.mxu0 %v7961
    %8108 = vmatprep.subr.bf16.mxu0 %v7958
    %8109 = vmatpush1.bf16.msra.mxu0 %v7957
    %8110 = vmatprep.subr.bf16.mxu0 %v7954
    %8111 = vmatpush1.bf16.msra.mxu0 %v7953
    %8112 = vmatprep.subr.bf16.mxu0 %v7950
    %8113 = vmatpush1.bf16.msra.mxu0 %v7949
    %8114 = vmatprep.subr.bf16.mxu0 %v7946
    %8115 = vmatpush1.bf16.msra.mxu0 %v7945
    %8116 = vmatprep.subr.bf16.mxu0 %v7942
    %8117 = vmatpush1.bf16.msra.mxu0 %v7941
    %8118 = vmatprep.subr.bf16.mxu0 %v7938
    %8119 = vmatpush1.bf16.msra.mxu0 %v7937
    %8120 = vmatprep.subr.bf16.mxu0 %v7998
    %8121 = vmatpush2.bf16.msra.mxu0 %v7997
    %8122 = vmatprep.subr.bf16.mxu0 %v7994
    %8123 = vmatpush2.bf16.msra.mxu0 %v7993
    %8124 = vmatprep.subr.bf16.mxu0 %v7990
    %8125 = vmatpush2.bf16.msra.mxu0 %v7989
    %8126 = vmatprep.subr.bf16.mxu0 %v7986
    %8127 = vmatpush2.bf16.msra.mxu0 %v7985
    %8128 = vmatprep.subr.bf16.mxu0 %v7982
    %8129 = vmatpush2.bf16.msra.mxu0 %v7981
    %8130 = vmatprep.subr.bf16.mxu0 %v7978
    %8131 = vmatpush2.bf16.msra.mxu0 %v7977
    %8132 = vmatprep.subr.bf16.mxu0 %v7974
    %8133 = vmatpush2.bf16.msra.mxu0 %v7973
    %8134 = vmatprep.subr.bf16.mxu0 %v7970
    %8135 = vmatpush2.bf16.msra.mxu0 %v7969
    %8136 = vmatprep.mubr.bf16.mxu0 %v7740
    %8137 = vmatmul.mubr.bf16.gmra.mxu0 %v7739
    %v8138 = vpop.f32.mrf.mxu0
    %v8139 = vadd.f32 0.0, %v8138
    %v8140 = vpop.f32.mrf.mxu0
    %v8141 = vadd.f32 0.0, %v8140
    %v8142 = vpop.f32.mrf.mxu0
    %v8143 = vpop.f32.mrf.mxu0
    %8144 = vdwg.mxu0
    %v8145 = vadd.f32 %v7627, %v8098
    %v8146 = vadd.f32 %v7629, %v8100
    %v8147 = vadd.f32 %v7668, %v8139
    %v8148 = vadd.f32 %v7670, %v8141
    %s8149 = scalar_lea.vmem [#allocation9], 1536
    %v8150 = vld [vmem:[%s8149] sm:$0xff]
    %v8151 = vld [vmem:[%s8149 + $0x8] sm:$0xff]
    %v8152 = vld [vmem:[%s8149 + $0x10] sm:$0xff]
    %v8153 = vld [vmem:[%s8149 + $0x18] sm:$0xff]
    %v8154 = vld [vmem:[%s8149 + $0x20] sm:$0xff]
    %v8155 = vld [vmem:[%s8149 + $0x28] sm:$0xff]
    %v8156 = vld [vmem:[%s8149 + $0x30] sm:$0xff]
    %v8157 = vld [vmem:[%s8149 + $0x38] sm:$0xff]
    %v8158 = vld [vmem:[%s8149 + $0x40] sm:$0xff]
    %v8159 = vld [vmem:[%s8149 + $0x48] sm:$0xff]
    %v8160 = vld [vmem:[%s8149 + $0x50] sm:$0xff]
    %v8161 = vld [vmem:[%s8149 + $0x58] sm:$0xff]
    %v8162 = vld [vmem:[%s8149 + $0x60] sm:$0xff]
    %v8163 = vld [vmem:[%s8149 + $0x68] sm:$0xff]
    %v8164 = vld [vmem:[%s8149 + $0x70] sm:$0xff]
    %v8165 = vld [vmem:[%s8149 + $0x78] sm:$0xff]
    %v8166 = vld [vmem:[%s8149 + $0x80] sm:$0xff]
    %v8167 = vld [vmem:[%s8149 + $0x88] sm:$0xff]
    %v8168 = vld [vmem:[%s8149 + $0x90] sm:$0xff]
    %v8169 = vld [vmem:[%s8149 + $0x98] sm:$0xff]
    %v8170 = vld [vmem:[%s8149 + $0xa0] sm:$0xff]
    %v8171 = vld [vmem:[%s8149 + $0xa8] sm:$0xff]
    %v8172 = vld [vmem:[%s8149 + $0xb0] sm:$0xff]
    %v8173 = vld [vmem:[%s8149 + $0xb8] sm:$0xff]
    %v8174 = vld [vmem:[%s8149 + $0xc0] sm:$0xff]
    %v8175 = vld [vmem:[%s8149 + $0xc8] sm:$0xff]
    %v8176 = vld [vmem:[%s8149 + $0xd0] sm:$0xff]
    %v8177 = vld [vmem:[%s8149 + $0xd8] sm:$0xff]
    %v8178 = vld [vmem:[%s8149 + $0xe0] sm:$0xff]
    %v8179 = vld [vmem:[%s8149 + $0xe8] sm:$0xff]
    %v8180 = vld [vmem:[%s8149 + $0xf0] sm:$0xff]
    %v8181 = vld [vmem:[%s8149 + $0xf8] sm:$0xff]
    %v8182 = vld [vmem:[%s8149 + $0x100] sm:$0xff]
    %v8183 = vld [vmem:[%s8149 + $0x108] sm:$0xff]
    %v8184 = vld [vmem:[%s8149 + $0x110] sm:$0xff]
    %v8185 = vld [vmem:[%s8149 + $0x118] sm:$0xff]
    %v8186 = vld [vmem:[%s8149 + $0x120] sm:$0xff]
    %v8187 = vld [vmem:[%s8149 + $0x128] sm:$0xff]
    %v8188 = vld [vmem:[%s8149 + $0x130] sm:$0xff]
    %v8189 = vld [vmem:[%s8149 + $0x138] sm:$0xff]
    %v8190 = vld [vmem:[%s8149 + $0x140] sm:$0xff]
    %v8191 = vld [vmem:[%s8149 + $0x148] sm:$0xff]
    %v8192 = vld [vmem:[%s8149 + $0x150] sm:$0xff]
    %v8193 = vld [vmem:[%s8149 + $0x158] sm:$0xff]
    %v8194 = vld [vmem:[%s8149 + $0x160] sm:$0xff]
    %v8195 = vld [vmem:[%s8149 + $0x168] sm:$0xff]
    %v8196 = vld [vmem:[%s8149 + $0x170] sm:$0xff]
    %v8197 = vld [vmem:[%s8149 + $0x178] sm:$0xff]
    %v8198 = vld [vmem:[%s8149 + $0x180] sm:$0xff]
    %v8199 = vld [vmem:[%s8149 + $0x188] sm:$0xff]
    %v8200 = vld [vmem:[%s8149 + $0x190] sm:$0xff]
    %v8201 = vld [vmem:[%s8149 + $0x198] sm:$0xff]
    %v8202 = vld [vmem:[%s8149 + $0x1a0] sm:$0xff]
    %v8203 = vld [vmem:[%s8149 + $0x1a8] sm:$0xff]
    %v8204 = vld [vmem:[%s8149 + $0x1b0] sm:$0xff]
    %v8205 = vld [vmem:[%s8149 + $0x1b8] sm:$0xff]
    %v8206 = vld [vmem:[%s8149 + $0x1c0] sm:$0xff]
    %v8207 = vld [vmem:[%s8149 + $0x1c8] sm:$0xff]
    %v8208 = vld [vmem:[%s8149 + $0x1d0] sm:$0xff]
    %v8209 = vld [vmem:[%s8149 + $0x1d8] sm:$0xff]
    %v8210 = vld [vmem:[%s8149 + $0x1e0] sm:$0xff]
    %v8211 = vld [vmem:[%s8149 + $0x1e8] sm:$0xff]
    %v8212 = vld [vmem:[%s8149 + $0x1f0] sm:$0xff]
    %v8213 = vld [vmem:[%s8149 + $0x1f8] sm:$0xff]
    %v8214 = vpack.c.b16 %v6731, %v6731
    %v8215 = vpack.c.b16 %v6732, %v6732
    %v8282 = vunpack.c.l.b16 %v8150
    %v8283 = vunpack.c.h.b16 %v8150
    %v8284 = vunpack.c.l.b16 %v8151
    %v8285 = vunpack.c.h.b16 %v8151
    %v8286 = vunpack.c.l.b16 %v8152
    %v8287 = vunpack.c.h.b16 %v8152
    %v8288 = vunpack.c.l.b16 %v8153
    %v8289 = vunpack.c.h.b16 %v8153
    %v8290 = vunpack.c.l.b16 %v8154
    %v8291 = vunpack.c.h.b16 %v8154
    %v8292 = vunpack.c.l.b16 %v8155
    %v8293 = vunpack.c.h.b16 %v8155
    %v8294 = vunpack.c.l.b16 %v8156
    %v8295 = vunpack.c.h.b16 %v8156
    %v8296 = vunpack.c.l.b16 %v8157
    %v8297 = vunpack.c.h.b16 %v8157
    %v8298 = vunpack.c.l.b16 %v8158
    %v8299 = vunpack.c.h.b16 %v8158
    %v8300 = vunpack.c.l.b16 %v8159
    %v8301 = vunpack.c.h.b16 %v8159
    %v8302 = vunpack.c.l.b16 %v8160
    %v8303 = vunpack.c.h.b16 %v8160
    %v8304 = vunpack.c.l.b16 %v8161
    %v8305 = vunpack.c.h.b16 %v8161
    %v8306 = vunpack.c.l.b16 %v8162
    %v8307 = vunpack.c.h.b16 %v8162
    %v8308 = vunpack.c.l.b16 %v8163
    %v8309 = vunpack.c.h.b16 %v8163
    %v8310 = vunpack.c.l.b16 %v8164
    %v8311 = vunpack.c.h.b16 %v8164
    %v8312 = vunpack.c.l.b16 %v8165
    %v8313 = vunpack.c.h.b16 %v8165
    %v8314 = vunpack.c.l.b16 %v8166
    %v8315 = vunpack.c.h.b16 %v8166
    %v8316 = vunpack.c.l.b16 %v8167
    %v8317 = vunpack.c.h.b16 %v8167
    %v8318 = vunpack.c.l.b16 %v8168
    %v8319 = vunpack.c.h.b16 %v8168
    %v8320 = vunpack.c.l.b16 %v8169
    %v8321 = vunpack.c.h.b16 %v8169
    %v8322 = vunpack.c.l.b16 %v8170
    %v8323 = vunpack.c.h.b16 %v8170
    %v8324 = vunpack.c.l.b16 %v8171
    %v8325 = vunpack.c.h.b16 %v8171
    %v8326 = vunpack.c.l.b16 %v8172
    %v8327 = vunpack.c.h.b16 %v8172
    %v8328 = vunpack.c.l.b16 %v8173
    %v8329 = vunpack.c.h.b16 %v8173
    %v8330 = vunpack.c.l.b16 %v8174
    %v8331 = vunpack.c.h.b16 %v8174
    %v8332 = vunpack.c.l.b16 %v8175
    %v8333 = vunpack.c.h.b16 %v8175
    %v8334 = vunpack.c.l.b16 %v8176
    %v8335 = vunpack.c.h.b16 %v8176
    %v8336 = vunpack.c.l.b16 %v8177
    %v8337 = vunpack.c.h.b16 %v8177
    %v8338 = vunpack.c.l.b16 %v8178
    %v8339 = vunpack.c.h.b16 %v8178
    %v8340 = vunpack.c.l.b16 %v8179
    %v8341 = vunpack.c.h.b16 %v8179
    %v8342 = vunpack.c.l.b16 %v8180
    %v8343 = vunpack.c.h.b16 %v8180
    %v8344 = vunpack.c.l.b16 %v8181
    %v8345 = vunpack.c.h.b16 %v8181
    %v8346 = vunpack.c.l.b16 %v8182
    %v8347 = vunpack.c.h.b16 %v8182
    %v8348 = vunpack.c.l.b16 %v8183
    %v8349 = vunpack.c.h.b16 %v8183
    %v8350 = vunpack.c.l.b16 %v8184
    %v8351 = vunpack.c.h.b16 %v8184
    %v8352 = vunpack.c.l.b16 %v8185
    %v8353 = vunpack.c.h.b16 %v8185
    %v8354 = vunpack.c.l.b16 %v8186
    %v8355 = vunpack.c.h.b16 %v8186
    %v8356 = vunpack.c.l.b16 %v8187
    %v8357 = vunpack.c.h.b16 %v8187
    %v8358 = vunpack.c.l.b16 %v8188
    %v8359 = vunpack.c.h.b16 %v8188
    %v8360 = vunpack.c.l.b16 %v8189
    %v8361 = vunpack.c.h.b16 %v8189
    %v8362 = vunpack.c.l.b16 %v8190
    %v8363 = vunpack.c.h.b16 %v8190
    %v8364 = vunpack.c.l.b16 %v8191
    %v8365 = vunpack.c.h.b16 %v8191
    %v8366 = vunpack.c.l.b16 %v8192
    %v8367 = vunpack.c.h.b16 %v8192
    %v8368 = vunpack.c.l.b16 %v8193
    %v8369 = vunpack.c.h.b16 %v8193
    %v8370 = vunpack.c.l.b16 %v8194
    %v8371 = vunpack.c.h.b16 %v8194
    %v8372 = vunpack.c.l.b16 %v8195
    %v8373 = vunpack.c.h.b16 %v8195
    %v8374 = vunpack.c.l.b16 %v8196
    %v8375 = vunpack.c.h.b16 %v8196
    %v8376 = vunpack.c.l.b16 %v8197
    %v8377 = vunpack.c.h.b16 %v8197
    %v8378 = vunpack.c.l.b16 %v8198
    %v8379 = vunpack.c.h.b16 %v8198
    %v8380 = vunpack.c.l.b16 %v8199
    %v8381 = vunpack.c.h.b16 %v8199
    %v8382 = vunpack.c.l.b16 %v8200
    %v8383 = vunpack.c.h.b16 %v8200
    %v8384 = vunpack.c.l.b16 %v8201
    %v8385 = vunpack.c.h.b16 %v8201
    %v8386 = vunpack.c.l.b16 %v8202
    %v8387 = vunpack.c.h.b16 %v8202
    %v8388 = vunpack.c.l.b16 %v8203
    %v8389 = vunpack.c.h.b16 %v8203
    %v8390 = vunpack.c.l.b16 %v8204
    %v8391 = vunpack.c.h.b16 %v8204
    %v8392 = vunpack.c.l.b16 %v8205
    %v8393 = vunpack.c.h.b16 %v8205
    %v8394 = vunpack.c.l.b16 %v8206
    %v8395 = vunpack.c.h.b16 %v8206
    %v8396 = vunpack.c.l.b16 %v8207
    %v8397 = vunpack.c.h.b16 %v8207
    %v8398 = vunpack.c.l.b16 %v8208
    %v8399 = vunpack.c.h.b16 %v8208
    %v8400 = vunpack.c.l.b16 %v8209
    %v8401 = vunpack.c.h.b16 %v8209
    %v8402 = vunpack.c.l.b16 %v8210
    %v8403 = vunpack.c.h.b16 %v8210
    %v8404 = vunpack.c.l.b16 %v8211
    %v8405 = vunpack.c.h.b16 %v8211
    %v8406 = vunpack.c.l.b16 %v8212
    %v8407 = vunpack.c.h.b16 %v8212
    %v8408 = vunpack.c.l.b16 %v8213
    %v8409 = vunpack.c.h.b16 %v8213
    %v8410 = vpack.c.b16 %v8286, %v8282
    %v8411 = vpack.c.b16 %v8287, %v8283
    %v8412 = vpack.c.b16 %v8288, %v8284
    %v8413 = vpack.c.b16 %v8289, %v8285
    %v8414 = vpack.c.b16 %v8294, %v8290
    %v8415 = vpack.c.b16 %v8295, %v8291
    %v8416 = vpack.c.b16 %v8296, %v8292
    %v8417 = vpack.c.b16 %v8297, %v8293
    %v8418 = vpack.c.b16 %v8302, %v8298
    %v8419 = vpack.c.b16 %v8303, %v8299
    %v8420 = vpack.c.b16 %v8304, %v8300
    %v8421 = vpack.c.b16 %v8305, %v8301
    %v8422 = vpack.c.b16 %v8310, %v8306
    %v8423 = vpack.c.b16 %v8311, %v8307
    %v8424 = vpack.c.b16 %v8312, %v8308
    %v8425 = vpack.c.b16 %v8313, %v8309
    %v8426 = vpack.c.b16 %v8318, %v8314
    %v8427 = vpack.c.b16 %v8319, %v8315
    %v8428 = vpack.c.b16 %v8320, %v8316
    %v8429 = vpack.c.b16 %v8321, %v8317
    %v8430 = vpack.c.b16 %v8326, %v8322
    %v8431 = vpack.c.b16 %v8327, %v8323
    %v8432 = vpack.c.b16 %v8328, %v8324
    %v8433 = vpack.c.b16 %v8329, %v8325
    %v8434 = vpack.c.b16 %v8334, %v8330
    %v8435 = vpack.c.b16 %v8335, %v8331
    %v8436 = vpack.c.b16 %v8336, %v8332
    %v8437 = vpack.c.b16 %v8337, %v8333
    %v8438 = vpack.c.b16 %v8342, %v8338
    %v8439 = vpack.c.b16 %v8343, %v8339
    %v8440 = vpack.c.b16 %v8344, %v8340
    %v8441 = vpack.c.b16 %v8345, %v8341
    %v8442 = vpack.c.b16 %v8350, %v8346
    %v8443 = vpack.c.b16 %v8351, %v8347
    %v8444 = vpack.c.b16 %v8352, %v8348
    %v8445 = vpack.c.b16 %v8353, %v8349
    %v8446 = vpack.c.b16 %v8358, %v8354
    %v8447 = vpack.c.b16 %v8359, %v8355
    %v8448 = vpack.c.b16 %v8360, %v8356
    %v8449 = vpack.c.b16 %v8361, %v8357
    %v8450 = vpack.c.b16 %v8366, %v8362
    %v8451 = vpack.c.b16 %v8367, %v8363
    %v8452 = vpack.c.b16 %v8368, %v8364
    %v8453 = vpack.c.b16 %v8369, %v8365
    %v8454 = vpack.c.b16 %v8374, %v8370
    %v8455 = vpack.c.b16 %v8375, %v8371
    %v8456 = vpack.c.b16 %v8376, %v8372
    %v8457 = vpack.c.b16 %v8377, %v8373
    %v8458 = vpack.c.b16 %v8382, %v8378
    %v8459 = vpack.c.b16 %v8383, %v8379
    %v8460 = vpack.c.b16 %v8384, %v8380
    %v8461 = vpack.c.b16 %v8385, %v8381
    %v8462 = vpack.c.b16 %v8390, %v8386
    %v8463 = vpack.c.b16 %v8391, %v8387
    %v8464 = vpack.c.b16 %v8392, %v8388
    %v8465 = vpack.c.b16 %v8393, %v8389
    %v8466 = vpack.c.b16 %v8398, %v8394
    %v8467 = vpack.c.b16 %v8399, %v8395
    %v8468 = vpack.c.b16 %v8400, %v8396
    %v8469 = vpack.c.b16 %v8401, %v8397
    %v8470 = vpack.c.b16 %v8406, %v8402
    %v8471 = vpack.c.b16 %v8407, %v8403
    %v8472 = vpack.c.b16 %v8408, %v8404
    %v8473 = vpack.c.b16 %v8409, %v8405
    %8538 = vmatprep.subr.bf16.mxu0 %v8439
    %8539 = vmatpush1.bf16.msra.mxu0 %v8438
    %8540 = vmatprep.subr.bf16.mxu0 %v8435
    %8541 = vmatpush1.bf16.msra.mxu0 %v8434
    %8542 = vmatprep.subr.bf16.mxu0 %v8431
    %8543 = vmatpush1.bf16.msra.mxu0 %v8430
    %8544 = vmatprep.subr.bf16.mxu0 %v8427
    %8545 = vmatpush1.bf16.msra.mxu0 %v8426
    %8546 = vmatprep.subr.bf16.mxu0 %v8423
    %8547 = vmatpush1.bf16.msra.mxu0 %v8422
    %8548 = vmatprep.subr.bf16.mxu0 %v8419
    %8549 = vmatpush1.bf16.msra.mxu0 %v8418
    %8550 = vmatprep.subr.bf16.mxu0 %v8415
    %8551 = vmatpush1.bf16.msra.mxu0 %v8414
    %8552 = vmatprep.subr.bf16.mxu0 %v8411
    %8553 = vmatpush1.bf16.msra.mxu0 %v8410
    %8554 = vmatprep.subr.bf16.mxu0 %v8471
    %8555 = vmatpush2.bf16.msra.mxu0 %v8470
    %8556 = vmatprep.subr.bf16.mxu0 %v8467
    %8557 = vmatpush2.bf16.msra.mxu0 %v8466
    %8558 = vmatprep.subr.bf16.mxu0 %v8463
    %8559 = vmatpush2.bf16.msra.mxu0 %v8462
    %8560 = vmatprep.subr.bf16.mxu0 %v8459
    %8561 = vmatpush2.bf16.msra.mxu0 %v8458
    %8562 = vmatprep.subr.bf16.mxu0 %v8455
    %8563 = vmatpush2.bf16.msra.mxu0 %v8454
    %8564 = vmatprep.subr.bf16.mxu0 %v8451
    %8565 = vmatpush2.bf16.msra.mxu0 %v8450
    %8566 = vmatprep.subr.bf16.mxu0 %v8447
    %8567 = vmatpush2.bf16.msra.mxu0 %v8446
    %8568 = vmatprep.subr.bf16.mxu0 %v8443
    %8569 = vmatpush2.bf16.msra.mxu0 %v8442
    %8570 = vmatprep.mubr.bf16.mxu0 %v8215
    %8571 = vmatmul.mubr.bf16.gmra.mxu0 %v8214
    %v8572 = vpop.f32.mrf.mxu0
    %v8573 = vadd.f32 0.0, %v8572
    %v8574 = vpop.f32.mrf.mxu0
    %v8575 = vadd.f32 0.0, %v8574
    %v8576 = vpop.f32.mrf.mxu0
    %v8577 = vpop.f32.mrf.mxu0
    %8578 = vdwg.mxu0
    %8579 = vmatprep.subr.bf16.mxu0 %v8441
    %8580 = vmatpush1.bf16.msra.mxu0 %v8440
    %8581 = vmatprep.subr.bf16.mxu0 %v8437
    %8582 = vmatpush1.bf16.msra.mxu0 %v8436
    %8583 = vmatprep.subr.bf16.mxu0 %v8433
    %8584 = vmatpush1.bf16.msra.mxu0 %v8432
    %8585 = vmatprep.subr.bf16.mxu0 %v8429
    %8586 = vmatpush1.bf16.msra.mxu0 %v8428
    %8587 = vmatprep.subr.bf16.mxu0 %v8425
    %8588 = vmatpush1.bf16.msra.mxu0 %v8424
    %8589 = vmatprep.subr.bf16.mxu0 %v8421
    %8590 = vmatpush1.bf16.msra.mxu0 %v8420
    %8591 = vmatprep.subr.bf16.mxu0 %v8417
    %8592 = vmatpush1.bf16.msra.mxu0 %v8416
    %8593 = vmatprep.subr.bf16.mxu0 %v8413
    %8594 = vmatpush1.bf16.msra.mxu0 %v8412
    %8595 = vmatprep.subr.bf16.mxu0 %v8473
    %8596 = vmatpush2.bf16.msra.mxu0 %v8472
    %8597 = vmatprep.subr.bf16.mxu0 %v8469
    %8598 = vmatpush2.bf16.msra.mxu0 %v8468
    %8599 = vmatprep.subr.bf16.mxu0 %v8465
    %8600 = vmatpush2.bf16.msra.mxu0 %v8464
    %8601 = vmatprep.subr.bf16.mxu0 %v8461
    %8602 = vmatpush2.bf16.msra.mxu0 %v8460
    %8603 = vmatprep.subr.bf16.mxu0 %v8457
    %8604 = vmatpush2.bf16.msra.mxu0 %v8456
    %8605 = vmatprep.subr.bf16.mxu0 %v8453
    %8606 = vmatpush2.bf16.msra.mxu0 %v8452
    %8607 = vmatprep.subr.bf16.mxu0 %v8449
    %8608 = vmatpush2.bf16.msra.mxu0 %v8448
    %8609 = vmatprep.subr.bf16.mxu0 %v8445
    %8610 = vmatpush2.bf16.msra.mxu0 %v8444
    %8611 = vmatprep.mubr.bf16.mxu0 %v8215
    %8612 = vmatmul.mubr.bf16.gmra.mxu0 %v8214
    %v8613 = vpop.f32.mrf.mxu0
    %v8614 = vadd.f32 0.0, %v8613
    %v8615 = vpop.f32.mrf.mxu0
    %v8616 = vadd.f32 0.0, %v8615
    %v8617 = vpop.f32.mrf.mxu0
    %v8618 = vpop.f32.mrf.mxu0
    %8619 = vdwg.mxu0
    %v8620 = vadd.f32 %v8145, %v8573
    %v8621 = vadd.f32 %v8146, %v8575
    %v8622 = vadd.f32 %v8147, %v8614
    %v8623 = vadd.f32 %v8148, %v8616
    %v8624 = vld [vmem:[#allocation10] sm:$0xf]
    %v8626 = vlaneseq
    %v8627 = vshrl.u32 %v8626, 7
    %v8628 = vsub.s32 0, %v8627
    %v8629 = vrot.slane %v8624, %v8628
    %v8630 = vlaneseq
    %v8631 = vshrl.u32 %v8630, 7
    %v8632 = vsub.s32 1, %v8631
    %v8633 = vrot.slane %v8624, %v8632
    %v8634 = vlaneseq
    %v8635 = vshrl.u32 %v8634, 7
    %v8636 = vsub.s32 2, %v8635
    %v8637 = vrot.slane %v8624, %v8636
    %v8638 = vlaneseq
    %v8639 = vshrl.u32 %v8638, 7
    %v8640 = vsub.s32 3, %v8639
    %v8641 = vrot.slane %v8624, %v8640
    %v8646 = vadd.f32 %v8620, %v8629
    %v8647 = vadd.f32 %v8621, %v8633
    %v8648 = vadd.f32 %v8622, %v8637
    %v8649 = vadd.f32 %v8623, %v8641
    %v8650 = vmax.f32 %v8646, 0.0
    %v8651 = vmax.f32 %v8647, 0.0
    %v8652 = vmax.f32 %v8648, 0.0
    %v8653 = vmax.f32 %v8649, 0.0
    %v8654 = vpack.c.bf16 %v8650, %v8650
    %v8655 = vpack.c.bf16 %v8651, %v8651
    %v8656 = vpack.c.bf16 %v8652, %v8652
    %v8657 = vpack.c.bf16 %v8653, %v8653
    %v8658 = vld [vmem:[%s7] sm:$0xf]
    %v8659 = vld [vmem:[%s7 + $0x4] sm:$0xf]
    %v8660 = vld [vmem:[%s7 + $0x8] sm:$0xf]
    %v8661 = vld [vmem:[%s7 + $0xc] sm:$0xf]
    %v8662 = vld [vmem:[%s7 + $0x10] sm:$0xf]
    %v8663 = vld [vmem:[%s7 + $0x14] sm:$0xf]
    %v8664 = vld [vmem:[%s7 + $0x18] sm:$0xf]
    %v8665 = vld [vmem:[%s7 + $0x1c] sm:$0xf]
    %v8666 = vld [vmem:[%s7 + $0x20] sm:$0xf]
    %v8667 = vld [vmem:[%s7 + $0x24] sm:$0xf]
    %v8668 = vld [vmem:[%s7 + $0x28] sm:$0xf]
    %v8669 = vld [vmem:[%s7 + $0x2c] sm:$0xf]
    %v8670 = vld [vmem:[%s7 + $0x30] sm:$0xf]
    %v8671 = vld [vmem:[%s7 + $0x34] sm:$0xf]
    %v8672 = vld [vmem:[%s7 + $0x38] sm:$0xf]
    %v8673 = vld [vmem:[%s7 + $0x3c] sm:$0xf]
    %v8674 = vld [vmem:[%s7 + $0x40] sm:$0xf]
    %v8675 = vld [vmem:[%s7 + $0x44] sm:$0xf]
    %v8676 = vld [vmem:[%s7 + $0x48] sm:$0xf]
    %v8677 = vld [vmem:[%s7 + $0x4c] sm:$0xf]
    %v8678 = vld [vmem:[%s7 + $0x50] sm:$0xf]
    %v8679 = vld [vmem:[%s7 + $0x54] sm:$0xf]
    %v8680 = vld [vmem:[%s7 + $0x58] sm:$0xf]
    %v8681 = vld [vmem:[%s7 + $0x5c] sm:$0xf]
    %v8682 = vld [vmem:[%s7 + $0x60] sm:$0xf]
    %v8683 = vld [vmem:[%s7 + $0x64] sm:$0xf]
    %v8684 = vld [vmem:[%s7 + $0x68] sm:$0xf]
    %v8685 = vld [vmem:[%s7 + $0x6c] sm:$0xf]
    %v8686 = vld [vmem:[%s7 + $0x70] sm:$0xf]
    %v8687 = vld [vmem:[%s7 + $0x74] sm:$0xf]
    %v8688 = vld [vmem:[%s7 + $0x78] sm:$0xf]
    %v8689 = vld [vmem:[%s7 + $0x7c] sm:$0xf]
    %v8690 = vld [vmem:[%s7 + $0x80] sm:$0xf]
    %v8691 = vld [vmem:[%s7 + $0x84] sm:$0xf]
    %v8692 = vld [vmem:[%s7 + $0x88] sm:$0xf]
    %v8693 = vld [vmem:[%s7 + $0x8c] sm:$0xf]
    %v8694 = vld [vmem:[%s7 + $0x90] sm:$0xf]
    %v8695 = vld [vmem:[%s7 + $0x94] sm:$0xf]
    %v8696 = vld [vmem:[%s7 + $0x98] sm:$0xf]
    %v8697 = vld [vmem:[%s7 + $0x9c] sm:$0xf]
    %v8698 = vld [vmem:[%s7 + $0xa0] sm:$0xf]
    %v8699 = vld [vmem:[%s7 + $0xa4] sm:$0xf]
    %v8700 = vld [vmem:[%s7 + $0xa8] sm:$0xf]
    %v8701 = vld [vmem:[%s7 + $0xac] sm:$0xf]
    %v8702 = vld [vmem:[%s7 + $0xb0] sm:$0xf]
    %v8703 = vld [vmem:[%s7 + $0xb4] sm:$0xf]
    %v8704 = vld [vmem:[%s7 + $0xb8] sm:$0xf]
    %v8705 = vld [vmem:[%s7 + $0xbc] sm:$0xf]
    %v8706 = vld [vmem:[%s7 + $0xc0] sm:$0xf]
    %v8707 = vld [vmem:[%s7 + $0xc4] sm:$0xf]
    %v8708 = vld [vmem:[%s7 + $0xc8] sm:$0xf]
    %v8709 = vld [vmem:[%s7 + $0xcc] sm:$0xf]
    %v8710 = vld [vmem:[%s7 + $0xd0] sm:$0xf]
    %v8711 = vld [vmem:[%s7 + $0xd4] sm:$0xf]
    %v8712 = vld [vmem:[%s7 + $0xd8] sm:$0xf]
    %v8713 = vld [vmem:[%s7 + $0xdc] sm:$0xf]
    %v8714 = vld [vmem:[%s7 + $0xe0] sm:$0xf]
    %v8715 = vld [vmem:[%s7 + $0xe4] sm:$0xf]
    %v8716 = vld [vmem:[%s7 + $0xe8] sm:$0xf]
    %v8717 = vld [vmem:[%s7 + $0xec] sm:$0xf]
    %v8718 = vld [vmem:[%s7 + $0xf0] sm:$0xf]
    %v8719 = vld [vmem:[%s7 + $0xf4] sm:$0xf]
    %v8720 = vld [vmem:[%s7 + $0xf8] sm:$0xf]
    %v8721 = vld [vmem:[%s7 + $0xfc] sm:$0xf]
    %v8722 = vld [vmem:[#allocation12] sm:$0x1]
    %v8724 = vlaneseq
    %v8725 = vshrl.u32 %v8724, 7
    %v8726 = vsub.s32 0, %v8725
    %v8727 = vrot.slane %v8722, %v8726
    %v8793 = vunpack.c.l.b16 %v8658
    %v8794 = vunpack.c.l.b16 %v8659
    %v8795 = vunpack.c.l.b16 %v8660
    %v8796 = vunpack.c.l.b16 %v8661
    %v8797 = vunpack.c.l.b16 %v8662
    %v8798 = vunpack.c.l.b16 %v8663
    %v8799 = vunpack.c.l.b16 %v8664
    %v8800 = vunpack.c.l.b16 %v8665
    %v8801 = vunpack.c.l.b16 %v8666
    %v8802 = vunpack.c.l.b16 %v8667
    %v8803 = vunpack.c.l.b16 %v8668
    %v8804 = vunpack.c.l.b16 %v8669
    %v8805 = vunpack.c.l.b16 %v8670
    %v8806 = vunpack.c.l.b16 %v8671
    %v8807 = vunpack.c.l.b16 %v8672
    %v8808 = vunpack.c.l.b16 %v8673
    %v8809 = vunpack.c.l.b16 %v8674
    %v8810 = vunpack.c.l.b16 %v8675
    %v8811 = vunpack.c.l.b16 %v8676
    %v8812 = vunpack.c.l.b16 %v8677
    %v8813 = vunpack.c.l.b16 %v8678
    %v8814 = vunpack.c.l.b16 %v8679
    %v8815 = vunpack.c.l.b16 %v8680
    %v8816 = vunpack.c.l.b16 %v8681
    %v8817 = vunpack.c.l.b16 %v8682
    %v8818 = vunpack.c.l.b16 %v8683
    %v8819 = vunpack.c.l.b16 %v8684
    %v8820 = vunpack.c.l.b16 %v8685
    %v8821 = vunpack.c.l.b16 %v8686
    %v8822 = vunpack.c.l.b16 %v8687
    %v8823 = vunpack.c.l.b16 %v8688
    %v8824 = vunpack.c.l.b16 %v8689
    %v8825 = vunpack.c.l.b16 %v8690
    %v8826 = vunpack.c.l.b16 %v8691
    %v8827 = vunpack.c.l.b16 %v8692
    %v8828 = vunpack.c.l.b16 %v8693
    %v8829 = vunpack.c.l.b16 %v8694
    %v8830 = vunpack.c.l.b16 %v8695
    %v8831 = vunpack.c.l.b16 %v8696
    %v8832 = vunpack.c.l.b16 %v8697
    %v8833 = vunpack.c.l.b16 %v8698
    %v8834 = vunpack.c.l.b16 %v8699
    %v8835 = vunpack.c.l.b16 %v8700
    %v8836 = vunpack.c.l.b16 %v8701
    %v8837 = vunpack.c.l.b16 %v8702
    %v8838 = vunpack.c.l.b16 %v8703
    %v8839 = vunpack.c.l.b16 %v8704
    %v8840 = vunpack.c.l.b16 %v8705
    %v8841 = vunpack.c.l.b16 %v8706
    %v8842 = vunpack.c.l.b16 %v8707
    %v8843 = vunpack.c.l.b16 %v8708
    %v8844 = vunpack.c.l.b16 %v8709
    %v8845 = vunpack.c.l.b16 %v8710
    %v8846 = vunpack.c.l.b16 %v8711
    %v8847 = vunpack.c.l.b16 %v8712
    %v8848 = vunpack.c.l.b16 %v8713
    %v8849 = vunpack.c.l.b16 %v8714
    %v8850 = vunpack.c.l.b16 %v8715
    %v8851 = vunpack.c.l.b16 %v8716
    %v8852 = vunpack.c.l.b16 %v8717
    %v8853 = vunpack.c.l.b16 %v8718
    %v8854 = vunpack.c.l.b16 %v8719
    %v8855 = vunpack.c.l.b16 %v8720
    %v8856 = vunpack.c.l.b16 %v8721
    %v8857 = vpack.c.b16 %v8794, %v8793
    %v8858 = vpack.c.b16 %v8796, %v8795
    %v8859 = vpack.c.b16 %v8798, %v8797
    %v8860 = vpack.c.b16 %v8800, %v8799
    %v8861 = vpack.c.b16 %v8802, %v8801
    %v8862 = vpack.c.b16 %v8804, %v8803
    %v8863 = vpack.c.b16 %v8806, %v8805
    %v8864 = vpack.c.b16 %v8808, %v8807
    %v8865 = vpack.c.b16 %v8810, %v8809
    %v8866 = vpack.c.b16 %v8812, %v8811
    %v8867 = vpack.c.b16 %v8814, %v8813
    %v8868 = vpack.c.b16 %v8816, %v8815
    %v8869 = vpack.c.b16 %v8818, %v8817
    %v8870 = vpack.c.b16 %v8820, %v8819
    %v8871 = vpack.c.b16 %v8822, %v8821
    %v8872 = vpack.c.b16 %v8824, %v8823
    %v8873 = vpack.c.b16 %v8826, %v8825
    %v8874 = vpack.c.b16 %v8828, %v8827
    %v8875 = vpack.c.b16 %v8830, %v8829
    %v8876 = vpack.c.b16 %v8832, %v8831
    %v8877 = vpack.c.b16 %v8834, %v8833
    %v8878 = vpack.c.b16 %v8836, %v8835
    %v8879 = vpack.c.b16 %v8838, %v8837
    %v8880 = vpack.c.b16 %v8840, %v8839
    %v8881 = vpack.c.b16 %v8842, %v8841
    %v8882 = vpack.c.b16 %v8844, %v8843
    %v8883 = vpack.c.b16 %v8846, %v8845
    %v8884 = vpack.c.b16 %v8848, %v8847
    %v8885 = vpack.c.b16 %v8850, %v8849
    %v8886 = vpack.c.b16 %v8852, %v8851
    %v8887 = vpack.c.b16 %v8854, %v8853
    %v8888 = vpack.c.b16 %v8856, %v8855
    %8921 = vmatprep.subr.bf16.mxu0 0
    %8922 = vmatpush1.bf16.msra.mxu0 %v8864
    %8923 = vmatprep.subr.bf16.mxu0 0
    %8924 = vmatpush1.bf16.msra.mxu0 %v8863
    %8925 = vmatprep.subr.bf16.mxu0 0
    %8926 = vmatpush1.bf16.msra.mxu0 %v8862
    %8927 = vmatprep.subr.bf16.mxu0 0
    %8928 = vmatpush1.bf16.msra.mxu0 %v8861
    %8929 = vmatprep.subr.bf16.mxu0 0
    %8930 = vmatpush1.bf16.msra.mxu0 %v8860
    %8931 = vmatprep.subr.bf16.mxu0 0
    %8932 = vmatpush1.bf16.msra.mxu0 %v8859
    %8933 = vmatprep.subr.bf16.mxu0 0
    %8934 = vmatpush1.bf16.msra.mxu0 %v8858
    %8935 = vmatprep.subr.bf16.mxu0 0
    %8936 = vmatpush1.bf16.msra.mxu0 %v8857
    %8937 = vmatprep.subr.bf16.mxu0 0
    %8938 = vmatpush2.bf16.msra.mxu0 %v8872
    %8939 = vmatprep.subr.bf16.mxu0 0
    %8940 = vmatpush2.bf16.msra.mxu0 %v8871
    %8941 = vmatprep.subr.bf16.mxu0 0
    %8942 = vmatpush2.bf16.msra.mxu0 %v8870
    %8943 = vmatprep.subr.bf16.mxu0 0
    %8944 = vmatpush2.bf16.msra.mxu0 %v8869
    %8945 = vmatprep.subr.bf16.mxu0 0
    %8946 = vmatpush2.bf16.msra.mxu0 %v8868
    %8947 = vmatprep.subr.bf16.mxu0 0
    %8948 = vmatpush2.bf16.msra.mxu0 %v8867
    %8949 = vmatprep.subr.bf16.mxu0 0
    %8950 = vmatpush2.bf16.msra.mxu0 %v8866
    %8951 = vmatprep.subr.bf16.mxu0 0
    %8952 = vmatpush2.bf16.msra.mxu0 %v8865
    %8953 = vmatprep.mubr.bf16.mxu0 %v8655
    %8954 = vmatmul.mubr.bf16.gmra.mxu0 %v8654
    %v8955 = vpop.f32.mrf.mxu0
    %v8956 = vadd.f32 %v8727, %v8955
    %v8957 = vpop.f32.mrf.mxu0
    %v8958 = vpop.f32.mrf.mxu0
    %v8959 = vpop.f32.mrf.mxu0
    %8960 = vdwg.mxu0
    %8961 = vmatprep.subr.bf16.mxu0 0
    %8962 = vmatpush1.bf16.msra.mxu0 %v8880
    %8963 = vmatprep.subr.bf16.mxu0 0
    %8964 = vmatpush1.bf16.msra.mxu0 %v8879
    %8965 = vmatprep.subr.bf16.mxu0 0
    %8966 = vmatpush1.bf16.msra.mxu0 %v8878
    %8967 = vmatprep.subr.bf16.mxu0 0
    %8968 = vmatpush1.bf16.msra.mxu0 %v8877
    %8969 = vmatprep.subr.bf16.mxu0 0
    %8970 = vmatpush1.bf16.msra.mxu0 %v8876
    %8971 = vmatprep.subr.bf16.mxu0 0
    %8972 = vmatpush1.bf16.msra.mxu0 %v8875
    %8973 = vmatprep.subr.bf16.mxu0 0
    %8974 = vmatpush1.bf16.msra.mxu0 %v8874
    %8975 = vmatprep.subr.bf16.mxu0 0
    %8976 = vmatpush1.bf16.msra.mxu0 %v8873
    %8977 = vmatprep.subr.bf16.mxu0 0
    %8978 = vmatpush2.bf16.msra.mxu0 %v8888
    %8979 = vmatprep.subr.bf16.mxu0 0
    %8980 = vmatpush2.bf16.msra.mxu0 %v8887
    %8981 = vmatprep.subr.bf16.mxu0 0
    %8982 = vmatpush2.bf16.msra.mxu0 %v8886
    %8983 = vmatprep.subr.bf16.mxu0 0
    %8984 = vmatpush2.bf16.msra.mxu0 %v8885
    %8985 = vmatprep.subr.bf16.mxu0 0
    %8986 = vmatpush2.bf16.msra.mxu0 %v8884
    %8987 = vmatprep.subr.bf16.mxu0 0
    %8988 = vmatpush2.bf16.msra.mxu0 %v8883
    %8989 = vmatprep.subr.bf16.mxu0 0
    %8990 = vmatpush2.bf16.msra.mxu0 %v8882
    %8991 = vmatprep.subr.bf16.mxu0 0
    %8992 = vmatpush2.bf16.msra.mxu0 %v8881
    %8993 = vmatprep.mubr.bf16.mxu0 %v8657
    %8994 = vmatmul.mubr.bf16.gmra.mxu0 %v8656
    %v8995 = vpop.f32.mrf.mxu0
    %v8996 = vadd.f32 %v8956, %v8995
    %v8997 = vpop.f32.mrf.mxu0
    %v8998 = vpop.f32.mrf.mxu0
    %v8999 = vpop.f32.mrf.mxu0
    %9000 = vdwg.mxu0
    %vm9001 = vcmask 80896
    %v9002 = vsel %vm9001, %v8996, -inf
    %9003 = vmax.xlane.f32.xlu0 %v9002
    %v9004 = vpop.xlane.xlu0 %9003
    %v9005 = vsub.f32 %v8996, %v9004
    %v9006 = vmul.f32 %v9005, 1.442695
    %v9007 = vpow.pop %v9006
    %v9008 = vsel %vm9001, %v9007, 0.0
    %9009 = vadd.xlane.f32.xlu0 %v9008
    %v9010 = vpop.xlane.xlu0 %9009
    %v9011 = vlog2.pop %v9010
    %v9012 = vmul.f32 %v9011, 0.6931472
    %v9013 = vsub.f32 %v9005, %v9012
    %9014 = vst.msk [vmem:[%s9] sm:$0xff] %vm9001, %v9013
    // Predicated region
    $region66: #{net_forward.1} parent=1 // pred_check
      _
    $region67: #{net_forward.1} parent=1 // pred_check_branch
      %9016 = sbr.rel (0) target = $region69
    $region68: #{net_forward.1} parent=1 // pred_region
      _
    $region69: #{net_forward.1} parent=1 // pred_fallthru
      _
    // Predicated region
    $region70: #{net_forward.1} parent=1 // pred_check
      _
    $region71: #{net_forward.1} parent=1 // pred_check_branch
      %9018 = sbr.rel (0) target = $region73
    $region72: #{net_forward.1} parent=1 // pred_region
      _
    $region73: #{net_forward.1} parent=1 // pred_fallthru
      _
    %9019 = vsyncpa [#allocation3], 1
    %9020 = vsyncpa [#allocation5], 1
    %9021 = vsyncpa [#allocation8], 1
    %9022 = vsyncpa [#allocation11], 1

</llo_original>
